<compile_context>
chip_gen: v7x
topology: tpu7x:2x2x1
jax: 0.10.0
libtpu: 0.0.40
codegen_flags: <defaults>
</compile_context>

<pallas_src>
import functools
import math

import jax
import jax.numpy as jnp
from jax.experimental import pallas as pl
from jax.experimental.pallas import tpu as pltpu

PI = math.pi
SOFTPLUS_SHIFT = math.log(2.0)
LANE = 128


def _shifted_softplus(x):
    # numerically-stable softplus (f32 elementwise; keep off bf16 for v5e) - log(2)
    return jnp.maximum(x, 0.0) + jnp.log1p(jnp.exp(-jnp.abs(x))) - SOFTPLUS_SHIFT


def _round_up(v, m):
    return (v + m - 1) // m * m


def _pad2(a, rows, cols):
    return jnp.pad(a.astype(jnp.float32),
                   ((0, rows - a.shape[0]), (0, cols - a.shape[1])))


def _interaction_kernel(
    x_ref,          # [N_pad, HP] f32   (resident, constant block index)
    elen_ref,       # [TE, 1]     f32   (edge tile)
    eattr_ref,      # [TE, GP]    f32   (edge tile)
    src_oh_ref,     # [TE, N_pad] bf16  one-hot of edge source nodes
    tgt_oh_ref,     # [TE, N_pad] bf16  one-hot of edge target nodes (NOT transposed)
    w_mlp1_ref,     # [GP, FP]
    b_mlp1_ref,     # [1, FP]
    w_mlp2_ref,     # [FP, FP]
    b_mlp2_ref,     # [1, FP]
    w_lin1_ref,     # [HP, FP]   CFConv.lin1 (no bias)
    w_lin2_ref,     # [FP, HP]   CFConv.lin2
    b_lin2_ref,     # [1, HP]
    w_lin_ref,      # [HP, HP]   InteractionBlock.lin
    b_lin_ref,      # [1, HP]
    out_ref,        # [N_pad, HP]
    x1_scratch,     # [N_pad, FP] bf16  lin1(x), computed once
    acc_scratch,    # [N_pad, FP] f32   scatter-add accumulator
    *,
    cutoff: float,
    smooth: bool,
):
    f32 = jnp.float32
    e = pl.program_id(0)

    # --- init: lin1(x) once, zero the aggregation accumulator ---
    @pl.when(e == 0)
    def _init():
        x1 = jnp.dot(x_ref[...], w_lin1_ref[...], preferred_element_type=f32)
        x1_scratch[...] = x1.astype(jnp.bfloat16)
        acc_scratch[...] = jnp.zeros_like(acc_scratch)

    # --- filter network on this edge tile: nn(edge_attr) ---
    h = jnp.dot(eattr_ref[...], w_mlp1_ref[...], preferred_element_type=f32)
    h = _shifted_softplus(h + b_mlp1_ref[...])
    w_filt = jnp.dot(h, w_mlp2_ref[...], preferred_element_type=f32)
    w_filt = w_filt + b_mlp2_ref[...]

    # --- cosine cutoff C (f32 elementwise) ---
    el = elen_ref[...]                                        # [TE, 1]
    if smooth:
        C = 0.5 * (jnp.cos(el * (PI / cutoff)) + 1.0)
        C = jnp.where((el <= cutoff) & (el >= 0.0), C, 0.0)
    else:
        C = (el <= cutoff).astype(f32)
    W = w_filt * C                                            # [TE, FP]

    # --- gather x_j = x1[src] via bf16 one-hot matmul (f32 accumulation) ---
    x_j = jnp.dot(src_oh_ref[...], x1_scratch[...], preferred_element_type=f32)
    msg = (x_j * W).astype(jnp.bfloat16)                      # message in bf16 for MXU

    # --- scatter-add at targets: contract over the edge axis (no host transpose) ---
    acc_scratch[...] += jax.lax.dot_general(
        tgt_oh_ref[...], msg,
        dimension_numbers=(((0,), (0,)), ((), ())),
        preferred_element_type=f32)

    # --- finalize: lin2 -> shifted softplus -> lin ---
    @pl.when(e == pl.num_programs(0) - 1)
    def _fini():
        x2 = jnp.dot(acc_scratch[...], w_lin2_ref[...], preferred_element_type=f32)
        x2 = x2 + b_lin2_ref[...]
        x3 = _shifted_softplus(x2)
        out = jnp.dot(x3, w_lin_ref[...], preferred_element_type=f32)
        out_ref[...] = (out + b_lin_ref[...]).astype(out_ref.dtype)


def interaction_block_forward(x, edge_index, edge_length, edge_attr, params,
                              *, cutoff, smooth, edge_tile=256):
    """x: [N, H] f32, edge_index: [2, E] i32, edge_length: [E, 1] f32,
       edge_attr: [E, G] f32.  Returns [N, H] f32."""
    N, H = x.shape
    E = edge_index.shape[1]
    G = edge_attr.shape[1]
    F = params["w_mlp1"].shape[1]

    HP = _round_up(H, LANE)
    FP = _round_up(F, LANE)
    GP = _round_up(G, LANE)
    N_pad = _round_up(N, LANE)          # lane dim of the one-hots -> lane-dense
    TE = edge_tile                       # edge rows per grid step (multiple of 8)
    E_pad = _round_up(E, TE)

    # ---- pad activations / graph data ----
    x_p = _pad2(x, N_pad, HP)
    eattr_p = _pad2(edge_attr, E_pad, GP)
    # padded edges get length > cutoff (and zero one-hot rows) -> contribute nothing
    elen_p = jnp.pad(edge_length.astype(jnp.float32),
                     ((0, E_pad - E), (0, 0)), constant_values=cutoff + 1.0)

    src = jnp.pad(edge_index[0].astype(jnp.int32), (0, E_pad - E), constant_values=-1)
    tgt = jnp.pad(edge_index[1].astype(jnp.int32), (0, E_pad - E), constant_values=-1)
    # bf16 one-hots (0/1 exact); index -1 -> all-zero row, so padding is inert.
    src_oh = jax.nn.one_hot(src, N_pad, dtype=jnp.bfloat16)   # [E_pad, N_pad]
    tgt_oh = jax.nn.one_hot(tgt, N_pad, dtype=jnp.bfloat16)   # [E_pad, N_pad]
    # TODO(synk): for very large graphs replace the [E,N] one-hot matmuls with
    # scalar-prefetched index-driven gather / scatter-add (O(E*N) HBM today).

    # ---- pad weights (zero padding keeps shifted-softplus of padded lanes at 0) ----
    w_mlp1 = _pad2(params["w_mlp1"], GP, FP); b_mlp1 = _pad2(params["b_mlp1"], 1, FP)
    w_mlp2 = _pad2(params["w_mlp2"], FP, FP); b_mlp2 = _pad2(params["b_mlp2"], 1, FP)
    w_lin1 = _pad2(params["w_lin1"], HP, FP)
    w_lin2 = _pad2(params["w_lin2"], FP, HP); b_lin2 = _pad2(params["b_lin2"], 1, HP)
    w_lin = _pad2(params["w_lin"], HP, HP);  b_lin = _pad2(params["b_lin"], 1, HP)

    grid = (E_pad // TE,)

    def edge_map(e):
        return (e, 0)

    def const_map(e):
        return (0, 0)

    in_specs = [
        pl.BlockSpec((N_pad, HP), const_map),   # x
        pl.BlockSpec((TE, 1), edge_map),        # edge_length
        pl.BlockSpec((TE, GP), edge_map),       # edge_attr
        pl.BlockSpec((TE, N_pad), edge_map),    # src one-hot
        pl.BlockSpec((TE, N_pad), edge_map),    # tgt one-hot
        pl.BlockSpec((GP, FP), const_map),
        pl.BlockSpec((1, FP), const_map),
        pl.BlockSpec((FP, FP), const_map),
        pl.BlockSpec((1, FP), const_map),
        pl.BlockSpec((HP, FP), const_map),
        pl.BlockSpec((FP, HP), const_map),
        pl.BlockSpec((1, HP), const_map),
        pl.BlockSpec((HP, HP), const_map),
        pl.BlockSpec((1, HP), const_map),
    ]
    out_spec = pl.BlockSpec((N_pad, HP), const_map)

    weight_bytes = 4 * sum(int(w.size) for w in
                           (w_mlp1, b_mlp1, w_mlp2, b_mlp2, w_lin1, w_lin2,
                            b_lin2, w_lin, b_lin))
    cost = pl.CostEstimate(
        flops=int(2 * (E_pad * GP * FP + E_pad * FP * FP + N_pad * HP * FP
                       + 2 * E_pad * N_pad * FP + N_pad * FP * HP + N_pad * HP * HP)),
        transcendentals=int(2 * E_pad * FP + E_pad + N_pad * HP),
        bytes_accessed=int(4 * (x_p.size + eattr_p.size + elen_p.size)
                           + 2 * (src_oh.size + tgt_oh.size)
                           + weight_bytes + 4 * N_pad * HP),
    )

    kernel = functools.partial(_interaction_kernel,
                               cutoff=float(cutoff), smooth=bool(smooth))

    out_p = pl.pallas_call(
        kernel,
        out_shape=jax.ShapeDtypeStruct((N_pad, HP), jnp.float32),
        grid_spec=pltpu.PrefetchScalarGridSpec(
            num_scalar_prefetch=0,
            grid=grid,
            in_specs=in_specs,
            out_specs=out_spec,
            scratch_shapes=[
                pltpu.VMEM((N_pad, FP), jnp.bfloat16),   # lin1(x)
                pltpu.VMEM((N_pad, FP), jnp.float32),    # scatter-add accumulator
            ],
        ),
        compiler_params=pltpu.CompilerParams(
            dimension_semantics=("arbitrary",)),         # edge axis = reduction
        cost_estimate=cost,
    )(x_p, elen_p, eattr_p, src_oh, tgt_oh,
      w_mlp1, b_mlp1, w_mlp2, b_mlp2, w_lin1, w_lin2, b_lin2, w_lin, b_lin)

    return out_p[:N, :H]


def make_params(key, hidden_channels, num_gaussians, num_filters):
    """Deterministic synthetic parameters (shapes follow the PyTorch module)."""
    ks = jax.random.split(key, 8)

    def xavier(k, fan_in, fan_out):
        a = math.sqrt(6.0 / (fan_in + fan_out))
        return jax.random.uniform(k, (fan_in, fan_out), jnp.float32, -a, a)

    H, G, F = hidden_channels, num_gaussians, num_filters
    return {
        "w_mlp1": xavier(ks[0], G, F),
        "b_mlp1": jax.random.uniform(ks[1], (1, F), jnp.float32, -0.1, 0.1),
        "w_mlp2": xavier(ks[2], F, F),
        "b_mlp2": jax.random.uniform(ks[3], (1, F), jnp.float32, -0.1, 0.1),
        "w_lin1": xavier(ks[4], H, F),
        "w_lin2": xavier(ks[5], F, H),
        "b_lin2": jnp.zeros((1, H), jnp.float32),
        "w_lin": xavier(ks[6], H, H),
        "b_lin": jax.random.uniform(ks[7], (1, H), jnp.float32, -0.1, 0.1),
    }


def reference_forward(x, edge_index, edge_length, edge_attr, params, *, cutoff, smooth):
    """Pure-JAX f32 reference of the PyTorch InteractionBlock forward."""
    src, tgt = edge_index[0], edge_index[1]
    h = edge_attr @ params["w_mlp1"] + params["b_mlp1"]
    h = jax.nn.softplus(h) - SOFTPLUS_SHIFT
    w_filt = h @ params["w_mlp2"] + params["b_mlp2"]
    if smooth:
        C = 0.5 * (jnp.cos(edge_length * PI / cutoff) + 1.0)
        C = C * (edge_length <= cutoff) * (edge_length >= 0.0)
    else:
        C = (edge_length <= cutoff).astype(jnp.float32)
    W = w_filt * C
    x1 = x @ params["w_lin1"]
    msg = x1[src] * W
    agg = jnp.zeros_like(x1).at[tgt].add(msg)
    x2 = agg @ params["w_lin2"] + params["b_lin2"]
    x3 = jax.nn.softplus(x2) - SOFTPLUS_SHIFT
    return x3 @ params["w_lin"] + params["b_lin"]


if __name__ == "__main__":
    hidden_channels = 32
    num_gaussians = 16
    num_filters = 32
    cutoff = 10.0
    smooth = True

    N = 8    # nodes
    E = 16   # edges

    key = jax.random.PRNGKey(0)
    k_x, k_len, k_attr, k_src, k_tgt, k_par = jax.random.split(key, 6)

    x = jax.random.normal(k_x, (N, hidden_channels), jnp.float32)
    edge_length = jax.random.uniform(k_len, (E, 1), jnp.float32, 0.0, 12.0)
    edge_attr = jax.random.normal(k_attr, (E, num_gaussians), jnp.float32)
    edge_index = jnp.stack([
        jax.random.randint(k_src, (E,), 0, N),
        jax.random.randint(k_tgt, (E,), 0, N),
    ]).astype(jnp.int32)

    params = make_params(k_par, hidden_channels, num_gaussians, num_filters)

    out = interaction_block_forward(
        x, edge_index, edge_length, edge_attr, params,
        cutoff=cutoff, smooth=smooth,
    )
    jax.block_until_ready(out)

    ref = reference_forward(
        x, edge_index, edge_length, edge_attr, params,
        cutoff=cutoff, smooth=smooth,
    )

    assert out.shape == (N, hidden_channels)
    assert bool(jnp.all(jnp.isfinite(out)))
    # bf16 gather/scatter operands -> allow a loose tolerance vs the f32 reference
    max_err = float(jnp.max(jnp.abs(out - ref)))
    assert max_err < 0.5, f"max abs error {max_err}"
    print("KERNEL_OK")
</pallas_src>

<mosaic_0001>
module attributes {stable_mosaic.version = 11 : i64} {
  func.func @_interaction_kernel(%arg0: i32, %arg1: memref<128x128xf32, #tpu.memory_space<vmem>>, %arg2: memref<256x1xf32, #tpu.memory_space<vmem>>, %arg3: memref<256x128xf32, #tpu.memory_space<vmem>>, %arg4: memref<256x128xbf16, #tpu.memory_space<vmem>>, %arg5: memref<256x128xbf16, #tpu.memory_space<vmem>>, %arg6: memref<128x128xf32, #tpu.memory_space<vmem>>, %arg7: memref<1x128xf32, #tpu.memory_space<vmem>>, %arg8: memref<128x128xf32, #tpu.memory_space<vmem>>, %arg9: memref<1x128xf32, #tpu.memory_space<vmem>>, %arg10: memref<128x128xf32, #tpu.memory_space<vmem>>, %arg11: memref<128x128xf32, #tpu.memory_space<vmem>>, %arg12: memref<1x128xf32, #tpu.memory_space<vmem>>, %arg13: memref<128x128xf32, #tpu.memory_space<vmem>>, %arg14: memref<1x128xf32, #tpu.memory_space<vmem>>, %arg15: memref<128x128xf32, #tpu.memory_space<vmem>>, %arg16: memref<128x128xbf16, #tpu.memory_space<vmem>>, %arg17: memref<128x128xf32, #tpu.memory_space<vmem>>) attributes {dimension_semantics = [#tpu.dimension_semantics<arbitrary>], iteration_bounds = array<i64: 1>, scalar_prefetch = 0 : i64, scratch_operands = 2 : i64, tpu.core_type = #tpu.core_type<tc>, window_params = [{pipeline_mode = #tpu.pipeline_mode<synchronous>, transform_indices = @transform_0, window_bounds = array<i64: 128, 128>}, {transform_indices = @transform_1, window_bounds = array<i64: 256, 1>}, {transform_indices = @transform_2, window_bounds = array<i64: 256, 128>}, {transform_indices = @transform_3, window_bounds = array<i64: 256, 128>}, {transform_indices = @transform_4, window_bounds = array<i64: 256, 128>}, {pipeline_mode = #tpu.pipeline_mode<synchronous>, transform_indices = @transform_5, window_bounds = array<i64: 128, 128>}, {pipeline_mode = #tpu.pipeline_mode<synchronous>, transform_indices = @transform_6, window_bounds = array<i64: 1, 128>}, {pipeline_mode = #tpu.pipeline_mode<synchronous>, transform_indices = @transform_7, window_bounds = array<i64: 128, 128>}, {pipeline_mode = #tpu.pipeline_mode<synchronous>, transform_indices = @transform_8, window_bounds = array<i64: 1, 128>}, {pipeline_mode = #tpu.pipeline_mode<synchronous>, transform_indices = @transform_9, window_bounds = array<i64: 128, 128>}, {pipeline_mode = #tpu.pipeline_mode<synchronous>, transform_indices = @transform_10, window_bounds = array<i64: 128, 128>}, {pipeline_mode = #tpu.pipeline_mode<synchronous>, transform_indices = @transform_11, window_bounds = array<i64: 1, 128>}, {pipeline_mode = #tpu.pipeline_mode<synchronous>, transform_indices = @transform_12, window_bounds = array<i64: 128, 128>}, {pipeline_mode = #tpu.pipeline_mode<synchronous>, transform_indices = @transform_13, window_bounds = array<i64: 1, 128>}, {pipeline_mode = #tpu.pipeline_mode<synchronous>, transform_indices = @transform_14, window_bounds = array<i64: 128, 128>}]} {
    %c0_i32 = arith.constant 0 : i32
    %0 = arith.cmpi eq, %arg0, %c0_i32 : i32
    %1 = arith.extui %0 : i1 to i32
    %c0_i32_0 = arith.constant 0 : i32
    %2 = arith.cmpi ne, %1, %c0_i32_0 : i32
    scf.if %2 {
      %c0_36 = arith.constant 0 : index
      %c0_37 = arith.constant 0 : index
      %54 = vector.load %arg1[%c0_36, %c0_37] : memref<128x128xf32, #tpu.memory_space<vmem>>, vector<128x128xf32>
      %c0_38 = arith.constant 0 : index
      %c0_39 = arith.constant 0 : index
      %55 = vector.load %arg10[%c0_38, %c0_39] : memref<128x128xf32, #tpu.memory_space<vmem>>, vector<128x128xf32>
      %cst_40 = arith.constant dense<0.000000e+00> : vector<128x128xf32>
      %56 = tpu.matmul %54, %55, %cst_40 {dimension_numbers = #tpu.dot_dimension_numbers<[1], [0], [0], [1], [0, 0, 1, 1], [], []>} : vector<128x128xf32>, vector<128x128xf32>, vector<128x128xf32> -> vector<128x128xf32>
      %57 = arith.truncf %56 : vector<128x128xf32> to vector<128x128xbf16>
      %c0_41 = arith.constant 0 : index
      %c0_42 = arith.constant 0 : index
      %58 = vector.load %arg16[%c0_41, %c0_42] : memref<128x128xbf16, #tpu.memory_space<vmem>>, vector<128x128xbf16>
      tpu.vector_store %arg16[%c0_41, %c0_42], %57 {strides = array<i32>} : memref<128x128xbf16, #tpu.memory_space<vmem>>, vector<128x128xbf16>,
      %cst_43 = arith.constant 0.000000e+00 : f32
      %59 = vector.broadcast %cst_43 : f32 to vector<128x128xf32>
      %c0_44 = arith.constant 0 : index
      %c0_45 = arith.constant 0 : index
      %60 = vector.load %arg17[%c0_44, %c0_45] : memref<128x128xf32, #tpu.memory_space<vmem>>, vector<128x128xf32>
      tpu.vector_store %arg17[%c0_44, %c0_45], %59 {strides = array<i32>} : memref<128x128xf32, #tpu.memory_space<vmem>>, vector<128x128xf32>,
    } else {
    }
    %c0 = arith.constant 0 : index
    %c0_1 = arith.constant 0 : index
    %3 = vector.load %arg3[%c0, %c0_1] : memref<256x128xf32, #tpu.memory_space<vmem>>, vector<256x128xf32>
    %c0_2 = arith.constant 0 : index
    %c0_3 = arith.constant 0 : index
    %4 = vector.load %arg6[%c0_2, %c0_3] : memref<128x128xf32, #tpu.memory_space<vmem>>, vector<128x128xf32>
    %cst = arith.constant dense<0.000000e+00> : vector<256x128xf32>
    %5 = tpu.matmul %3, %4, %cst {dimension_numbers = #tpu.dot_dimension_numbers<[1], [0], [0], [1], [0, 0, 1, 1], [], []>} : vector<256x128xf32>, vector<128x128xf32>, vector<256x128xf32> -> vector<256x128xf32>
    %c0_4 = arith.constant 0 : index
    %c0_5 = arith.constant 0 : index
    %6 = vector.load %arg7[%c0_4, %c0_5] : memref<1x128xf32, #tpu.memory_space<vmem>>, vector<1x128xf32>
    %7 = vector.broadcast %6 : vector<1x128xf32> to vector<256x128xf32>
    %8 = arith.addf %5, %7 : vector<256x128xf32>
    %cst_6 = arith.constant 0.000000e+00 : f32
    %9 = vector.broadcast %cst_6 : f32 to vector<256x128xf32>
    %10 = arith.maximumf %8, %9 : vector<256x128xf32>
    %11 = math.absf %8 : vector<256x128xf32>
    %cst_7 = arith.constant 0.000000e+00 : f32
    %12 = vector.broadcast %cst_7 : f32 to vector<256x128xf32>
    %13 = arith.subf %12, %11 : vector<256x128xf32>
    %14 = math.exp %13 : vector<256x128xf32>
    %15 = math.log1p %14 : vector<256x128xf32>
    %16 = arith.addf %10, %15 : vector<256x128xf32>
    %cst_8 = arith.constant 0.693147182 : f32
    %17 = vector.broadcast %cst_8 : f32 to vector<256x128xf32>
    %18 = arith.subf %16, %17 : vector<256x128xf32>
    %c0_9 = arith.constant 0 : index
    %c0_10 = arith.constant 0 : index
    %19 = vector.load %arg8[%c0_9, %c0_10] : memref<128x128xf32, #tpu.memory_space<vmem>>, vector<128x128xf32>
    %cst_11 = arith.constant dense<0.000000e+00> : vector<256x128xf32>
    %20 = tpu.matmul %18, %19, %cst_11 {dimension_numbers = #tpu.dot_dimension_numbers<[1], [0], [0], [1], [0, 0, 1, 1], [], []>} : vector<256x128xf32>, vector<128x128xf32>, vector<256x128xf32> -> vector<256x128xf32>
    %c0_12 = arith.constant 0 : index
    %c0_13 = arith.constant 0 : index
    %21 = vector.load %arg9[%c0_12, %c0_13] : memref<1x128xf32, #tpu.memory_space<vmem>>, vector<1x128xf32>
    %22 = vector.broadcast %21 : vector<1x128xf32> to vector<256x128xf32>
    %23 = arith.addf %20, %22 : vector<256x128xf32>
    %c0_14 = arith.constant 0 : index
    %c0_15 = arith.constant 0 : index
    %24 = vector.load %arg2[%c0_14, %c0_15] : memref<256x1xf32, #tpu.memory_space<vmem>>, vector<256x1xf32>
    %cst_16 = arith.constant 0.314159274 : f32
    %25 = vector.broadcast %cst_16 : f32 to vector<256x1xf32>
    %26 = arith.mulf %24, %25 : vector<256x1xf32>
    %27 = math.cos %26 : vector<256x1xf32>
    %cst_17 = arith.constant 1.000000e+00 : f32
    %28 = vector.broadcast %cst_17 : f32 to vector<256x1xf32>
    %29 = arith.addf %27, %28 : vector<256x1xf32>
    %cst_18 = arith.constant 5.000000e-01 : f32
    %30 = vector.broadcast %cst_18 : f32 to vector<256x1xf32>
    %31 = arith.mulf %30, %29 : vector<256x1xf32>
    %cst_19 = arith.constant 1.000000e+01 : f32
    %32 = vector.broadcast %cst_19 : f32 to vector<256x1xf32>
    %33 = arith.cmpf ole, %24, %32 : vector<256x1xf32>
    %cst_20 = arith.constant 0.000000e+00 : f32
    %34 = vector.broadcast %cst_20 : f32 to vector<256x1xf32>
    %35 = arith.cmpf oge, %24, %34 : vector<256x1xf32>
    %36 = arith.andi %33, %35 : vector<256x1xi1>
    %cst_21 = arith.constant 0.000000e+00 : f32
    %37 = vector.broadcast %cst_21 : f32 to vector<256x1xf32>
    %38 = arith.select %36, %31, %37 : vector<256x1xi1>, vector<256x1xf32>
    %39 = vector.broadcast %38 : vector<256x1xf32> to vector<256x128xf32>
    %40 = arith.mulf %23, %39 : vector<256x128xf32>
    %c0_22 = arith.constant 0 : index
    %c0_23 = arith.constant 0 : index
    %41 = vector.load %arg4[%c0_22, %c0_23] : memref<256x128xbf16, #tpu.memory_space<vmem>>, vector<256x128xbf16>
    %c0_24 = arith.constant 0 : index
    %c0_25 = arith.constant 0 : index
    %42 = vector.load %arg16[%c0_24, %c0_25] : memref<128x128xbf16, #tpu.memory_space<vmem>>, vector<128x128xbf16>
    %cst_26 = arith.constant dense<0.000000e+00> : vector<256x128xf32>
    %43 = tpu.matmul %41, %42, %cst_26 {dimension_numbers = #tpu.dot_dimension_numbers<[1], [0], [0], [1], [0, 0, 1, 1], [], []>} : vector<256x128xbf16>, vector<128x128xbf16>, vector<256x128xf32> -> vector<256x128xf32>
    %44 = arith.mulf %43, %40 : vector<256x128xf32>
    %45 = arith.truncf %44 : vector<256x128xf32> to vector<256x128xbf16>
    %c0_27 = arith.constant 0 : index
    %c0_28 = arith.constant 0 : index
    %46 = vector.load %arg17[%c0_27, %c0_28] : memref<128x128xf32, #tpu.memory_space<vmem>>, vector<128x128xf32>
    %c0_29 = arith.constant 0 : index
    %c0_30 = arith.constant 0 : index
    %47 = vector.load %arg5[%c0_29, %c0_30] : memref<256x128xbf16, #tpu.memory_space<vmem>>, vector<256x128xbf16>
    %cst_31 = arith.constant dense<0.000000e+00> : vector<128x128xf32>
    %48 = tpu.matmul %47, %45, %cst_31 {dimension_numbers = #tpu.dot_dimension_numbers<[0], [0], [1], [1], [0, 1, 1, 1], [], []>} : vector<256x128xbf16>, vector<256x128xbf16>, vector<128x128xf32> -> vector<128x128xf32>
    %49 = arith.addf %46, %48 : vector<128x128xf32>
    %c0_32 = arith.constant 0 : index
    %c0_33 = arith.constant 0 : index
    %50 = vector.load %arg17[%c0_32, %c0_33] : memref<128x128xf32, #tpu.memory_space<vmem>>, vector<128x128xf32>
    tpu.vector_store %arg17[%c0_32, %c0_33], %49 {strides = array<i32>} : memref<128x128xf32, #tpu.memory_space<vmem>>, vector<128x128xf32>,
    %c0_i32_34 = arith.constant 0 : i32
    %51 = arith.cmpi eq, %arg0, %c0_i32_34 : i32
    %52 = arith.extui %51 : i1 to i32
    %c0_i32_35 = arith.constant 0 : i32
    %53 = arith.cmpi ne, %52, %c0_i32_35 : i32
    scf.if %53 {
      %c0_36 = arith.constant 0 : index
      %c0_37 = arith.constant 0 : index
      %54 = vector.load %arg17[%c0_36, %c0_37] : memref<128x128xf32, #tpu.memory_space<vmem>>, vector<128x128xf32>
      %c0_38 = arith.constant 0 : index
      %c0_39 = arith.constant 0 : index
      %55 = vector.load %arg11[%c0_38, %c0_39] : memref<128x128xf32, #tpu.memory_space<vmem>>, vector<128x128xf32>
      %cst_40 = arith.constant dense<0.000000e+00> : vector<128x128xf32>
      %56 = tpu.matmul %54, %55, %cst_40 {dimension_numbers = #tpu.dot_dimension_numbers<[1], [0], [0], [1], [0, 0, 1, 1], [], []>} : vector<128x128xf32>, vector<128x128xf32>, vector<128x128xf32> -> vector<128x128xf32>
      %c0_41 = arith.constant 0 : index
      %c0_42 = arith.constant 0 : index
      %57 = vector.load %arg12[%c0_41, %c0_42] : memref<1x128xf32, #tpu.memory_space<vmem>>, vector<1x128xf32>
      %58 = vector.broadcast %57 : vector<1x128xf32> to vector<128x128xf32>
      %59 = arith.addf %56, %58 : vector<128x128xf32>
      %cst_43 = arith.constant 0.000000e+00 : f32
      %60 = vector.broadcast %cst_43 : f32 to vector<128x128xf32>
      %61 = arith.maximumf %59, %60 : vector<128x128xf32>
      %62 = math.absf %59 : vector<128x128xf32>
      %cst_44 = arith.constant 0.000000e+00 : f32
      %63 = vector.broadcast %cst_44 : f32 to vector<128x128xf32>
      %64 = arith.subf %63, %62 : vector<128x128xf32>
      %65 = math.exp %64 : vector<128x128xf32>
      %66 = math.log1p %65 : vector<128x128xf32>
      %67 = arith.addf %61, %66 : vector<128x128xf32>
      %cst_45 = arith.constant 0.693147182 : f32
      %68 = vector.broadcast %cst_45 : f32 to vector<128x128xf32>
      %69 = arith.subf %67, %68 : vector<128x128xf32>
      %c0_46 = arith.constant 0 : index
      %c0_47 = arith.constant 0 : index
      %70 = vector.load %arg13[%c0_46, %c0_47] : memref<128x128xf32, #tpu.memory_space<vmem>>, vector<128x128xf32>
      %cst_48 = arith.constant dense<0.000000e+00> : vector<128x128xf32>
      %71 = tpu.matmul %69, %70, %cst_48 {dimension_numbers = #tpu.dot_dimension_numbers<[1], [0], [0], [1], [0, 0, 1, 1], [], []>} : vector<128x128xf32>, vector<128x128xf32>, vector<128x128xf32> -> vector<128x128xf32>
      %c0_49 = arith.constant 0 : index
      %c0_50 = arith.constant 0 : index
      %72 = vector.load %arg14[%c0_49, %c0_50] : memref<1x128xf32, #tpu.memory_space<vmem>>, vector<1x128xf32>
      %73 = vector.broadcast %72 : vector<1x128xf32> to vector<128x128xf32>
      %74 = arith.addf %71, %73 : vector<128x128xf32>
      %c0_51 = arith.constant 0 : index
      %c0_52 = arith.constant 0 : index
      %75 = vector.load %arg15[%c0_51, %c0_52] : memref<128x128xf32, #tpu.memory_space<vmem>>, vector<128x128xf32>
      tpu.vector_store %arg15[%c0_51, %c0_52], %74 {strides = array<i32>} : memref<128x128xf32, #tpu.memory_space<vmem>>, vector<128x128xf32>,
    } else {
    }
    return
  }
  func.func @transform_0(%arg0: i32) -> (i32, i32) {
    %c0_i32 = arith.constant 0 : i32
    %c0_i32_0 = arith.constant 0 : i32
    %c0_i32_1 = arith.constant 0 : i32
    return %c0_i32, %c0_i32_0 : i32, i32
  }
  func.func @transform_1(%arg0: i32) -> (i32, i32) {
    %c0_i32 = arith.constant 0 : i32
    %c0_i32_0 = arith.constant 0 : i32
    return %arg0, %c0_i32 : i32, i32
  }
  func.func @transform_2(%arg0: i32) -> (i32, i32) {
    %c0_i32 = arith.constant 0 : i32
    %c0_i32_0 = arith.constant 0 : i32
    return %arg0, %c0_i32 : i32, i32
  }
  func.func @transform_3(%arg0: i32) -> (i32, i32) {
    %c0_i32 = arith.constant 0 : i32
    %c0_i32_0 = arith.constant 0 : i32
    return %arg0, %c0_i32 : i32, i32
  }
  func.func @transform_4(%arg0: i32) -> (i32, i32) {
    %c0_i32 = arith.constant 0 : i32
    %c0_i32_0 = arith.constant 0 : i32
    return %arg0, %c0_i32 : i32, i32
  }
  func.func @transform_5(%arg0: i32) -> (i32, i32) {
    %c0_i32 = arith.constant 0 : i32
    %c0_i32_0 = arith.constant 0 : i32
    %c0_i32_1 = arith.constant 0 : i32
    return %c0_i32, %c0_i32_0 : i32, i32
  }
  func.func @transform_6(%arg0: i32) -> (i32, i32) {
    %c0_i32 = arith.constant 0 : i32
    %c0_i32_0 = arith.constant 0 : i32
    %c0_i32_1 = arith.constant 0 : i32
    return %c0_i32, %c0_i32_0 : i32, i32
  }
  func.func @transform_7(%arg0: i32) -> (i32, i32) {
    %c0_i32 = arith.constant 0 : i32
    %c0_i32_0 = arith.constant 0 : i32
    %c0_i32_1 = arith.constant 0 : i32
    return %c0_i32, %c0_i32_0 : i32, i32
  }
  func.func @transform_8(%arg0: i32) -> (i32, i32) {
    %c0_i32 = arith.constant 0 : i32
    %c0_i32_0 = arith.constant 0 : i32
    %c0_i32_1 = arith.constant 0 : i32
    return %c0_i32, %c0_i32_0 : i32, i32
  }
  func.func @transform_9(%arg0: i32) -> (i32, i32) {
    %c0_i32 = arith.constant 0 : i32
    %c0_i32_0 = arith.constant 0 : i32
    %c0_i32_1 = arith.constant 0 : i32
    return %c0_i32, %c0_i32_0 : i32, i32
  }
  func.func @transform_10(%arg0: i32) -> (i32, i32) {
    %c0_i32 = arith.constant 0 : i32
    %c0_i32_0 = arith.constant 0 : i32
    %c0_i32_1 = arith.constant 0 : i32
    return %c0_i32, %c0_i32_0 : i32, i32
  }
  func.func @transform_11(%arg0: i32) -> (i32, i32) {
    %c0_i32 = arith.constant 0 : i32
    %c0_i32_0 = arith.constant 0 : i32
    %c0_i32_1 = arith.constant 0 : i32
    return %c0_i32, %c0_i32_0 : i32, i32
  }
  func.func @transform_12(%arg0: i32) -> (i32, i32) {
    %c0_i32 = arith.constant 0 : i32
    %c0_i32_0 = arith.constant 0 : i32
    %c0_i32_1 = arith.constant 0 : i32
    return %c0_i32, %c0_i32_0 : i32, i32
  }
  func.func @transform_13(%arg0: i32) -> (i32, i32) {
    %c0_i32 = arith.constant 0 : i32
    %c0_i32_0 = arith.constant 0 : i32
    %c0_i32_1 = arith.constant 0 : i32
    return %c0_i32, %c0_i32_0 : i32, i32
  }
  func.func @transform_14(%arg0: i32) -> (i32, i32) {
    %c0_i32 = arith.constant 0 : i32
    %c0_i32_0 = arith.constant 0 : i32
    %c0_i32_1 = arith.constant 0 : i32
    return %c0_i32, %c0_i32_0 : i32, i32
  }
}

</mosaic_0001>

<llo_original>
// kernel: tpu_custom_call.1
$region0: #{tpu_custom_call.1}
  #allocation0 [shape = 'u32[]', space=smem, size = 0x4, offset = 0x4, fixed_abs, tag = 'smem constant byte address 0x4 - core index']
  #allocation1 [shape = 'u32[144,128]{1,0:T(1,128)}', space=vmem, size = 0x12000, scoped, tag = 'internal scratch']
  #allocation2 [shape = 'bf16[128,128]{1,0:T(16,128)(2,1)}', space=vmem, size = 0x8000, scoped, tag = 'scratch operand']
  #allocation3 [shape = 'f32[128,128]{1,0:T(8,128)}', space=vmem, size = 0x10000, scoped, tag = 'scratch operand']
  %s0 = inlined_call_operand.hbm [shape: f32[128,128], index: 0, kind: input, shape index: {}]
  %s1 = inlined_call_operand.vmem [shape: f32[256,1], index: 1, kind: input, shape index: {}]
  %s2 = inlined_call_operand.vmem [shape: f32[256,128], index: 2, kind: input, shape index: {}]
  %s3 = inlined_call_operand.hbm [shape: bf16[256,128], index: 3, kind: input, shape index: {}]
  %s4 = inlined_call_operand.hbm [shape: bf16[256,128], index: 4, kind: input, shape index: {}]
  %s5 = inlined_call_operand.hbm [shape: f32[128,128], index: 5, kind: input, shape index: {}]
  %s6 = inlined_call_operand.vmem [shape: f32[1,128], index: 6, kind: input, shape index: {}]
  %s7 = inlined_call_operand.hbm [shape: f32[128,128], index: 7, kind: input, shape index: {}]
  %s8 = inlined_call_operand.vmem [shape: f32[1,128], index: 8, kind: input, shape index: {}]
  %s9 = inlined_call_operand.hbm [shape: f32[128,128], index: 9, kind: input, shape index: {}]
  %s10 = inlined_call_operand.hbm [shape: f32[128,128], index: 10, kind: input, shape index: {}]
  %s11 = inlined_call_operand.vmem [shape: f32[1,128], index: 11, kind: input, shape index: {}]
  %s12 = inlined_call_operand.hbm [shape: f32[128,128], index: 12, kind: input, shape index: {}]
  %s13 = inlined_call_operand.vmem [shape: f32[1,128], index: 13, kind: input, shape index: {}]
  %s14 = inlined_call_operand.hbm [shape: f32[128,128], index: 14, kind: output, shape index: {}]
  %s15 = sld [smem:[#allocation0]]
  $region106: #{tpu_custom_call.1} parent=0
    _
  %s17 = ssub.s32 1, %s15
  %s18 = scalar_select 0, %s17, %s15
  $region1: #{tpu_custom_call.1} parent=0
    #allocation4 [shape = 'u8[65536]{0}', space=vmem, size = 0x10000, scoped, tag = 'input window, operand 0, single buffered']
    #allocation5 [shape = 's32[1]{0}', space=sflag, size = 0x4, scoped, tag = 'scoped memory for tpu_custom_call.1']
    #allocation6 [shape = 's32[1]{0}', space=sflag, size = 0x4, scoped, tag = 'scoped memory for tpu_custom_call.1']
    #allocation7 [shape = 'u8[65536]{0}', space=vmem, size = 0x10000, scoped, tag = 'input window, operand 3, single buffered']
    #allocation8 [shape = 's32[1]{0}', space=sflag, size = 0x4, scoped, tag = 'scoped memory for tpu_custom_call.1']
    #allocation9 [shape = 'u8[65536]{0}', space=vmem, size = 0x10000, scoped, tag = 'input window, operand 4, single buffered']
    #allocation10 [shape = 'u8[65536]{0}', space=vmem, size = 0x10000, scoped, tag = 'input window, operand 5, single buffered']
    #allocation11 [shape = 's32[1]{0}', space=sflag, size = 0x4, scoped, tag = 'scoped memory for tpu_custom_call.1']
    #allocation12 [shape = 'u8[65536]{0}', space=vmem, size = 0x10000, scoped, tag = 'input window, operand 7, single buffered']
    #allocation13 [shape = 'u8[65536]{0}', space=vmem, size = 0x10000, scoped, tag = 'input window, operand 9, single buffered']
    #allocation14 [shape = 's32[1]{0}', space=sflag, size = 0x4, scoped, tag = 'scoped memory for tpu_custom_call.1']
    #allocation15 [shape = 'u8[65536]{0}', space=vmem, size = 0x10000, scoped, tag = 'input window, operand 10, single buffered']
    #allocation16 [shape = 'u8[65536]{0}', space=vmem, size = 0x10000, scoped, tag = 'input window, operand 12, single buffered']
    #allocation17 [shape = 's32[1]{0}', space=sflag, size = 0x4, scoped, tag = 'scoped memory for tpu_custom_call.1']
    #allocation18 [shape = 'u8[65536]{0}', space=vmem, size = 0x10000, scoped, tag = 'output window, operand 0, single buffered']
    %19 = vsyncpa [#allocation5], 0
    %20 = vsyncpa [#allocation8], 0
    %21 = vsyncpa [#allocation11], 0
    %22 = vsyncpa [#allocation14], 0
    %23 = vsyncpa [#allocation17], 0
    %24 = vsyncpa [#allocation6], 0
    // Predicated region
    $region2: #{tpu_custom_call.1} parent=1 // pred_check
      _
    $region3: #{tpu_custom_call.1} parent=1 // pred_check_branch
      %26 = sbr.rel (0) target = $region5
    $region4: #{tpu_custom_call.1} parent=1 // pred_region
      %s28 = ssub.s32 2048, 2048
      %29 = vsyncadd [#allocation5], %s28
      %s30 = sshll.u32 [#allocation4], 4
      %s31 = int_to_ptr.vmem [resolvable:$true] %s30
      %36 = dma.hbm_to_vmem [thread:$0]  %s0, 2048, %s31, [#allocation5], 128, 128, 8
    $region5: #{tpu_custom_call.1} parent=1 // pred_fallthru
      _
    // Predicated region
    $region6: #{tpu_custom_call.1} parent=1 // pred_check
      _
    $region7: #{tpu_custom_call.1} parent=1 // pred_check_branch
      %38 = sbr.rel (0) target = $region9
    $region8: #{tpu_custom_call.1} parent=1 // pred_region
      _
    $region9: #{tpu_custom_call.1} parent=1 // pred_fallthru
      _
    // Predicated region
    $region10: #{tpu_custom_call.1} parent=1 // pred_check
      _
    $region11: #{tpu_custom_call.1} parent=1 // pred_check_branch
      %40 = sbr.rel (0) target = $region13
    $region12: #{tpu_custom_call.1} parent=1 // pred_region
      _
    $region13: #{tpu_custom_call.1} parent=1 // pred_fallthru
      _
    // Predicated region
    $region14: #{tpu_custom_call.1} parent=1 // pred_check
      _
    $region15: #{tpu_custom_call.1} parent=1 // pred_check_branch
      %42 = sbr.rel (0) target = $region17
    $region16: #{tpu_custom_call.1} parent=1 // pred_region
      %s44 = ssub.s32 2048, 2048
      %45 = vsyncadd [#allocation8], %s44
      %s46 = sshll.u32 [#allocation7], 4
      %s47 = int_to_ptr.vmem [resolvable:$true] %s46
      %52 = dma.hbm_to_vmem [thread:$0]  %s3, 2048, %s47, [#allocation8], 64, 64, 4
    $region17: #{tpu_custom_call.1} parent=1 // pred_fallthru
      _
    // Predicated region
    $region18: #{tpu_custom_call.1} parent=1 // pred_check
      _
    $region19: #{tpu_custom_call.1} parent=1 // pred_check_branch
      %54 = sbr.rel (0) target = $region21
    $region20: #{tpu_custom_call.1} parent=1 // pred_region
      %s56 = ssub.s32 2048, 2048
      %57 = vsyncadd [#allocation8], %s56
      %s58 = sshll.u32 [#allocation9], 4
      %s59 = int_to_ptr.vmem [resolvable:$true] %s58
      %64 = dma.hbm_to_vmem [thread:$0]  %s4, 2048, %s59, [#allocation8], 64, 64, 4
    $region21: #{tpu_custom_call.1} parent=1 // pred_fallthru
      _
    // Predicated region
    $region22: #{tpu_custom_call.1} parent=1 // pred_check
      _
    $region23: #{tpu_custom_call.1} parent=1 // pred_check_branch
      %66 = sbr.rel (0) target = $region25
    $region24: #{tpu_custom_call.1} parent=1 // pred_region
      %s68 = ssub.s32 2048, 2048
      %69 = vsyncadd [#allocation11], %s68
      %s70 = sshll.u32 [#allocation10], 4
      %s71 = int_to_ptr.vmem [resolvable:$true] %s70
      %76 = dma.hbm_to_vmem [thread:$0]  %s5, 2048, %s71, [#allocation11], 128, 128, 8
    $region25: #{tpu_custom_call.1} parent=1 // pred_fallthru
      _
    // Predicated region
    $region26: #{tpu_custom_call.1} parent=1 // pred_check
      _
    $region27: #{tpu_custom_call.1} parent=1 // pred_check_branch
      %78 = sbr.rel (0) target = $region29
    $region28: #{tpu_custom_call.1} parent=1 // pred_region
      _
    $region29: #{tpu_custom_call.1} parent=1 // pred_fallthru
      _
    // Predicated region
    $region30: #{tpu_custom_call.1} parent=1 // pred_check
      _
    $region31: #{tpu_custom_call.1} parent=1 // pred_check_branch
      %80 = sbr.rel (0) target = $region33
    $region32: #{tpu_custom_call.1} parent=1 // pred_region
      %s82 = ssub.s32 2048, 2048
      %83 = vsyncadd [#allocation11], %s82
      %s84 = sshll.u32 [#allocation12], 4
      %s85 = int_to_ptr.vmem [resolvable:$true] %s84
      %90 = dma.hbm_to_vmem [thread:$0]  %s7, 2048, %s85, [#allocation11], 128, 128, 8
    $region33: #{tpu_custom_call.1} parent=1 // pred_fallthru
      _
    // Predicated region
    $region34: #{tpu_custom_call.1} parent=1 // pred_check
      _
    $region35: #{tpu_custom_call.1} parent=1 // pred_check_branch
      %92 = sbr.rel (0) target = $region37
    $region36: #{tpu_custom_call.1} parent=1 // pred_region
      _
    $region37: #{tpu_custom_call.1} parent=1 // pred_fallthru
      _
    // Predicated region
    $region38: #{tpu_custom_call.1} parent=1 // pred_check
      _
    $region39: #{tpu_custom_call.1} parent=1 // pred_check_branch
      %94 = sbr.rel (0) target = $region41
    $region40: #{tpu_custom_call.1} parent=1 // pred_region
      %s96 = ssub.s32 2048, 2048
      %97 = vsyncadd [#allocation14], %s96
      %s98 = sshll.u32 [#allocation13], 4
      %s99 = int_to_ptr.vmem [resolvable:$true] %s98
      %104 = dma.hbm_to_vmem [thread:$0]  %s9, 2048, %s99, [#allocation14], 128, 128, 8
    $region41: #{tpu_custom_call.1} parent=1 // pred_fallthru
      _
    // Predicated region
    $region42: #{tpu_custom_call.1} parent=1 // pred_check
      _
    $region43: #{tpu_custom_call.1} parent=1 // pred_check_branch
      %106 = sbr.rel (0) target = $region45
    $region44: #{tpu_custom_call.1} parent=1 // pred_region
      %s108 = ssub.s32 2048, 2048
      %109 = vsyncadd [#allocation14], %s108
      %s110 = sshll.u32 [#allocation15], 4
      %s111 = int_to_ptr.vmem [resolvable:$true] %s110
      %116 = dma.hbm_to_vmem [thread:$0]  %s10, 2048, %s111, [#allocation14], 128, 128, 8
    $region45: #{tpu_custom_call.1} parent=1 // pred_fallthru
      _
    // Predicated region
    $region46: #{tpu_custom_call.1} parent=1 // pred_check
      _
    $region47: #{tpu_custom_call.1} parent=1 // pred_check_branch
      %118 = sbr.rel (0) target = $region49
    $region48: #{tpu_custom_call.1} parent=1 // pred_region
      _
    $region49: #{tpu_custom_call.1} parent=1 // pred_fallthru
      _
    // Predicated region
    $region50: #{tpu_custom_call.1} parent=1 // pred_check
      _
    $region51: #{tpu_custom_call.1} parent=1 // pred_check_branch
      %120 = sbr.rel (0) target = $region53
    $region52: #{tpu_custom_call.1} parent=1 // pred_region
      %s122 = ssub.s32 2048, 2048
      %123 = vsyncadd [#allocation17], %s122
      %s124 = sshll.u32 [#allocation16], 4
      %s125 = int_to_ptr.vmem [resolvable:$true] %s124
      %130 = dma.hbm_to_vmem [thread:$0]  %s12, 2048, %s125, [#allocation17], 128, 128, 8
    $region53: #{tpu_custom_call.1} parent=1 // pred_fallthru
      _
    // Predicated region
    $region54: #{tpu_custom_call.1} parent=1 // pred_check
      _
    $region55: #{tpu_custom_call.1} parent=1 // pred_check_branch
      %132 = sbr.rel (0) target = $region57
    $region56: #{tpu_custom_call.1} parent=1 // pred_region
      _
    $region57: #{tpu_custom_call.1} parent=1 // pred_fallthru
      _
    // Predicated region
    $region58: #{tpu_custom_call.1} parent=1 // pred_check
      _
    $region59: #{tpu_custom_call.1} parent=1 // pred_check_branch
      %134 = sbr.rel (0) target = $region61
    $region60: #{tpu_custom_call.1} parent=1 // pred_region
      %135 = dma.done [#allocation5], 2048
    $region61: #{tpu_custom_call.1} parent=1 // pred_fallthru
      _
    // Predicated region
    $region62: #{tpu_custom_call.1} parent=1 // pred_check
      _
    $region63: #{tpu_custom_call.1} parent=1 // pred_check_branch
      %137 = sbr.rel (0) target = $region65
    $region64: #{tpu_custom_call.1} parent=1 // pred_region
      %138 = dma.done [#allocation8], 2048
    $region65: #{tpu_custom_call.1} parent=1 // pred_fallthru
      _
    // Predicated region
    $region66: #{tpu_custom_call.1} parent=1 // pred_check
      _
    $region67: #{tpu_custom_call.1} parent=1 // pred_check_branch
      %140 = sbr.rel (0) target = $region69
    $region68: #{tpu_custom_call.1} parent=1 // pred_region
      %141 = dma.done [#allocation8], 2048
    $region69: #{tpu_custom_call.1} parent=1 // pred_fallthru
      _
    // Predicated region
    $region70: #{tpu_custom_call.1} parent=1 // pred_check
      _
    $region71: #{tpu_custom_call.1} parent=1 // pred_check_branch
      %143 = sbr.rel (0) target = $region73
    $region72: #{tpu_custom_call.1} parent=1 // pred_region
      %144 = dma.done [#allocation11], 2048
    $region73: #{tpu_custom_call.1} parent=1 // pred_fallthru
      _
    // Predicated region
    $region74: #{tpu_custom_call.1} parent=1 // pred_check
      _
    $region75: #{tpu_custom_call.1} parent=1 // pred_check_branch
      %146 = sbr.rel (0) target = $region77
    $region76: #{tpu_custom_call.1} parent=1 // pred_region
      %147 = dma.done [#allocation11], 2048
    $region77: #{tpu_custom_call.1} parent=1 // pred_fallthru
      _
    // Predicated region
    $region78: #{tpu_custom_call.1} parent=1 // pred_check
      _
    $region79: #{tpu_custom_call.1} parent=1 // pred_check_branch
      %149 = sbr.rel (0) target = $region81
    $region80: #{tpu_custom_call.1} parent=1 // pred_region
      %150 = dma.done [#allocation14], 2048
    $region81: #{tpu_custom_call.1} parent=1 // pred_fallthru
      _
    // Predicated region
    $region82: #{tpu_custom_call.1} parent=1 // pred_check
      _
    $region83: #{tpu_custom_call.1} parent=1 // pred_check_branch
      %152 = sbr.rel (0) target = $region85
    $region84: #{tpu_custom_call.1} parent=1 // pred_region
      %153 = dma.done [#allocation14], 2048
    $region85: #{tpu_custom_call.1} parent=1 // pred_fallthru
      _
    // Predicated region
    $region86: #{tpu_custom_call.1} parent=1 // pred_check
      _
    $region87: #{tpu_custom_call.1} parent=1 // pred_check_branch
      %155 = sbr.rel (0) target = $region89
    $region88: #{tpu_custom_call.1} parent=1 // pred_region
      %156 = dma.done [#allocation17], 2048
    $region89: #{tpu_custom_call.1} parent=1 // pred_fallthru
      _
    %p158 = scmp.eq.s32.totalorder 0, 0
    // Predicated region
    $region90: #{tpu_custom_call.1} parent=1 // pred_check
      %p159 = pneg %p158
    $region91: #{tpu_custom_call.1} parent=1 // pred_check_branch
      %161 = sbr.rel (%p159) target = $region93
    $region92: #{tpu_custom_call.1} parent=1 // pred_region
      %v162 = vld [vmem:[#allocation4] sm:$0xff]
      %v163 = vld [vmem:[#allocation4 + $0x8] sm:$0xff]
      %v164 = vld [vmem:[#allocation4 + $0x10] sm:$0xff]
      %v165 = vld [vmem:[#allocation4 + $0x18] sm:$0xff]
      %v166 = vld [vmem:[#allocation4 + $0x20] sm:$0xff]
      %v167 = vld [vmem:[#allocation4 + $0x28] sm:$0xff]
      %v168 = vld [vmem:[#allocation4 + $0x30] sm:$0xff]
      %v169 = vld [vmem:[#allocation4 + $0x38] sm:$0xff]
      %v170 = vld [vmem:[#allocation4 + $0x40] sm:$0xff]
      %v171 = vld [vmem:[#allocation4 + $0x48] sm:$0xff]
      %v172 = vld [vmem:[#allocation4 + $0x50] sm:$0xff]
      %v173 = vld [vmem:[#allocation4 + $0x58] sm:$0xff]
      %v174 = vld [vmem:[#allocation4 + $0x60] sm:$0xff]
      %v175 = vld [vmem:[#allocation4 + $0x68] sm:$0xff]
      %v176 = vld [vmem:[#allocation4 + $0x70] sm:$0xff]
      %v177 = vld [vmem:[#allocation4 + $0x78] sm:$0xff]
      %v178 = vld [vmem:[#allocation13] sm:$0xff]
      %v179 = vld [vmem:[#allocation13 + $0x8] sm:$0xff]
      %v180 = vld [vmem:[#allocation13 + $0x10] sm:$0xff]
      %v181 = vld [vmem:[#allocation13 + $0x18] sm:$0xff]
      %v182 = vld [vmem:[#allocation13 + $0x20] sm:$0xff]
      %v183 = vld [vmem:[#allocation13 + $0x28] sm:$0xff]
      %v184 = vld [vmem:[#allocation13 + $0x30] sm:$0xff]
      %v185 = vld [vmem:[#allocation13 + $0x38] sm:$0xff]
      %v186 = vld [vmem:[#allocation13 + $0x40] sm:$0xff]
      %v187 = vld [vmem:[#allocation13 + $0x48] sm:$0xff]
      %v188 = vld [vmem:[#allocation13 + $0x50] sm:$0xff]
      %v189 = vld [vmem:[#allocation13 + $0x58] sm:$0xff]
      %v190 = vld [vmem:[#allocation13 + $0x60] sm:$0xff]
      %v191 = vld [vmem:[#allocation13 + $0x68] sm:$0xff]
      %v192 = vld [vmem:[#allocation13 + $0x70] sm:$0xff]
      %v193 = vld [vmem:[#allocation13 + $0x78] sm:$0xff]
      %194 = vmatprep.subr.mxu0 0.0
      %195 = vmatpush1.msra.mxu0 %v178
      %196 = vmatprep.subr.mxu0 0.0
      %197 = vmatpush1.msra.mxu0 %v179
      %198 = vmatprep.subr.mxu0 0.0
      %199 = vmatpush1.msra.mxu0 %v180
      %200 = vmatprep.subr.mxu0 0.0
      %201 = vmatpush1.msra.mxu0 %v181
      %202 = vmatprep.subr.mxu0 0.0
      %203 = vmatpush1.msra.mxu0 %v182
      %204 = vmatprep.subr.mxu0 0.0
      %205 = vmatpush1.msra.mxu0 %v183
      %206 = vmatprep.subr.mxu0 0.0
      %207 = vmatpush1.msra.mxu0 %v184
      %208 = vmatprep.subr.mxu0 0.0
      %209 = vmatpush1.msra.mxu0 %v185
      %210 = vmatprep.subr.mxu0 0.0
      %211 = vmatpush1.msra.mxu0 %v186
      %212 = vmatprep.subr.mxu0 0.0
      %213 = vmatpush1.msra.mxu0 %v187
      %214 = vmatprep.subr.mxu0 0.0
      %215 = vmatpush1.msra.mxu0 %v188
      %216 = vmatprep.subr.mxu0 0.0
      %217 = vmatpush1.msra.mxu0 %v189
      %218 = vmatprep.subr.mxu0 0.0
      %219 = vmatpush1.msra.mxu0 %v190
      %220 = vmatprep.subr.mxu0 0.0
      %221 = vmatpush1.msra.mxu0 %v191
      %222 = vmatprep.subr.mxu0 0.0
      %223 = vmatpush1.msra.mxu0 %v192
      %224 = vmatprep.subr.mxu0 0.0
      %225 = vmatpush1.msra.mxu0 %v193
      %226 = vmatprep.subr.mxu0 0.0
      %227 = vmatpush1.msra.mxu0 0.0
      %228 = vmatprep.subr.mxu0 0.0
      %229 = vmatpush1.msra.mxu0 0.0
      %230 = vmatprep.subr.mxu0 0.0
      %231 = vmatpush1.msra.mxu0 0.0
      %232 = vmatprep.subr.mxu0 0.0
      %233 = vmatpush1.msra.mxu0 0.0
      %234 = vmatprep.subr.mxu0 0.0
      %235 = vmatpush1.msra.mxu0 0.0
      %236 = vmatprep.subr.mxu0 0.0
      %237 = vmatpush1.msra.mxu0 0.0
      %238 = vmatprep.subr.mxu0 0.0
      %239 = vmatpush1.msra.mxu0 0.0
      %240 = vmatprep.subr.mxu0 0.0
      %241 = vmatpush1.msra.mxu0 0.0
      %242 = vmatprep.subr.mxu0 0.0
      %243 = vmatpush1.msra.mxu0 0.0
      %244 = vmatprep.subr.mxu0 0.0
      %245 = vmatpush1.msra.mxu0 0.0
      %246 = vmatprep.subr.mxu0 0.0
      %247 = vmatpush1.msra.mxu0 0.0
      %248 = vmatprep.subr.mxu0 0.0
      %249 = vmatpush1.msra.mxu0 0.0
      %250 = vmatprep.subr.mxu0 0.0
      %251 = vmatpush1.msra.mxu0 0.0
      %252 = vmatprep.subr.mxu0 0.0
      %253 = vmatpush1.msra.mxu0 0.0
      %254 = vmatprep.subr.mxu0 0.0
      %255 = vmatpush1.msra.mxu0 0.0
      %256 = vmatprep.subr.mxu0 0.0
      %257 = vmatpush1.msra.mxu0 0.0
      %258 = vmatprep.mubr.f32.mxu0 0.0
      %259 = vmatmul.mubr.f32.gmra.mrb[0].mxu0 %v162
      %v260 = vpop.f32.mrb[0].mxu0
      %v261 = vadd.f32 0.0, %v260
      %v262 = vpop.f32.mrb[0].mxu0
      %263 = vmatprep.mubr.f32.mxu0 0.0
      %264 = vmatmul.mubr.f32.gmra.mrb[0].mxu0 %v163
      %v265 = vpop.f32.mrb[0].mxu0
      %v266 = vadd.f32 0.0, %v265
      %v267 = vpop.f32.mrb[0].mxu0
      %268 = vmatprep.mubr.f32.mxu0 0.0
      %269 = vmatmul.mubr.f32.gmra.mrb[0].mxu0 %v164
      %v270 = vpop.f32.mrb[0].mxu0
      %v271 = vadd.f32 0.0, %v270
      %v272 = vpop.f32.mrb[0].mxu0
      %273 = vmatprep.mubr.f32.mxu0 0.0
      %274 = vmatmul.mubr.f32.gmra.mrb[0].mxu0 %v165
      %v275 = vpop.f32.mrb[0].mxu0
      %v276 = vadd.f32 0.0, %v275
      %v277 = vpop.f32.mrb[0].mxu0
      %278 = vmatprep.mubr.f32.mxu0 0.0
      %279 = vmatmul.mubr.f32.gmra.mrb[0].mxu0 %v166
      %v280 = vpop.f32.mrb[0].mxu0
      %v281 = vadd.f32 0.0, %v280
      %v282 = vpop.f32.mrb[0].mxu0
      %283 = vmatprep.mubr.f32.mxu0 0.0
      %284 = vmatmul.mubr.f32.gmra.mrb[0].mxu0 %v167
      %v285 = vpop.f32.mrb[0].mxu0
      %v286 = vadd.f32 0.0, %v285
      %v287 = vpop.f32.mrb[0].mxu0
      %288 = vmatprep.mubr.f32.mxu0 0.0
      %289 = vmatmul.mubr.f32.gmra.mrb[0].mxu0 %v168
      %v290 = vpop.f32.mrb[0].mxu0
      %v291 = vadd.f32 0.0, %v290
      %v292 = vpop.f32.mrb[0].mxu0
      %293 = vmatprep.mubr.f32.mxu0 0.0
      %294 = vmatmul.mubr.f32.gmra.mrb[0].mxu0 %v169
      %v295 = vpop.f32.mrb[0].mxu0
      %v296 = vadd.f32 0.0, %v295
      %v297 = vpop.f32.mrb[0].mxu0
      %298 = vmatprep.mubr.f32.mxu0 0.0
      %299 = vmatmul.mubr.f32.gmra.mrb[0].mxu0 %v170
      %v300 = vpop.f32.mrb[0].mxu0
      %v301 = vadd.f32 0.0, %v300
      %v302 = vpop.f32.mrb[0].mxu0
      %303 = vmatprep.mubr.f32.mxu0 0.0
      %304 = vmatmul.mubr.f32.gmra.mrb[0].mxu0 %v171
      %v305 = vpop.f32.mrb[0].mxu0
      %v306 = vadd.f32 0.0, %v305
      %v307 = vpop.f32.mrb[0].mxu0
      %308 = vmatprep.mubr.f32.mxu0 0.0
      %309 = vmatmul.mubr.f32.gmra.mrb[0].mxu0 %v172
      %v310 = vpop.f32.mrb[0].mxu0
      %v311 = vadd.f32 0.0, %v310
      %v312 = vpop.f32.mrb[0].mxu0
      %313 = vmatprep.mubr.f32.mxu0 0.0
      %314 = vmatmul.mubr.f32.gmra.mrb[0].mxu0 %v173
      %v315 = vpop.f32.mrb[0].mxu0
      %v316 = vadd.f32 0.0, %v315
      %v317 = vpop.f32.mrb[0].mxu0
      %318 = vmatprep.mubr.f32.mxu0 0.0
      %319 = vmatmul.mubr.f32.gmra.mrb[0].mxu0 %v174
      %v320 = vpop.f32.mrb[0].mxu0
      %v321 = vadd.f32 0.0, %v320
      %v322 = vpop.f32.mrb[0].mxu0
      %323 = vmatprep.mubr.f32.mxu0 0.0
      %324 = vmatmul.mubr.f32.gmra.mrb[0].mxu0 %v175
      %v325 = vpop.f32.mrb[0].mxu0
      %v326 = vadd.f32 0.0, %v325
      %v327 = vpop.f32.mrb[0].mxu0
      %328 = vmatprep.mubr.f32.mxu0 0.0
      %329 = vmatmul.mubr.f32.gmra.mrb[0].mxu0 %v176
      %v330 = vpop.f32.mrb[0].mxu0
      %v331 = vadd.f32 0.0, %v330
      %v332 = vpop.f32.mrb[0].mxu0
      %333 = vmatprep.mubr.f32.mxu0 0.0
      %334 = vmatmul.mubr.f32.gmra.mrb[0].mxu0 %v177
      %v335 = vpop.f32.mrb[0].mxu0
      %v336 = vadd.f32 0.0, %v335
      %v337 = vpop.f32.mrb[0].mxu0
      %338 = vdwg.mxu0
      %v339 = vpack.c.bf16 %v266, %v261
      %v340 = vpack.c.bf16 %v276, %v271
      %v341 = vpack.c.bf16 %v286, %v281
      %v342 = vpack.c.bf16 %v296, %v291
      %v343 = vpack.c.bf16 %v306, %v301
      %v344 = vpack.c.bf16 %v316, %v311
      %v345 = vpack.c.bf16 %v326, %v321
      %v346 = vpack.c.bf16 %v336, %v331
      %347 = vst [vmem:[#allocation2] sm:$0xff] %v339
      %348 = vst [vmem:[#allocation2 + $0x8] sm:$0xff] %v340
      %349 = vst [vmem:[#allocation2 + $0x10] sm:$0xff] %v341
      %350 = vst [vmem:[#allocation2 + $0x18] sm:$0xff] %v342
      %351 = vst [vmem:[#allocation2 + $0x20] sm:$0xff] %v343
      %352 = vst [vmem:[#allocation2 + $0x28] sm:$0xff] %v344
      %353 = vst [vmem:[#allocation2 + $0x30] sm:$0xff] %v345
      %354 = vst [vmem:[#allocation2 + $0x38] sm:$0xff] %v346
      %355 = vst [vmem:[#allocation3] sm:$0xff] 0.0
      %356 = vst [vmem:[#allocation3 + $0x8] sm:$0xff] 0.0
      %357 = vst [vmem:[#allocation3 + $0x10] sm:$0xff] 0.0
      %358 = vst [vmem:[#allocation3 + $0x18] sm:$0xff] 0.0
      %359 = vst [vmem:[#allocation3 + $0x20] sm:$0xff] 0.0
      %360 = vst [vmem:[#allocation3 + $0x28] sm:$0xff] 0.0
      %361 = vst [vmem:[#allocation3 + $0x30] sm:$0xff] 0.0
      %362 = vst [vmem:[#allocation3 + $0x38] sm:$0xff] 0.0
      %363 = vst [vmem:[#allocation3 + $0x40] sm:$0xff] 0.0
      %364 = vst [vmem:[#allocation3 + $0x48] sm:$0xff] 0.0
      %365 = vst [vmem:[#allocation3 + $0x50] sm:$0xff] 0.0
      %366 = vst [vmem:[#allocation3 + $0x58] sm:$0xff] 0.0
      %367 = vst [vmem:[#allocation3 + $0x60] sm:$0xff] 0.0
      %368 = vst [vmem:[#allocation3 + $0x68] sm:$0xff] 0.0
      %369 = vst [vmem:[#allocation3 + $0x70] sm:$0xff] 0.0
      %370 = vst [vmem:[#allocation3 + $0x78] sm:$0xff] 0.0
    $region93: #{tpu_custom_call.1} parent=1 // pred_fallthru
      _
    %v371 = vld [vmem:[%s2] sm:$0xff]
    %v372 = vld [vmem:[%s2 + $0x8] sm:$0xff]
    %v373 = vld [vmem:[%s2 + $0x10] sm:$0xff]
    %v374 = vld [vmem:[%s2 + $0x18] sm:$0xff]
    %v375 = vld [vmem:[%s2 + $0x20] sm:$0xff]
    %v376 = vld [vmem:[%s2 + $0x28] sm:$0xff]
    %v377 = vld [vmem:[%s2 + $0x30] sm:$0xff]
    %v378 = vld [vmem:[%s2 + $0x38] sm:$0xff]
    %v379 = vld [vmem:[%s2 + $0x40] sm:$0xff]
    %v380 = vld [vmem:[%s2 + $0x48] sm:$0xff]
    %v381 = vld [vmem:[%s2 + $0x50] sm:$0xff]
    %v382 = vld [vmem:[%s2 + $0x58] sm:$0xff]
    %v383 = vld [vmem:[%s2 + $0x60] sm:$0xff]
    %v384 = vld [vmem:[%s2 + $0x68] sm:$0xff]
    %v385 = vld [vmem:[%s2 + $0x70] sm:$0xff]
    %v386 = vld [vmem:[%s2 + $0x78] sm:$0xff]
    %v387 = vld [vmem:[%s2 + $0x80] sm:$0xff]
    %v388 = vld [vmem:[%s2 + $0x88] sm:$0xff]
    %v389 = vld [vmem:[%s2 + $0x90] sm:$0xff]
    %v390 = vld [vmem:[%s2 + $0x98] sm:$0xff]
    %v391 = vld [vmem:[%s2 + $0xa0] sm:$0xff]
    %v392 = vld [vmem:[%s2 + $0xa8] sm:$0xff]
    %v393 = vld [vmem:[%s2 + $0xb0] sm:$0xff]
    %v394 = vld [vmem:[%s2 + $0xb8] sm:$0xff]
    %v395 = vld [vmem:[%s2 + $0xc0] sm:$0xff]
    %v396 = vld [vmem:[%s2 + $0xc8] sm:$0xff]
    %v397 = vld [vmem:[%s2 + $0xd0] sm:$0xff]
    %v398 = vld [vmem:[%s2 + $0xd8] sm:$0xff]
    %v399 = vld [vmem:[%s2 + $0xe0] sm:$0xff]
    %v400 = vld [vmem:[%s2 + $0xe8] sm:$0xff]
    %v401 = vld [vmem:[%s2 + $0xf0] sm:$0xff]
    %v402 = vld [vmem:[%s2 + $0xf8] sm:$0xff]
    %v403 = vld [vmem:[#allocation10] sm:$0xff]
    %v404 = vld [vmem:[#allocation10 + $0x8] sm:$0xff]
    %v405 = vld [vmem:[#allocation10 + $0x10] sm:$0xff]
    %v406 = vld [vmem:[#allocation10 + $0x18] sm:$0xff]
    %v407 = vld [vmem:[#allocation10 + $0x20] sm:$0xff]
    %v408 = vld [vmem:[#allocation10 + $0x28] sm:$0xff]
    %v409 = vld [vmem:[#allocation10 + $0x30] sm:$0xff]
    %v410 = vld [vmem:[#allocation10 + $0x38] sm:$0xff]
    %v411 = vld [vmem:[#allocation10 + $0x40] sm:$0xff]
    %v412 = vld [vmem:[#allocation10 + $0x48] sm:$0xff]
    %v413 = vld [vmem:[#allocation10 + $0x50] sm:$0xff]
    %v414 = vld [vmem:[#allocation10 + $0x58] sm:$0xff]
    %v415 = vld [vmem:[#allocation10 + $0x60] sm:$0xff]
    %v416 = vld [vmem:[#allocation10 + $0x68] sm:$0xff]
    %v417 = vld [vmem:[#allocation10 + $0x70] sm:$0xff]
    %v418 = vld [vmem:[#allocation10 + $0x78] sm:$0xff]
    %v419 = vld [vmem:[%s6] sm:$0x1]
    %v421 = vlaneseq
    %v422 = vshrl.u32 %v421, 7
    %v423 = vsub.s32 0, %v422
    %v424 = vrot.slane %v419, %v423
    %426 = vmatprep.subr.mxu0 0.0
    %427 = vmatpush1.msra.mxu0 %v403
    %428 = vmatprep.subr.mxu0 0.0
    %429 = vmatpush1.msra.mxu0 %v404
    %430 = vmatprep.subr.mxu0 0.0
    %431 = vmatpush1.msra.mxu0 %v405
    %432 = vmatprep.subr.mxu0 0.0
    %433 = vmatpush1.msra.mxu0 %v406
    %434 = vmatprep.subr.mxu0 0.0
    %435 = vmatpush1.msra.mxu0 %v407
    %436 = vmatprep.subr.mxu0 0.0
    %437 = vmatpush1.msra.mxu0 %v408
    %438 = vmatprep.subr.mxu0 0.0
    %439 = vmatpush1.msra.mxu0 %v409
    %440 = vmatprep.subr.mxu0 0.0
    %441 = vmatpush1.msra.mxu0 %v410
    %442 = vmatprep.subr.mxu0 0.0
    %443 = vmatpush1.msra.mxu0 %v411
    %444 = vmatprep.subr.mxu0 0.0
    %445 = vmatpush1.msra.mxu0 %v412
    %446 = vmatprep.subr.mxu0 0.0
    %447 = vmatpush1.msra.mxu0 %v413
    %448 = vmatprep.subr.mxu0 0.0
    %449 = vmatpush1.msra.mxu0 %v414
    %450 = vmatprep.subr.mxu0 0.0
    %451 = vmatpush1.msra.mxu0 %v415
    %452 = vmatprep.subr.mxu0 0.0
    %453 = vmatpush1.msra.mxu0 %v416
    %454 = vmatprep.subr.mxu0 0.0
    %455 = vmatpush1.msra.mxu0 %v417
    %456 = vmatprep.subr.mxu0 0.0
    %457 = vmatpush1.msra.mxu0 %v418
    %458 = vmatprep.subr.mxu0 0.0
    %459 = vmatpush1.msra.mxu0 0.0
    %460 = vmatprep.subr.mxu0 0.0
    %461 = vmatpush1.msra.mxu0 0.0
    %462 = vmatprep.subr.mxu0 0.0
    %463 = vmatpush1.msra.mxu0 0.0
    %464 = vmatprep.subr.mxu0 0.0
    %465 = vmatpush1.msra.mxu0 0.0
    %466 = vmatprep.subr.mxu0 0.0
    %467 = vmatpush1.msra.mxu0 0.0
    %468 = vmatprep.subr.mxu0 0.0
    %469 = vmatpush1.msra.mxu0 0.0
    %470 = vmatprep.subr.mxu0 0.0
    %471 = vmatpush1.msra.mxu0 0.0
    %472 = vmatprep.subr.mxu0 0.0
    %473 = vmatpush1.msra.mxu0 0.0
    %474 = vmatprep.subr.mxu0 0.0
    %475 = vmatpush1.msra.mxu0 0.0
    %476 = vmatprep.subr.mxu0 0.0
    %477 = vmatpush1.msra.mxu0 0.0
    %478 = vmatprep.subr.mxu0 0.0
    %479 = vmatpush1.msra.mxu0 0.0
    %480 = vmatprep.subr.mxu0 0.0
    %481 = vmatpush1.msra.mxu0 0.0
    %482 = vmatprep.subr.mxu0 0.0
    %483 = vmatpush1.msra.mxu0 0.0
    %484 = vmatprep.subr.mxu0 0.0
    %485 = vmatpush1.msra.mxu0 0.0
    %486 = vmatprep.subr.mxu0 0.0
    %487 = vmatpush1.msra.mxu0 0.0
    %488 = vmatprep.subr.mxu0 0.0
    %489 = vmatpush1.msra.mxu0 0.0
    %490 = vmatprep.mubr.f32.mxu0 0.0
    %491 = vmatmul.mubr.f32.gmra.mrb[0].mxu0 %v371
    %v492 = vpop.f32.mrb[0].mxu0
    %v493 = vadd.f32 %v424, %v492
    %v494 = vpop.f32.mrb[0].mxu0
    %495 = vmatprep.mubr.f32.mxu0 0.0
    %496 = vmatmul.mubr.f32.gmra.mrb[0].mxu0 %v372
    %v497 = vpop.f32.mrb[0].mxu0
    %v498 = vadd.f32 %v424, %v497
    %v499 = vpop.f32.mrb[0].mxu0
    %500 = vmatprep.mubr.f32.mxu0 0.0
    %501 = vmatmul.mubr.f32.gmra.mrb[0].mxu0 %v373
    %v502 = vpop.f32.mrb[0].mxu0
    %v503 = vadd.f32 %v424, %v502
    %v504 = vpop.f32.mrb[0].mxu0
    %505 = vmatprep.mubr.f32.mxu0 0.0
    %506 = vmatmul.mubr.f32.gmra.mrb[0].mxu0 %v374
    %v507 = vpop.f32.mrb[0].mxu0
    %v508 = vadd.f32 %v424, %v507
    %v509 = vpop.f32.mrb[0].mxu0
    %510 = vmatprep.mubr.f32.mxu0 0.0
    %511 = vmatmul.mubr.f32.gmra.mrb[0].mxu0 %v375
    %v512 = vpop.f32.mrb[0].mxu0
    %v513 = vadd.f32 %v424, %v512
    %v514 = vpop.f32.mrb[0].mxu0
    %515 = vmatprep.mubr.f32.mxu0 0.0
    %516 = vmatmul.mubr.f32.gmra.mrb[0].mxu0 %v376
    %v517 = vpop.f32.mrb[0].mxu0
    %v518 = vadd.f32 %v424, %v517
    %v519 = vpop.f32.mrb[0].mxu0
    %520 = vmatprep.mubr.f32.mxu0 0.0
    %521 = vmatmul.mubr.f32.gmra.mrb[0].mxu0 %v377
    %v522 = vpop.f32.mrb[0].mxu0
    %v523 = vadd.f32 %v424, %v522
    %v524 = vpop.f32.mrb[0].mxu0
    %525 = vmatprep.mubr.f32.mxu0 0.0
    %526 = vmatmul.mubr.f32.gmra.mrb[0].mxu0 %v378
    %v527 = vpop.f32.mrb[0].mxu0
    %v528 = vadd.f32 %v424, %v527
    %v529 = vpop.f32.mrb[0].mxu0
    %530 = vmatprep.mubr.f32.mxu0 0.0
    %531 = vmatmul.mubr.f32.gmra.mrb[0].mxu0 %v379
    %v532 = vpop.f32.mrb[0].mxu0
    %v533 = vadd.f32 %v424, %v532
    %v534 = vpop.f32.mrb[0].mxu0
    %535 = vmatprep.mubr.f32.mxu0 0.0
    %536 = vmatmul.mubr.f32.gmra.mrb[0].mxu0 %v380
    %v537 = vpop.f32.mrb[0].mxu0
    %v538 = vadd.f32 %v424, %v537
    %v539 = vpop.f32.mrb[0].mxu0
    %540 = vmatprep.mubr.f32.mxu0 0.0
    %541 = vmatmul.mubr.f32.gmra.mrb[0].mxu0 %v381
    %v542 = vpop.f32.mrb[0].mxu0
    %v543 = vadd.f32 %v424, %v542
    %v544 = vpop.f32.mrb[0].mxu0
    %545 = vmatprep.mubr.f32.mxu0 0.0
    %546 = vmatmul.mubr.f32.gmra.mrb[0].mxu0 %v382
    %v547 = vpop.f32.mrb[0].mxu0
    %v548 = vadd.f32 %v424, %v547
    %v549 = vpop.f32.mrb[0].mxu0
    %550 = vmatprep.mubr.f32.mxu0 0.0
    %551 = vmatmul.mubr.f32.gmra.mrb[0].mxu0 %v383
    %v552 = vpop.f32.mrb[0].mxu0
    %v553 = vadd.f32 %v424, %v552
    %v554 = vpop.f32.mrb[0].mxu0
    %555 = vmatprep.mubr.f32.mxu0 0.0
    %556 = vmatmul.mubr.f32.gmra.mrb[0].mxu0 %v384
    %v557 = vpop.f32.mrb[0].mxu0
    %v558 = vadd.f32 %v424, %v557
    %v559 = vpop.f32.mrb[0].mxu0
    %560 = vmatprep.mubr.f32.mxu0 0.0
    %561 = vmatmul.mubr.f32.gmra.mrb[0].mxu0 %v385
    %v562 = vpop.f32.mrb[0].mxu0
    %v563 = vadd.f32 %v424, %v562
    %v564 = vpop.f32.mrb[0].mxu0
    %565 = vmatprep.mubr.f32.mxu0 0.0
    %566 = vmatmul.mubr.f32.gmra.mrb[0].mxu0 %v386
    %v567 = vpop.f32.mrb[0].mxu0
    %v568 = vadd.f32 %v424, %v567
    %v569 = vpop.f32.mrb[0].mxu0
    %570 = vmatprep.mubr.f32.mxu0 0.0
    %571 = vmatmul.mubr.f32.gmra.mrb[0].mxu0 %v387
    %v572 = vpop.f32.mrb[0].mxu0
    %v573 = vadd.f32 %v424, %v572
    %v574 = vpop.f32.mrb[0].mxu0
    %575 = vmatprep.mubr.f32.mxu0 0.0
    %576 = vmatmul.mubr.f32.gmra.mrb[0].mxu0 %v388
    %v577 = vpop.f32.mrb[0].mxu0
    %v578 = vadd.f32 %v424, %v577
    %v579 = vpop.f32.mrb[0].mxu0
    %580 = vmatprep.mubr.f32.mxu0 0.0
    %581 = vmatmul.mubr.f32.gmra.mrb[0].mxu0 %v389
    %v582 = vpop.f32.mrb[0].mxu0
    %v583 = vadd.f32 %v424, %v582
    %v584 = vpop.f32.mrb[0].mxu0
    %585 = vmatprep.mubr.f32.mxu0 0.0
    %586 = vmatmul.mubr.f32.gmra.mrb[0].mxu0 %v390
    %v587 = vpop.f32.mrb[0].mxu0
    %v588 = vadd.f32 %v424, %v587
    %v589 = vpop.f32.mrb[0].mxu0
    %590 = vmatprep.mubr.f32.mxu0 0.0
    %591 = vmatmul.mubr.f32.gmra.mrb[0].mxu0 %v391
    %v592 = vpop.f32.mrb[0].mxu0
    %v593 = vadd.f32 %v424, %v592
    %v594 = vpop.f32.mrb[0].mxu0
    %595 = vmatprep.mubr.f32.mxu0 0.0
    %596 = vmatmul.mubr.f32.gmra.mrb[0].mxu0 %v392
    %v597 = vpop.f32.mrb[0].mxu0
    %v598 = vadd.f32 %v424, %v597
    %v599 = vpop.f32.mrb[0].mxu0
    %600 = vmatprep.mubr.f32.mxu0 0.0
    %601 = vmatmul.mubr.f32.gmra.mrb[0].mxu0 %v393
    %v602 = vpop.f32.mrb[0].mxu0
    %v603 = vadd.f32 %v424, %v602
    %v604 = vpop.f32.mrb[0].mxu0
    %605 = vmatprep.mubr.f32.mxu0 0.0
    %606 = vmatmul.mubr.f32.gmra.mrb[0].mxu0 %v394
    %v607 = vpop.f32.mrb[0].mxu0
    %v608 = vadd.f32 %v424, %v607
    %v609 = vpop.f32.mrb[0].mxu0
    %610 = vmatprep.mubr.f32.mxu0 0.0
    %611 = vmatmul.mubr.f32.gmra.mrb[0].mxu0 %v395
    %v612 = vpop.f32.mrb[0].mxu0
    %v613 = vadd.f32 %v424, %v612
    %v614 = vpop.f32.mrb[0].mxu0
    %615 = vmatprep.mubr.f32.mxu0 0.0
    %616 = vmatmul.mubr.f32.gmra.mrb[0].mxu0 %v396
    %v617 = vpop.f32.mrb[0].mxu0
    %v618 = vadd.f32 %v424, %v617
    %v619 = vpop.f32.mrb[0].mxu0
    %620 = vmatprep.mubr.f32.mxu0 0.0
    %621 = vmatmul.mubr.f32.gmra.mrb[0].mxu0 %v397
    %v622 = vpop.f32.mrb[0].mxu0
    %v623 = vadd.f32 %v424, %v622
    %v624 = vpop.f32.mrb[0].mxu0
    %625 = vmatprep.mubr.f32.mxu0 0.0
    %626 = vmatmul.mubr.f32.gmra.mrb[0].mxu0 %v398
    %v627 = vpop.f32.mrb[0].mxu0
    %v628 = vadd.f32 %v424, %v627
    %v629 = vpop.f32.mrb[0].mxu0
    %630 = vmatprep.mubr.f32.mxu0 0.0
    %631 = vmatmul.mubr.f32.gmra.mrb[0].mxu0 %v399
    %v632 = vpop.f32.mrb[0].mxu0
    %v633 = vadd.f32 %v424, %v632
    %v634 = vpop.f32.mrb[0].mxu0
    %635 = vmatprep.mubr.f32.mxu0 0.0
    %636 = vmatmul.mubr.f32.gmra.mrb[0].mxu0 %v400
    %v637 = vpop.f32.mrb[0].mxu0
    %v638 = vadd.f32 %v424, %v637
    %v639 = vpop.f32.mrb[0].mxu0
    %640 = vmatprep.mubr.f32.mxu0 0.0
    %641 = vmatmul.mubr.f32.gmra.mrb[0].mxu0 %v401
    %v642 = vpop.f32.mrb[0].mxu0
    %v643 = vadd.f32 %v424, %v642
    %v644 = vpop.f32.mrb[0].mxu0
    %645 = vmatprep.mubr.f32.mxu0 0.0
    %646 = vmatmul.mubr.f32.gmra.mrb[0].mxu0 %v402
    %v647 = vpop.f32.mrb[0].mxu0
    %v648 = vadd.f32 %v424, %v647
    %v649 = vpop.f32.mrb[0].mxu0
    %650 = vdwg.mxu0
    %v651 = vmax.f32 %v493, 0.0
    %v652 = vmax.f32 %v498, 0.0
    %v653 = vmax.f32 %v503, 0.0
    %v654 = vmax.f32 %v508, 0.0
    %v655 = vmax.f32 %v513, 0.0
    %v656 = vmax.f32 %v518, 0.0
    %v657 = vmax.f32 %v523, 0.0
    %v658 = vmax.f32 %v528, 0.0
    %v659 = vmax.f32 %v533, 0.0
    %v660 = vmax.f32 %v538, 0.0
    %v661 = vmax.f32 %v543, 0.0
    %v662 = vmax.f32 %v548, 0.0
    %v663 = vmax.f32 %v553, 0.0
    %v664 = vmax.f32 %v558, 0.0
    %v665 = vmax.f32 %v563, 0.0
    %v666 = vmax.f32 %v568, 0.0
    %v667 = vmax.f32 %v573, 0.0
    %v668 = vmax.f32 %v578, 0.0
    %v669 = vmax.f32 %v583, 0.0
    %v670 = vmax.f32 %v588, 0.0
    %v671 = vmax.f32 %v593, 0.0
    %v672 = vmax.f32 %v598, 0.0
    %v673 = vmax.f32 %v603, 0.0
    %v674 = vmax.f32 %v608, 0.0
    %v675 = vmax.f32 %v613, 0.0
    %v676 = vmax.f32 %v618, 0.0
    %v677 = vmax.f32 %v623, 0.0
    %v678 = vmax.f32 %v628, 0.0
    %v679 = vmax.f32 %v633, 0.0
    %v680 = vmax.f32 %v638, 0.0
    %v681 = vmax.f32 %v643, 0.0
    %v682 = vmax.f32 %v648, 0.0
    %v683 = vand.u32 2147483647, %v493
    %v684 = vand.u32 2147483647, %v498
    %v685 = vand.u32 2147483647, %v503
    %v686 = vand.u32 2147483647, %v508
    %v687 = vand.u32 2147483647, %v513
    %v688 = vand.u32 2147483647, %v518
    %v689 = vand.u32 2147483647, %v523
    %v690 = vand.u32 2147483647, %v528
    %v691 = vand.u32 2147483647, %v533
    %v692 = vand.u32 2147483647, %v538
    %v693 = vand.u32 2147483647, %v543
    %v694 = vand.u32 2147483647, %v548
    %v695 = vand.u32 2147483647, %v553
    %v696 = vand.u32 2147483647, %v558
    %v697 = vand.u32 2147483647, %v563
    %v698 = vand.u32 2147483647, %v568
    %v699 = vand.u32 2147483647, %v573
    %v700 = vand.u32 2147483647, %v578
    %v701 = vand.u32 2147483647, %v583
    %v702 = vand.u32 2147483647, %v588
    %v703 = vand.u32 2147483647, %v593
    %v704 = vand.u32 2147483647, %v598
    %v705 = vand.u32 2147483647, %v603
    %v706 = vand.u32 2147483647, %v608
    %v707 = vand.u32 2147483647, %v613
    %v708 = vand.u32 2147483647, %v618
    %v709 = vand.u32 2147483647, %v623
    %v710 = vand.u32 2147483647, %v628
    %v711 = vand.u32 2147483647, %v633
    %v712 = vand.u32 2147483647, %v638
    %v713 = vand.u32 2147483647, %v643
    %v714 = vand.u32 2147483647, %v648
    %v715 = vsub.f32 0.0, %v683
    %v716 = vsub.f32 0.0, %v684
    %v717 = vsub.f32 0.0, %v685
    %v718 = vsub.f32 0.0, %v686
    %v719 = vsub.f32 0.0, %v687
    %v720 = vsub.f32 0.0, %v688
    %v721 = vsub.f32 0.0, %v689
    %v722 = vsub.f32 0.0, %v690
    %v723 = vsub.f32 0.0, %v691
    %v724 = vsub.f32 0.0, %v692
    %v725 = vsub.f32 0.0, %v693
    %v726 = vsub.f32 0.0, %v694
    %v727 = vsub.f32 0.0, %v695
    %v728 = vsub.f32 0.0, %v696
    %v729 = vsub.f32 0.0, %v697
    %v730 = vsub.f32 0.0, %v698
    %v731 = vsub.f32 0.0, %v699
    %v732 = vsub.f32 0.0, %v700
    %v733 = vsub.f32 0.0, %v701
    %v734 = vsub.f32 0.0, %v702
    %v735 = vsub.f32 0.0, %v703
    %v736 = vsub.f32 0.0, %v704
    %v737 = vsub.f32 0.0, %v705
    %v738 = vsub.f32 0.0, %v706
    %v739 = vsub.f32 0.0, %v707
    %v740 = vsub.f32 0.0, %v708
    %v741 = vsub.f32 0.0, %v709
    %v742 = vsub.f32 0.0, %v710
    %v743 = vsub.f32 0.0, %v711
    %v744 = vsub.f32 0.0, %v712
    %v745 = vsub.f32 0.0, %v713
    %v746 = vsub.f32 0.0, %v714
    %v747 = vmul.f32 %v715, 1.442695
    %v748 = vpow.pop %v747
    %v749 = vmul.f32 %v716, 1.442695
    %v750 = vpow.pop %v749
    %v751 = vmul.f32 %v717, 1.442695
    %v752 = vpow.pop %v751
    %v753 = vmul.f32 %v718, 1.442695
    %v754 = vpow.pop %v753
    %v755 = vmul.f32 %v719, 1.442695
    %v756 = vpow.pop %v755
    %v757 = vmul.f32 %v720, 1.442695
    %v758 = vpow.pop %v757
    %v759 = vmul.f32 %v721, 1.442695
    %v760 = vpow.pop %v759
    %v761 = vmul.f32 %v722, 1.442695
    %v762 = vpow.pop %v761
    %v763 = vmul.f32 %v723, 1.442695
    %v764 = vpow.pop %v763
    %v765 = vmul.f32 %v724, 1.442695
    %v766 = vpow.pop %v765
    %v767 = vmul.f32 %v725, 1.442695
    %v768 = vpow.pop %v767
    %v769 = vmul.f32 %v726, 1.442695
    %v770 = vpow.pop %v769
    %v771 = vmul.f32 %v727, 1.442695
    %v772 = vpow.pop %v771
    %v773 = vmul.f32 %v728, 1.442695
    %v774 = vpow.pop %v773
    %v775 = vmul.f32 %v729, 1.442695
    %v776 = vpow.pop %v775
    %v777 = vmul.f32 %v730, 1.442695
    %v778 = vpow.pop %v777
    %v779 = vmul.f32 %v731, 1.442695
    %v780 = vpow.pop %v779
    %v781 = vmul.f32 %v732, 1.442695
    %v782 = vpow.pop %v781
    %v783 = vmul.f32 %v733, 1.442695
    %v784 = vpow.pop %v783
    %v785 = vmul.f32 %v734, 1.442695
    %v786 = vpow.pop %v785
    %v787 = vmul.f32 %v735, 1.442695
    %v788 = vpow.pop %v787
    %v789 = vmul.f32 %v736, 1.442695
    %v790 = vpow.pop %v789
    %v791 = vmul.f32 %v737, 1.442695
    %v792 = vpow.pop %v791
    %v793 = vmul.f32 %v738, 1.442695
    %v794 = vpow.pop %v793
    %v795 = vmul.f32 %v739, 1.442695
    %v796 = vpow.pop %v795
    %v797 = vmul.f32 %v740, 1.442695
    %v798 = vpow.pop %v797
    %v799 = vmul.f32 %v741, 1.442695
    %v800 = vpow.pop %v799
    %v801 = vmul.f32 %v742, 1.442695
    %v802 = vpow.pop %v801
    %v803 = vmul.f32 %v743, 1.442695
    %v804 = vpow.pop %v803
    %v805 = vmul.f32 %v744, 1.442695
    %v806 = vpow.pop %v805
    %v807 = vmul.f32 %v745, 1.442695
    %v808 = vpow.pop %v807
    %v809 = vmul.f32 %v746, 1.442695
    %v810 = vpow.pop %v809
    %v811 = vadd.f32 %v748, 1.0
    %v812 = vlog2.pop %v811
    %v813 = vmul.f32 %v812, 0.6931472
    %v814 = vmul.f32 -0.5, %v748
    %v815 = vadd.f32 %v814, 1.0
    %v816 = vmul.f32 %v815, %v748
    %v817 = vand.u32 2147483647, %v748
    %vm818 = vcmp.lt.f32.partialorder %v817, 0.0004427343
    %v819 = vsel %vm818, %v816, %v813
    %v820 = vadd.f32 %v750, 1.0
    %v821 = vlog2.pop %v820
    %v822 = vmul.f32 %v821, 0.6931472
    %v823 = vmul.f32 -0.5, %v750
    %v824 = vadd.f32 %v823, 1.0
    %v825 = vmul.f32 %v824, %v750
    %v826 = vand.u32 2147483647, %v750
    %vm827 = vcmp.lt.f32.partialorder %v826, 0.0004427343
    %v828 = vsel %vm827, %v825, %v822
    %v829 = vadd.f32 %v752, 1.0
    %v830 = vlog2.pop %v829
    %v831 = vmul.f32 %v830, 0.6931472
    %v832 = vmul.f32 -0.5, %v752
    %v833 = vadd.f32 %v832, 1.0
    %v834 = vmul.f32 %v833, %v752
    %v835 = vand.u32 2147483647, %v752
    %vm836 = vcmp.lt.f32.partialorder %v835, 0.0004427343
    %v837 = vsel %vm836, %v834, %v831
    %v838 = vadd.f32 %v754, 1.0
    %v839 = vlog2.pop %v838
    %v840 = vmul.f32 %v839, 0.6931472
    %v841 = vmul.f32 -0.5, %v754
    %v842 = vadd.f32 %v841, 1.0
    %v843 = vmul.f32 %v842, %v754
    %v844 = vand.u32 2147483647, %v754
    %vm845 = vcmp.lt.f32.partialorder %v844, 0.0004427343
    %v846 = vsel %vm845, %v843, %v840
    %v847 = vadd.f32 %v756, 1.0
    %v848 = vlog2.pop %v847
    %v849 = vmul.f32 %v848, 0.6931472
    %v850 = vmul.f32 -0.5, %v756
    %v851 = vadd.f32 %v850, 1.0
    %v852 = vmul.f32 %v851, %v756
    %v853 = vand.u32 2147483647, %v756
    %vm854 = vcmp.lt.f32.partialorder %v853, 0.0004427343
    %v855 = vsel %vm854, %v852, %v849
    %v856 = vadd.f32 %v758, 1.0
    %v857 = vlog2.pop %v856
    %v858 = vmul.f32 %v857, 0.6931472
    %v859 = vmul.f32 -0.5, %v758
    %v860 = vadd.f32 %v859, 1.0
    %v861 = vmul.f32 %v860, %v758
    %v862 = vand.u32 2147483647, %v758
    %vm863 = vcmp.lt.f32.partialorder %v862, 0.0004427343
    %v864 = vsel %vm863, %v861, %v858
    %v865 = vadd.f32 %v760, 1.0
    %v866 = vlog2.pop %v865
    %v867 = vmul.f32 %v866, 0.6931472
    %v868 = vmul.f32 -0.5, %v760
    %v869 = vadd.f32 %v868, 1.0
    %v870 = vmul.f32 %v869, %v760
    %v871 = vand.u32 2147483647, %v760
    %vm872 = vcmp.lt.f32.partialorder %v871, 0.0004427343
    %v873 = vsel %vm872, %v870, %v867
    %v874 = vadd.f32 %v762, 1.0
    %v875 = vlog2.pop %v874
    %v876 = vmul.f32 %v875, 0.6931472
    %v877 = vmul.f32 -0.5, %v762
    %v878 = vadd.f32 %v877, 1.0
    %v879 = vmul.f32 %v878, %v762
    %v880 = vand.u32 2147483647, %v762
    %vm881 = vcmp.lt.f32.partialorder %v880, 0.0004427343
    %v882 = vsel %vm881, %v879, %v876
    %v883 = vadd.f32 %v764, 1.0
    %v884 = vlog2.pop %v883
    %v885 = vmul.f32 %v884, 0.6931472
    %v886 = vmul.f32 -0.5, %v764
    %v887 = vadd.f32 %v886, 1.0
    %v888 = vmul.f32 %v887, %v764
    %v889 = vand.u32 2147483647, %v764
    %vm890 = vcmp.lt.f32.partialorder %v889, 0.0004427343
    %v891 = vsel %vm890, %v888, %v885
    %v892 = vadd.f32 %v766, 1.0
    %v893 = vlog2.pop %v892
    %v894 = vmul.f32 %v893, 0.6931472
    %v895 = vmul.f32 -0.5, %v766
    %v896 = vadd.f32 %v895, 1.0
    %v897 = vmul.f32 %v896, %v766
    %v898 = vand.u32 2147483647, %v766
    %vm899 = vcmp.lt.f32.partialorder %v898, 0.0004427343
    %v900 = vsel %vm899, %v897, %v894
    %v901 = vadd.f32 %v768, 1.0
    %v902 = vlog2.pop %v901
    %v903 = vmul.f32 %v902, 0.6931472
    %v904 = vmul.f32 -0.5, %v768
    %v905 = vadd.f32 %v904, 1.0
    %v906 = vmul.f32 %v905, %v768
    %v907 = vand.u32 2147483647, %v768
    %vm908 = vcmp.lt.f32.partialorder %v907, 0.0004427343
    %v909 = vsel %vm908, %v906, %v903
    %v910 = vadd.f32 %v770, 1.0
    %v911 = vlog2.pop %v910
    %v912 = vmul.f32 %v911, 0.6931472
    %v913 = vmul.f32 -0.5, %v770
    %v914 = vadd.f32 %v913, 1.0
    %v915 = vmul.f32 %v914, %v770
    %v916 = vand.u32 2147483647, %v770
    %vm917 = vcmp.lt.f32.partialorder %v916, 0.0004427343
    %v918 = vsel %vm917, %v915, %v912
    %v919 = vadd.f32 %v772, 1.0
    %v920 = vlog2.pop %v919
    %v921 = vmul.f32 %v920, 0.6931472
    %v922 = vmul.f32 -0.5, %v772
    %v923 = vadd.f32 %v922, 1.0
    %v924 = vmul.f32 %v923, %v772
    %v925 = vand.u32 2147483647, %v772
    %vm926 = vcmp.lt.f32.partialorder %v925, 0.0004427343
    %v927 = vsel %vm926, %v924, %v921
    %v928 = vadd.f32 %v774, 1.0
    %v929 = vlog2.pop %v928
    %v930 = vmul.f32 %v929, 0.6931472
    %v931 = vmul.f32 -0.5, %v774
    %v932 = vadd.f32 %v931, 1.0
    %v933 = vmul.f32 %v932, %v774
    %v934 = vand.u32 2147483647, %v774
    %vm935 = vcmp.lt.f32.partialorder %v934, 0.0004427343
    %v936 = vsel %vm935, %v933, %v930
    %v937 = vadd.f32 %v776, 1.0
    %v938 = vlog2.pop %v937
    %v939 = vmul.f32 %v938, 0.6931472
    %v940 = vmul.f32 -0.5, %v776
    %v941 = vadd.f32 %v940, 1.0
    %v942 = vmul.f32 %v941, %v776
    %v943 = vand.u32 2147483647, %v776
    %vm944 = vcmp.lt.f32.partialorder %v943, 0.0004427343
    %v945 = vsel %vm944, %v942, %v939
    %v946 = vadd.f32 %v778, 1.0
    %v947 = vlog2.pop %v946
    %v948 = vmul.f32 %v947, 0.6931472
    %v949 = vmul.f32 -0.5, %v778
    %v950 = vadd.f32 %v949, 1.0
    %v951 = vmul.f32 %v950, %v778
    %v952 = vand.u32 2147483647, %v778
    %vm953 = vcmp.lt.f32.partialorder %v952, 0.0004427343
    %v954 = vsel %vm953, %v951, %v948
    %v955 = vadd.f32 %v780, 1.0
    %v956 = vlog2.pop %v955
    %v957 = vmul.f32 %v956, 0.6931472
    %v958 = vmul.f32 -0.5, %v780
    %v959 = vadd.f32 %v958, 1.0
    %v960 = vmul.f32 %v959, %v780
    %v961 = vand.u32 2147483647, %v780
    %vm962 = vcmp.lt.f32.partialorder %v961, 0.0004427343
    %v963 = vsel %vm962, %v960, %v957
    %v964 = vadd.f32 %v782, 1.0
    %v965 = vlog2.pop %v964
    %v966 = vmul.f32 %v965, 0.6931472
    %v967 = vmul.f32 -0.5, %v782
    %v968 = vadd.f32 %v967, 1.0
    %v969 = vmul.f32 %v968, %v782
    %v970 = vand.u32 2147483647, %v782
    %vm971 = vcmp.lt.f32.partialorder %v970, 0.0004427343
    %v972 = vsel %vm971, %v969, %v966
    %v973 = vadd.f32 %v784, 1.0
    %v974 = vlog2.pop %v973
    %v975 = vmul.f32 %v974, 0.6931472
    %v976 = vmul.f32 -0.5, %v784
    %v977 = vadd.f32 %v976, 1.0
    %v978 = vmul.f32 %v977, %v784
    %v979 = vand.u32 2147483647, %v784
    %vm980 = vcmp.lt.f32.partialorder %v979, 0.0004427343
    %v981 = vsel %vm980, %v978, %v975
    %v982 = vadd.f32 %v786, 1.0
    %v983 = vlog2.pop %v982
    %v984 = vmul.f32 %v983, 0.6931472
    %v985 = vmul.f32 -0.5, %v786
    %v986 = vadd.f32 %v985, 1.0
    %v987 = vmul.f32 %v986, %v786
    %v988 = vand.u32 2147483647, %v786
    %vm989 = vcmp.lt.f32.partialorder %v988, 0.0004427343
    %v990 = vsel %vm989, %v987, %v984
    %v991 = vadd.f32 %v788, 1.0
    %v992 = vlog2.pop %v991
    %v993 = vmul.f32 %v992, 0.6931472
    %v994 = vmul.f32 -0.5, %v788
    %v995 = vadd.f32 %v994, 1.0
    %v996 = vmul.f32 %v995, %v788
    %v997 = vand.u32 2147483647, %v788
    %vm998 = vcmp.lt.f32.partialorder %v997, 0.0004427343
    %v999 = vsel %vm998, %v996, %v993
    %v1000 = vadd.f32 %v790, 1.0
    %v1001 = vlog2.pop %v1000
    %v1002 = vmul.f32 %v1001, 0.6931472
    %v1003 = vmul.f32 -0.5, %v790
    %v1004 = vadd.f32 %v1003, 1.0
    %v1005 = vmul.f32 %v1004, %v790
    %v1006 = vand.u32 2147483647, %v790
    %vm1007 = vcmp.lt.f32.partialorder %v1006, 0.0004427343
    %v1008 = vsel %vm1007, %v1005, %v1002
    %v1009 = vadd.f32 %v792, 1.0
    %v1010 = vlog2.pop %v1009
    %v1011 = vmul.f32 %v1010, 0.6931472
    %v1012 = vmul.f32 -0.5, %v792
    %v1013 = vadd.f32 %v1012, 1.0
    %v1014 = vmul.f32 %v1013, %v792
    %v1015 = vand.u32 2147483647, %v792
    %vm1016 = vcmp.lt.f32.partialorder %v1015, 0.0004427343
    %v1017 = vsel %vm1016, %v1014, %v1011
    %v1018 = vadd.f32 %v794, 1.0
    %v1019 = vlog2.pop %v1018
    %v1020 = vmul.f32 %v1019, 0.6931472
    %v1021 = vmul.f32 -0.5, %v794
    %v1022 = vadd.f32 %v1021, 1.0
    %v1023 = vmul.f32 %v1022, %v794
    %v1024 = vand.u32 2147483647, %v794
    %vm1025 = vcmp.lt.f32.partialorder %v1024, 0.0004427343
    %v1026 = vsel %vm1025, %v1023, %v1020
    %v1027 = vadd.f32 %v796, 1.0
    %v1028 = vlog2.pop %v1027
    %v1029 = vmul.f32 %v1028, 0.6931472
    %v1030 = vmul.f32 -0.5, %v796
    %v1031 = vadd.f32 %v1030, 1.0
    %v1032 = vmul.f32 %v1031, %v796
    %v1033 = vand.u32 2147483647, %v796
    %vm1034 = vcmp.lt.f32.partialorder %v1033, 0.0004427343
    %v1035 = vsel %vm1034, %v1032, %v1029
    %v1036 = vadd.f32 %v798, 1.0
    %v1037 = vlog2.pop %v1036
    %v1038 = vmul.f32 %v1037, 0.6931472
    %v1039 = vmul.f32 -0.5, %v798
    %v1040 = vadd.f32 %v1039, 1.0
    %v1041 = vmul.f32 %v1040, %v798
    %v1042 = vand.u32 2147483647, %v798
    %vm1043 = vcmp.lt.f32.partialorder %v1042, 0.0004427343
    %v1044 = vsel %vm1043, %v1041, %v1038
    %v1045 = vadd.f32 %v800, 1.0
    %v1046 = vlog2.pop %v1045
    %v1047 = vmul.f32 %v1046, 0.6931472
    %v1048 = vmul.f32 -0.5, %v800
    %v1049 = vadd.f32 %v1048, 1.0
    %v1050 = vmul.f32 %v1049, %v800
    %v1051 = vand.u32 2147483647, %v800
    %vm1052 = vcmp.lt.f32.partialorder %v1051, 0.0004427343
    %v1053 = vsel %vm1052, %v1050, %v1047
    %v1054 = vadd.f32 %v802, 1.0
    %v1055 = vlog2.pop %v1054
    %v1056 = vmul.f32 %v1055, 0.6931472
    %v1057 = vmul.f32 -0.5, %v802
    %v1058 = vadd.f32 %v1057, 1.0
    %v1059 = vmul.f32 %v1058, %v802
    %v1060 = vand.u32 2147483647, %v802
    %vm1061 = vcmp.lt.f32.partialorder %v1060, 0.0004427343
    %v1062 = vsel %vm1061, %v1059, %v1056
    %v1063 = vadd.f32 %v804, 1.0
    %v1064 = vlog2.pop %v1063
    %v1065 = vmul.f32 %v1064, 0.6931472
    %v1066 = vmul.f32 -0.5, %v804
    %v1067 = vadd.f32 %v1066, 1.0
    %v1068 = vmul.f32 %v1067, %v804
    %v1069 = vand.u32 2147483647, %v804
    %vm1070 = vcmp.lt.f32.partialorder %v1069, 0.0004427343
    %v1071 = vsel %vm1070, %v1068, %v1065
    %v1072 = vadd.f32 %v806, 1.0
    %v1073 = vlog2.pop %v1072
    %v1074 = vmul.f32 %v1073, 0.6931472
    %v1075 = vmul.f32 -0.5, %v806
    %v1076 = vadd.f32 %v1075, 1.0
    %v1077 = vmul.f32 %v1076, %v806
    %v1078 = vand.u32 2147483647, %v806
    %vm1079 = vcmp.lt.f32.partialorder %v1078, 0.0004427343
    %v1080 = vsel %vm1079, %v1077, %v1074
    %v1081 = vadd.f32 %v808, 1.0
    %v1082 = vlog2.pop %v1081
    %v1083 = vmul.f32 %v1082, 0.6931472
    %v1084 = vmul.f32 -0.5, %v808
    %v1085 = vadd.f32 %v1084, 1.0
    %v1086 = vmul.f32 %v1085, %v808
    %v1087 = vand.u32 2147483647, %v808
    %vm1088 = vcmp.lt.f32.partialorder %v1087, 0.0004427343
    %v1089 = vsel %vm1088, %v1086, %v1083
    %v1090 = vadd.f32 %v810, 1.0
    %v1091 = vlog2.pop %v1090
    %v1092 = vmul.f32 %v1091, 0.6931472
    %v1093 = vmul.f32 -0.5, %v810
    %v1094 = vadd.f32 %v1093, 1.0
    %v1095 = vmul.f32 %v1094, %v810
    %v1096 = vand.u32 2147483647, %v810
    %vm1097 = vcmp.lt.f32.partialorder %v1096, 0.0004427343
    %v1098 = vsel %vm1097, %v1095, %v1092
    %v1099 = vadd.f32 %v651, %v819
    %v1100 = vadd.f32 %v652, %v828
    %v1101 = vadd.f32 %v653, %v837
    %v1102 = vadd.f32 %v654, %v846
    %v1103 = vadd.f32 %v655, %v855
    %v1104 = vadd.f32 %v656, %v864
    %v1105 = vadd.f32 %v657, %v873
    %v1106 = vadd.f32 %v658, %v882
    %v1107 = vadd.f32 %v659, %v891
    %v1108 = vadd.f32 %v660, %v900
    %v1109 = vadd.f32 %v661, %v909
    %v1110 = vadd.f32 %v662, %v918
    %v1111 = vadd.f32 %v663, %v927
    %v1112 = vadd.f32 %v664, %v936
    %v1113 = vadd.f32 %v665, %v945
    %v1114 = vadd.f32 %v666, %v954
    %v1115 = vadd.f32 %v667, %v963
    %v1116 = vadd.f32 %v668, %v972
    %v1117 = vadd.f32 %v669, %v981
    %v1118 = vadd.f32 %v670, %v990
    %v1119 = vadd.f32 %v671, %v999
    %v1120 = vadd.f32 %v672, %v1008
    %v1121 = vadd.f32 %v673, %v1017
    %v1122 = vadd.f32 %v674, %v1026
    %v1123 = vadd.f32 %v675, %v1035
    %v1124 = vadd.f32 %v676, %v1044
    %v1125 = vadd.f32 %v677, %v1053
    %v1126 = vadd.f32 %v678, %v1062
    %v1127 = vadd.f32 %v679, %v1071
    %v1128 = vadd.f32 %v680, %v1080
    %v1129 = vadd.f32 %v681, %v1089
    %v1130 = vadd.f32 %v682, %v1098
    %v1131 = vsub.f32 %v1099, 0.6931472
    %v1132 = vsub.f32 %v1100, 0.6931472
    %v1133 = vsub.f32 %v1101, 0.6931472
    %v1134 = vsub.f32 %v1102, 0.6931472
    %v1135 = vsub.f32 %v1103, 0.6931472
    %v1136 = vsub.f32 %v1104, 0.6931472
    %v1137 = vsub.f32 %v1105, 0.6931472
    %v1138 = vsub.f32 %v1106, 0.6931472
    %v1139 = vsub.f32 %v1107, 0.6931472
    %v1140 = vsub.f32 %v1108, 0.6931472
    %v1141 = vsub.f32 %v1109, 0.6931472
    %v1142 = vsub.f32 %v1110, 0.6931472
    %v1143 = vsub.f32 %v1111, 0.6931472
    %v1144 = vsub.f32 %v1112, 0.6931472
    %v1145 = vsub.f32 %v1113, 0.6931472
    %v1146 = vsub.f32 %v1114, 0.6931472
    %v1147 = vsub.f32 %v1115, 0.6931472
    %v1148 = vsub.f32 %v1116, 0.6931472
    %v1149 = vsub.f32 %v1117, 0.6931472
    %v1150 = vsub.f32 %v1118, 0.6931472
    %v1151 = vsub.f32 %v1119, 0.6931472
    %v1152 = vsub.f32 %v1120, 0.6931472
    %v1153 = vsub.f32 %v1121, 0.6931472
    %v1154 = vsub.f32 %v1122, 0.6931472
    %v1155 = vsub.f32 %v1123, 0.6931472
    %v1156 = vsub.f32 %v1124, 0.6931472
    %v1157 = vsub.f32 %v1125, 0.6931472
    %v1158 = vsub.f32 %v1126, 0.6931472
    %v1159 = vsub.f32 %v1127, 0.6931472
    %v1160 = vsub.f32 %v1128, 0.6931472
    %v1161 = vsub.f32 %v1129, 0.6931472
    %v1162 = vsub.f32 %v1130, 0.6931472
    %v1163 = vld [vmem:[#allocation12] sm:$0xff]
    %v1164 = vld [vmem:[#allocation12 + $0x8] sm:$0xff]
    %v1165 = vld [vmem:[#allocation12 + $0x10] sm:$0xff]
    %v1166 = vld [vmem:[#allocation12 + $0x18] sm:$0xff]
    %v1167 = vld [vmem:[#allocation12 + $0x20] sm:$0xff]
    %v1168 = vld [vmem:[#allocation12 + $0x28] sm:$0xff]
    %v1169 = vld [vmem:[#allocation12 + $0x30] sm:$0xff]
    %v1170 = vld [vmem:[#allocation12 + $0x38] sm:$0xff]
    %v1171 = vld [vmem:[#allocation12 + $0x40] sm:$0xff]
    %v1172 = vld [vmem:[#allocation12 + $0x48] sm:$0xff]
    %v1173 = vld [vmem:[#allocation12 + $0x50] sm:$0xff]
    %v1174 = vld [vmem:[#allocation12 + $0x58] sm:$0xff]
    %v1175 = vld [vmem:[#allocation12 + $0x60] sm:$0xff]
    %v1176 = vld [vmem:[#allocation12 + $0x68] sm:$0xff]
    %v1177 = vld [vmem:[#allocation12 + $0x70] sm:$0xff]
    %v1178 = vld [vmem:[#allocation12 + $0x78] sm:$0xff]
    %v1179 = vld [vmem:[%s8] sm:$0x1]
    %v1181 = vlaneseq
    %v1182 = vshrl.u32 %v1181, 7
    %v1183 = vsub.s32 0, %v1182
    %v1184 = vrot.slane %v1179, %v1183
    %1186 = vmatprep.subr.mxu0 0.0
    %1187 = vmatpush1.msra.mxu0 %v1163
    %1188 = vmatprep.subr.mxu0 0.0
    %1189 = vmatpush1.msra.mxu0 %v1164
    %1190 = vmatprep.subr.mxu0 0.0
    %1191 = vmatpush1.msra.mxu0 %v1165
    %1192 = vmatprep.subr.mxu0 0.0
    %1193 = vmatpush1.msra.mxu0 %v1166
    %1194 = vmatprep.subr.mxu0 0.0
    %1195 = vmatpush1.msra.mxu0 %v1167
    %1196 = vmatprep.subr.mxu0 0.0
    %1197 = vmatpush1.msra.mxu0 %v1168
    %1198 = vmatprep.subr.mxu0 0.0
    %1199 = vmatpush1.msra.mxu0 %v1169
    %1200 = vmatprep.subr.mxu0 0.0
    %1201 = vmatpush1.msra.mxu0 %v1170
    %1202 = vmatprep.subr.mxu0 0.0
    %1203 = vmatpush1.msra.mxu0 %v1171
    %1204 = vmatprep.subr.mxu0 0.0
    %1205 = vmatpush1.msra.mxu0 %v1172
    %1206 = vmatprep.subr.mxu0 0.0
    %1207 = vmatpush1.msra.mxu0 %v1173
    %1208 = vmatprep.subr.mxu0 0.0
    %1209 = vmatpush1.msra.mxu0 %v1174
    %1210 = vmatprep.subr.mxu0 0.0
    %1211 = vmatpush1.msra.mxu0 %v1175
    %1212 = vmatprep.subr.mxu0 0.0
    %1213 = vmatpush1.msra.mxu0 %v1176
    %1214 = vmatprep.subr.mxu0 0.0
    %1215 = vmatpush1.msra.mxu0 %v1177
    %1216 = vmatprep.subr.mxu0 0.0
    %1217 = vmatpush1.msra.mxu0 %v1178
    %1218 = vmatprep.subr.mxu0 0.0
    %1219 = vmatpush1.msra.mxu0 0.0
    %1220 = vmatprep.subr.mxu0 0.0
    %1221 = vmatpush1.msra.mxu0 0.0
    %1222 = vmatprep.subr.mxu0 0.0
    %1223 = vmatpush1.msra.mxu0 0.0
    %1224 = vmatprep.subr.mxu0 0.0
    %1225 = vmatpush1.msra.mxu0 0.0
    %1226 = vmatprep.subr.mxu0 0.0
    %1227 = vmatpush1.msra.mxu0 0.0
    %1228 = vmatprep.subr.mxu0 0.0
    %1229 = vmatpush1.msra.mxu0 0.0
    %1230 = vmatprep.subr.mxu0 0.0
    %1231 = vmatpush1.msra.mxu0 0.0
    %1232 = vmatprep.subr.mxu0 0.0
    %1233 = vmatpush1.msra.mxu0 0.0
    %1234 = vmatprep.subr.mxu0 0.0
    %1235 = vmatpush1.msra.mxu0 0.0
    %1236 = vmatprep.subr.mxu0 0.0
    %1237 = vmatpush1.msra.mxu0 0.0
    %1238 = vmatprep.subr.mxu0 0.0
    %1239 = vmatpush1.msra.mxu0 0.0
    %1240 = vmatprep.subr.mxu0 0.0
    %1241 = vmatpush1.msra.mxu0 0.0
    %1242 = vmatprep.subr.mxu0 0.0
    %1243 = vmatpush1.msra.mxu0 0.0
    %1244 = vmatprep.subr.mxu0 0.0
    %1245 = vmatpush1.msra.mxu0 0.0
    %1246 = vmatprep.subr.mxu0 0.0
    %1247 = vmatpush1.msra.mxu0 0.0
    %1248 = vmatprep.subr.mxu0 0.0
    %1249 = vmatpush1.msra.mxu0 0.0
    %1250 = vmatprep.mubr.f32.mxu0 0.0
    %1251 = vmatmul.mubr.f32.gmra.mrb[0].mxu0 %v1131
    %v1252 = vpop.f32.mrb[0].mxu0
    %v1253 = vadd.f32 %v1184, %v1252
    %v1254 = vpop.f32.mrb[0].mxu0
    %1255 = vmatprep.mubr.f32.mxu0 0.0
    %1256 = vmatmul.mubr.f32.gmra.mrb[0].mxu0 %v1132
    %v1257 = vpop.f32.mrb[0].mxu0
    %v1258 = vadd.f32 %v1184, %v1257
    %v1259 = vpop.f32.mrb[0].mxu0
    %1260 = vmatprep.mubr.f32.mxu0 0.0
    %1261 = vmatmul.mubr.f32.gmra.mrb[0].mxu0 %v1133
    %v1262 = vpop.f32.mrb[0].mxu0
    %v1263 = vadd.f32 %v1184, %v1262
    %v1264 = vpop.f32.mrb[0].mxu0
    %1265 = vmatprep.mubr.f32.mxu0 0.0
    %1266 = vmatmul.mubr.f32.gmra.mrb[0].mxu0 %v1134
    %v1267 = vpop.f32.mrb[0].mxu0
    %v1268 = vadd.f32 %v1184, %v1267
    %v1269 = vpop.f32.mrb[0].mxu0
    %1270 = vmatprep.mubr.f32.mxu0 0.0
    %1271 = vmatmul.mubr.f32.gmra.mrb[0].mxu0 %v1135
    %v1272 = vpop.f32.mrb[0].mxu0
    %v1273 = vadd.f32 %v1184, %v1272
    %v1274 = vpop.f32.mrb[0].mxu0
    %1275 = vmatprep.mubr.f32.mxu0 0.0
    %1276 = vmatmul.mubr.f32.gmra.mrb[0].mxu0 %v1136
    %v1277 = vpop.f32.mrb[0].mxu0
    %v1278 = vadd.f32 %v1184, %v1277
    %v1279 = vpop.f32.mrb[0].mxu0
    %1280 = vmatprep.mubr.f32.mxu0 0.0
    %1281 = vmatmul.mubr.f32.gmra.mrb[0].mxu0 %v1137
    %v1282 = vpop.f32.mrb[0].mxu0
    %v1283 = vadd.f32 %v1184, %v1282
    %v1284 = vpop.f32.mrb[0].mxu0
    %1285 = vmatprep.mubr.f32.mxu0 0.0
    %1286 = vmatmul.mubr.f32.gmra.mrb[0].mxu0 %v1138
    %v1287 = vpop.f32.mrb[0].mxu0
    %v1288 = vadd.f32 %v1184, %v1287
    %v1289 = vpop.f32.mrb[0].mxu0
    %1290 = vmatprep.mubr.f32.mxu0 0.0
    %1291 = vmatmul.mubr.f32.gmra.mrb[0].mxu0 %v1139
    %v1292 = vpop.f32.mrb[0].mxu0
    %v1293 = vadd.f32 %v1184, %v1292
    %v1294 = vpop.f32.mrb[0].mxu0
    %1295 = vmatprep.mubr.f32.mxu0 0.0
    %1296 = vmatmul.mubr.f32.gmra.mrb[0].mxu0 %v1140
    %v1297 = vpop.f32.mrb[0].mxu0
    %v1298 = vadd.f32 %v1184, %v1297
    %v1299 = vpop.f32.mrb[0].mxu0
    %1300 = vmatprep.mubr.f32.mxu0 0.0
    %1301 = vmatmul.mubr.f32.gmra.mrb[0].mxu0 %v1141
    %v1302 = vpop.f32.mrb[0].mxu0
    %v1303 = vadd.f32 %v1184, %v1302
    %v1304 = vpop.f32.mrb[0].mxu0
    %1305 = vmatprep.mubr.f32.mxu0 0.0
    %1306 = vmatmul.mubr.f32.gmra.mrb[0].mxu0 %v1142
    %v1307 = vpop.f32.mrb[0].mxu0
    %v1308 = vadd.f32 %v1184, %v1307
    %v1309 = vpop.f32.mrb[0].mxu0
    %1310 = vmatprep.mubr.f32.mxu0 0.0
    %1311 = vmatmul.mubr.f32.gmra.mrb[0].mxu0 %v1143
    %v1312 = vpop.f32.mrb[0].mxu0
    %v1313 = vadd.f32 %v1184, %v1312
    %v1314 = vpop.f32.mrb[0].mxu0
    %1315 = vmatprep.mubr.f32.mxu0 0.0
    %1316 = vmatmul.mubr.f32.gmra.mrb[0].mxu0 %v1144
    %v1317 = vpop.f32.mrb[0].mxu0
    %v1318 = vadd.f32 %v1184, %v1317
    %v1319 = vpop.f32.mrb[0].mxu0
    %1320 = vmatprep.mubr.f32.mxu0 0.0
    %1321 = vmatmul.mubr.f32.gmra.mrb[0].mxu0 %v1145
    %v1322 = vpop.f32.mrb[0].mxu0
    %v1323 = vadd.f32 %v1184, %v1322
    %v1324 = vpop.f32.mrb[0].mxu0
    %1325 = vmatprep.mubr.f32.mxu0 0.0
    %1326 = vmatmul.mubr.f32.gmra.mrb[0].mxu0 %v1146
    %v1327 = vpop.f32.mrb[0].mxu0
    %v1328 = vadd.f32 %v1184, %v1327
    %v1329 = vpop.f32.mrb[0].mxu0
    %1330 = vmatprep.mubr.f32.mxu0 0.0
    %1331 = vmatmul.mubr.f32.gmra.mrb[0].mxu0 %v1147
    %v1332 = vpop.f32.mrb[0].mxu0
    %v1333 = vadd.f32 %v1184, %v1332
    %v1334 = vpop.f32.mrb[0].mxu0
    %1335 = vmatprep.mubr.f32.mxu0 0.0
    %1336 = vmatmul.mubr.f32.gmra.mrb[0].mxu0 %v1148
    %v1337 = vpop.f32.mrb[0].mxu0
    %v1338 = vadd.f32 %v1184, %v1337
    %v1339 = vpop.f32.mrb[0].mxu0
    %1340 = vmatprep.mubr.f32.mxu0 0.0
    %1341 = vmatmul.mubr.f32.gmra.mrb[0].mxu0 %v1149
    %v1342 = vpop.f32.mrb[0].mxu0
    %v1343 = vadd.f32 %v1184, %v1342
    %v1344 = vpop.f32.mrb[0].mxu0
    %1345 = vmatprep.mubr.f32.mxu0 0.0
    %1346 = vmatmul.mubr.f32.gmra.mrb[0].mxu0 %v1150
    %v1347 = vpop.f32.mrb[0].mxu0
    %v1348 = vadd.f32 %v1184, %v1347
    %v1349 = vpop.f32.mrb[0].mxu0
    %1350 = vmatprep.mubr.f32.mxu0 0.0
    %1351 = vmatmul.mubr.f32.gmra.mrb[0].mxu0 %v1151
    %v1352 = vpop.f32.mrb[0].mxu0
    %v1353 = vadd.f32 %v1184, %v1352
    %v1354 = vpop.f32.mrb[0].mxu0
    %1355 = vmatprep.mubr.f32.mxu0 0.0
    %1356 = vmatmul.mubr.f32.gmra.mrb[0].mxu0 %v1152
    %v1357 = vpop.f32.mrb[0].mxu0
    %v1358 = vadd.f32 %v1184, %v1357
    %v1359 = vpop.f32.mrb[0].mxu0
    %1360 = vmatprep.mubr.f32.mxu0 0.0
    %1361 = vmatmul.mubr.f32.gmra.mrb[0].mxu0 %v1153
    %v1362 = vpop.f32.mrb[0].mxu0
    %v1363 = vadd.f32 %v1184, %v1362
    %v1364 = vpop.f32.mrb[0].mxu0
    %1365 = vmatprep.mubr.f32.mxu0 0.0
    %1366 = vmatmul.mubr.f32.gmra.mrb[0].mxu0 %v1154
    %v1367 = vpop.f32.mrb[0].mxu0
    %v1368 = vadd.f32 %v1184, %v1367
    %v1369 = vpop.f32.mrb[0].mxu0
    %1370 = vmatprep.mubr.f32.mxu0 0.0
    %1371 = vmatmul.mubr.f32.gmra.mrb[0].mxu0 %v1155
    %v1372 = vpop.f32.mrb[0].mxu0
    %v1373 = vadd.f32 %v1184, %v1372
    %v1374 = vpop.f32.mrb[0].mxu0
    %1375 = vmatprep.mubr.f32.mxu0 0.0
    %1376 = vmatmul.mubr.f32.gmra.mrb[0].mxu0 %v1156
    %v1377 = vpop.f32.mrb[0].mxu0
    %v1378 = vadd.f32 %v1184, %v1377
    %v1379 = vpop.f32.mrb[0].mxu0
    %1380 = vmatprep.mubr.f32.mxu0 0.0
    %1381 = vmatmul.mubr.f32.gmra.mrb[0].mxu0 %v1157
    %v1382 = vpop.f32.mrb[0].mxu0
    %v1383 = vadd.f32 %v1184, %v1382
    %v1384 = vpop.f32.mrb[0].mxu0
    %1385 = vmatprep.mubr.f32.mxu0 0.0
    %1386 = vmatmul.mubr.f32.gmra.mrb[0].mxu0 %v1158
    %v1387 = vpop.f32.mrb[0].mxu0
    %v1388 = vadd.f32 %v1184, %v1387
    %v1389 = vpop.f32.mrb[0].mxu0
    %1390 = vmatprep.mubr.f32.mxu0 0.0
    %1391 = vmatmul.mubr.f32.gmra.mrb[0].mxu0 %v1159
    %v1392 = vpop.f32.mrb[0].mxu0
    %v1393 = vadd.f32 %v1184, %v1392
    %v1394 = vpop.f32.mrb[0].mxu0
    %1395 = vmatprep.mubr.f32.mxu0 0.0
    %1396 = vmatmul.mubr.f32.gmra.mrb[0].mxu0 %v1160
    %v1397 = vpop.f32.mrb[0].mxu0
    %v1398 = vadd.f32 %v1184, %v1397
    %v1399 = vpop.f32.mrb[0].mxu0
    %1400 = vmatprep.mubr.f32.mxu0 0.0
    %1401 = vmatmul.mubr.f32.gmra.mrb[0].mxu0 %v1161
    %v1402 = vpop.f32.mrb[0].mxu0
    %v1403 = vadd.f32 %v1184, %v1402
    %v1404 = vpop.f32.mrb[0].mxu0
    %1405 = vmatprep.mubr.f32.mxu0 0.0
    %1406 = vmatmul.mubr.f32.gmra.mrb[0].mxu0 %v1162
    %v1407 = vpop.f32.mrb[0].mxu0
    %v1408 = vadd.f32 %v1184, %v1407
    %v1409 = vpop.f32.mrb[0].mxu0
    %1410 = vdwg.mxu0
    %v1411 = vld [vmem:[%s1] sm:$0xff]
    %v1412 = vld [vmem:[%s1 + $0x8] sm:$0xff]
    %v1413 = vld [vmem:[%s1 + $0x10] sm:$0xff]
    %v1414 = vld [vmem:[%s1 + $0x18] sm:$0xff]
    %v1415 = vld [vmem:[%s1 + $0x20] sm:$0xff]
    %v1416 = vld [vmem:[%s1 + $0x28] sm:$0xff]
    %v1417 = vld [vmem:[%s1 + $0x30] sm:$0xff]
    %v1418 = vld [vmem:[%s1 + $0x38] sm:$0xff]
    %v1419 = vld [vmem:[%s1 + $0x40] sm:$0xff]
    %v1420 = vld [vmem:[%s1 + $0x48] sm:$0xff]
    %v1421 = vld [vmem:[%s1 + $0x50] sm:$0xff]
    %v1422 = vld [vmem:[%s1 + $0x58] sm:$0xff]
    %v1423 = vld [vmem:[%s1 + $0x60] sm:$0xff]
    %v1424 = vld [vmem:[%s1 + $0x68] sm:$0xff]
    %v1425 = vld [vmem:[%s1 + $0x70] sm:$0xff]
    %v1426 = vld [vmem:[%s1 + $0x78] sm:$0xff]
    %v1427 = vld [vmem:[%s1 + $0x80] sm:$0xff]
    %v1428 = vld [vmem:[%s1 + $0x88] sm:$0xff]
    %v1429 = vld [vmem:[%s1 + $0x90] sm:$0xff]
    %v1430 = vld [vmem:[%s1 + $0x98] sm:$0xff]
    %v1431 = vld [vmem:[%s1 + $0xa0] sm:$0xff]
    %v1432 = vld [vmem:[%s1 + $0xa8] sm:$0xff]
    %v1433 = vld [vmem:[%s1 + $0xb0] sm:$0xff]
    %v1434 = vld [vmem:[%s1 + $0xb8] sm:$0xff]
    %v1435 = vld [vmem:[%s1 + $0xc0] sm:$0xff]
    %v1436 = vld [vmem:[%s1 + $0xc8] sm:$0xff]
    %v1437 = vld [vmem:[%s1 + $0xd0] sm:$0xff]
    %v1438 = vld [vmem:[%s1 + $0xd8] sm:$0xff]
    %v1439 = vld [vmem:[%s1 + $0xe0] sm:$0xff]
    %v1440 = vld [vmem:[%s1 + $0xe8] sm:$0xff]
    %v1441 = vld [vmem:[%s1 + $0xf0] sm:$0xff]
    %v1442 = vld [vmem:[%s1 + $0xf8] sm:$0xff]
    %v1443 = vmul.f32 %v1411, 0.31415927
    %v1444 = vmul.f32 %v1412, 0.31415927
    %v1445 = vmul.f32 %v1413, 0.31415927
    %v1446 = vmul.f32 %v1414, 0.31415927
    %v1447 = vmul.f32 %v1415, 0.31415927
    %v1448 = vmul.f32 %v1416, 0.31415927
    %v1449 = vmul.f32 %v1417, 0.31415927
    %v1450 = vmul.f32 %v1418, 0.31415927
    %v1451 = vmul.f32 %v1419, 0.31415927
    %v1452 = vmul.f32 %v1420, 0.31415927
    %v1453 = vmul.f32 %v1421, 0.31415927
    %v1454 = vmul.f32 %v1422, 0.31415927
    %v1455 = vmul.f32 %v1423, 0.31415927
    %v1456 = vmul.f32 %v1424, 0.31415927
    %v1457 = vmul.f32 %v1425, 0.31415927
    %v1458 = vmul.f32 %v1426, 0.31415927
    %v1459 = vmul.f32 %v1427, 0.31415927
    %v1460 = vmul.f32 %v1428, 0.31415927
    %v1461 = vmul.f32 %v1429, 0.31415927
    %v1462 = vmul.f32 %v1430, 0.31415927
    %v1463 = vmul.f32 %v1431, 0.31415927
    %v1464 = vmul.f32 %v1432, 0.31415927
    %v1465 = vmul.f32 %v1433, 0.31415927
    %v1466 = vmul.f32 %v1434, 0.31415927
    %v1467 = vmul.f32 %v1435, 0.31415927
    %v1468 = vmul.f32 %v1436, 0.31415927
    %v1469 = vmul.f32 %v1437, 0.31415927
    %v1470 = vmul.f32 %v1438, 0.31415927
    %v1471 = vmul.f32 %v1439, 0.31415927
    %v1472 = vmul.f32 %v1440, 0.31415927
    %v1473 = vmul.f32 %v1441, 0.31415927
    %v1474 = vmul.f32 %v1442, 0.31415927
    %v1475 = vand.u32 2147483647, %v1443
    %vm1476 = vcmp.le.f32.partialorder %v1475, 0.7853982
    %vm1477 = vcmp.lt.s32.totalorder %v1443, 0
    %v1478 = vand.u32 %v1443, 2139095040
    %v1479 = vshrl.u32 %v1478, 23
    %v1480 = vsub.s32 %v1479, 127
    %v1481 = vand.u32 2147483647, %v1443
    %v1482 = vand.u32 %v1481, 8388607
    %v1483 = vor.u32 %v1482, 8388608
    %v1484 = vsub.s32 0, %v1483
    %v1485 = vadd.s32 %v1480, 1
    %vm1486 = vcmp.gt.s32.totalorder %v1485, 0
    %v1487 = vsel %vm1486, %v1485, 0
    %v1488 = vshrl.u32 %v1487, 5
    %v1489 = vand.u32 %v1487, 31
    %v1490 = vsub.s32 32, %v1489
    %v1491 = vshrl.u32 683565275, %v1490
    %v1492 = vshll.u32 683565275, %v1489
    %v1493 = vshrl.u32 2475754826, %v1490
    %v1494 = vor.u32 %v1492, %v1493
    %v1495 = vshll.u32 2475754826, %v1489
    %v1496 = vshrl.u32 2131351028, %v1490
    %v1497 = vor.u32 %v1495, %v1496
    %v1498 = vshll.u32 2131351028, %v1489
    %v1499 = vshrl.u32 2102212464, %v1490
    %v1500 = vor.u32 %v1498, %v1499
    %v1501 = vshll.u32 2102212464, %v1489
    %v1502 = vshrl.u32 920167782, %v1490
    %v1503 = vor.u32 %v1501, %v1502
    %v1504 = vshll.u32 920167782, %v1489
    %v1505 = vshrl.u32 1326507024, %v1490
    %v1506 = vor.u32 %v1504, %v1505
    %vm1507 = vcmp.lt.s32.totalorder %v1488, 1
    %vm1508 = vcmp.lt.s32.totalorder %v1488, 2
    %vm1509 = vcmp.lt.s32.totalorder %v1488, 3
    %vm1510 = vcmp.lt.s32.totalorder %v1488, 4
    %v1511 = vsel %vm1507, %v1491, %v1494
    %v1512 = vsel %vm1510, %v1500, 2102212464
    %v1513 = vsel %vm1509, %v1497, %v1512
    %v1514 = vsel %vm1508, %v1511, %v1513
    %v1515 = vsel %vm1507, %v1494, %v1497
    %v1516 = vsel %vm1510, %v1503, 920167782
    %v1517 = vsel %vm1509, %v1500, %v1516
    %v1518 = vsel %vm1508, %v1515, %v1517
    %v1519 = vsel %vm1507, %v1497, %v1500
    %v1520 = vsel %vm1510, %v1506, 1326507024
    %v1521 = vsel %vm1509, %v1503, %v1520
    %v1522 = vsel %vm1508, %v1519, %v1521
    %v1523 = vshll.u32 %v1483, 8
    %v1524 = vmul.u32.u64.compose %v1523, %v1522
    %v1525 = vextract.low.u32 %v1524
    %v1526 = vextract.high.u32 %v1524
    %v1527 = vmul.u32.u64.compose %v1523, %v1518
    %v1528 = vextract.low.u32 %v1527
    %v1529 = vextract.high.u32 %v1527
    %v1530 = vmul.u32 %v1523, %v1514
    %v1531 = vadd.s32 %v1526, %v1528
    %vm1532 = vc.u32 %v1526, %v1528
    %v1533 = vadd.s32 %v1529, 1
    %v1534 = vsel %vm1532, %v1533, %v1529
    %v1535 = vadd.s32 %v1530, %v1534
    %v1536 = vadd.s32 %v1535, 536870912
    %v1537 = vshrl.u32 %v1536, 30
    %v1538 = vshll.u32 %v1537, 30
    %v1539 = vsub.s32 %v1535, %v1538
    %vm1540 = vcmp.lt.s32.totalorder %v1539, 0
    %v1541 = vsub.s32 0, %v1539
    %v1542 = vsel %vm1540, %v1541, %v1539
    %v1543 = vclz %v1542
    %v1544 = vsub.s32 %v1543, 2
    %vm1545 = vcmp.gt.s32.totalorder 0, %v1544
    %v1546 = vsel %vm1545, 0, %v1544
    %v1547 = vsub.s32 32, %v1546
    %v1548 = vshll.u32 %v1539, %v1546
    %v1549 = vshrl.u32 %v1531, %v1547
    %v1550 = vor.u32 %v1548, %v1549
    %v1551 = vsub.s32 4294967266, %v1546
    %v1552 = vadd.s32 %v1551, 127
    %v1553 = vshll.u32 %v1552, 23
    %v1554 = vor.u32 4788187, %v1553
    %v1555 = vand.u32 2147483647, %v1554
    %v1557 = vcvt.s32.f32 %v1550
    %v1558 = vmul.f32 %v1557, %v1555
    %v1559 = vxor.u32 %v1558, 2147483648
    %v1560 = vsel %vm1477, %v1559, %v1558
    %v1561 = vsub.s32 4, %v1537
    %v1562 = vsel %vm1477, %v1561, %v1537
    %v1563 = vsel %vm1476, %v1443, %v1560
    %v1564 = vsel %vm1476, 0, %v1562
    %v1565 = vcosq.f32.pop %v1563
    %v1566 = vsinq.f32.pop %v1563
    %vm1567 = vweird.f32 %v1443
    %v1568 = vand.u32 %v1564, 3
    %vm1569 = vcmp.lt.s32.totalorder %v1568, 2
    %vm1570 = vcmp.eq.s32.totalorder %v1568, 0
    %v1571 = vxor.u32 %v1566, 2147483648
    %v1572 = vsel %vm1570, %v1565, %v1571
    %vm1573 = vcmp.eq.s32.totalorder %v1568, 2
    %v1574 = vxor.u32 %v1565, 2147483648
    %v1575 = vsel %vm1573, %v1574, %v1566
    %v1576 = vsel %vm1569, %v1572, %v1575
    %v1577 = vsel %vm1567, nan, %v1576
    %v1578 = vand.u32 2147483647, %v1444
    %vm1579 = vcmp.le.f32.partialorder %v1578, 0.7853982
    %vm1580 = vcmp.lt.s32.totalorder %v1444, 0
    %v1581 = vand.u32 %v1444, 2139095040
    %v1582 = vshrl.u32 %v1581, 23
    %v1583 = vsub.s32 %v1582, 127
    %v1584 = vand.u32 2147483647, %v1444
    %v1585 = vand.u32 %v1584, 8388607
    %v1586 = vor.u32 %v1585, 8388608
    %v1587 = vsub.s32 0, %v1586
    %v1588 = vadd.s32 %v1583, 1
    %vm1589 = vcmp.gt.s32.totalorder %v1588, 0
    %v1590 = vsel %vm1589, %v1588, 0
    %v1591 = vshrl.u32 %v1590, 5
    %v1592 = vand.u32 %v1590, 31
    %v1593 = vsub.s32 32, %v1592
    %v1594 = vshrl.u32 683565275, %v1593
    %v1595 = vshll.u32 683565275, %v1592
    %v1596 = vshrl.u32 2475754826, %v1593
    %v1597 = vor.u32 %v1595, %v1596
    %v1598 = vshll.u32 2475754826, %v1592
    %v1599 = vshrl.u32 2131351028, %v1593
    %v1600 = vor.u32 %v1598, %v1599
    %v1601 = vshll.u32 2131351028, %v1592
    %v1602 = vshrl.u32 2102212464, %v1593
    %v1603 = vor.u32 %v1601, %v1602
    %v1604 = vshll.u32 2102212464, %v1592
    %v1605 = vshrl.u32 920167782, %v1593
    %v1606 = vor.u32 %v1604, %v1605
    %v1607 = vshll.u32 920167782, %v1592
    %v1608 = vshrl.u32 1326507024, %v1593
    %v1609 = vor.u32 %v1607, %v1608
    %vm1610 = vcmp.lt.s32.totalorder %v1591, 1
    %vm1611 = vcmp.lt.s32.totalorder %v1591, 2
    %vm1612 = vcmp.lt.s32.totalorder %v1591, 3
    %vm1613 = vcmp.lt.s32.totalorder %v1591, 4
    %v1614 = vsel %vm1610, %v1594, %v1597
    %v1615 = vsel %vm1613, %v1603, 2102212464
    %v1616 = vsel %vm1612, %v1600, %v1615
    %v1617 = vsel %vm1611, %v1614, %v1616
    %v1618 = vsel %vm1610, %v1597, %v1600
    %v1619 = vsel %vm1613, %v1606, 920167782
    %v1620 = vsel %vm1612, %v1603, %v1619
    %v1621 = vsel %vm1611, %v1618, %v1620
    %v1622 = vsel %vm1610, %v1600, %v1603
    %v1623 = vsel %vm1613, %v1609, 1326507024
    %v1624 = vsel %vm1612, %v1606, %v1623
    %v1625 = vsel %vm1611, %v1622, %v1624
    %v1626 = vshll.u32 %v1586, 8
    %v1627 = vmul.u32.u64.compose %v1626, %v1625
    %v1628 = vextract.low.u32 %v1627
    %v1629 = vextract.high.u32 %v1627
    %v1630 = vmul.u32.u64.compose %v1626, %v1621
    %v1631 = vextract.low.u32 %v1630
    %v1632 = vextract.high.u32 %v1630
    %v1633 = vmul.u32 %v1626, %v1617
    %v1634 = vadd.s32 %v1629, %v1631
    %vm1635 = vc.u32 %v1629, %v1631
    %v1636 = vadd.s32 %v1632, 1
    %v1637 = vsel %vm1635, %v1636, %v1632
    %v1638 = vadd.s32 %v1633, %v1637
    %v1639 = vadd.s32 %v1638, 536870912
    %v1640 = vshrl.u32 %v1639, 30
    %v1641 = vshll.u32 %v1640, 30
    %v1642 = vsub.s32 %v1638, %v1641
    %vm1643 = vcmp.lt.s32.totalorder %v1642, 0
    %v1644 = vsub.s32 0, %v1642
    %v1645 = vsel %vm1643, %v1644, %v1642
    %v1646 = vclz %v1645
    %v1647 = vsub.s32 %v1646, 2
    %vm1648 = vcmp.gt.s32.totalorder 0, %v1647
    %v1649 = vsel %vm1648, 0, %v1647
    %v1650 = vsub.s32 32, %v1649
    %v1651 = vshll.u32 %v1642, %v1649
    %v1652 = vshrl.u32 %v1634, %v1650
    %v1653 = vor.u32 %v1651, %v1652
    %v1654 = vsub.s32 4294967266, %v1649
    %v1655 = vadd.s32 %v1654, 127
    %v1656 = vshll.u32 %v1655, 23
    %v1657 = vor.u32 4788187, %v1656
    %v1658 = vand.u32 2147483647, %v1657
    %v1660 = vcvt.s32.f32 %v1653
    %v1661 = vmul.f32 %v1660, %v1658
    %v1662 = vxor.u32 %v1661, 2147483648
    %v1663 = vsel %vm1580, %v1662, %v1661
    %v1664 = vsub.s32 4, %v1640
    %v1665 = vsel %vm1580, %v1664, %v1640
    %v1666 = vsel %vm1579, %v1444, %v1663
    %v1667 = vsel %vm1579, 0, %v1665
    %v1668 = vcosq.f32.pop %v1666
    %v1669 = vsinq.f32.pop %v1666
    %vm1670 = vweird.f32 %v1444
    %v1671 = vand.u32 %v1667, 3
    %vm1672 = vcmp.lt.s32.totalorder %v1671, 2
    %vm1673 = vcmp.eq.s32.totalorder %v1671, 0
    %v1674 = vxor.u32 %v1669, 2147483648
    %v1675 = vsel %vm1673, %v1668, %v1674
    %vm1676 = vcmp.eq.s32.totalorder %v1671, 2
    %v1677 = vxor.u32 %v1668, 2147483648
    %v1678 = vsel %vm1676, %v1677, %v1669
    %v1679 = vsel %vm1672, %v1675, %v1678
    %v1680 = vsel %vm1670, nan, %v1679
    %v1681 = vand.u32 2147483647, %v1445
    %vm1682 = vcmp.le.f32.partialorder %v1681, 0.7853982
    %vm1683 = vcmp.lt.s32.totalorder %v1445, 0
    %v1684 = vand.u32 %v1445, 2139095040
    %v1685 = vshrl.u32 %v1684, 23
    %v1686 = vsub.s32 %v1685, 127
    %v1687 = vand.u32 2147483647, %v1445
    %v1688 = vand.u32 %v1687, 8388607
    %v1689 = vor.u32 %v1688, 8388608
    %v1690 = vsub.s32 0, %v1689
    %v1691 = vadd.s32 %v1686, 1
    %vm1692 = vcmp.gt.s32.totalorder %v1691, 0
    %v1693 = vsel %vm1692, %v1691, 0
    %v1694 = vshrl.u32 %v1693, 5
    %v1695 = vand.u32 %v1693, 31
    %v1696 = vsub.s32 32, %v1695
    %v1697 = vshrl.u32 683565275, %v1696
    %v1698 = vshll.u32 683565275, %v1695
    %v1699 = vshrl.u32 2475754826, %v1696
    %v1700 = vor.u32 %v1698, %v1699
    %v1701 = vshll.u32 2475754826, %v1695
    %v1702 = vshrl.u32 2131351028, %v1696
    %v1703 = vor.u32 %v1701, %v1702
    %v1704 = vshll.u32 2131351028, %v1695
    %v1705 = vshrl.u32 2102212464, %v1696
    %v1706 = vor.u32 %v1704, %v1705
    %v1707 = vshll.u32 2102212464, %v1695
    %v1708 = vshrl.u32 920167782, %v1696
    %v1709 = vor.u32 %v1707, %v1708
    %v1710 = vshll.u32 920167782, %v1695
    %v1711 = vshrl.u32 1326507024, %v1696
    %v1712 = vor.u32 %v1710, %v1711
    %vm1713 = vcmp.lt.s32.totalorder %v1694, 1
    %vm1714 = vcmp.lt.s32.totalorder %v1694, 2
    %vm1715 = vcmp.lt.s32.totalorder %v1694, 3
    %vm1716 = vcmp.lt.s32.totalorder %v1694, 4
    %v1717 = vsel %vm1713, %v1697, %v1700
    %v1718 = vsel %vm1716, %v1706, 2102212464
    %v1719 = vsel %vm1715, %v1703, %v1718
    %v1720 = vsel %vm1714, %v1717, %v1719
    %v1721 = vsel %vm1713, %v1700, %v1703
    %v1722 = vsel %vm1716, %v1709, 920167782
    %v1723 = vsel %vm1715, %v1706, %v1722
    %v1724 = vsel %vm1714, %v1721, %v1723
    %v1725 = vsel %vm1713, %v1703, %v1706
    %v1726 = vsel %vm1716, %v1712, 1326507024
    %v1727 = vsel %vm1715, %v1709, %v1726
    %v1728 = vsel %vm1714, %v1725, %v1727
    %v1729 = vshll.u32 %v1689, 8
    %v1730 = vmul.u32.u64.compose %v1729, %v1728
    %v1731 = vextract.low.u32 %v1730
    %v1732 = vextract.high.u32 %v1730
    %v1733 = vmul.u32.u64.compose %v1729, %v1724
    %v1734 = vextract.low.u32 %v1733
    %v1735 = vextract.high.u32 %v1733
    %v1736 = vmul.u32 %v1729, %v1720
    %v1737 = vadd.s32 %v1732, %v1734
    %vm1738 = vc.u32 %v1732, %v1734
    %v1739 = vadd.s32 %v1735, 1
    %v1740 = vsel %vm1738, %v1739, %v1735
    %v1741 = vadd.s32 %v1736, %v1740
    %v1742 = vadd.s32 %v1741, 536870912
    %v1743 = vshrl.u32 %v1742, 30
    %v1744 = vshll.u32 %v1743, 30
    %v1745 = vsub.s32 %v1741, %v1744
    %vm1746 = vcmp.lt.s32.totalorder %v1745, 0
    %v1747 = vsub.s32 0, %v1745
    %v1748 = vsel %vm1746, %v1747, %v1745
    %v1749 = vclz %v1748
    %v1750 = vsub.s32 %v1749, 2
    %vm1751 = vcmp.gt.s32.totalorder 0, %v1750
    %v1752 = vsel %vm1751, 0, %v1750
    %v1753 = vsub.s32 32, %v1752
    %v1754 = vshll.u32 %v1745, %v1752
    %v1755 = vshrl.u32 %v1737, %v1753
    %v1756 = vor.u32 %v1754, %v1755
    %v1757 = vsub.s32 4294967266, %v1752
    %v1758 = vadd.s32 %v1757, 127
    %v1759 = vshll.u32 %v1758, 23
    %v1760 = vor.u32 4788187, %v1759
    %v1761 = vand.u32 2147483647, %v1760
    %v1763 = vcvt.s32.f32 %v1756
    %v1764 = vmul.f32 %v1763, %v1761
    %v1765 = vxor.u32 %v1764, 2147483648
    %v1766 = vsel %vm1683, %v1765, %v1764
    %v1767 = vsub.s32 4, %v1743
    %v1768 = vsel %vm1683, %v1767, %v1743
    %v1769 = vsel %vm1682, %v1445, %v1766
    %v1770 = vsel %vm1682, 0, %v1768
    %v1771 = vcosq.f32.pop %v1769
    %v1772 = vsinq.f32.pop %v1769
    %vm1773 = vweird.f32 %v1445
    %v1774 = vand.u32 %v1770, 3
    %vm1775 = vcmp.lt.s32.totalorder %v1774, 2
    %vm1776 = vcmp.eq.s32.totalorder %v1774, 0
    %v1777 = vxor.u32 %v1772, 2147483648
    %v1778 = vsel %vm1776, %v1771, %v1777
    %vm1779 = vcmp.eq.s32.totalorder %v1774, 2
    %v1780 = vxor.u32 %v1771, 2147483648
    %v1781 = vsel %vm1779, %v1780, %v1772
    %v1782 = vsel %vm1775, %v1778, %v1781
    %v1783 = vsel %vm1773, nan, %v1782
    %v1784 = vand.u32 2147483647, %v1446
    %vm1785 = vcmp.le.f32.partialorder %v1784, 0.7853982
    %vm1786 = vcmp.lt.s32.totalorder %v1446, 0
    %v1787 = vand.u32 %v1446, 2139095040
    %v1788 = vshrl.u32 %v1787, 23
    %v1789 = vsub.s32 %v1788, 127
    %v1790 = vand.u32 2147483647, %v1446
    %v1791 = vand.u32 %v1790, 8388607
    %v1792 = vor.u32 %v1791, 8388608
    %v1793 = vsub.s32 0, %v1792
    %v1794 = vadd.s32 %v1789, 1
    %vm1795 = vcmp.gt.s32.totalorder %v1794, 0
    %v1796 = vsel %vm1795, %v1794, 0
    %v1797 = vshrl.u32 %v1796, 5
    %v1798 = vand.u32 %v1796, 31
    %v1799 = vsub.s32 32, %v1798
    %v1800 = vshrl.u32 683565275, %v1799
    %v1801 = vshll.u32 683565275, %v1798
    %v1802 = vshrl.u32 2475754826, %v1799
    %v1803 = vor.u32 %v1801, %v1802
    %v1804 = vshll.u32 2475754826, %v1798
    %v1805 = vshrl.u32 2131351028, %v1799
    %v1806 = vor.u32 %v1804, %v1805
    %v1807 = vshll.u32 2131351028, %v1798
    %v1808 = vshrl.u32 2102212464, %v1799
    %v1809 = vor.u32 %v1807, %v1808
    %v1810 = vshll.u32 2102212464, %v1798
    %v1811 = vshrl.u32 920167782, %v1799
    %v1812 = vor.u32 %v1810, %v1811
    %v1813 = vshll.u32 920167782, %v1798
    %v1814 = vshrl.u32 1326507024, %v1799
    %v1815 = vor.u32 %v1813, %v1814
    %vm1816 = vcmp.lt.s32.totalorder %v1797, 1
    %vm1817 = vcmp.lt.s32.totalorder %v1797, 2
    %vm1818 = vcmp.lt.s32.totalorder %v1797, 3
    %vm1819 = vcmp.lt.s32.totalorder %v1797, 4
    %v1820 = vsel %vm1816, %v1800, %v1803
    %v1821 = vsel %vm1819, %v1809, 2102212464
    %v1822 = vsel %vm1818, %v1806, %v1821
    %v1823 = vsel %vm1817, %v1820, %v1822
    %v1824 = vsel %vm1816, %v1803, %v1806
    %v1825 = vsel %vm1819, %v1812, 920167782
    %v1826 = vsel %vm1818, %v1809, %v1825
    %v1827 = vsel %vm1817, %v1824, %v1826
    %v1828 = vsel %vm1816, %v1806, %v1809
    %v1829 = vsel %vm1819, %v1815, 1326507024
    %v1830 = vsel %vm1818, %v1812, %v1829
    %v1831 = vsel %vm1817, %v1828, %v1830
    %v1832 = vshll.u32 %v1792, 8
    %v1833 = vmul.u32.u64.compose %v1832, %v1831
    %v1834 = vextract.low.u32 %v1833
    %v1835 = vextract.high.u32 %v1833
    %v1836 = vmul.u32.u64.compose %v1832, %v1827
    %v1837 = vextract.low.u32 %v1836
    %v1838 = vextract.high.u32 %v1836
    %v1839 = vmul.u32 %v1832, %v1823
    %v1840 = vadd.s32 %v1835, %v1837
    %vm1841 = vc.u32 %v1835, %v1837
    %v1842 = vadd.s32 %v1838, 1
    %v1843 = vsel %vm1841, %v1842, %v1838
    %v1844 = vadd.s32 %v1839, %v1843
    %v1845 = vadd.s32 %v1844, 536870912
    %v1846 = vshrl.u32 %v1845, 30
    %v1847 = vshll.u32 %v1846, 30
    %v1848 = vsub.s32 %v1844, %v1847
    %vm1849 = vcmp.lt.s32.totalorder %v1848, 0
    %v1850 = vsub.s32 0, %v1848
    %v1851 = vsel %vm1849, %v1850, %v1848
    %v1852 = vclz %v1851
    %v1853 = vsub.s32 %v1852, 2
    %vm1854 = vcmp.gt.s32.totalorder 0, %v1853
    %v1855 = vsel %vm1854, 0, %v1853
    %v1856 = vsub.s32 32, %v1855
    %v1857 = vshll.u32 %v1848, %v1855
    %v1858 = vshrl.u32 %v1840, %v1856
    %v1859 = vor.u32 %v1857, %v1858
    %v1860 = vsub.s32 4294967266, %v1855
    %v1861 = vadd.s32 %v1860, 127
    %v1862 = vshll.u32 %v1861, 23
    %v1863 = vor.u32 4788187, %v1862
    %v1864 = vand.u32 2147483647, %v1863
    %v1866 = vcvt.s32.f32 %v1859
    %v1867 = vmul.f32 %v1866, %v1864
    %v1868 = vxor.u32 %v1867, 2147483648
    %v1869 = vsel %vm1786, %v1868, %v1867
    %v1870 = vsub.s32 4, %v1846
    %v1871 = vsel %vm1786, %v1870, %v1846
    %v1872 = vsel %vm1785, %v1446, %v1869
    %v1873 = vsel %vm1785, 0, %v1871
    %v1874 = vcosq.f32.pop %v1872
    %v1875 = vsinq.f32.pop %v1872
    %vm1876 = vweird.f32 %v1446
    %v1877 = vand.u32 %v1873, 3
    %vm1878 = vcmp.lt.s32.totalorder %v1877, 2
    %vm1879 = vcmp.eq.s32.totalorder %v1877, 0
    %v1880 = vxor.u32 %v1875, 2147483648
    %v1881 = vsel %vm1879, %v1874, %v1880
    %vm1882 = vcmp.eq.s32.totalorder %v1877, 2
    %v1883 = vxor.u32 %v1874, 2147483648
    %v1884 = vsel %vm1882, %v1883, %v1875
    %v1885 = vsel %vm1878, %v1881, %v1884
    %v1886 = vsel %vm1876, nan, %v1885
    %v1887 = vand.u32 2147483647, %v1447
    %vm1888 = vcmp.le.f32.partialorder %v1887, 0.7853982
    %vm1889 = vcmp.lt.s32.totalorder %v1447, 0
    %v1890 = vand.u32 %v1447, 2139095040
    %v1891 = vshrl.u32 %v1890, 23
    %v1892 = vsub.s32 %v1891, 127
    %v1893 = vand.u32 2147483647, %v1447
    %v1894 = vand.u32 %v1893, 8388607
    %v1895 = vor.u32 %v1894, 8388608
    %v1896 = vsub.s32 0, %v1895
    %v1897 = vadd.s32 %v1892, 1
    %vm1898 = vcmp.gt.s32.totalorder %v1897, 0
    %v1899 = vsel %vm1898, %v1897, 0
    %v1900 = vshrl.u32 %v1899, 5
    %v1901 = vand.u32 %v1899, 31
    %v1902 = vsub.s32 32, %v1901
    %v1903 = vshrl.u32 683565275, %v1902
    %v1904 = vshll.u32 683565275, %v1901
    %v1905 = vshrl.u32 2475754826, %v1902
    %v1906 = vor.u32 %v1904, %v1905
    %v1907 = vshll.u32 2475754826, %v1901
    %v1908 = vshrl.u32 2131351028, %v1902
    %v1909 = vor.u32 %v1907, %v1908
    %v1910 = vshll.u32 2131351028, %v1901
    %v1911 = vshrl.u32 2102212464, %v1902
    %v1912 = vor.u32 %v1910, %v1911
    %v1913 = vshll.u32 2102212464, %v1901
    %v1914 = vshrl.u32 920167782, %v1902
    %v1915 = vor.u32 %v1913, %v1914
    %v1916 = vshll.u32 920167782, %v1901
    %v1917 = vshrl.u32 1326507024, %v1902
    %v1918 = vor.u32 %v1916, %v1917
    %vm1919 = vcmp.lt.s32.totalorder %v1900, 1
    %vm1920 = vcmp.lt.s32.totalorder %v1900, 2
    %vm1921 = vcmp.lt.s32.totalorder %v1900, 3
    %vm1922 = vcmp.lt.s32.totalorder %v1900, 4
    %v1923 = vsel %vm1919, %v1903, %v1906
    %v1924 = vsel %vm1922, %v1912, 2102212464
    %v1925 = vsel %vm1921, %v1909, %v1924
    %v1926 = vsel %vm1920, %v1923, %v1925
    %v1927 = vsel %vm1919, %v1906, %v1909
    %v1928 = vsel %vm1922, %v1915, 920167782
    %v1929 = vsel %vm1921, %v1912, %v1928
    %v1930 = vsel %vm1920, %v1927, %v1929
    %v1931 = vsel %vm1919, %v1909, %v1912
    %v1932 = vsel %vm1922, %v1918, 1326507024
    %v1933 = vsel %vm1921, %v1915, %v1932
    %v1934 = vsel %vm1920, %v1931, %v1933
    %v1935 = vshll.u32 %v1895, 8
    %v1936 = vmul.u32.u64.compose %v1935, %v1934
    %v1937 = vextract.low.u32 %v1936
    %v1938 = vextract.high.u32 %v1936
    %v1939 = vmul.u32.u64.compose %v1935, %v1930
    %v1940 = vextract.low.u32 %v1939
    %v1941 = vextract.high.u32 %v1939
    %v1942 = vmul.u32 %v1935, %v1926
    %v1943 = vadd.s32 %v1938, %v1940
    %vm1944 = vc.u32 %v1938, %v1940
    %v1945 = vadd.s32 %v1941, 1
    %v1946 = vsel %vm1944, %v1945, %v1941
    %v1947 = vadd.s32 %v1942, %v1946
    %v1948 = vadd.s32 %v1947, 536870912
    %v1949 = vshrl.u32 %v1948, 30
    %v1950 = vshll.u32 %v1949, 30
    %v1951 = vsub.s32 %v1947, %v1950
    %vm1952 = vcmp.lt.s32.totalorder %v1951, 0
    %v1953 = vsub.s32 0, %v1951
    %v1954 = vsel %vm1952, %v1953, %v1951
    %v1955 = vclz %v1954
    %v1956 = vsub.s32 %v1955, 2
    %vm1957 = vcmp.gt.s32.totalorder 0, %v1956
    %v1958 = vsel %vm1957, 0, %v1956
    %v1959 = vsub.s32 32, %v1958
    %v1960 = vshll.u32 %v1951, %v1958
    %v1961 = vshrl.u32 %v1943, %v1959
    %v1962 = vor.u32 %v1960, %v1961
    %v1963 = vsub.s32 4294967266, %v1958
    %v1964 = vadd.s32 %v1963, 127
    %v1965 = vshll.u32 %v1964, 23
    %v1966 = vor.u32 4788187, %v1965
    %v1967 = vand.u32 2147483647, %v1966
    %v1969 = vcvt.s32.f32 %v1962
    %v1970 = vmul.f32 %v1969, %v1967
    %v1971 = vxor.u32 %v1970, 2147483648
    %v1972 = vsel %vm1889, %v1971, %v1970
    %v1973 = vsub.s32 4, %v1949
    %v1974 = vsel %vm1889, %v1973, %v1949
    %v1975 = vsel %vm1888, %v1447, %v1972
    %v1976 = vsel %vm1888, 0, %v1974
    %v1977 = vcosq.f32.pop %v1975
    %v1978 = vsinq.f32.pop %v1975
    %vm1979 = vweird.f32 %v1447
    %v1980 = vand.u32 %v1976, 3
    %vm1981 = vcmp.lt.s32.totalorder %v1980, 2
    %vm1982 = vcmp.eq.s32.totalorder %v1980, 0
    %v1983 = vxor.u32 %v1978, 2147483648
    %v1984 = vsel %vm1982, %v1977, %v1983
    %vm1985 = vcmp.eq.s32.totalorder %v1980, 2
    %v1986 = vxor.u32 %v1977, 2147483648
    %v1987 = vsel %vm1985, %v1986, %v1978
    %v1988 = vsel %vm1981, %v1984, %v1987
    %v1989 = vsel %vm1979, nan, %v1988
    %v1990 = vand.u32 2147483647, %v1448
    %vm1991 = vcmp.le.f32.partialorder %v1990, 0.7853982
    %vm1992 = vcmp.lt.s32.totalorder %v1448, 0
    %v1993 = vand.u32 %v1448, 2139095040
    %v1994 = vshrl.u32 %v1993, 23
    %v1995 = vsub.s32 %v1994, 127
    %v1996 = vand.u32 2147483647, %v1448
    %v1997 = vand.u32 %v1996, 8388607
    %v1998 = vor.u32 %v1997, 8388608
    %v1999 = vsub.s32 0, %v1998
    %v2000 = vadd.s32 %v1995, 1
    %vm2001 = vcmp.gt.s32.totalorder %v2000, 0
    %v2002 = vsel %vm2001, %v2000, 0
    %v2003 = vshrl.u32 %v2002, 5
    %v2004 = vand.u32 %v2002, 31
    %v2005 = vsub.s32 32, %v2004
    %v2006 = vshrl.u32 683565275, %v2005
    %v2007 = vshll.u32 683565275, %v2004
    %v2008 = vshrl.u32 2475754826, %v2005
    %v2009 = vor.u32 %v2007, %v2008
    %v2010 = vshll.u32 2475754826, %v2004
    %v2011 = vshrl.u32 2131351028, %v2005
    %v2012 = vor.u32 %v2010, %v2011
    %v2013 = vshll.u32 2131351028, %v2004
    %v2014 = vshrl.u32 2102212464, %v2005
    %v2015 = vor.u32 %v2013, %v2014
    %v2016 = vshll.u32 2102212464, %v2004
    %v2017 = vshrl.u32 920167782, %v2005
    %v2018 = vor.u32 %v2016, %v2017
    %v2019 = vshll.u32 920167782, %v2004
    %v2020 = vshrl.u32 1326507024, %v2005
    %v2021 = vor.u32 %v2019, %v2020
    %vm2022 = vcmp.lt.s32.totalorder %v2003, 1
    %vm2023 = vcmp.lt.s32.totalorder %v2003, 2
    %vm2024 = vcmp.lt.s32.totalorder %v2003, 3
    %vm2025 = vcmp.lt.s32.totalorder %v2003, 4
    %v2026 = vsel %vm2022, %v2006, %v2009
    %v2027 = vsel %vm2025, %v2015, 2102212464
    %v2028 = vsel %vm2024, %v2012, %v2027
    %v2029 = vsel %vm2023, %v2026, %v2028
    %v2030 = vsel %vm2022, %v2009, %v2012
    %v2031 = vsel %vm2025, %v2018, 920167782
    %v2032 = vsel %vm2024, %v2015, %v2031
    %v2033 = vsel %vm2023, %v2030, %v2032
    %v2034 = vsel %vm2022, %v2012, %v2015
    %v2035 = vsel %vm2025, %v2021, 1326507024
    %v2036 = vsel %vm2024, %v2018, %v2035
    %v2037 = vsel %vm2023, %v2034, %v2036
    %v2038 = vshll.u32 %v1998, 8
    %v2039 = vmul.u32.u64.compose %v2038, %v2037
    %v2040 = vextract.low.u32 %v2039
    %v2041 = vextract.high.u32 %v2039
    %v2042 = vmul.u32.u64.compose %v2038, %v2033
    %v2043 = vextract.low.u32 %v2042
    %v2044 = vextract.high.u32 %v2042
    %v2045 = vmul.u32 %v2038, %v2029
    %v2046 = vadd.s32 %v2041, %v2043
    %vm2047 = vc.u32 %v2041, %v2043
    %v2048 = vadd.s32 %v2044, 1
    %v2049 = vsel %vm2047, %v2048, %v2044
    %v2050 = vadd.s32 %v2045, %v2049
    %v2051 = vadd.s32 %v2050, 536870912
    %v2052 = vshrl.u32 %v2051, 30
    %v2053 = vshll.u32 %v2052, 30
    %v2054 = vsub.s32 %v2050, %v2053
    %vm2055 = vcmp.lt.s32.totalorder %v2054, 0
    %v2056 = vsub.s32 0, %v2054
    %v2057 = vsel %vm2055, %v2056, %v2054
    %v2058 = vclz %v2057
    %v2059 = vsub.s32 %v2058, 2
    %vm2060 = vcmp.gt.s32.totalorder 0, %v2059
    %v2061 = vsel %vm2060, 0, %v2059
    %v2062 = vsub.s32 32, %v2061
    %v2063 = vshll.u32 %v2054, %v2061
    %v2064 = vshrl.u32 %v2046, %v2062
    %v2065 = vor.u32 %v2063, %v2064
    %v2066 = vsub.s32 4294967266, %v2061
    %v2067 = vadd.s32 %v2066, 127
    %v2068 = vshll.u32 %v2067, 23
    %v2069 = vor.u32 4788187, %v2068
    %v2070 = vand.u32 2147483647, %v2069
    %v2072 = vcvt.s32.f32 %v2065
    %v2073 = vmul.f32 %v2072, %v2070
    %v2074 = vxor.u32 %v2073, 2147483648
    %v2075 = vsel %vm1992, %v2074, %v2073
    %v2076 = vsub.s32 4, %v2052
    %v2077 = vsel %vm1992, %v2076, %v2052
    %v2078 = vsel %vm1991, %v1448, %v2075
    %v2079 = vsel %vm1991, 0, %v2077
    %v2080 = vcosq.f32.pop %v2078
    %v2081 = vsinq.f32.pop %v2078
    %vm2082 = vweird.f32 %v1448
    %v2083 = vand.u32 %v2079, 3
    %vm2084 = vcmp.lt.s32.totalorder %v2083, 2
    %vm2085 = vcmp.eq.s32.totalorder %v2083, 0
    %v2086 = vxor.u32 %v2081, 2147483648
    %v2087 = vsel %vm2085, %v2080, %v2086
    %vm2088 = vcmp.eq.s32.totalorder %v2083, 2
    %v2089 = vxor.u32 %v2080, 2147483648
    %v2090 = vsel %vm2088, %v2089, %v2081
    %v2091 = vsel %vm2084, %v2087, %v2090
    %v2092 = vsel %vm2082, nan, %v2091
    %v2093 = vand.u32 2147483647, %v1449
    %vm2094 = vcmp.le.f32.partialorder %v2093, 0.7853982
    %vm2095 = vcmp.lt.s32.totalorder %v1449, 0
    %v2096 = vand.u32 %v1449, 2139095040
    %v2097 = vshrl.u32 %v2096, 23
    %v2098 = vsub.s32 %v2097, 127
    %v2099 = vand.u32 2147483647, %v1449
    %v2100 = vand.u32 %v2099, 8388607
    %v2101 = vor.u32 %v2100, 8388608
    %v2102 = vsub.s32 0, %v2101
    %v2103 = vadd.s32 %v2098, 1
    %vm2104 = vcmp.gt.s32.totalorder %v2103, 0
    %v2105 = vsel %vm2104, %v2103, 0
    %v2106 = vshrl.u32 %v2105, 5
    %v2107 = vand.u32 %v2105, 31
    %v2108 = vsub.s32 32, %v2107
    %v2109 = vshrl.u32 683565275, %v2108
    %v2110 = vshll.u32 683565275, %v2107
    %v2111 = vshrl.u32 2475754826, %v2108
    %v2112 = vor.u32 %v2110, %v2111
    %v2113 = vshll.u32 2475754826, %v2107
    %v2114 = vshrl.u32 2131351028, %v2108
    %v2115 = vor.u32 %v2113, %v2114
    %v2116 = vshll.u32 2131351028, %v2107
    %v2117 = vshrl.u32 2102212464, %v2108
    %v2118 = vor.u32 %v2116, %v2117
    %v2119 = vshll.u32 2102212464, %v2107
    %v2120 = vshrl.u32 920167782, %v2108
    %v2121 = vor.u32 %v2119, %v2120
    %v2122 = vshll.u32 920167782, %v2107
    %v2123 = vshrl.u32 1326507024, %v2108
    %v2124 = vor.u32 %v2122, %v2123
    %vm2125 = vcmp.lt.s32.totalorder %v2106, 1
    %vm2126 = vcmp.lt.s32.totalorder %v2106, 2
    %vm2127 = vcmp.lt.s32.totalorder %v2106, 3
    %vm2128 = vcmp.lt.s32.totalorder %v2106, 4
    %v2129 = vsel %vm2125, %v2109, %v2112
    %v2130 = vsel %vm2128, %v2118, 2102212464
    %v2131 = vsel %vm2127, %v2115, %v2130
    %v2132 = vsel %vm2126, %v2129, %v2131
    %v2133 = vsel %vm2125, %v2112, %v2115
    %v2134 = vsel %vm2128, %v2121, 920167782
    %v2135 = vsel %vm2127, %v2118, %v2134
    %v2136 = vsel %vm2126, %v2133, %v2135
    %v2137 = vsel %vm2125, %v2115, %v2118
    %v2138 = vsel %vm2128, %v2124, 1326507024
    %v2139 = vsel %vm2127, %v2121, %v2138
    %v2140 = vsel %vm2126, %v2137, %v2139
    %v2141 = vshll.u32 %v2101, 8
    %v2142 = vmul.u32.u64.compose %v2141, %v2140
    %v2143 = vextract.low.u32 %v2142
    %v2144 = vextract.high.u32 %v2142
    %v2145 = vmul.u32.u64.compose %v2141, %v2136
    %v2146 = vextract.low.u32 %v2145
    %v2147 = vextract.high.u32 %v2145
    %v2148 = vmul.u32 %v2141, %v2132
    %v2149 = vadd.s32 %v2144, %v2146
    %vm2150 = vc.u32 %v2144, %v2146
    %v2151 = vadd.s32 %v2147, 1
    %v2152 = vsel %vm2150, %v2151, %v2147
    %v2153 = vadd.s32 %v2148, %v2152
    %v2154 = vadd.s32 %v2153, 536870912
    %v2155 = vshrl.u32 %v2154, 30
    %v2156 = vshll.u32 %v2155, 30
    %v2157 = vsub.s32 %v2153, %v2156
    %vm2158 = vcmp.lt.s32.totalorder %v2157, 0
    %v2159 = vsub.s32 0, %v2157
    %v2160 = vsel %vm2158, %v2159, %v2157
    %v2161 = vclz %v2160
    %v2162 = vsub.s32 %v2161, 2
    %vm2163 = vcmp.gt.s32.totalorder 0, %v2162
    %v2164 = vsel %vm2163, 0, %v2162
    %v2165 = vsub.s32 32, %v2164
    %v2166 = vshll.u32 %v2157, %v2164
    %v2167 = vshrl.u32 %v2149, %v2165
    %v2168 = vor.u32 %v2166, %v2167
    %v2169 = vsub.s32 4294967266, %v2164
    %v2170 = vadd.s32 %v2169, 127
    %v2171 = vshll.u32 %v2170, 23
    %v2172 = vor.u32 4788187, %v2171
    %v2173 = vand.u32 2147483647, %v2172
    %v2175 = vcvt.s32.f32 %v2168
    %v2176 = vmul.f32 %v2175, %v2173
    %v2177 = vxor.u32 %v2176, 2147483648
    %v2178 = vsel %vm2095, %v2177, %v2176
    %v2179 = vsub.s32 4, %v2155
    %v2180 = vsel %vm2095, %v2179, %v2155
    %v2181 = vsel %vm2094, %v1449, %v2178
    %v2182 = vsel %vm2094, 0, %v2180
    %v2183 = vcosq.f32.pop %v2181
    %v2184 = vsinq.f32.pop %v2181
    %vm2185 = vweird.f32 %v1449
    %v2186 = vand.u32 %v2182, 3
    %vm2187 = vcmp.lt.s32.totalorder %v2186, 2
    %vm2188 = vcmp.eq.s32.totalorder %v2186, 0
    %v2189 = vxor.u32 %v2184, 2147483648
    %v2190 = vsel %vm2188, %v2183, %v2189
    %vm2191 = vcmp.eq.s32.totalorder %v2186, 2
    %v2192 = vxor.u32 %v2183, 2147483648
    %v2193 = vsel %vm2191, %v2192, %v2184
    %v2194 = vsel %vm2187, %v2190, %v2193
    %v2195 = vsel %vm2185, nan, %v2194
    %v2196 = vand.u32 2147483647, %v1450
    %vm2197 = vcmp.le.f32.partialorder %v2196, 0.7853982
    %vm2198 = vcmp.lt.s32.totalorder %v1450, 0
    %v2199 = vand.u32 %v1450, 2139095040
    %v2200 = vshrl.u32 %v2199, 23
    %v2201 = vsub.s32 %v2200, 127
    %v2202 = vand.u32 2147483647, %v1450
    %v2203 = vand.u32 %v2202, 8388607
    %v2204 = vor.u32 %v2203, 8388608
    %v2205 = vsub.s32 0, %v2204
    %v2206 = vadd.s32 %v2201, 1
    %vm2207 = vcmp.gt.s32.totalorder %v2206, 0
    %v2208 = vsel %vm2207, %v2206, 0
    %v2209 = vshrl.u32 %v2208, 5
    %v2210 = vand.u32 %v2208, 31
    %v2211 = vsub.s32 32, %v2210
    %v2212 = vshrl.u32 683565275, %v2211
    %v2213 = vshll.u32 683565275, %v2210
    %v2214 = vshrl.u32 2475754826, %v2211
    %v2215 = vor.u32 %v2213, %v2214
    %v2216 = vshll.u32 2475754826, %v2210
    %v2217 = vshrl.u32 2131351028, %v2211
    %v2218 = vor.u32 %v2216, %v2217
    %v2219 = vshll.u32 2131351028, %v2210
    %v2220 = vshrl.u32 2102212464, %v2211
    %v2221 = vor.u32 %v2219, %v2220
    %v2222 = vshll.u32 2102212464, %v2210
    %v2223 = vshrl.u32 920167782, %v2211
    %v2224 = vor.u32 %v2222, %v2223
    %v2225 = vshll.u32 920167782, %v2210
    %v2226 = vshrl.u32 1326507024, %v2211
    %v2227 = vor.u32 %v2225, %v2226
    %vm2228 = vcmp.lt.s32.totalorder %v2209, 1
    %vm2229 = vcmp.lt.s32.totalorder %v2209, 2
    %vm2230 = vcmp.lt.s32.totalorder %v2209, 3
    %vm2231 = vcmp.lt.s32.totalorder %v2209, 4
    %v2232 = vsel %vm2228, %v2212, %v2215
    %v2233 = vsel %vm2231, %v2221, 2102212464
    %v2234 = vsel %vm2230, %v2218, %v2233
    %v2235 = vsel %vm2229, %v2232, %v2234
    %v2236 = vsel %vm2228, %v2215, %v2218
    %v2237 = vsel %vm2231, %v2224, 920167782
    %v2238 = vsel %vm2230, %v2221, %v2237
    %v2239 = vsel %vm2229, %v2236, %v2238
    %v2240 = vsel %vm2228, %v2218, %v2221
    %v2241 = vsel %vm2231, %v2227, 1326507024
    %v2242 = vsel %vm2230, %v2224, %v2241
    %v2243 = vsel %vm2229, %v2240, %v2242
    %v2244 = vshll.u32 %v2204, 8
    %v2245 = vmul.u32.u64.compose %v2244, %v2243
    %v2246 = vextract.low.u32 %v2245
    %v2247 = vextract.high.u32 %v2245
    %v2248 = vmul.u32.u64.compose %v2244, %v2239
    %v2249 = vextract.low.u32 %v2248
    %v2250 = vextract.high.u32 %v2248
    %v2251 = vmul.u32 %v2244, %v2235
    %v2252 = vadd.s32 %v2247, %v2249
    %vm2253 = vc.u32 %v2247, %v2249
    %v2254 = vadd.s32 %v2250, 1
    %v2255 = vsel %vm2253, %v2254, %v2250
    %v2256 = vadd.s32 %v2251, %v2255
    %v2257 = vadd.s32 %v2256, 536870912
    %v2258 = vshrl.u32 %v2257, 30
    %v2259 = vshll.u32 %v2258, 30
    %v2260 = vsub.s32 %v2256, %v2259
    %vm2261 = vcmp.lt.s32.totalorder %v2260, 0
    %v2262 = vsub.s32 0, %v2260
    %v2263 = vsel %vm2261, %v2262, %v2260
    %v2264 = vclz %v2263
    %v2265 = vsub.s32 %v2264, 2
    %vm2266 = vcmp.gt.s32.totalorder 0, %v2265
    %v2267 = vsel %vm2266, 0, %v2265
    %v2268 = vsub.s32 32, %v2267
    %v2269 = vshll.u32 %v2260, %v2267
    %v2270 = vshrl.u32 %v2252, %v2268
    %v2271 = vor.u32 %v2269, %v2270
    %v2272 = vsub.s32 4294967266, %v2267
    %v2273 = vadd.s32 %v2272, 127
    %v2274 = vshll.u32 %v2273, 23
    %v2275 = vor.u32 4788187, %v2274
    %v2276 = vand.u32 2147483647, %v2275
    %v2278 = vcvt.s32.f32 %v2271
    %v2279 = vmul.f32 %v2278, %v2276
    %v2280 = vxor.u32 %v2279, 2147483648
    %v2281 = vsel %vm2198, %v2280, %v2279
    %v2282 = vsub.s32 4, %v2258
    %v2283 = vsel %vm2198, %v2282, %v2258
    %v2284 = vsel %vm2197, %v1450, %v2281
    %v2285 = vsel %vm2197, 0, %v2283
    %v2286 = vcosq.f32.pop %v2284
    %v2287 = vsinq.f32.pop %v2284
    %vm2288 = vweird.f32 %v1450
    %v2289 = vand.u32 %v2285, 3
    %vm2290 = vcmp.lt.s32.totalorder %v2289, 2
    %vm2291 = vcmp.eq.s32.totalorder %v2289, 0
    %v2292 = vxor.u32 %v2287, 2147483648
    %v2293 = vsel %vm2291, %v2286, %v2292
    %vm2294 = vcmp.eq.s32.totalorder %v2289, 2
    %v2295 = vxor.u32 %v2286, 2147483648
    %v2296 = vsel %vm2294, %v2295, %v2287
    %v2297 = vsel %vm2290, %v2293, %v2296
    %v2298 = vsel %vm2288, nan, %v2297
    %v2299 = vand.u32 2147483647, %v1451
    %vm2300 = vcmp.le.f32.partialorder %v2299, 0.7853982
    %vm2301 = vcmp.lt.s32.totalorder %v1451, 0
    %v2302 = vand.u32 %v1451, 2139095040
    %v2303 = vshrl.u32 %v2302, 23
    %v2304 = vsub.s32 %v2303, 127
    %v2305 = vand.u32 2147483647, %v1451
    %v2306 = vand.u32 %v2305, 8388607
    %v2307 = vor.u32 %v2306, 8388608
    %v2308 = vsub.s32 0, %v2307
    %v2309 = vadd.s32 %v2304, 1
    %vm2310 = vcmp.gt.s32.totalorder %v2309, 0
    %v2311 = vsel %vm2310, %v2309, 0
    %v2312 = vshrl.u32 %v2311, 5
    %v2313 = vand.u32 %v2311, 31
    %v2314 = vsub.s32 32, %v2313
    %v2315 = vshrl.u32 683565275, %v2314
    %v2316 = vshll.u32 683565275, %v2313
    %v2317 = vshrl.u32 2475754826, %v2314
    %v2318 = vor.u32 %v2316, %v2317
    %v2319 = vshll.u32 2475754826, %v2313
    %v2320 = vshrl.u32 2131351028, %v2314
    %v2321 = vor.u32 %v2319, %v2320
    %v2322 = vshll.u32 2131351028, %v2313
    %v2323 = vshrl.u32 2102212464, %v2314
    %v2324 = vor.u32 %v2322, %v2323
    %v2325 = vshll.u32 2102212464, %v2313
    %v2326 = vshrl.u32 920167782, %v2314
    %v2327 = vor.u32 %v2325, %v2326
    %v2328 = vshll.u32 920167782, %v2313
    %v2329 = vshrl.u32 1326507024, %v2314
    %v2330 = vor.u32 %v2328, %v2329
    %vm2331 = vcmp.lt.s32.totalorder %v2312, 1
    %vm2332 = vcmp.lt.s32.totalorder %v2312, 2
    %vm2333 = vcmp.lt.s32.totalorder %v2312, 3
    %vm2334 = vcmp.lt.s32.totalorder %v2312, 4
    %v2335 = vsel %vm2331, %v2315, %v2318
    %v2336 = vsel %vm2334, %v2324, 2102212464
    %v2337 = vsel %vm2333, %v2321, %v2336
    %v2338 = vsel %vm2332, %v2335, %v2337
    %v2339 = vsel %vm2331, %v2318, %v2321
    %v2340 = vsel %vm2334, %v2327, 920167782
    %v2341 = vsel %vm2333, %v2324, %v2340
    %v2342 = vsel %vm2332, %v2339, %v2341
    %v2343 = vsel %vm2331, %v2321, %v2324
    %v2344 = vsel %vm2334, %v2330, 1326507024
    %v2345 = vsel %vm2333, %v2327, %v2344
    %v2346 = vsel %vm2332, %v2343, %v2345
    %v2347 = vshll.u32 %v2307, 8
    %v2348 = vmul.u32.u64.compose %v2347, %v2346
    %v2349 = vextract.low.u32 %v2348
    %v2350 = vextract.high.u32 %v2348
    %v2351 = vmul.u32.u64.compose %v2347, %v2342
    %v2352 = vextract.low.u32 %v2351
    %v2353 = vextract.high.u32 %v2351
    %v2354 = vmul.u32 %v2347, %v2338
    %v2355 = vadd.s32 %v2350, %v2352
    %vm2356 = vc.u32 %v2350, %v2352
    %v2357 = vadd.s32 %v2353, 1
    %v2358 = vsel %vm2356, %v2357, %v2353
    %v2359 = vadd.s32 %v2354, %v2358
    %v2360 = vadd.s32 %v2359, 536870912
    %v2361 = vshrl.u32 %v2360, 30
    %v2362 = vshll.u32 %v2361, 30
    %v2363 = vsub.s32 %v2359, %v2362
    %vm2364 = vcmp.lt.s32.totalorder %v2363, 0
    %v2365 = vsub.s32 0, %v2363
    %v2366 = vsel %vm2364, %v2365, %v2363
    %v2367 = vclz %v2366
    %v2368 = vsub.s32 %v2367, 2
    %vm2369 = vcmp.gt.s32.totalorder 0, %v2368
    %v2370 = vsel %vm2369, 0, %v2368
    %v2371 = vsub.s32 32, %v2370
    %v2372 = vshll.u32 %v2363, %v2370
    %v2373 = vshrl.u32 %v2355, %v2371
    %v2374 = vor.u32 %v2372, %v2373
    %v2375 = vsub.s32 4294967266, %v2370
    %v2376 = vadd.s32 %v2375, 127
    %v2377 = vshll.u32 %v2376, 23
    %v2378 = vor.u32 4788187, %v2377
    %v2379 = vand.u32 2147483647, %v2378
    %v2381 = vcvt.s32.f32 %v2374
    %v2382 = vmul.f32 %v2381, %v2379
    %v2383 = vxor.u32 %v2382, 2147483648
    %v2384 = vsel %vm2301, %v2383, %v2382
    %v2385 = vsub.s32 4, %v2361
    %v2386 = vsel %vm2301, %v2385, %v2361
    %v2387 = vsel %vm2300, %v1451, %v2384
    %v2388 = vsel %vm2300, 0, %v2386
    %v2389 = vcosq.f32.pop %v2387
    %v2390 = vsinq.f32.pop %v2387
    %vm2391 = vweird.f32 %v1451
    %v2392 = vand.u32 %v2388, 3
    %vm2393 = vcmp.lt.s32.totalorder %v2392, 2
    %vm2394 = vcmp.eq.s32.totalorder %v2392, 0
    %v2395 = vxor.u32 %v2390, 2147483648
    %v2396 = vsel %vm2394, %v2389, %v2395
    %vm2397 = vcmp.eq.s32.totalorder %v2392, 2
    %v2398 = vxor.u32 %v2389, 2147483648
    %v2399 = vsel %vm2397, %v2398, %v2390
    %v2400 = vsel %vm2393, %v2396, %v2399
    %v2401 = vsel %vm2391, nan, %v2400
    %v2402 = vand.u32 2147483647, %v1452
    %vm2403 = vcmp.le.f32.partialorder %v2402, 0.7853982
    %vm2404 = vcmp.lt.s32.totalorder %v1452, 0
    %v2405 = vand.u32 %v1452, 2139095040
    %v2406 = vshrl.u32 %v2405, 23
    %v2407 = vsub.s32 %v2406, 127
    %v2408 = vand.u32 2147483647, %v1452
    %v2409 = vand.u32 %v2408, 8388607
    %v2410 = vor.u32 %v2409, 8388608
    %v2411 = vsub.s32 0, %v2410
    %v2412 = vadd.s32 %v2407, 1
    %vm2413 = vcmp.gt.s32.totalorder %v2412, 0
    %v2414 = vsel %vm2413, %v2412, 0
    %v2415 = vshrl.u32 %v2414, 5
    %v2416 = vand.u32 %v2414, 31
    %v2417 = vsub.s32 32, %v2416
    %v2418 = vshrl.u32 683565275, %v2417
    %v2419 = vshll.u32 683565275, %v2416
    %v2420 = vshrl.u32 2475754826, %v2417
    %v2421 = vor.u32 %v2419, %v2420
    %v2422 = vshll.u32 2475754826, %v2416
    %v2423 = vshrl.u32 2131351028, %v2417
    %v2424 = vor.u32 %v2422, %v2423
    %v2425 = vshll.u32 2131351028, %v2416
    %v2426 = vshrl.u32 2102212464, %v2417
    %v2427 = vor.u32 %v2425, %v2426
    %v2428 = vshll.u32 2102212464, %v2416
    %v2429 = vshrl.u32 920167782, %v2417
    %v2430 = vor.u32 %v2428, %v2429
    %v2431 = vshll.u32 920167782, %v2416
    %v2432 = vshrl.u32 1326507024, %v2417
    %v2433 = vor.u32 %v2431, %v2432
    %vm2434 = vcmp.lt.s32.totalorder %v2415, 1
    %vm2435 = vcmp.lt.s32.totalorder %v2415, 2
    %vm2436 = vcmp.lt.s32.totalorder %v2415, 3
    %vm2437 = vcmp.lt.s32.totalorder %v2415, 4
    %v2438 = vsel %vm2434, %v2418, %v2421
    %v2439 = vsel %vm2437, %v2427, 2102212464
    %v2440 = vsel %vm2436, %v2424, %v2439
    %v2441 = vsel %vm2435, %v2438, %v2440
    %v2442 = vsel %vm2434, %v2421, %v2424
    %v2443 = vsel %vm2437, %v2430, 920167782
    %v2444 = vsel %vm2436, %v2427, %v2443
    %v2445 = vsel %vm2435, %v2442, %v2444
    %v2446 = vsel %vm2434, %v2424, %v2427
    %v2447 = vsel %vm2437, %v2433, 1326507024
    %v2448 = vsel %vm2436, %v2430, %v2447
    %v2449 = vsel %vm2435, %v2446, %v2448
    %v2450 = vshll.u32 %v2410, 8
    %v2451 = vmul.u32.u64.compose %v2450, %v2449
    %v2452 = vextract.low.u32 %v2451
    %v2453 = vextract.high.u32 %v2451
    %v2454 = vmul.u32.u64.compose %v2450, %v2445
    %v2455 = vextract.low.u32 %v2454
    %v2456 = vextract.high.u32 %v2454
    %v2457 = vmul.u32 %v2450, %v2441
    %v2458 = vadd.s32 %v2453, %v2455
    %vm2459 = vc.u32 %v2453, %v2455
    %v2460 = vadd.s32 %v2456, 1
    %v2461 = vsel %vm2459, %v2460, %v2456
    %v2462 = vadd.s32 %v2457, %v2461
    %v2463 = vadd.s32 %v2462, 536870912
    %v2464 = vshrl.u32 %v2463, 30
    %v2465 = vshll.u32 %v2464, 30
    %v2466 = vsub.s32 %v2462, %v2465
    %vm2467 = vcmp.lt.s32.totalorder %v2466, 0
    %v2468 = vsub.s32 0, %v2466
    %v2469 = vsel %vm2467, %v2468, %v2466
    %v2470 = vclz %v2469
    %v2471 = vsub.s32 %v2470, 2
    %vm2472 = vcmp.gt.s32.totalorder 0, %v2471
    %v2473 = vsel %vm2472, 0, %v2471
    %v2474 = vsub.s32 32, %v2473
    %v2475 = vshll.u32 %v2466, %v2473
    %v2476 = vshrl.u32 %v2458, %v2474
    %v2477 = vor.u32 %v2475, %v2476
    %v2478 = vsub.s32 4294967266, %v2473
    %v2479 = vadd.s32 %v2478, 127
    %v2480 = vshll.u32 %v2479, 23
    %v2481 = vor.u32 4788187, %v2480
    %v2482 = vand.u32 2147483647, %v2481
    %v2484 = vcvt.s32.f32 %v2477
    %v2485 = vmul.f32 %v2484, %v2482
    %v2486 = vxor.u32 %v2485, 2147483648
    %v2487 = vsel %vm2404, %v2486, %v2485
    %v2488 = vsub.s32 4, %v2464
    %v2489 = vsel %vm2404, %v2488, %v2464
    %v2490 = vsel %vm2403, %v1452, %v2487
    %v2491 = vsel %vm2403, 0, %v2489
    %v2492 = vcosq.f32.pop %v2490
    %v2493 = vsinq.f32.pop %v2490
    %vm2494 = vweird.f32 %v1452
    %v2495 = vand.u32 %v2491, 3
    %vm2496 = vcmp.lt.s32.totalorder %v2495, 2
    %vm2497 = vcmp.eq.s32.totalorder %v2495, 0
    %v2498 = vxor.u32 %v2493, 2147483648
    %v2499 = vsel %vm2497, %v2492, %v2498
    %vm2500 = vcmp.eq.s32.totalorder %v2495, 2
    %v2501 = vxor.u32 %v2492, 2147483648
    %v2502 = vsel %vm2500, %v2501, %v2493
    %v2503 = vsel %vm2496, %v2499, %v2502
    %v2504 = vsel %vm2494, nan, %v2503
    %v2505 = vand.u32 2147483647, %v1453
    %vm2506 = vcmp.le.f32.partialorder %v2505, 0.7853982
    %vm2507 = vcmp.lt.s32.totalorder %v1453, 0
    %v2508 = vand.u32 %v1453, 2139095040
    %v2509 = vshrl.u32 %v2508, 23
    %v2510 = vsub.s32 %v2509, 127
    %v2511 = vand.u32 2147483647, %v1453
    %v2512 = vand.u32 %v2511, 8388607
    %v2513 = vor.u32 %v2512, 8388608
    %v2514 = vsub.s32 0, %v2513
    %v2515 = vadd.s32 %v2510, 1
    %vm2516 = vcmp.gt.s32.totalorder %v2515, 0
    %v2517 = vsel %vm2516, %v2515, 0
    %v2518 = vshrl.u32 %v2517, 5
    %v2519 = vand.u32 %v2517, 31
    %v2520 = vsub.s32 32, %v2519
    %v2521 = vshrl.u32 683565275, %v2520
    %v2522 = vshll.u32 683565275, %v2519
    %v2523 = vshrl.u32 2475754826, %v2520
    %v2524 = vor.u32 %v2522, %v2523
    %v2525 = vshll.u32 2475754826, %v2519
    %v2526 = vshrl.u32 2131351028, %v2520
    %v2527 = vor.u32 %v2525, %v2526
    %v2528 = vshll.u32 2131351028, %v2519
    %v2529 = vshrl.u32 2102212464, %v2520
    %v2530 = vor.u32 %v2528, %v2529
    %v2531 = vshll.u32 2102212464, %v2519
    %v2532 = vshrl.u32 920167782, %v2520
    %v2533 = vor.u32 %v2531, %v2532
    %v2534 = vshll.u32 920167782, %v2519
    %v2535 = vshrl.u32 1326507024, %v2520
    %v2536 = vor.u32 %v2534, %v2535
    %vm2537 = vcmp.lt.s32.totalorder %v2518, 1
    %vm2538 = vcmp.lt.s32.totalorder %v2518, 2
    %vm2539 = vcmp.lt.s32.totalorder %v2518, 3
    %vm2540 = vcmp.lt.s32.totalorder %v2518, 4
    %v2541 = vsel %vm2537, %v2521, %v2524
    %v2542 = vsel %vm2540, %v2530, 2102212464
    %v2543 = vsel %vm2539, %v2527, %v2542
    %v2544 = vsel %vm2538, %v2541, %v2543
    %v2545 = vsel %vm2537, %v2524, %v2527
    %v2546 = vsel %vm2540, %v2533, 920167782
    %v2547 = vsel %vm2539, %v2530, %v2546
    %v2548 = vsel %vm2538, %v2545, %v2547
    %v2549 = vsel %vm2537, %v2527, %v2530
    %v2550 = vsel %vm2540, %v2536, 1326507024
    %v2551 = vsel %vm2539, %v2533, %v2550
    %v2552 = vsel %vm2538, %v2549, %v2551
    %v2553 = vshll.u32 %v2513, 8
    %v2554 = vmul.u32.u64.compose %v2553, %v2552
    %v2555 = vextract.low.u32 %v2554
    %v2556 = vextract.high.u32 %v2554
    %v2557 = vmul.u32.u64.compose %v2553, %v2548
    %v2558 = vextract.low.u32 %v2557
    %v2559 = vextract.high.u32 %v2557
    %v2560 = vmul.u32 %v2553, %v2544
    %v2561 = vadd.s32 %v2556, %v2558
    %vm2562 = vc.u32 %v2556, %v2558
    %v2563 = vadd.s32 %v2559, 1
    %v2564 = vsel %vm2562, %v2563, %v2559
    %v2565 = vadd.s32 %v2560, %v2564
    %v2566 = vadd.s32 %v2565, 536870912
    %v2567 = vshrl.u32 %v2566, 30
    %v2568 = vshll.u32 %v2567, 30
    %v2569 = vsub.s32 %v2565, %v2568
    %vm2570 = vcmp.lt.s32.totalorder %v2569, 0
    %v2571 = vsub.s32 0, %v2569
    %v2572 = vsel %vm2570, %v2571, %v2569
    %v2573 = vclz %v2572
    %v2574 = vsub.s32 %v2573, 2
    %vm2575 = vcmp.gt.s32.totalorder 0, %v2574
    %v2576 = vsel %vm2575, 0, %v2574
    %v2577 = vsub.s32 32, %v2576
    %v2578 = vshll.u32 %v2569, %v2576
    %v2579 = vshrl.u32 %v2561, %v2577
    %v2580 = vor.u32 %v2578, %v2579
    %v2581 = vsub.s32 4294967266, %v2576
    %v2582 = vadd.s32 %v2581, 127
    %v2583 = vshll.u32 %v2582, 23
    %v2584 = vor.u32 4788187, %v2583
    %v2585 = vand.u32 2147483647, %v2584
    %v2587 = vcvt.s32.f32 %v2580
    %v2588 = vmul.f32 %v2587, %v2585
    %v2589 = vxor.u32 %v2588, 2147483648
    %v2590 = vsel %vm2507, %v2589, %v2588
    %v2591 = vsub.s32 4, %v2567
    %v2592 = vsel %vm2507, %v2591, %v2567
    %v2593 = vsel %vm2506, %v1453, %v2590
    %v2594 = vsel %vm2506, 0, %v2592
    %v2595 = vcosq.f32.pop %v2593
    %v2596 = vsinq.f32.pop %v2593
    %vm2597 = vweird.f32 %v1453
    %v2598 = vand.u32 %v2594, 3
    %vm2599 = vcmp.lt.s32.totalorder %v2598, 2
    %vm2600 = vcmp.eq.s32.totalorder %v2598, 0
    %v2601 = vxor.u32 %v2596, 2147483648
    %v2602 = vsel %vm2600, %v2595, %v2601
    %vm2603 = vcmp.eq.s32.totalorder %v2598, 2
    %v2604 = vxor.u32 %v2595, 2147483648
    %v2605 = vsel %vm2603, %v2604, %v2596
    %v2606 = vsel %vm2599, %v2602, %v2605
    %v2607 = vsel %vm2597, nan, %v2606
    %v2608 = vand.u32 2147483647, %v1454
    %vm2609 = vcmp.le.f32.partialorder %v2608, 0.7853982
    %vm2610 = vcmp.lt.s32.totalorder %v1454, 0
    %v2611 = vand.u32 %v1454, 2139095040
    %v2612 = vshrl.u32 %v2611, 23
    %v2613 = vsub.s32 %v2612, 127
    %v2614 = vand.u32 2147483647, %v1454
    %v2615 = vand.u32 %v2614, 8388607
    %v2616 = vor.u32 %v2615, 8388608
    %v2617 = vsub.s32 0, %v2616
    %v2618 = vadd.s32 %v2613, 1
    %vm2619 = vcmp.gt.s32.totalorder %v2618, 0
    %v2620 = vsel %vm2619, %v2618, 0
    %v2621 = vshrl.u32 %v2620, 5
    %v2622 = vand.u32 %v2620, 31
    %v2623 = vsub.s32 32, %v2622
    %v2624 = vshrl.u32 683565275, %v2623
    %v2625 = vshll.u32 683565275, %v2622
    %v2626 = vshrl.u32 2475754826, %v2623
    %v2627 = vor.u32 %v2625, %v2626
    %v2628 = vshll.u32 2475754826, %v2622
    %v2629 = vshrl.u32 2131351028, %v2623
    %v2630 = vor.u32 %v2628, %v2629
    %v2631 = vshll.u32 2131351028, %v2622
    %v2632 = vshrl.u32 2102212464, %v2623
    %v2633 = vor.u32 %v2631, %v2632
    %v2634 = vshll.u32 2102212464, %v2622
    %v2635 = vshrl.u32 920167782, %v2623
    %v2636 = vor.u32 %v2634, %v2635
    %v2637 = vshll.u32 920167782, %v2622
    %v2638 = vshrl.u32 1326507024, %v2623
    %v2639 = vor.u32 %v2637, %v2638
    %vm2640 = vcmp.lt.s32.totalorder %v2621, 1
    %vm2641 = vcmp.lt.s32.totalorder %v2621, 2
    %vm2642 = vcmp.lt.s32.totalorder %v2621, 3
    %vm2643 = vcmp.lt.s32.totalorder %v2621, 4
    %v2644 = vsel %vm2640, %v2624, %v2627
    %v2645 = vsel %vm2643, %v2633, 2102212464
    %v2646 = vsel %vm2642, %v2630, %v2645
    %v2647 = vsel %vm2641, %v2644, %v2646
    %v2648 = vsel %vm2640, %v2627, %v2630
    %v2649 = vsel %vm2643, %v2636, 920167782
    %v2650 = vsel %vm2642, %v2633, %v2649
    %v2651 = vsel %vm2641, %v2648, %v2650
    %v2652 = vsel %vm2640, %v2630, %v2633
    %v2653 = vsel %vm2643, %v2639, 1326507024
    %v2654 = vsel %vm2642, %v2636, %v2653
    %v2655 = vsel %vm2641, %v2652, %v2654
    %v2656 = vshll.u32 %v2616, 8
    %v2657 = vmul.u32.u64.compose %v2656, %v2655
    %v2658 = vextract.low.u32 %v2657
    %v2659 = vextract.high.u32 %v2657
    %v2660 = vmul.u32.u64.compose %v2656, %v2651
    %v2661 = vextract.low.u32 %v2660
    %v2662 = vextract.high.u32 %v2660
    %v2663 = vmul.u32 %v2656, %v2647
    %v2664 = vadd.s32 %v2659, %v2661
    %vm2665 = vc.u32 %v2659, %v2661
    %v2666 = vadd.s32 %v2662, 1
    %v2667 = vsel %vm2665, %v2666, %v2662
    %v2668 = vadd.s32 %v2663, %v2667
    %v2669 = vadd.s32 %v2668, 536870912
    %v2670 = vshrl.u32 %v2669, 30
    %v2671 = vshll.u32 %v2670, 30
    %v2672 = vsub.s32 %v2668, %v2671
    %vm2673 = vcmp.lt.s32.totalorder %v2672, 0
    %v2674 = vsub.s32 0, %v2672
    %v2675 = vsel %vm2673, %v2674, %v2672
    %v2676 = vclz %v2675
    %v2677 = vsub.s32 %v2676, 2
    %vm2678 = vcmp.gt.s32.totalorder 0, %v2677
    %v2679 = vsel %vm2678, 0, %v2677
    %v2680 = vsub.s32 32, %v2679
    %v2681 = vshll.u32 %v2672, %v2679
    %v2682 = vshrl.u32 %v2664, %v2680
    %v2683 = vor.u32 %v2681, %v2682
    %v2684 = vsub.s32 4294967266, %v2679
    %v2685 = vadd.s32 %v2684, 127
    %v2686 = vshll.u32 %v2685, 23
    %v2687 = vor.u32 4788187, %v2686
    %v2688 = vand.u32 2147483647, %v2687
    %v2690 = vcvt.s32.f32 %v2683
    %v2691 = vmul.f32 %v2690, %v2688
    %v2692 = vxor.u32 %v2691, 2147483648
    %v2693 = vsel %vm2610, %v2692, %v2691
    %v2694 = vsub.s32 4, %v2670
    %v2695 = vsel %vm2610, %v2694, %v2670
    %v2696 = vsel %vm2609, %v1454, %v2693
    %v2697 = vsel %vm2609, 0, %v2695
    %v2698 = vcosq.f32.pop %v2696
    %v2699 = vsinq.f32.pop %v2696
    %vm2700 = vweird.f32 %v1454
    %v2701 = vand.u32 %v2697, 3
    %vm2702 = vcmp.lt.s32.totalorder %v2701, 2
    %vm2703 = vcmp.eq.s32.totalorder %v2701, 0
    %v2704 = vxor.u32 %v2699, 2147483648
    %v2705 = vsel %vm2703, %v2698, %v2704
    %vm2706 = vcmp.eq.s32.totalorder %v2701, 2
    %v2707 = vxor.u32 %v2698, 2147483648
    %v2708 = vsel %vm2706, %v2707, %v2699
    %v2709 = vsel %vm2702, %v2705, %v2708
    %v2710 = vsel %vm2700, nan, %v2709
    %v2711 = vand.u32 2147483647, %v1455
    %vm2712 = vcmp.le.f32.partialorder %v2711, 0.7853982
    %vm2713 = vcmp.lt.s32.totalorder %v1455, 0
    %v2714 = vand.u32 %v1455, 2139095040
    %v2715 = vshrl.u32 %v2714, 23
    %v2716 = vsub.s32 %v2715, 127
    %v2717 = vand.u32 2147483647, %v1455
    %v2718 = vand.u32 %v2717, 8388607
    %v2719 = vor.u32 %v2718, 8388608
    %v2720 = vsub.s32 0, %v2719
    %v2721 = vadd.s32 %v2716, 1
    %vm2722 = vcmp.gt.s32.totalorder %v2721, 0
    %v2723 = vsel %vm2722, %v2721, 0
    %v2724 = vshrl.u32 %v2723, 5
    %v2725 = vand.u32 %v2723, 31
    %v2726 = vsub.s32 32, %v2725
    %v2727 = vshrl.u32 683565275, %v2726
    %v2728 = vshll.u32 683565275, %v2725
    %v2729 = vshrl.u32 2475754826, %v2726
    %v2730 = vor.u32 %v2728, %v2729
    %v2731 = vshll.u32 2475754826, %v2725
    %v2732 = vshrl.u32 2131351028, %v2726
    %v2733 = vor.u32 %v2731, %v2732
    %v2734 = vshll.u32 2131351028, %v2725
    %v2735 = vshrl.u32 2102212464, %v2726
    %v2736 = vor.u32 %v2734, %v2735
    %v2737 = vshll.u32 2102212464, %v2725
    %v2738 = vshrl.u32 920167782, %v2726
    %v2739 = vor.u32 %v2737, %v2738
    %v2740 = vshll.u32 920167782, %v2725
    %v2741 = vshrl.u32 1326507024, %v2726
    %v2742 = vor.u32 %v2740, %v2741
    %vm2743 = vcmp.lt.s32.totalorder %v2724, 1
    %vm2744 = vcmp.lt.s32.totalorder %v2724, 2
    %vm2745 = vcmp.lt.s32.totalorder %v2724, 3
    %vm2746 = vcmp.lt.s32.totalorder %v2724, 4
    %v2747 = vsel %vm2743, %v2727, %v2730
    %v2748 = vsel %vm2746, %v2736, 2102212464
    %v2749 = vsel %vm2745, %v2733, %v2748
    %v2750 = vsel %vm2744, %v2747, %v2749
    %v2751 = vsel %vm2743, %v2730, %v2733
    %v2752 = vsel %vm2746, %v2739, 920167782
    %v2753 = vsel %vm2745, %v2736, %v2752
    %v2754 = vsel %vm2744, %v2751, %v2753
    %v2755 = vsel %vm2743, %v2733, %v2736
    %v2756 = vsel %vm2746, %v2742, 1326507024
    %v2757 = vsel %vm2745, %v2739, %v2756
    %v2758 = vsel %vm2744, %v2755, %v2757
    %v2759 = vshll.u32 %v2719, 8
    %v2760 = vmul.u32.u64.compose %v2759, %v2758
    %v2761 = vextract.low.u32 %v2760
    %v2762 = vextract.high.u32 %v2760
    %v2763 = vmul.u32.u64.compose %v2759, %v2754
    %v2764 = vextract.low.u32 %v2763
    %v2765 = vextract.high.u32 %v2763
    %v2766 = vmul.u32 %v2759, %v2750
    %v2767 = vadd.s32 %v2762, %v2764
    %vm2768 = vc.u32 %v2762, %v2764
    %v2769 = vadd.s32 %v2765, 1
    %v2770 = vsel %vm2768, %v2769, %v2765
    %v2771 = vadd.s32 %v2766, %v2770
    %v2772 = vadd.s32 %v2771, 536870912
    %v2773 = vshrl.u32 %v2772, 30
    %v2774 = vshll.u32 %v2773, 30
    %v2775 = vsub.s32 %v2771, %v2774
    %vm2776 = vcmp.lt.s32.totalorder %v2775, 0
    %v2777 = vsub.s32 0, %v2775
    %v2778 = vsel %vm2776, %v2777, %v2775
    %v2779 = vclz %v2778
    %v2780 = vsub.s32 %v2779, 2
    %vm2781 = vcmp.gt.s32.totalorder 0, %v2780
    %v2782 = vsel %vm2781, 0, %v2780
    %v2783 = vsub.s32 32, %v2782
    %v2784 = vshll.u32 %v2775, %v2782
    %v2785 = vshrl.u32 %v2767, %v2783
    %v2786 = vor.u32 %v2784, %v2785
    %v2787 = vsub.s32 4294967266, %v2782
    %v2788 = vadd.s32 %v2787, 127
    %v2789 = vshll.u32 %v2788, 23
    %v2790 = vor.u32 4788187, %v2789
    %v2791 = vand.u32 2147483647, %v2790
    %v2793 = vcvt.s32.f32 %v2786
    %v2794 = vmul.f32 %v2793, %v2791
    %v2795 = vxor.u32 %v2794, 2147483648
    %v2796 = vsel %vm2713, %v2795, %v2794
    %v2797 = vsub.s32 4, %v2773
    %v2798 = vsel %vm2713, %v2797, %v2773
    %v2799 = vsel %vm2712, %v1455, %v2796
    %v2800 = vsel %vm2712, 0, %v2798
    %v2801 = vcosq.f32.pop %v2799
    %v2802 = vsinq.f32.pop %v2799
    %vm2803 = vweird.f32 %v1455
    %v2804 = vand.u32 %v2800, 3
    %vm2805 = vcmp.lt.s32.totalorder %v2804, 2
    %vm2806 = vcmp.eq.s32.totalorder %v2804, 0
    %v2807 = vxor.u32 %v2802, 2147483648
    %v2808 = vsel %vm2806, %v2801, %v2807
    %vm2809 = vcmp.eq.s32.totalorder %v2804, 2
    %v2810 = vxor.u32 %v2801, 2147483648
    %v2811 = vsel %vm2809, %v2810, %v2802
    %v2812 = vsel %vm2805, %v2808, %v2811
    %v2813 = vsel %vm2803, nan, %v2812
    %v2814 = vand.u32 2147483647, %v1456
    %vm2815 = vcmp.le.f32.partialorder %v2814, 0.7853982
    %vm2816 = vcmp.lt.s32.totalorder %v1456, 0
    %v2817 = vand.u32 %v1456, 2139095040
    %v2818 = vshrl.u32 %v2817, 23
    %v2819 = vsub.s32 %v2818, 127
    %v2820 = vand.u32 2147483647, %v1456
    %v2821 = vand.u32 %v2820, 8388607
    %v2822 = vor.u32 %v2821, 8388608
    %v2823 = vsub.s32 0, %v2822
    %v2824 = vadd.s32 %v2819, 1
    %vm2825 = vcmp.gt.s32.totalorder %v2824, 0
    %v2826 = vsel %vm2825, %v2824, 0
    %v2827 = vshrl.u32 %v2826, 5
    %v2828 = vand.u32 %v2826, 31
    %v2829 = vsub.s32 32, %v2828
    %v2830 = vshrl.u32 683565275, %v2829
    %v2831 = vshll.u32 683565275, %v2828
    %v2832 = vshrl.u32 2475754826, %v2829
    %v2833 = vor.u32 %v2831, %v2832
    %v2834 = vshll.u32 2475754826, %v2828
    %v2835 = vshrl.u32 2131351028, %v2829
    %v2836 = vor.u32 %v2834, %v2835
    %v2837 = vshll.u32 2131351028, %v2828
    %v2838 = vshrl.u32 2102212464, %v2829
    %v2839 = vor.u32 %v2837, %v2838
    %v2840 = vshll.u32 2102212464, %v2828
    %v2841 = vshrl.u32 920167782, %v2829
    %v2842 = vor.u32 %v2840, %v2841
    %v2843 = vshll.u32 920167782, %v2828
    %v2844 = vshrl.u32 1326507024, %v2829
    %v2845 = vor.u32 %v2843, %v2844
    %vm2846 = vcmp.lt.s32.totalorder %v2827, 1
    %vm2847 = vcmp.lt.s32.totalorder %v2827, 2
    %vm2848 = vcmp.lt.s32.totalorder %v2827, 3
    %vm2849 = vcmp.lt.s32.totalorder %v2827, 4
    %v2850 = vsel %vm2846, %v2830, %v2833
    %v2851 = vsel %vm2849, %v2839, 2102212464
    %v2852 = vsel %vm2848, %v2836, %v2851
    %v2853 = vsel %vm2847, %v2850, %v2852
    %v2854 = vsel %vm2846, %v2833, %v2836
    %v2855 = vsel %vm2849, %v2842, 920167782
    %v2856 = vsel %vm2848, %v2839, %v2855
    %v2857 = vsel %vm2847, %v2854, %v2856
    %v2858 = vsel %vm2846, %v2836, %v2839
    %v2859 = vsel %vm2849, %v2845, 1326507024
    %v2860 = vsel %vm2848, %v2842, %v2859
    %v2861 = vsel %vm2847, %v2858, %v2860
    %v2862 = vshll.u32 %v2822, 8
    %v2863 = vmul.u32.u64.compose %v2862, %v2861
    %v2864 = vextract.low.u32 %v2863
    %v2865 = vextract.high.u32 %v2863
    %v2866 = vmul.u32.u64.compose %v2862, %v2857
    %v2867 = vextract.low.u32 %v2866
    %v2868 = vextract.high.u32 %v2866
    %v2869 = vmul.u32 %v2862, %v2853
    %v2870 = vadd.s32 %v2865, %v2867
    %vm2871 = vc.u32 %v2865, %v2867
    %v2872 = vadd.s32 %v2868, 1
    %v2873 = vsel %vm2871, %v2872, %v2868
    %v2874 = vadd.s32 %v2869, %v2873
    %v2875 = vadd.s32 %v2874, 536870912
    %v2876 = vshrl.u32 %v2875, 30
    %v2877 = vshll.u32 %v2876, 30
    %v2878 = vsub.s32 %v2874, %v2877
    %vm2879 = vcmp.lt.s32.totalorder %v2878, 0
    %v2880 = vsub.s32 0, %v2878
    %v2881 = vsel %vm2879, %v2880, %v2878
    %v2882 = vclz %v2881
    %v2883 = vsub.s32 %v2882, 2
    %vm2884 = vcmp.gt.s32.totalorder 0, %v2883
    %v2885 = vsel %vm2884, 0, %v2883
    %v2886 = vsub.s32 32, %v2885
    %v2887 = vshll.u32 %v2878, %v2885
    %v2888 = vshrl.u32 %v2870, %v2886
    %v2889 = vor.u32 %v2887, %v2888
    %v2890 = vsub.s32 4294967266, %v2885
    %v2891 = vadd.s32 %v2890, 127
    %v2892 = vshll.u32 %v2891, 23
    %v2893 = vor.u32 4788187, %v2892
    %v2894 = vand.u32 2147483647, %v2893
    %v2896 = vcvt.s32.f32 %v2889
    %v2897 = vmul.f32 %v2896, %v2894
    %v2898 = vxor.u32 %v2897, 2147483648
    %v2899 = vsel %vm2816, %v2898, %v2897
    %v2900 = vsub.s32 4, %v2876
    %v2901 = vsel %vm2816, %v2900, %v2876
    %v2902 = vsel %vm2815, %v1456, %v2899
    %v2903 = vsel %vm2815, 0, %v2901
    %v2904 = vcosq.f32.pop %v2902
    %v2905 = vsinq.f32.pop %v2902
    %vm2906 = vweird.f32 %v1456
    %v2907 = vand.u32 %v2903, 3
    %vm2908 = vcmp.lt.s32.totalorder %v2907, 2
    %vm2909 = vcmp.eq.s32.totalorder %v2907, 0
    %v2910 = vxor.u32 %v2905, 2147483648
    %v2911 = vsel %vm2909, %v2904, %v2910
    %vm2912 = vcmp.eq.s32.totalorder %v2907, 2
    %v2913 = vxor.u32 %v2904, 2147483648
    %v2914 = vsel %vm2912, %v2913, %v2905
    %v2915 = vsel %vm2908, %v2911, %v2914
    %v2916 = vsel %vm2906, nan, %v2915
    %v2917 = vand.u32 2147483647, %v1457
    %vm2918 = vcmp.le.f32.partialorder %v2917, 0.7853982
    %vm2919 = vcmp.lt.s32.totalorder %v1457, 0
    %v2920 = vand.u32 %v1457, 2139095040
    %v2921 = vshrl.u32 %v2920, 23
    %v2922 = vsub.s32 %v2921, 127
    %v2923 = vand.u32 2147483647, %v1457
    %v2924 = vand.u32 %v2923, 8388607
    %v2925 = vor.u32 %v2924, 8388608
    %v2926 = vsub.s32 0, %v2925
    %v2927 = vadd.s32 %v2922, 1
    %vm2928 = vcmp.gt.s32.totalorder %v2927, 0
    %v2929 = vsel %vm2928, %v2927, 0
    %v2930 = vshrl.u32 %v2929, 5
    %v2931 = vand.u32 %v2929, 31
    %v2932 = vsub.s32 32, %v2931
    %v2933 = vshrl.u32 683565275, %v2932
    %v2934 = vshll.u32 683565275, %v2931
    %v2935 = vshrl.u32 2475754826, %v2932
    %v2936 = vor.u32 %v2934, %v2935
    %v2937 = vshll.u32 2475754826, %v2931
    %v2938 = vshrl.u32 2131351028, %v2932
    %v2939 = vor.u32 %v2937, %v2938
    %v2940 = vshll.u32 2131351028, %v2931
    %v2941 = vshrl.u32 2102212464, %v2932
    %v2942 = vor.u32 %v2940, %v2941
    %v2943 = vshll.u32 2102212464, %v2931
    %v2944 = vshrl.u32 920167782, %v2932
    %v2945 = vor.u32 %v2943, %v2944
    %v2946 = vshll.u32 920167782, %v2931
    %v2947 = vshrl.u32 1326507024, %v2932
    %v2948 = vor.u32 %v2946, %v2947
    %vm2949 = vcmp.lt.s32.totalorder %v2930, 1
    %vm2950 = vcmp.lt.s32.totalorder %v2930, 2
    %vm2951 = vcmp.lt.s32.totalorder %v2930, 3
    %vm2952 = vcmp.lt.s32.totalorder %v2930, 4
    %v2953 = vsel %vm2949, %v2933, %v2936
    %v2954 = vsel %vm2952, %v2942, 2102212464
    %v2955 = vsel %vm2951, %v2939, %v2954
    %v2956 = vsel %vm2950, %v2953, %v2955
    %v2957 = vsel %vm2949, %v2936, %v2939
    %v2958 = vsel %vm2952, %v2945, 920167782
    %v2959 = vsel %vm2951, %v2942, %v2958
    %v2960 = vsel %vm2950, %v2957, %v2959
    %v2961 = vsel %vm2949, %v2939, %v2942
    %v2962 = vsel %vm2952, %v2948, 1326507024
    %v2963 = vsel %vm2951, %v2945, %v2962
    %v2964 = vsel %vm2950, %v2961, %v2963
    %v2965 = vshll.u32 %v2925, 8
    %v2966 = vmul.u32.u64.compose %v2965, %v2964
    %v2967 = vextract.low.u32 %v2966
    %v2968 = vextract.high.u32 %v2966
    %v2969 = vmul.u32.u64.compose %v2965, %v2960
    %v2970 = vextract.low.u32 %v2969
    %v2971 = vextract.high.u32 %v2969
    %v2972 = vmul.u32 %v2965, %v2956
    %v2973 = vadd.s32 %v2968, %v2970
    %vm2974 = vc.u32 %v2968, %v2970
    %v2975 = vadd.s32 %v2971, 1
    %v2976 = vsel %vm2974, %v2975, %v2971
    %v2977 = vadd.s32 %v2972, %v2976
    %v2978 = vadd.s32 %v2977, 536870912
    %v2979 = vshrl.u32 %v2978, 30
    %v2980 = vshll.u32 %v2979, 30
    %v2981 = vsub.s32 %v2977, %v2980
    %vm2982 = vcmp.lt.s32.totalorder %v2981, 0
    %v2983 = vsub.s32 0, %v2981
    %v2984 = vsel %vm2982, %v2983, %v2981
    %v2985 = vclz %v2984
    %v2986 = vsub.s32 %v2985, 2
    %vm2987 = vcmp.gt.s32.totalorder 0, %v2986
    %v2988 = vsel %vm2987, 0, %v2986
    %v2989 = vsub.s32 32, %v2988
    %v2990 = vshll.u32 %v2981, %v2988
    %v2991 = vshrl.u32 %v2973, %v2989
    %v2992 = vor.u32 %v2990, %v2991
    %v2993 = vsub.s32 4294967266, %v2988
    %v2994 = vadd.s32 %v2993, 127
    %v2995 = vshll.u32 %v2994, 23
    %v2996 = vor.u32 4788187, %v2995
    %v2997 = vand.u32 2147483647, %v2996
    %v2999 = vcvt.s32.f32 %v2992
    %v3000 = vmul.f32 %v2999, %v2997
    %v3001 = vxor.u32 %v3000, 2147483648
    %v3002 = vsel %vm2919, %v3001, %v3000
    %v3003 = vsub.s32 4, %v2979
    %v3004 = vsel %vm2919, %v3003, %v2979
    %v3005 = vsel %vm2918, %v1457, %v3002
    %v3006 = vsel %vm2918, 0, %v3004
    %v3007 = vcosq.f32.pop %v3005
    %v3008 = vsinq.f32.pop %v3005
    %vm3009 = vweird.f32 %v1457
    %v3010 = vand.u32 %v3006, 3
    %vm3011 = vcmp.lt.s32.totalorder %v3010, 2
    %vm3012 = vcmp.eq.s32.totalorder %v3010, 0
    %v3013 = vxor.u32 %v3008, 2147483648
    %v3014 = vsel %vm3012, %v3007, %v3013
    %vm3015 = vcmp.eq.s32.totalorder %v3010, 2
    %v3016 = vxor.u32 %v3007, 2147483648
    %v3017 = vsel %vm3015, %v3016, %v3008
    %v3018 = vsel %vm3011, %v3014, %v3017
    %v3019 = vsel %vm3009, nan, %v3018
    %v3020 = vand.u32 2147483647, %v1458
    %vm3021 = vcmp.le.f32.partialorder %v3020, 0.7853982
    %vm3022 = vcmp.lt.s32.totalorder %v1458, 0
    %v3023 = vand.u32 %v1458, 2139095040
    %v3024 = vshrl.u32 %v3023, 23
    %v3025 = vsub.s32 %v3024, 127
    %v3026 = vand.u32 2147483647, %v1458
    %v3027 = vand.u32 %v3026, 8388607
    %v3028 = vor.u32 %v3027, 8388608
    %v3029 = vsub.s32 0, %v3028
    %v3030 = vadd.s32 %v3025, 1
    %vm3031 = vcmp.gt.s32.totalorder %v3030, 0
    %v3032 = vsel %vm3031, %v3030, 0
    %v3033 = vshrl.u32 %v3032, 5
    %v3034 = vand.u32 %v3032, 31
    %v3035 = vsub.s32 32, %v3034
    %v3036 = vshrl.u32 683565275, %v3035
    %v3037 = vshll.u32 683565275, %v3034
    %v3038 = vshrl.u32 2475754826, %v3035
    %v3039 = vor.u32 %v3037, %v3038
    %v3040 = vshll.u32 2475754826, %v3034
    %v3041 = vshrl.u32 2131351028, %v3035
    %v3042 = vor.u32 %v3040, %v3041
    %v3043 = vshll.u32 2131351028, %v3034
    %v3044 = vshrl.u32 2102212464, %v3035
    %v3045 = vor.u32 %v3043, %v3044
    %v3046 = vshll.u32 2102212464, %v3034
    %v3047 = vshrl.u32 920167782, %v3035
    %v3048 = vor.u32 %v3046, %v3047
    %v3049 = vshll.u32 920167782, %v3034
    %v3050 = vshrl.u32 1326507024, %v3035
    %v3051 = vor.u32 %v3049, %v3050
    %vm3052 = vcmp.lt.s32.totalorder %v3033, 1
    %vm3053 = vcmp.lt.s32.totalorder %v3033, 2
    %vm3054 = vcmp.lt.s32.totalorder %v3033, 3
    %vm3055 = vcmp.lt.s32.totalorder %v3033, 4
    %v3056 = vsel %vm3052, %v3036, %v3039
    %v3057 = vsel %vm3055, %v3045, 2102212464
    %v3058 = vsel %vm3054, %v3042, %v3057
    %v3059 = vsel %vm3053, %v3056, %v3058
    %v3060 = vsel %vm3052, %v3039, %v3042
    %v3061 = vsel %vm3055, %v3048, 920167782
    %v3062 = vsel %vm3054, %v3045, %v3061
    %v3063 = vsel %vm3053, %v3060, %v3062
    %v3064 = vsel %vm3052, %v3042, %v3045
    %v3065 = vsel %vm3055, %v3051, 1326507024
    %v3066 = vsel %vm3054, %v3048, %v3065
    %v3067 = vsel %vm3053, %v3064, %v3066
    %v3068 = vshll.u32 %v3028, 8
    %v3069 = vmul.u32.u64.compose %v3068, %v3067
    %v3070 = vextract.low.u32 %v3069
    %v3071 = vextract.high.u32 %v3069
    %v3072 = vmul.u32.u64.compose %v3068, %v3063
    %v3073 = vextract.low.u32 %v3072
    %v3074 = vextract.high.u32 %v3072
    %v3075 = vmul.u32 %v3068, %v3059
    %v3076 = vadd.s32 %v3071, %v3073
    %vm3077 = vc.u32 %v3071, %v3073
    %v3078 = vadd.s32 %v3074, 1
    %v3079 = vsel %vm3077, %v3078, %v3074
    %v3080 = vadd.s32 %v3075, %v3079
    %v3081 = vadd.s32 %v3080, 536870912
    %v3082 = vshrl.u32 %v3081, 30
    %v3083 = vshll.u32 %v3082, 30
    %v3084 = vsub.s32 %v3080, %v3083
    %vm3085 = vcmp.lt.s32.totalorder %v3084, 0
    %v3086 = vsub.s32 0, %v3084
    %v3087 = vsel %vm3085, %v3086, %v3084
    %v3088 = vclz %v3087
    %v3089 = vsub.s32 %v3088, 2
    %vm3090 = vcmp.gt.s32.totalorder 0, %v3089
    %v3091 = vsel %vm3090, 0, %v3089
    %v3092 = vsub.s32 32, %v3091
    %v3093 = vshll.u32 %v3084, %v3091
    %v3094 = vshrl.u32 %v3076, %v3092
    %v3095 = vor.u32 %v3093, %v3094
    %v3096 = vsub.s32 4294967266, %v3091
    %v3097 = vadd.s32 %v3096, 127
    %v3098 = vshll.u32 %v3097, 23
    %v3099 = vor.u32 4788187, %v3098
    %v3100 = vand.u32 2147483647, %v3099
    %v3102 = vcvt.s32.f32 %v3095
    %v3103 = vmul.f32 %v3102, %v3100
    %v3104 = vxor.u32 %v3103, 2147483648
    %v3105 = vsel %vm3022, %v3104, %v3103
    %v3106 = vsub.s32 4, %v3082
    %v3107 = vsel %vm3022, %v3106, %v3082
    %v3108 = vsel %vm3021, %v1458, %v3105
    %v3109 = vsel %vm3021, 0, %v3107
    %v3110 = vcosq.f32.pop %v3108
    %v3111 = vsinq.f32.pop %v3108
    %vm3112 = vweird.f32 %v1458
    %v3113 = vand.u32 %v3109, 3
    %vm3114 = vcmp.lt.s32.totalorder %v3113, 2
    %vm3115 = vcmp.eq.s32.totalorder %v3113, 0
    %v3116 = vxor.u32 %v3111, 2147483648
    %v3117 = vsel %vm3115, %v3110, %v3116
    %vm3118 = vcmp.eq.s32.totalorder %v3113, 2
    %v3119 = vxor.u32 %v3110, 2147483648
    %v3120 = vsel %vm3118, %v3119, %v3111
    %v3121 = vsel %vm3114, %v3117, %v3120
    %v3122 = vsel %vm3112, nan, %v3121
    %v3123 = vand.u32 2147483647, %v1459
    %vm3124 = vcmp.le.f32.partialorder %v3123, 0.7853982
    %vm3125 = vcmp.lt.s32.totalorder %v1459, 0
    %v3126 = vand.u32 %v1459, 2139095040
    %v3127 = vshrl.u32 %v3126, 23
    %v3128 = vsub.s32 %v3127, 127
    %v3129 = vand.u32 2147483647, %v1459
    %v3130 = vand.u32 %v3129, 8388607
    %v3131 = vor.u32 %v3130, 8388608
    %v3132 = vsub.s32 0, %v3131
    %v3133 = vadd.s32 %v3128, 1
    %vm3134 = vcmp.gt.s32.totalorder %v3133, 0
    %v3135 = vsel %vm3134, %v3133, 0
    %v3136 = vshrl.u32 %v3135, 5
    %v3137 = vand.u32 %v3135, 31
    %v3138 = vsub.s32 32, %v3137
    %v3139 = vshrl.u32 683565275, %v3138
    %v3140 = vshll.u32 683565275, %v3137
    %v3141 = vshrl.u32 2475754826, %v3138
    %v3142 = vor.u32 %v3140, %v3141
    %v3143 = vshll.u32 2475754826, %v3137
    %v3144 = vshrl.u32 2131351028, %v3138
    %v3145 = vor.u32 %v3143, %v3144
    %v3146 = vshll.u32 2131351028, %v3137
    %v3147 = vshrl.u32 2102212464, %v3138
    %v3148 = vor.u32 %v3146, %v3147
    %v3149 = vshll.u32 2102212464, %v3137
    %v3150 = vshrl.u32 920167782, %v3138
    %v3151 = vor.u32 %v3149, %v3150
    %v3152 = vshll.u32 920167782, %v3137
    %v3153 = vshrl.u32 1326507024, %v3138
    %v3154 = vor.u32 %v3152, %v3153
    %vm3155 = vcmp.lt.s32.totalorder %v3136, 1
    %vm3156 = vcmp.lt.s32.totalorder %v3136, 2
    %vm3157 = vcmp.lt.s32.totalorder %v3136, 3
    %vm3158 = vcmp.lt.s32.totalorder %v3136, 4
    %v3159 = vsel %vm3155, %v3139, %v3142
    %v3160 = vsel %vm3158, %v3148, 2102212464
    %v3161 = vsel %vm3157, %v3145, %v3160
    %v3162 = vsel %vm3156, %v3159, %v3161
    %v3163 = vsel %vm3155, %v3142, %v3145
    %v3164 = vsel %vm3158, %v3151, 920167782
    %v3165 = vsel %vm3157, %v3148, %v3164
    %v3166 = vsel %vm3156, %v3163, %v3165
    %v3167 = vsel %vm3155, %v3145, %v3148
    %v3168 = vsel %vm3158, %v3154, 1326507024
    %v3169 = vsel %vm3157, %v3151, %v3168
    %v3170 = vsel %vm3156, %v3167, %v3169
    %v3171 = vshll.u32 %v3131, 8
    %v3172 = vmul.u32.u64.compose %v3171, %v3170
    %v3173 = vextract.low.u32 %v3172
    %v3174 = vextract.high.u32 %v3172
    %v3175 = vmul.u32.u64.compose %v3171, %v3166
    %v3176 = vextract.low.u32 %v3175
    %v3177 = vextract.high.u32 %v3175
    %v3178 = vmul.u32 %v3171, %v3162
    %v3179 = vadd.s32 %v3174, %v3176
    %vm3180 = vc.u32 %v3174, %v3176
    %v3181 = vadd.s32 %v3177, 1
    %v3182 = vsel %vm3180, %v3181, %v3177
    %v3183 = vadd.s32 %v3178, %v3182
    %v3184 = vadd.s32 %v3183, 536870912
    %v3185 = vshrl.u32 %v3184, 30
    %v3186 = vshll.u32 %v3185, 30
    %v3187 = vsub.s32 %v3183, %v3186
    %vm3188 = vcmp.lt.s32.totalorder %v3187, 0
    %v3189 = vsub.s32 0, %v3187
    %v3190 = vsel %vm3188, %v3189, %v3187
    %v3191 = vclz %v3190
    %v3192 = vsub.s32 %v3191, 2
    %vm3193 = vcmp.gt.s32.totalorder 0, %v3192
    %v3194 = vsel %vm3193, 0, %v3192
    %v3195 = vsub.s32 32, %v3194
    %v3196 = vshll.u32 %v3187, %v3194
    %v3197 = vshrl.u32 %v3179, %v3195
    %v3198 = vor.u32 %v3196, %v3197
    %v3199 = vsub.s32 4294967266, %v3194
    %v3200 = vadd.s32 %v3199, 127
    %v3201 = vshll.u32 %v3200, 23
    %v3202 = vor.u32 4788187, %v3201
    %v3203 = vand.u32 2147483647, %v3202
    %v3205 = vcvt.s32.f32 %v3198
    %v3206 = vmul.f32 %v3205, %v3203
    %v3207 = vxor.u32 %v3206, 2147483648
    %v3208 = vsel %vm3125, %v3207, %v3206
    %v3209 = vsub.s32 4, %v3185
    %v3210 = vsel %vm3125, %v3209, %v3185
    %v3211 = vsel %vm3124, %v1459, %v3208
    %v3212 = vsel %vm3124, 0, %v3210
    %v3213 = vcosq.f32.pop %v3211
    %v3214 = vsinq.f32.pop %v3211
    %vm3215 = vweird.f32 %v1459
    %v3216 = vand.u32 %v3212, 3
    %vm3217 = vcmp.lt.s32.totalorder %v3216, 2
    %vm3218 = vcmp.eq.s32.totalorder %v3216, 0
    %v3219 = vxor.u32 %v3214, 2147483648
    %v3220 = vsel %vm3218, %v3213, %v3219
    %vm3221 = vcmp.eq.s32.totalorder %v3216, 2
    %v3222 = vxor.u32 %v3213, 2147483648
    %v3223 = vsel %vm3221, %v3222, %v3214
    %v3224 = vsel %vm3217, %v3220, %v3223
    %v3225 = vsel %vm3215, nan, %v3224
    %v3226 = vand.u32 2147483647, %v1460
    %vm3227 = vcmp.le.f32.partialorder %v3226, 0.7853982
    %vm3228 = vcmp.lt.s32.totalorder %v1460, 0
    %v3229 = vand.u32 %v1460, 2139095040
    %v3230 = vshrl.u32 %v3229, 23
    %v3231 = vsub.s32 %v3230, 127
    %v3232 = vand.u32 2147483647, %v1460
    %v3233 = vand.u32 %v3232, 8388607
    %v3234 = vor.u32 %v3233, 8388608
    %v3235 = vsub.s32 0, %v3234
    %v3236 = vadd.s32 %v3231, 1
    %vm3237 = vcmp.gt.s32.totalorder %v3236, 0
    %v3238 = vsel %vm3237, %v3236, 0
    %v3239 = vshrl.u32 %v3238, 5
    %v3240 = vand.u32 %v3238, 31
    %v3241 = vsub.s32 32, %v3240
    %v3242 = vshrl.u32 683565275, %v3241
    %v3243 = vshll.u32 683565275, %v3240
    %v3244 = vshrl.u32 2475754826, %v3241
    %v3245 = vor.u32 %v3243, %v3244
    %v3246 = vshll.u32 2475754826, %v3240
    %v3247 = vshrl.u32 2131351028, %v3241
    %v3248 = vor.u32 %v3246, %v3247
    %v3249 = vshll.u32 2131351028, %v3240
    %v3250 = vshrl.u32 2102212464, %v3241
    %v3251 = vor.u32 %v3249, %v3250
    %v3252 = vshll.u32 2102212464, %v3240
    %v3253 = vshrl.u32 920167782, %v3241
    %v3254 = vor.u32 %v3252, %v3253
    %v3255 = vshll.u32 920167782, %v3240
    %v3256 = vshrl.u32 1326507024, %v3241
    %v3257 = vor.u32 %v3255, %v3256
    %vm3258 = vcmp.lt.s32.totalorder %v3239, 1
    %vm3259 = vcmp.lt.s32.totalorder %v3239, 2
    %vm3260 = vcmp.lt.s32.totalorder %v3239, 3
    %vm3261 = vcmp.lt.s32.totalorder %v3239, 4
    %v3262 = vsel %vm3258, %v3242, %v3245
    %v3263 = vsel %vm3261, %v3251, 2102212464
    %v3264 = vsel %vm3260, %v3248, %v3263
    %v3265 = vsel %vm3259, %v3262, %v3264
    %v3266 = vsel %vm3258, %v3245, %v3248
    %v3267 = vsel %vm3261, %v3254, 920167782
    %v3268 = vsel %vm3260, %v3251, %v3267
    %v3269 = vsel %vm3259, %v3266, %v3268
    %v3270 = vsel %vm3258, %v3248, %v3251
    %v3271 = vsel %vm3261, %v3257, 1326507024
    %v3272 = vsel %vm3260, %v3254, %v3271
    %v3273 = vsel %vm3259, %v3270, %v3272
    %v3274 = vshll.u32 %v3234, 8
    %v3275 = vmul.u32.u64.compose %v3274, %v3273
    %v3276 = vextract.low.u32 %v3275
    %v3277 = vextract.high.u32 %v3275
    %v3278 = vmul.u32.u64.compose %v3274, %v3269
    %v3279 = vextract.low.u32 %v3278
    %v3280 = vextract.high.u32 %v3278
    %v3281 = vmul.u32 %v3274, %v3265
    %v3282 = vadd.s32 %v3277, %v3279
    %vm3283 = vc.u32 %v3277, %v3279
    %v3284 = vadd.s32 %v3280, 1
    %v3285 = vsel %vm3283, %v3284, %v3280
    %v3286 = vadd.s32 %v3281, %v3285
    %v3287 = vadd.s32 %v3286, 536870912
    %v3288 = vshrl.u32 %v3287, 30
    %v3289 = vshll.u32 %v3288, 30
    %v3290 = vsub.s32 %v3286, %v3289
    %vm3291 = vcmp.lt.s32.totalorder %v3290, 0
    %v3292 = vsub.s32 0, %v3290
    %v3293 = vsel %vm3291, %v3292, %v3290
    %v3294 = vclz %v3293
    %v3295 = vsub.s32 %v3294, 2
    %vm3296 = vcmp.gt.s32.totalorder 0, %v3295
    %v3297 = vsel %vm3296, 0, %v3295
    %v3298 = vsub.s32 32, %v3297
    %v3299 = vshll.u32 %v3290, %v3297
    %v3300 = vshrl.u32 %v3282, %v3298
    %v3301 = vor.u32 %v3299, %v3300
    %v3302 = vsub.s32 4294967266, %v3297
    %v3303 = vadd.s32 %v3302, 127
    %v3304 = vshll.u32 %v3303, 23
    %v3305 = vor.u32 4788187, %v3304
    %v3306 = vand.u32 2147483647, %v3305
    %v3308 = vcvt.s32.f32 %v3301
    %v3309 = vmul.f32 %v3308, %v3306
    %v3310 = vxor.u32 %v3309, 2147483648
    %v3311 = vsel %vm3228, %v3310, %v3309
    %v3312 = vsub.s32 4, %v3288
    %v3313 = vsel %vm3228, %v3312, %v3288
    %v3314 = vsel %vm3227, %v1460, %v3311
    %v3315 = vsel %vm3227, 0, %v3313
    %v3316 = vcosq.f32.pop %v3314
    %v3317 = vsinq.f32.pop %v3314
    %vm3318 = vweird.f32 %v1460
    %v3319 = vand.u32 %v3315, 3
    %vm3320 = vcmp.lt.s32.totalorder %v3319, 2
    %vm3321 = vcmp.eq.s32.totalorder %v3319, 0
    %v3322 = vxor.u32 %v3317, 2147483648
    %v3323 = vsel %vm3321, %v3316, %v3322
    %vm3324 = vcmp.eq.s32.totalorder %v3319, 2
    %v3325 = vxor.u32 %v3316, 2147483648
    %v3326 = vsel %vm3324, %v3325, %v3317
    %v3327 = vsel %vm3320, %v3323, %v3326
    %v3328 = vsel %vm3318, nan, %v3327
    %v3329 = vand.u32 2147483647, %v1461
    %vm3330 = vcmp.le.f32.partialorder %v3329, 0.7853982
    %vm3331 = vcmp.lt.s32.totalorder %v1461, 0
    %v3332 = vand.u32 %v1461, 2139095040
    %v3333 = vshrl.u32 %v3332, 23
    %v3334 = vsub.s32 %v3333, 127
    %v3335 = vand.u32 2147483647, %v1461
    %v3336 = vand.u32 %v3335, 8388607
    %v3337 = vor.u32 %v3336, 8388608
    %v3338 = vsub.s32 0, %v3337
    %v3339 = vadd.s32 %v3334, 1
    %vm3340 = vcmp.gt.s32.totalorder %v3339, 0
    %v3341 = vsel %vm3340, %v3339, 0
    %v3342 = vshrl.u32 %v3341, 5
    %v3343 = vand.u32 %v3341, 31
    %v3344 = vsub.s32 32, %v3343
    %v3345 = vshrl.u32 683565275, %v3344
    %v3346 = vshll.u32 683565275, %v3343
    %v3347 = vshrl.u32 2475754826, %v3344
    %v3348 = vor.u32 %v3346, %v3347
    %v3349 = vshll.u32 2475754826, %v3343
    %v3350 = vshrl.u32 2131351028, %v3344
    %v3351 = vor.u32 %v3349, %v3350
    %v3352 = vshll.u32 2131351028, %v3343
    %v3353 = vshrl.u32 2102212464, %v3344
    %v3354 = vor.u32 %v3352, %v3353
    %v3355 = vshll.u32 2102212464, %v3343
    %v3356 = vshrl.u32 920167782, %v3344
    %v3357 = vor.u32 %v3355, %v3356
    %v3358 = vshll.u32 920167782, %v3343
    %v3359 = vshrl.u32 1326507024, %v3344
    %v3360 = vor.u32 %v3358, %v3359
    %vm3361 = vcmp.lt.s32.totalorder %v3342, 1
    %vm3362 = vcmp.lt.s32.totalorder %v3342, 2
    %vm3363 = vcmp.lt.s32.totalorder %v3342, 3
    %vm3364 = vcmp.lt.s32.totalorder %v3342, 4
    %v3365 = vsel %vm3361, %v3345, %v3348
    %v3366 = vsel %vm3364, %v3354, 2102212464
    %v3367 = vsel %vm3363, %v3351, %v3366
    %v3368 = vsel %vm3362, %v3365, %v3367
    %v3369 = vsel %vm3361, %v3348, %v3351
    %v3370 = vsel %vm3364, %v3357, 920167782
    %v3371 = vsel %vm3363, %v3354, %v3370
    %v3372 = vsel %vm3362, %v3369, %v3371
    %v3373 = vsel %vm3361, %v3351, %v3354
    %v3374 = vsel %vm3364, %v3360, 1326507024
    %v3375 = vsel %vm3363, %v3357, %v3374
    %v3376 = vsel %vm3362, %v3373, %v3375
    %v3377 = vshll.u32 %v3337, 8
    %v3378 = vmul.u32.u64.compose %v3377, %v3376
    %v3379 = vextract.low.u32 %v3378
    %v3380 = vextract.high.u32 %v3378
    %v3381 = vmul.u32.u64.compose %v3377, %v3372
    %v3382 = vextract.low.u32 %v3381
    %v3383 = vextract.high.u32 %v3381
    %v3384 = vmul.u32 %v3377, %v3368
    %v3385 = vadd.s32 %v3380, %v3382
    %vm3386 = vc.u32 %v3380, %v3382
    %v3387 = vadd.s32 %v3383, 1
    %v3388 = vsel %vm3386, %v3387, %v3383
    %v3389 = vadd.s32 %v3384, %v3388
    %v3390 = vadd.s32 %v3389, 536870912
    %v3391 = vshrl.u32 %v3390, 30
    %v3392 = vshll.u32 %v3391, 30
    %v3393 = vsub.s32 %v3389, %v3392
    %vm3394 = vcmp.lt.s32.totalorder %v3393, 0
    %v3395 = vsub.s32 0, %v3393
    %v3396 = vsel %vm3394, %v3395, %v3393
    %v3397 = vclz %v3396
    %v3398 = vsub.s32 %v3397, 2
    %vm3399 = vcmp.gt.s32.totalorder 0, %v3398
    %v3400 = vsel %vm3399, 0, %v3398
    %v3401 = vsub.s32 32, %v3400
    %v3402 = vshll.u32 %v3393, %v3400
    %v3403 = vshrl.u32 %v3385, %v3401
    %v3404 = vor.u32 %v3402, %v3403
    %v3405 = vsub.s32 4294967266, %v3400
    %v3406 = vadd.s32 %v3405, 127
    %v3407 = vshll.u32 %v3406, 23
    %v3408 = vor.u32 4788187, %v3407
    %v3409 = vand.u32 2147483647, %v3408
    %v3411 = vcvt.s32.f32 %v3404
    %v3412 = vmul.f32 %v3411, %v3409
    %v3413 = vxor.u32 %v3412, 2147483648
    %v3414 = vsel %vm3331, %v3413, %v3412
    %v3415 = vsub.s32 4, %v3391
    %v3416 = vsel %vm3331, %v3415, %v3391
    %v3417 = vsel %vm3330, %v1461, %v3414
    %v3418 = vsel %vm3330, 0, %v3416
    %v3419 = vcosq.f32.pop %v3417
    %v3420 = vsinq.f32.pop %v3417
    %vm3421 = vweird.f32 %v1461
    %v3422 = vand.u32 %v3418, 3
    %vm3423 = vcmp.lt.s32.totalorder %v3422, 2
    %vm3424 = vcmp.eq.s32.totalorder %v3422, 0
    %v3425 = vxor.u32 %v3420, 2147483648
    %v3426 = vsel %vm3424, %v3419, %v3425
    %vm3427 = vcmp.eq.s32.totalorder %v3422, 2
    %v3428 = vxor.u32 %v3419, 2147483648
    %v3429 = vsel %vm3427, %v3428, %v3420
    %v3430 = vsel %vm3423, %v3426, %v3429
    %v3431 = vsel %vm3421, nan, %v3430
    %v3432 = vand.u32 2147483647, %v1462
    %vm3433 = vcmp.le.f32.partialorder %v3432, 0.7853982
    %vm3434 = vcmp.lt.s32.totalorder %v1462, 0
    %v3435 = vand.u32 %v1462, 2139095040
    %v3436 = vshrl.u32 %v3435, 23
    %v3437 = vsub.s32 %v3436, 127
    %v3438 = vand.u32 2147483647, %v1462
    %v3439 = vand.u32 %v3438, 8388607
    %v3440 = vor.u32 %v3439, 8388608
    %v3441 = vsub.s32 0, %v3440
    %v3442 = vadd.s32 %v3437, 1
    %vm3443 = vcmp.gt.s32.totalorder %v3442, 0
    %v3444 = vsel %vm3443, %v3442, 0
    %v3445 = vshrl.u32 %v3444, 5
    %v3446 = vand.u32 %v3444, 31
    %v3447 = vsub.s32 32, %v3446
    %v3448 = vshrl.u32 683565275, %v3447
    %v3449 = vshll.u32 683565275, %v3446
    %v3450 = vshrl.u32 2475754826, %v3447
    %v3451 = vor.u32 %v3449, %v3450
    %v3452 = vshll.u32 2475754826, %v3446
    %v3453 = vshrl.u32 2131351028, %v3447
    %v3454 = vor.u32 %v3452, %v3453
    %v3455 = vshll.u32 2131351028, %v3446
    %v3456 = vshrl.u32 2102212464, %v3447
    %v3457 = vor.u32 %v3455, %v3456
    %v3458 = vshll.u32 2102212464, %v3446
    %v3459 = vshrl.u32 920167782, %v3447
    %v3460 = vor.u32 %v3458, %v3459
    %v3461 = vshll.u32 920167782, %v3446
    %v3462 = vshrl.u32 1326507024, %v3447
    %v3463 = vor.u32 %v3461, %v3462
    %vm3464 = vcmp.lt.s32.totalorder %v3445, 1
    %vm3465 = vcmp.lt.s32.totalorder %v3445, 2
    %vm3466 = vcmp.lt.s32.totalorder %v3445, 3
    %vm3467 = vcmp.lt.s32.totalorder %v3445, 4
    %v3468 = vsel %vm3464, %v3448, %v3451
    %v3469 = vsel %vm3467, %v3457, 2102212464
    %v3470 = vsel %vm3466, %v3454, %v3469
    %v3471 = vsel %vm3465, %v3468, %v3470
    %v3472 = vsel %vm3464, %v3451, %v3454
    %v3473 = vsel %vm3467, %v3460, 920167782
    %v3474 = vsel %vm3466, %v3457, %v3473
    %v3475 = vsel %vm3465, %v3472, %v3474
    %v3476 = vsel %vm3464, %v3454, %v3457
    %v3477 = vsel %vm3467, %v3463, 1326507024
    %v3478 = vsel %vm3466, %v3460, %v3477
    %v3479 = vsel %vm3465, %v3476, %v3478
    %v3480 = vshll.u32 %v3440, 8
    %v3481 = vmul.u32.u64.compose %v3480, %v3479
    %v3482 = vextract.low.u32 %v3481
    %v3483 = vextract.high.u32 %v3481
    %v3484 = vmul.u32.u64.compose %v3480, %v3475
    %v3485 = vextract.low.u32 %v3484
    %v3486 = vextract.high.u32 %v3484
    %v3487 = vmul.u32 %v3480, %v3471
    %v3488 = vadd.s32 %v3483, %v3485
    %vm3489 = vc.u32 %v3483, %v3485
    %v3490 = vadd.s32 %v3486, 1
    %v3491 = vsel %vm3489, %v3490, %v3486
    %v3492 = vadd.s32 %v3487, %v3491
    %v3493 = vadd.s32 %v3492, 536870912
    %v3494 = vshrl.u32 %v3493, 30
    %v3495 = vshll.u32 %v3494, 30
    %v3496 = vsub.s32 %v3492, %v3495
    %vm3497 = vcmp.lt.s32.totalorder %v3496, 0
    %v3498 = vsub.s32 0, %v3496
    %v3499 = vsel %vm3497, %v3498, %v3496
    %v3500 = vclz %v3499
    %v3501 = vsub.s32 %v3500, 2
    %vm3502 = vcmp.gt.s32.totalorder 0, %v3501
    %v3503 = vsel %vm3502, 0, %v3501
    %v3504 = vsub.s32 32, %v3503
    %v3505 = vshll.u32 %v3496, %v3503
    %v3506 = vshrl.u32 %v3488, %v3504
    %v3507 = vor.u32 %v3505, %v3506
    %v3508 = vsub.s32 4294967266, %v3503
    %v3509 = vadd.s32 %v3508, 127
    %v3510 = vshll.u32 %v3509, 23
    %v3511 = vor.u32 4788187, %v3510
    %v3512 = vand.u32 2147483647, %v3511
    %v3514 = vcvt.s32.f32 %v3507
    %v3515 = vmul.f32 %v3514, %v3512
    %v3516 = vxor.u32 %v3515, 2147483648
    %v3517 = vsel %vm3434, %v3516, %v3515
    %v3518 = vsub.s32 4, %v3494
    %v3519 = vsel %vm3434, %v3518, %v3494
    %v3520 = vsel %vm3433, %v1462, %v3517
    %v3521 = vsel %vm3433, 0, %v3519
    %v3522 = vcosq.f32.pop %v3520
    %v3523 = vsinq.f32.pop %v3520
    %vm3524 = vweird.f32 %v1462
    %v3525 = vand.u32 %v3521, 3
    %vm3526 = vcmp.lt.s32.totalorder %v3525, 2
    %vm3527 = vcmp.eq.s32.totalorder %v3525, 0
    %v3528 = vxor.u32 %v3523, 2147483648
    %v3529 = vsel %vm3527, %v3522, %v3528
    %vm3530 = vcmp.eq.s32.totalorder %v3525, 2
    %v3531 = vxor.u32 %v3522, 2147483648
    %v3532 = vsel %vm3530, %v3531, %v3523
    %v3533 = vsel %vm3526, %v3529, %v3532
    %v3534 = vsel %vm3524, nan, %v3533
    %v3535 = vand.u32 2147483647, %v1463
    %vm3536 = vcmp.le.f32.partialorder %v3535, 0.7853982
    %vm3537 = vcmp.lt.s32.totalorder %v1463, 0
    %v3538 = vand.u32 %v1463, 2139095040
    %v3539 = vshrl.u32 %v3538, 23
    %v3540 = vsub.s32 %v3539, 127
    %v3541 = vand.u32 2147483647, %v1463
    %v3542 = vand.u32 %v3541, 8388607
    %v3543 = vor.u32 %v3542, 8388608
    %v3544 = vsub.s32 0, %v3543
    %v3545 = vadd.s32 %v3540, 1
    %vm3546 = vcmp.gt.s32.totalorder %v3545, 0
    %v3547 = vsel %vm3546, %v3545, 0
    %v3548 = vshrl.u32 %v3547, 5
    %v3549 = vand.u32 %v3547, 31
    %v3550 = vsub.s32 32, %v3549
    %v3551 = vshrl.u32 683565275, %v3550
    %v3552 = vshll.u32 683565275, %v3549
    %v3553 = vshrl.u32 2475754826, %v3550
    %v3554 = vor.u32 %v3552, %v3553
    %v3555 = vshll.u32 2475754826, %v3549
    %v3556 = vshrl.u32 2131351028, %v3550
    %v3557 = vor.u32 %v3555, %v3556
    %v3558 = vshll.u32 2131351028, %v3549
    %v3559 = vshrl.u32 2102212464, %v3550
    %v3560 = vor.u32 %v3558, %v3559
    %v3561 = vshll.u32 2102212464, %v3549
    %v3562 = vshrl.u32 920167782, %v3550
    %v3563 = vor.u32 %v3561, %v3562
    %v3564 = vshll.u32 920167782, %v3549
    %v3565 = vshrl.u32 1326507024, %v3550
    %v3566 = vor.u32 %v3564, %v3565
    %vm3567 = vcmp.lt.s32.totalorder %v3548, 1
    %vm3568 = vcmp.lt.s32.totalorder %v3548, 2
    %vm3569 = vcmp.lt.s32.totalorder %v3548, 3
    %vm3570 = vcmp.lt.s32.totalorder %v3548, 4
    %v3571 = vsel %vm3567, %v3551, %v3554
    %v3572 = vsel %vm3570, %v3560, 2102212464
    %v3573 = vsel %vm3569, %v3557, %v3572
    %v3574 = vsel %vm3568, %v3571, %v3573
    %v3575 = vsel %vm3567, %v3554, %v3557
    %v3576 = vsel %vm3570, %v3563, 920167782
    %v3577 = vsel %vm3569, %v3560, %v3576
    %v3578 = vsel %vm3568, %v3575, %v3577
    %v3579 = vsel %vm3567, %v3557, %v3560
    %v3580 = vsel %vm3570, %v3566, 1326507024
    %v3581 = vsel %vm3569, %v3563, %v3580
    %v3582 = vsel %vm3568, %v3579, %v3581
    %v3583 = vshll.u32 %v3543, 8
    %v3584 = vmul.u32.u64.compose %v3583, %v3582
    %v3585 = vextract.low.u32 %v3584
    %v3586 = vextract.high.u32 %v3584
    %v3587 = vmul.u32.u64.compose %v3583, %v3578
    %v3588 = vextract.low.u32 %v3587
    %v3589 = vextract.high.u32 %v3587
    %v3590 = vmul.u32 %v3583, %v3574
    %v3591 = vadd.s32 %v3586, %v3588
    %vm3592 = vc.u32 %v3586, %v3588
    %v3593 = vadd.s32 %v3589, 1
    %v3594 = vsel %vm3592, %v3593, %v3589
    %v3595 = vadd.s32 %v3590, %v3594
    %v3596 = vadd.s32 %v3595, 536870912
    %v3597 = vshrl.u32 %v3596, 30
    %v3598 = vshll.u32 %v3597, 30
    %v3599 = vsub.s32 %v3595, %v3598
    %vm3600 = vcmp.lt.s32.totalorder %v3599, 0
    %v3601 = vsub.s32 0, %v3599
    %v3602 = vsel %vm3600, %v3601, %v3599
    %v3603 = vclz %v3602
    %v3604 = vsub.s32 %v3603, 2
    %vm3605 = vcmp.gt.s32.totalorder 0, %v3604
    %v3606 = vsel %vm3605, 0, %v3604
    %v3607 = vsub.s32 32, %v3606
    %v3608 = vshll.u32 %v3599, %v3606
    %v3609 = vshrl.u32 %v3591, %v3607
    %v3610 = vor.u32 %v3608, %v3609
    %v3611 = vsub.s32 4294967266, %v3606
    %v3612 = vadd.s32 %v3611, 127
    %v3613 = vshll.u32 %v3612, 23
    %v3614 = vor.u32 4788187, %v3613
    %v3615 = vand.u32 2147483647, %v3614
    %v3617 = vcvt.s32.f32 %v3610
    %v3618 = vmul.f32 %v3617, %v3615
    %v3619 = vxor.u32 %v3618, 2147483648
    %v3620 = vsel %vm3537, %v3619, %v3618
    %v3621 = vsub.s32 4, %v3597
    %v3622 = vsel %vm3537, %v3621, %v3597
    %v3623 = vsel %vm3536, %v1463, %v3620
    %v3624 = vsel %vm3536, 0, %v3622
    %v3625 = vcosq.f32.pop %v3623
    %v3626 = vsinq.f32.pop %v3623
    %vm3627 = vweird.f32 %v1463
    %v3628 = vand.u32 %v3624, 3
    %vm3629 = vcmp.lt.s32.totalorder %v3628, 2
    %vm3630 = vcmp.eq.s32.totalorder %v3628, 0
    %v3631 = vxor.u32 %v3626, 2147483648
    %v3632 = vsel %vm3630, %v3625, %v3631
    %vm3633 = vcmp.eq.s32.totalorder %v3628, 2
    %v3634 = vxor.u32 %v3625, 2147483648
    %v3635 = vsel %vm3633, %v3634, %v3626
    %v3636 = vsel %vm3629, %v3632, %v3635
    %v3637 = vsel %vm3627, nan, %v3636
    %v3638 = vand.u32 2147483647, %v1464
    %vm3639 = vcmp.le.f32.partialorder %v3638, 0.7853982
    %vm3640 = vcmp.lt.s32.totalorder %v1464, 0
    %v3641 = vand.u32 %v1464, 2139095040
    %v3642 = vshrl.u32 %v3641, 23
    %v3643 = vsub.s32 %v3642, 127
    %v3644 = vand.u32 2147483647, %v1464
    %v3645 = vand.u32 %v3644, 8388607
    %v3646 = vor.u32 %v3645, 8388608
    %v3647 = vsub.s32 0, %v3646
    %v3648 = vadd.s32 %v3643, 1
    %vm3649 = vcmp.gt.s32.totalorder %v3648, 0
    %v3650 = vsel %vm3649, %v3648, 0
    %v3651 = vshrl.u32 %v3650, 5
    %v3652 = vand.u32 %v3650, 31
    %v3653 = vsub.s32 32, %v3652
    %v3654 = vshrl.u32 683565275, %v3653
    %v3655 = vshll.u32 683565275, %v3652
    %v3656 = vshrl.u32 2475754826, %v3653
    %v3657 = vor.u32 %v3655, %v3656
    %v3658 = vshll.u32 2475754826, %v3652
    %v3659 = vshrl.u32 2131351028, %v3653
    %v3660 = vor.u32 %v3658, %v3659
    %v3661 = vshll.u32 2131351028, %v3652
    %v3662 = vshrl.u32 2102212464, %v3653
    %v3663 = vor.u32 %v3661, %v3662
    %v3664 = vshll.u32 2102212464, %v3652
    %v3665 = vshrl.u32 920167782, %v3653
    %v3666 = vor.u32 %v3664, %v3665
    %v3667 = vshll.u32 920167782, %v3652
    %v3668 = vshrl.u32 1326507024, %v3653
    %v3669 = vor.u32 %v3667, %v3668
    %vm3670 = vcmp.lt.s32.totalorder %v3651, 1
    %vm3671 = vcmp.lt.s32.totalorder %v3651, 2
    %vm3672 = vcmp.lt.s32.totalorder %v3651, 3
    %vm3673 = vcmp.lt.s32.totalorder %v3651, 4
    %v3674 = vsel %vm3670, %v3654, %v3657
    %v3675 = vsel %vm3673, %v3663, 2102212464
    %v3676 = vsel %vm3672, %v3660, %v3675
    %v3677 = vsel %vm3671, %v3674, %v3676
    %v3678 = vsel %vm3670, %v3657, %v3660
    %v3679 = vsel %vm3673, %v3666, 920167782
    %v3680 = vsel %vm3672, %v3663, %v3679
    %v3681 = vsel %vm3671, %v3678, %v3680
    %v3682 = vsel %vm3670, %v3660, %v3663
    %v3683 = vsel %vm3673, %v3669, 1326507024
    %v3684 = vsel %vm3672, %v3666, %v3683
    %v3685 = vsel %vm3671, %v3682, %v3684
    %v3686 = vshll.u32 %v3646, 8
    %v3687 = vmul.u32.u64.compose %v3686, %v3685
    %v3688 = vextract.low.u32 %v3687
    %v3689 = vextract.high.u32 %v3687
    %v3690 = vmul.u32.u64.compose %v3686, %v3681
    %v3691 = vextract.low.u32 %v3690
    %v3692 = vextract.high.u32 %v3690
    %v3693 = vmul.u32 %v3686, %v3677
    %v3694 = vadd.s32 %v3689, %v3691
    %vm3695 = vc.u32 %v3689, %v3691
    %v3696 = vadd.s32 %v3692, 1
    %v3697 = vsel %vm3695, %v3696, %v3692
    %v3698 = vadd.s32 %v3693, %v3697
    %v3699 = vadd.s32 %v3698, 536870912
    %v3700 = vshrl.u32 %v3699, 30
    %v3701 = vshll.u32 %v3700, 30
    %v3702 = vsub.s32 %v3698, %v3701
    %vm3703 = vcmp.lt.s32.totalorder %v3702, 0
    %v3704 = vsub.s32 0, %v3702
    %v3705 = vsel %vm3703, %v3704, %v3702
    %v3706 = vclz %v3705
    %v3707 = vsub.s32 %v3706, 2
    %vm3708 = vcmp.gt.s32.totalorder 0, %v3707
    %v3709 = vsel %vm3708, 0, %v3707
    %v3710 = vsub.s32 32, %v3709
    %v3711 = vshll.u32 %v3702, %v3709
    %v3712 = vshrl.u32 %v3694, %v3710
    %v3713 = vor.u32 %v3711, %v3712
    %v3714 = vsub.s32 4294967266, %v3709
    %v3715 = vadd.s32 %v3714, 127
    %v3716 = vshll.u32 %v3715, 23
    %v3717 = vor.u32 4788187, %v3716
    %v3718 = vand.u32 2147483647, %v3717
    %v3720 = vcvt.s32.f32 %v3713
    %v3721 = vmul.f32 %v3720, %v3718
    %v3722 = vxor.u32 %v3721, 2147483648
    %v3723 = vsel %vm3640, %v3722, %v3721
    %v3724 = vsub.s32 4, %v3700
    %v3725 = vsel %vm3640, %v3724, %v3700
    %v3726 = vsel %vm3639, %v1464, %v3723
    %v3727 = vsel %vm3639, 0, %v3725
    %v3728 = vcosq.f32.pop %v3726
    %v3729 = vsinq.f32.pop %v3726
    %vm3730 = vweird.f32 %v1464
    %v3731 = vand.u32 %v3727, 3
    %vm3732 = vcmp.lt.s32.totalorder %v3731, 2
    %vm3733 = vcmp.eq.s32.totalorder %v3731, 0
    %v3734 = vxor.u32 %v3729, 2147483648
    %v3735 = vsel %vm3733, %v3728, %v3734
    %vm3736 = vcmp.eq.s32.totalorder %v3731, 2
    %v3737 = vxor.u32 %v3728, 2147483648
    %v3738 = vsel %vm3736, %v3737, %v3729
    %v3739 = vsel %vm3732, %v3735, %v3738
    %v3740 = vsel %vm3730, nan, %v3739
    %v3741 = vand.u32 2147483647, %v1465
    %vm3742 = vcmp.le.f32.partialorder %v3741, 0.7853982
    %vm3743 = vcmp.lt.s32.totalorder %v1465, 0
    %v3744 = vand.u32 %v1465, 2139095040
    %v3745 = vshrl.u32 %v3744, 23
    %v3746 = vsub.s32 %v3745, 127
    %v3747 = vand.u32 2147483647, %v1465
    %v3748 = vand.u32 %v3747, 8388607
    %v3749 = vor.u32 %v3748, 8388608
    %v3750 = vsub.s32 0, %v3749
    %v3751 = vadd.s32 %v3746, 1
    %vm3752 = vcmp.gt.s32.totalorder %v3751, 0
    %v3753 = vsel %vm3752, %v3751, 0
    %v3754 = vshrl.u32 %v3753, 5
    %v3755 = vand.u32 %v3753, 31
    %v3756 = vsub.s32 32, %v3755
    %v3757 = vshrl.u32 683565275, %v3756
    %v3758 = vshll.u32 683565275, %v3755
    %v3759 = vshrl.u32 2475754826, %v3756
    %v3760 = vor.u32 %v3758, %v3759
    %v3761 = vshll.u32 2475754826, %v3755
    %v3762 = vshrl.u32 2131351028, %v3756
    %v3763 = vor.u32 %v3761, %v3762
    %v3764 = vshll.u32 2131351028, %v3755
    %v3765 = vshrl.u32 2102212464, %v3756
    %v3766 = vor.u32 %v3764, %v3765
    %v3767 = vshll.u32 2102212464, %v3755
    %v3768 = vshrl.u32 920167782, %v3756
    %v3769 = vor.u32 %v3767, %v3768
    %v3770 = vshll.u32 920167782, %v3755
    %v3771 = vshrl.u32 1326507024, %v3756
    %v3772 = vor.u32 %v3770, %v3771
    %vm3773 = vcmp.lt.s32.totalorder %v3754, 1
    %vm3774 = vcmp.lt.s32.totalorder %v3754, 2
    %vm3775 = vcmp.lt.s32.totalorder %v3754, 3
    %vm3776 = vcmp.lt.s32.totalorder %v3754, 4
    %v3777 = vsel %vm3773, %v3757, %v3760
    %v3778 = vsel %vm3776, %v3766, 2102212464
    %v3779 = vsel %vm3775, %v3763, %v3778
    %v3780 = vsel %vm3774, %v3777, %v3779
    %v3781 = vsel %vm3773, %v3760, %v3763
    %v3782 = vsel %vm3776, %v3769, 920167782
    %v3783 = vsel %vm3775, %v3766, %v3782
    %v3784 = vsel %vm3774, %v3781, %v3783
    %v3785 = vsel %vm3773, %v3763, %v3766
    %v3786 = vsel %vm3776, %v3772, 1326507024
    %v3787 = vsel %vm3775, %v3769, %v3786
    %v3788 = vsel %vm3774, %v3785, %v3787
    %v3789 = vshll.u32 %v3749, 8
    %v3790 = vmul.u32.u64.compose %v3789, %v3788
    %v3791 = vextract.low.u32 %v3790
    %v3792 = vextract.high.u32 %v3790
    %v3793 = vmul.u32.u64.compose %v3789, %v3784
    %v3794 = vextract.low.u32 %v3793
    %v3795 = vextract.high.u32 %v3793
    %v3796 = vmul.u32 %v3789, %v3780
    %v3797 = vadd.s32 %v3792, %v3794
    %vm3798 = vc.u32 %v3792, %v3794
    %v3799 = vadd.s32 %v3795, 1
    %v3800 = vsel %vm3798, %v3799, %v3795
    %v3801 = vadd.s32 %v3796, %v3800
    %v3802 = vadd.s32 %v3801, 536870912
    %v3803 = vshrl.u32 %v3802, 30
    %v3804 = vshll.u32 %v3803, 30
    %v3805 = vsub.s32 %v3801, %v3804
    %vm3806 = vcmp.lt.s32.totalorder %v3805, 0
    %v3807 = vsub.s32 0, %v3805
    %v3808 = vsel %vm3806, %v3807, %v3805
    %v3809 = vclz %v3808
    %v3810 = vsub.s32 %v3809, 2
    %vm3811 = vcmp.gt.s32.totalorder 0, %v3810
    %v3812 = vsel %vm3811, 0, %v3810
    %v3813 = vsub.s32 32, %v3812
    %v3814 = vshll.u32 %v3805, %v3812
    %v3815 = vshrl.u32 %v3797, %v3813
    %v3816 = vor.u32 %v3814, %v3815
    %v3817 = vsub.s32 4294967266, %v3812
    %v3818 = vadd.s32 %v3817, 127
    %v3819 = vshll.u32 %v3818, 23
    %v3820 = vor.u32 4788187, %v3819
    %v3821 = vand.u32 2147483647, %v3820
    %v3823 = vcvt.s32.f32 %v3816
    %v3824 = vmul.f32 %v3823, %v3821
    %v3825 = vxor.u32 %v3824, 2147483648
    %v3826 = vsel %vm3743, %v3825, %v3824
    %v3827 = vsub.s32 4, %v3803
    %v3828 = vsel %vm3743, %v3827, %v3803
    %v3829 = vsel %vm3742, %v1465, %v3826
    %v3830 = vsel %vm3742, 0, %v3828
    %v3831 = vcosq.f32.pop %v3829
    %v3832 = vsinq.f32.pop %v3829
    %vm3833 = vweird.f32 %v1465
    %v3834 = vand.u32 %v3830, 3
    %vm3835 = vcmp.lt.s32.totalorder %v3834, 2
    %vm3836 = vcmp.eq.s32.totalorder %v3834, 0
    %v3837 = vxor.u32 %v3832, 2147483648
    %v3838 = vsel %vm3836, %v3831, %v3837
    %vm3839 = vcmp.eq.s32.totalorder %v3834, 2
    %v3840 = vxor.u32 %v3831, 2147483648
    %v3841 = vsel %vm3839, %v3840, %v3832
    %v3842 = vsel %vm3835, %v3838, %v3841
    %v3843 = vsel %vm3833, nan, %v3842
    %v3844 = vand.u32 2147483647, %v1466
    %vm3845 = vcmp.le.f32.partialorder %v3844, 0.7853982
    %vm3846 = vcmp.lt.s32.totalorder %v1466, 0
    %v3847 = vand.u32 %v1466, 2139095040
    %v3848 = vshrl.u32 %v3847, 23
    %v3849 = vsub.s32 %v3848, 127
    %v3850 = vand.u32 2147483647, %v1466
    %v3851 = vand.u32 %v3850, 8388607
    %v3852 = vor.u32 %v3851, 8388608
    %v3853 = vsub.s32 0, %v3852
    %v3854 = vadd.s32 %v3849, 1
    %vm3855 = vcmp.gt.s32.totalorder %v3854, 0
    %v3856 = vsel %vm3855, %v3854, 0
    %v3857 = vshrl.u32 %v3856, 5
    %v3858 = vand.u32 %v3856, 31
    %v3859 = vsub.s32 32, %v3858
    %v3860 = vshrl.u32 683565275, %v3859
    %v3861 = vshll.u32 683565275, %v3858
    %v3862 = vshrl.u32 2475754826, %v3859
    %v3863 = vor.u32 %v3861, %v3862
    %v3864 = vshll.u32 2475754826, %v3858
    %v3865 = vshrl.u32 2131351028, %v3859
    %v3866 = vor.u32 %v3864, %v3865
    %v3867 = vshll.u32 2131351028, %v3858
    %v3868 = vshrl.u32 2102212464, %v3859
    %v3869 = vor.u32 %v3867, %v3868
    %v3870 = vshll.u32 2102212464, %v3858
    %v3871 = vshrl.u32 920167782, %v3859
    %v3872 = vor.u32 %v3870, %v3871
    %v3873 = vshll.u32 920167782, %v3858
    %v3874 = vshrl.u32 1326507024, %v3859
    %v3875 = vor.u32 %v3873, %v3874
    %vm3876 = vcmp.lt.s32.totalorder %v3857, 1
    %vm3877 = vcmp.lt.s32.totalorder %v3857, 2
    %vm3878 = vcmp.lt.s32.totalorder %v3857, 3
    %vm3879 = vcmp.lt.s32.totalorder %v3857, 4
    %v3880 = vsel %vm3876, %v3860, %v3863
    %v3881 = vsel %vm3879, %v3869, 2102212464
    %v3882 = vsel %vm3878, %v3866, %v3881
    %v3883 = vsel %vm3877, %v3880, %v3882
    %v3884 = vsel %vm3876, %v3863, %v3866
    %v3885 = vsel %vm3879, %v3872, 920167782
    %v3886 = vsel %vm3878, %v3869, %v3885
    %v3887 = vsel %vm3877, %v3884, %v3886
    %v3888 = vsel %vm3876, %v3866, %v3869
    %v3889 = vsel %vm3879, %v3875, 1326507024
    %v3890 = vsel %vm3878, %v3872, %v3889
    %v3891 = vsel %vm3877, %v3888, %v3890
    %v3892 = vshll.u32 %v3852, 8
    %v3893 = vmul.u32.u64.compose %v3892, %v3891
    %v3894 = vextract.low.u32 %v3893
    %v3895 = vextract.high.u32 %v3893
    %v3896 = vmul.u32.u64.compose %v3892, %v3887
    %v3897 = vextract.low.u32 %v3896
    %v3898 = vextract.high.u32 %v3896
    %v3899 = vmul.u32 %v3892, %v3883
    %v3900 = vadd.s32 %v3895, %v3897
    %vm3901 = vc.u32 %v3895, %v3897
    %v3902 = vadd.s32 %v3898, 1
    %v3903 = vsel %vm3901, %v3902, %v3898
    %v3904 = vadd.s32 %v3899, %v3903
    %v3905 = vadd.s32 %v3904, 536870912
    %v3906 = vshrl.u32 %v3905, 30
    %v3907 = vshll.u32 %v3906, 30
    %v3908 = vsub.s32 %v3904, %v3907
    %vm3909 = vcmp.lt.s32.totalorder %v3908, 0
    %v3910 = vsub.s32 0, %v3908
    %v3911 = vsel %vm3909, %v3910, %v3908
    %v3912 = vclz %v3911
    %v3913 = vsub.s32 %v3912, 2
    %vm3914 = vcmp.gt.s32.totalorder 0, %v3913
    %v3915 = vsel %vm3914, 0, %v3913
    %v3916 = vsub.s32 32, %v3915
    %v3917 = vshll.u32 %v3908, %v3915
    %v3918 = vshrl.u32 %v3900, %v3916
    %v3919 = vor.u32 %v3917, %v3918
    %v3920 = vsub.s32 4294967266, %v3915
    %v3921 = vadd.s32 %v3920, 127
    %v3922 = vshll.u32 %v3921, 23
    %v3923 = vor.u32 4788187, %v3922
    %v3924 = vand.u32 2147483647, %v3923
    %v3926 = vcvt.s32.f32 %v3919
    %v3927 = vmul.f32 %v3926, %v3924
    %v3928 = vxor.u32 %v3927, 2147483648
    %v3929 = vsel %vm3846, %v3928, %v3927
    %v3930 = vsub.s32 4, %v3906
    %v3931 = vsel %vm3846, %v3930, %v3906
    %v3932 = vsel %vm3845, %v1466, %v3929
    %v3933 = vsel %vm3845, 0, %v3931
    %v3934 = vcosq.f32.pop %v3932
    %v3935 = vsinq.f32.pop %v3932
    %vm3936 = vweird.f32 %v1466
    %v3937 = vand.u32 %v3933, 3
    %vm3938 = vcmp.lt.s32.totalorder %v3937, 2
    %vm3939 = vcmp.eq.s32.totalorder %v3937, 0
    %v3940 = vxor.u32 %v3935, 2147483648
    %v3941 = vsel %vm3939, %v3934, %v3940
    %vm3942 = vcmp.eq.s32.totalorder %v3937, 2
    %v3943 = vxor.u32 %v3934, 2147483648
    %v3944 = vsel %vm3942, %v3943, %v3935
    %v3945 = vsel %vm3938, %v3941, %v3944
    %v3946 = vsel %vm3936, nan, %v3945
    %v3947 = vand.u32 2147483647, %v1467
    %vm3948 = vcmp.le.f32.partialorder %v3947, 0.7853982
    %vm3949 = vcmp.lt.s32.totalorder %v1467, 0
    %v3950 = vand.u32 %v1467, 2139095040
    %v3951 = vshrl.u32 %v3950, 23
    %v3952 = vsub.s32 %v3951, 127
    %v3953 = vand.u32 2147483647, %v1467
    %v3954 = vand.u32 %v3953, 8388607
    %v3955 = vor.u32 %v3954, 8388608
    %v3956 = vsub.s32 0, %v3955
    %v3957 = vadd.s32 %v3952, 1
    %vm3958 = vcmp.gt.s32.totalorder %v3957, 0
    %v3959 = vsel %vm3958, %v3957, 0
    %v3960 = vshrl.u32 %v3959, 5
    %v3961 = vand.u32 %v3959, 31
    %v3962 = vsub.s32 32, %v3961
    %v3963 = vshrl.u32 683565275, %v3962
    %v3964 = vshll.u32 683565275, %v3961
    %v3965 = vshrl.u32 2475754826, %v3962
    %v3966 = vor.u32 %v3964, %v3965
    %v3967 = vshll.u32 2475754826, %v3961
    %v3968 = vshrl.u32 2131351028, %v3962
    %v3969 = vor.u32 %v3967, %v3968
    %v3970 = vshll.u32 2131351028, %v3961
    %v3971 = vshrl.u32 2102212464, %v3962
    %v3972 = vor.u32 %v3970, %v3971
    %v3973 = vshll.u32 2102212464, %v3961
    %v3974 = vshrl.u32 920167782, %v3962
    %v3975 = vor.u32 %v3973, %v3974
    %v3976 = vshll.u32 920167782, %v3961
    %v3977 = vshrl.u32 1326507024, %v3962
    %v3978 = vor.u32 %v3976, %v3977
    %vm3979 = vcmp.lt.s32.totalorder %v3960, 1
    %vm3980 = vcmp.lt.s32.totalorder %v3960, 2
    %vm3981 = vcmp.lt.s32.totalorder %v3960, 3
    %vm3982 = vcmp.lt.s32.totalorder %v3960, 4
    %v3983 = vsel %vm3979, %v3963, %v3966
    %v3984 = vsel %vm3982, %v3972, 2102212464
    %v3985 = vsel %vm3981, %v3969, %v3984
    %v3986 = vsel %vm3980, %v3983, %v3985
    %v3987 = vsel %vm3979, %v3966, %v3969
    %v3988 = vsel %vm3982, %v3975, 920167782
    %v3989 = vsel %vm3981, %v3972, %v3988
    %v3990 = vsel %vm3980, %v3987, %v3989
    %v3991 = vsel %vm3979, %v3969, %v3972
    %v3992 = vsel %vm3982, %v3978, 1326507024
    %v3993 = vsel %vm3981, %v3975, %v3992
    %v3994 = vsel %vm3980, %v3991, %v3993
    %v3995 = vshll.u32 %v3955, 8
    %v3996 = vmul.u32.u64.compose %v3995, %v3994
    %v3997 = vextract.low.u32 %v3996
    %v3998 = vextract.high.u32 %v3996
    %v3999 = vmul.u32.u64.compose %v3995, %v3990
    %v4000 = vextract.low.u32 %v3999
    %v4001 = vextract.high.u32 %v3999
    %v4002 = vmul.u32 %v3995, %v3986
    %v4003 = vadd.s32 %v3998, %v4000
    %vm4004 = vc.u32 %v3998, %v4000
    %v4005 = vadd.s32 %v4001, 1
    %v4006 = vsel %vm4004, %v4005, %v4001
    %v4007 = vadd.s32 %v4002, %v4006
    %v4008 = vadd.s32 %v4007, 536870912
    %v4009 = vshrl.u32 %v4008, 30
    %v4010 = vshll.u32 %v4009, 30
    %v4011 = vsub.s32 %v4007, %v4010
    %vm4012 = vcmp.lt.s32.totalorder %v4011, 0
    %v4013 = vsub.s32 0, %v4011
    %v4014 = vsel %vm4012, %v4013, %v4011
    %v4015 = vclz %v4014
    %v4016 = vsub.s32 %v4015, 2
    %vm4017 = vcmp.gt.s32.totalorder 0, %v4016
    %v4018 = vsel %vm4017, 0, %v4016
    %v4019 = vsub.s32 32, %v4018
    %v4020 = vshll.u32 %v4011, %v4018
    %v4021 = vshrl.u32 %v4003, %v4019
    %v4022 = vor.u32 %v4020, %v4021
    %v4023 = vsub.s32 4294967266, %v4018
    %v4024 = vadd.s32 %v4023, 127
    %v4025 = vshll.u32 %v4024, 23
    %v4026 = vor.u32 4788187, %v4025
    %v4027 = vand.u32 2147483647, %v4026
    %v4029 = vcvt.s32.f32 %v4022
    %v4030 = vmul.f32 %v4029, %v4027
    %v4031 = vxor.u32 %v4030, 2147483648
    %v4032 = vsel %vm3949, %v4031, %v4030
    %v4033 = vsub.s32 4, %v4009
    %v4034 = vsel %vm3949, %v4033, %v4009
    %v4035 = vsel %vm3948, %v1467, %v4032
    %v4036 = vsel %vm3948, 0, %v4034
    %v4037 = vcosq.f32.pop %v4035
    %v4038 = vsinq.f32.pop %v4035
    %vm4039 = vweird.f32 %v1467
    %v4040 = vand.u32 %v4036, 3
    %vm4041 = vcmp.lt.s32.totalorder %v4040, 2
    %vm4042 = vcmp.eq.s32.totalorder %v4040, 0
    %v4043 = vxor.u32 %v4038, 2147483648
    %v4044 = vsel %vm4042, %v4037, %v4043
    %vm4045 = vcmp.eq.s32.totalorder %v4040, 2
    %v4046 = vxor.u32 %v4037, 2147483648
    %v4047 = vsel %vm4045, %v4046, %v4038
    %v4048 = vsel %vm4041, %v4044, %v4047
    %v4049 = vsel %vm4039, nan, %v4048
    %v4050 = vand.u32 2147483647, %v1468
    %vm4051 = vcmp.le.f32.partialorder %v4050, 0.7853982
    %vm4052 = vcmp.lt.s32.totalorder %v1468, 0
    %v4053 = vand.u32 %v1468, 2139095040
    %v4054 = vshrl.u32 %v4053, 23
    %v4055 = vsub.s32 %v4054, 127
    %v4056 = vand.u32 2147483647, %v1468
    %v4057 = vand.u32 %v4056, 8388607
    %v4058 = vor.u32 %v4057, 8388608
    %v4059 = vsub.s32 0, %v4058
    %v4060 = vadd.s32 %v4055, 1
    %vm4061 = vcmp.gt.s32.totalorder %v4060, 0
    %v4062 = vsel %vm4061, %v4060, 0
    %v4063 = vshrl.u32 %v4062, 5
    %v4064 = vand.u32 %v4062, 31
    %v4065 = vsub.s32 32, %v4064
    %v4066 = vshrl.u32 683565275, %v4065
    %v4067 = vshll.u32 683565275, %v4064
    %v4068 = vshrl.u32 2475754826, %v4065
    %v4069 = vor.u32 %v4067, %v4068
    %v4070 = vshll.u32 2475754826, %v4064
    %v4071 = vshrl.u32 2131351028, %v4065
    %v4072 = vor.u32 %v4070, %v4071
    %v4073 = vshll.u32 2131351028, %v4064
    %v4074 = vshrl.u32 2102212464, %v4065
    %v4075 = vor.u32 %v4073, %v4074
    %v4076 = vshll.u32 2102212464, %v4064
    %v4077 = vshrl.u32 920167782, %v4065
    %v4078 = vor.u32 %v4076, %v4077
    %v4079 = vshll.u32 920167782, %v4064
    %v4080 = vshrl.u32 1326507024, %v4065
    %v4081 = vor.u32 %v4079, %v4080
    %vm4082 = vcmp.lt.s32.totalorder %v4063, 1
    %vm4083 = vcmp.lt.s32.totalorder %v4063, 2
    %vm4084 = vcmp.lt.s32.totalorder %v4063, 3
    %vm4085 = vcmp.lt.s32.totalorder %v4063, 4
    %v4086 = vsel %vm4082, %v4066, %v4069
    %v4087 = vsel %vm4085, %v4075, 2102212464
    %v4088 = vsel %vm4084, %v4072, %v4087
    %v4089 = vsel %vm4083, %v4086, %v4088
    %v4090 = vsel %vm4082, %v4069, %v4072
    %v4091 = vsel %vm4085, %v4078, 920167782
    %v4092 = vsel %vm4084, %v4075, %v4091
    %v4093 = vsel %vm4083, %v4090, %v4092
    %v4094 = vsel %vm4082, %v4072, %v4075
    %v4095 = vsel %vm4085, %v4081, 1326507024
    %v4096 = vsel %vm4084, %v4078, %v4095
    %v4097 = vsel %vm4083, %v4094, %v4096
    %v4098 = vshll.u32 %v4058, 8
    %v4099 = vmul.u32.u64.compose %v4098, %v4097
    %v4100 = vextract.low.u32 %v4099
    %v4101 = vextract.high.u32 %v4099
    %v4102 = vmul.u32.u64.compose %v4098, %v4093
    %v4103 = vextract.low.u32 %v4102
    %v4104 = vextract.high.u32 %v4102
    %v4105 = vmul.u32 %v4098, %v4089
    %v4106 = vadd.s32 %v4101, %v4103
    %vm4107 = vc.u32 %v4101, %v4103
    %v4108 = vadd.s32 %v4104, 1
    %v4109 = vsel %vm4107, %v4108, %v4104
    %v4110 = vadd.s32 %v4105, %v4109
    %v4111 = vadd.s32 %v4110, 536870912
    %v4112 = vshrl.u32 %v4111, 30
    %v4113 = vshll.u32 %v4112, 30
    %v4114 = vsub.s32 %v4110, %v4113
    %vm4115 = vcmp.lt.s32.totalorder %v4114, 0
    %v4116 = vsub.s32 0, %v4114
    %v4117 = vsel %vm4115, %v4116, %v4114
    %v4118 = vclz %v4117
    %v4119 = vsub.s32 %v4118, 2
    %vm4120 = vcmp.gt.s32.totalorder 0, %v4119
    %v4121 = vsel %vm4120, 0, %v4119
    %v4122 = vsub.s32 32, %v4121
    %v4123 = vshll.u32 %v4114, %v4121
    %v4124 = vshrl.u32 %v4106, %v4122
    %v4125 = vor.u32 %v4123, %v4124
    %v4126 = vsub.s32 4294967266, %v4121
    %v4127 = vadd.s32 %v4126, 127
    %v4128 = vshll.u32 %v4127, 23
    %v4129 = vor.u32 4788187, %v4128
    %v4130 = vand.u32 2147483647, %v4129
    %v4132 = vcvt.s32.f32 %v4125
    %v4133 = vmul.f32 %v4132, %v4130
    %v4134 = vxor.u32 %v4133, 2147483648
    %v4135 = vsel %vm4052, %v4134, %v4133
    %v4136 = vsub.s32 4, %v4112
    %v4137 = vsel %vm4052, %v4136, %v4112
    %v4138 = vsel %vm4051, %v1468, %v4135
    %v4139 = vsel %vm4051, 0, %v4137
    %v4140 = vcosq.f32.pop %v4138
    %v4141 = vsinq.f32.pop %v4138
    %vm4142 = vweird.f32 %v1468
    %v4143 = vand.u32 %v4139, 3
    %vm4144 = vcmp.lt.s32.totalorder %v4143, 2
    %vm4145 = vcmp.eq.s32.totalorder %v4143, 0
    %v4146 = vxor.u32 %v4141, 2147483648
    %v4147 = vsel %vm4145, %v4140, %v4146
    %vm4148 = vcmp.eq.s32.totalorder %v4143, 2
    %v4149 = vxor.u32 %v4140, 2147483648
    %v4150 = vsel %vm4148, %v4149, %v4141
    %v4151 = vsel %vm4144, %v4147, %v4150
    %v4152 = vsel %vm4142, nan, %v4151
    %v4153 = vand.u32 2147483647, %v1469
    %vm4154 = vcmp.le.f32.partialorder %v4153, 0.7853982
    %vm4155 = vcmp.lt.s32.totalorder %v1469, 0
    %v4156 = vand.u32 %v1469, 2139095040
    %v4157 = vshrl.u32 %v4156, 23
    %v4158 = vsub.s32 %v4157, 127
    %v4159 = vand.u32 2147483647, %v1469
    %v4160 = vand.u32 %v4159, 8388607
    %v4161 = vor.u32 %v4160, 8388608
    %v4162 = vsub.s32 0, %v4161
    %v4163 = vadd.s32 %v4158, 1
    %vm4164 = vcmp.gt.s32.totalorder %v4163, 0
    %v4165 = vsel %vm4164, %v4163, 0
    %v4166 = vshrl.u32 %v4165, 5
    %v4167 = vand.u32 %v4165, 31
    %v4168 = vsub.s32 32, %v4167
    %v4169 = vshrl.u32 683565275, %v4168
    %v4170 = vshll.u32 683565275, %v4167
    %v4171 = vshrl.u32 2475754826, %v4168
    %v4172 = vor.u32 %v4170, %v4171
    %v4173 = vshll.u32 2475754826, %v4167
    %v4174 = vshrl.u32 2131351028, %v4168
    %v4175 = vor.u32 %v4173, %v4174
    %v4176 = vshll.u32 2131351028, %v4167
    %v4177 = vshrl.u32 2102212464, %v4168
    %v4178 = vor.u32 %v4176, %v4177
    %v4179 = vshll.u32 2102212464, %v4167
    %v4180 = vshrl.u32 920167782, %v4168
    %v4181 = vor.u32 %v4179, %v4180
    %v4182 = vshll.u32 920167782, %v4167
    %v4183 = vshrl.u32 1326507024, %v4168
    %v4184 = vor.u32 %v4182, %v4183
    %vm4185 = vcmp.lt.s32.totalorder %v4166, 1
    %vm4186 = vcmp.lt.s32.totalorder %v4166, 2
    %vm4187 = vcmp.lt.s32.totalorder %v4166, 3
    %vm4188 = vcmp.lt.s32.totalorder %v4166, 4
    %v4189 = vsel %vm4185, %v4169, %v4172
    %v4190 = vsel %vm4188, %v4178, 2102212464
    %v4191 = vsel %vm4187, %v4175, %v4190
    %v4192 = vsel %vm4186, %v4189, %v4191
    %v4193 = vsel %vm4185, %v4172, %v4175
    %v4194 = vsel %vm4188, %v4181, 920167782
    %v4195 = vsel %vm4187, %v4178, %v4194
    %v4196 = vsel %vm4186, %v4193, %v4195
    %v4197 = vsel %vm4185, %v4175, %v4178
    %v4198 = vsel %vm4188, %v4184, 1326507024
    %v4199 = vsel %vm4187, %v4181, %v4198
    %v4200 = vsel %vm4186, %v4197, %v4199
    %v4201 = vshll.u32 %v4161, 8
    %v4202 = vmul.u32.u64.compose %v4201, %v4200
    %v4203 = vextract.low.u32 %v4202
    %v4204 = vextract.high.u32 %v4202
    %v4205 = vmul.u32.u64.compose %v4201, %v4196
    %v4206 = vextract.low.u32 %v4205
    %v4207 = vextract.high.u32 %v4205
    %v4208 = vmul.u32 %v4201, %v4192
    %v4209 = vadd.s32 %v4204, %v4206
    %vm4210 = vc.u32 %v4204, %v4206
    %v4211 = vadd.s32 %v4207, 1
    %v4212 = vsel %vm4210, %v4211, %v4207
    %v4213 = vadd.s32 %v4208, %v4212
    %v4214 = vadd.s32 %v4213, 536870912
    %v4215 = vshrl.u32 %v4214, 30
    %v4216 = vshll.u32 %v4215, 30
    %v4217 = vsub.s32 %v4213, %v4216
    %vm4218 = vcmp.lt.s32.totalorder %v4217, 0
    %v4219 = vsub.s32 0, %v4217
    %v4220 = vsel %vm4218, %v4219, %v4217
    %v4221 = vclz %v4220
    %v4222 = vsub.s32 %v4221, 2
    %vm4223 = vcmp.gt.s32.totalorder 0, %v4222
    %v4224 = vsel %vm4223, 0, %v4222
    %v4225 = vsub.s32 32, %v4224
    %v4226 = vshll.u32 %v4217, %v4224
    %v4227 = vshrl.u32 %v4209, %v4225
    %v4228 = vor.u32 %v4226, %v4227
    %v4229 = vsub.s32 4294967266, %v4224
    %v4230 = vadd.s32 %v4229, 127
    %v4231 = vshll.u32 %v4230, 23
    %v4232 = vor.u32 4788187, %v4231
    %v4233 = vand.u32 2147483647, %v4232
    %v4235 = vcvt.s32.f32 %v4228
    %v4236 = vmul.f32 %v4235, %v4233
    %v4237 = vxor.u32 %v4236, 2147483648
    %v4238 = vsel %vm4155, %v4237, %v4236
    %v4239 = vsub.s32 4, %v4215
    %v4240 = vsel %vm4155, %v4239, %v4215
    %v4241 = vsel %vm4154, %v1469, %v4238
    %v4242 = vsel %vm4154, 0, %v4240
    %v4243 = vcosq.f32.pop %v4241
    %v4244 = vsinq.f32.pop %v4241
    %vm4245 = vweird.f32 %v1469
    %v4246 = vand.u32 %v4242, 3
    %vm4247 = vcmp.lt.s32.totalorder %v4246, 2
    %vm4248 = vcmp.eq.s32.totalorder %v4246, 0
    %v4249 = vxor.u32 %v4244, 2147483648
    %v4250 = vsel %vm4248, %v4243, %v4249
    %vm4251 = vcmp.eq.s32.totalorder %v4246, 2
    %v4252 = vxor.u32 %v4243, 2147483648
    %v4253 = vsel %vm4251, %v4252, %v4244
    %v4254 = vsel %vm4247, %v4250, %v4253
    %v4255 = vsel %vm4245, nan, %v4254
    %v4256 = vand.u32 2147483647, %v1470
    %vm4257 = vcmp.le.f32.partialorder %v4256, 0.7853982
    %vm4258 = vcmp.lt.s32.totalorder %v1470, 0
    %v4259 = vand.u32 %v1470, 2139095040
    %v4260 = vshrl.u32 %v4259, 23
    %v4261 = vsub.s32 %v4260, 127
    %v4262 = vand.u32 2147483647, %v1470
    %v4263 = vand.u32 %v4262, 8388607
    %v4264 = vor.u32 %v4263, 8388608
    %v4265 = vsub.s32 0, %v4264
    %v4266 = vadd.s32 %v4261, 1
    %vm4267 = vcmp.gt.s32.totalorder %v4266, 0
    %v4268 = vsel %vm4267, %v4266, 0
    %v4269 = vshrl.u32 %v4268, 5
    %v4270 = vand.u32 %v4268, 31
    %v4271 = vsub.s32 32, %v4270
    %v4272 = vshrl.u32 683565275, %v4271
    %v4273 = vshll.u32 683565275, %v4270
    %v4274 = vshrl.u32 2475754826, %v4271
    %v4275 = vor.u32 %v4273, %v4274
    %v4276 = vshll.u32 2475754826, %v4270
    %v4277 = vshrl.u32 2131351028, %v4271
    %v4278 = vor.u32 %v4276, %v4277
    %v4279 = vshll.u32 2131351028, %v4270
    %v4280 = vshrl.u32 2102212464, %v4271
    %v4281 = vor.u32 %v4279, %v4280
    %v4282 = vshll.u32 2102212464, %v4270
    %v4283 = vshrl.u32 920167782, %v4271
    %v4284 = vor.u32 %v4282, %v4283
    %v4285 = vshll.u32 920167782, %v4270
    %v4286 = vshrl.u32 1326507024, %v4271
    %v4287 = vor.u32 %v4285, %v4286
    %vm4288 = vcmp.lt.s32.totalorder %v4269, 1
    %vm4289 = vcmp.lt.s32.totalorder %v4269, 2
    %vm4290 = vcmp.lt.s32.totalorder %v4269, 3
    %vm4291 = vcmp.lt.s32.totalorder %v4269, 4
    %v4292 = vsel %vm4288, %v4272, %v4275
    %v4293 = vsel %vm4291, %v4281, 2102212464
    %v4294 = vsel %vm4290, %v4278, %v4293
    %v4295 = vsel %vm4289, %v4292, %v4294
    %v4296 = vsel %vm4288, %v4275, %v4278
    %v4297 = vsel %vm4291, %v4284, 920167782
    %v4298 = vsel %vm4290, %v4281, %v4297
    %v4299 = vsel %vm4289, %v4296, %v4298
    %v4300 = vsel %vm4288, %v4278, %v4281
    %v4301 = vsel %vm4291, %v4287, 1326507024
    %v4302 = vsel %vm4290, %v4284, %v4301
    %v4303 = vsel %vm4289, %v4300, %v4302
    %v4304 = vshll.u32 %v4264, 8
    %v4305 = vmul.u32.u64.compose %v4304, %v4303
    %v4306 = vextract.low.u32 %v4305
    %v4307 = vextract.high.u32 %v4305
    %v4308 = vmul.u32.u64.compose %v4304, %v4299
    %v4309 = vextract.low.u32 %v4308
    %v4310 = vextract.high.u32 %v4308
    %v4311 = vmul.u32 %v4304, %v4295
    %v4312 = vadd.s32 %v4307, %v4309
    %vm4313 = vc.u32 %v4307, %v4309
    %v4314 = vadd.s32 %v4310, 1
    %v4315 = vsel %vm4313, %v4314, %v4310
    %v4316 = vadd.s32 %v4311, %v4315
    %v4317 = vadd.s32 %v4316, 536870912
    %v4318 = vshrl.u32 %v4317, 30
    %v4319 = vshll.u32 %v4318, 30
    %v4320 = vsub.s32 %v4316, %v4319
    %vm4321 = vcmp.lt.s32.totalorder %v4320, 0
    %v4322 = vsub.s32 0, %v4320
    %v4323 = vsel %vm4321, %v4322, %v4320
    %v4324 = vclz %v4323
    %v4325 = vsub.s32 %v4324, 2
    %vm4326 = vcmp.gt.s32.totalorder 0, %v4325
    %v4327 = vsel %vm4326, 0, %v4325
    %v4328 = vsub.s32 32, %v4327
    %v4329 = vshll.u32 %v4320, %v4327
    %v4330 = vshrl.u32 %v4312, %v4328
    %v4331 = vor.u32 %v4329, %v4330
    %v4332 = vsub.s32 4294967266, %v4327
    %v4333 = vadd.s32 %v4332, 127
    %v4334 = vshll.u32 %v4333, 23
    %v4335 = vor.u32 4788187, %v4334
    %v4336 = vand.u32 2147483647, %v4335
    %v4338 = vcvt.s32.f32 %v4331
    %v4339 = vmul.f32 %v4338, %v4336
    %v4340 = vxor.u32 %v4339, 2147483648
    %v4341 = vsel %vm4258, %v4340, %v4339
    %v4342 = vsub.s32 4, %v4318
    %v4343 = vsel %vm4258, %v4342, %v4318
    %v4344 = vsel %vm4257, %v1470, %v4341
    %v4345 = vsel %vm4257, 0, %v4343
    %v4346 = vcosq.f32.pop %v4344
    %v4347 = vsinq.f32.pop %v4344
    %vm4348 = vweird.f32 %v1470
    %v4349 = vand.u32 %v4345, 3
    %vm4350 = vcmp.lt.s32.totalorder %v4349, 2
    %vm4351 = vcmp.eq.s32.totalorder %v4349, 0
    %v4352 = vxor.u32 %v4347, 2147483648
    %v4353 = vsel %vm4351, %v4346, %v4352
    %vm4354 = vcmp.eq.s32.totalorder %v4349, 2
    %v4355 = vxor.u32 %v4346, 2147483648
    %v4356 = vsel %vm4354, %v4355, %v4347
    %v4357 = vsel %vm4350, %v4353, %v4356
    %v4358 = vsel %vm4348, nan, %v4357
    %v4359 = vand.u32 2147483647, %v1471
    %vm4360 = vcmp.le.f32.partialorder %v4359, 0.7853982
    %vm4361 = vcmp.lt.s32.totalorder %v1471, 0
    %v4362 = vand.u32 %v1471, 2139095040
    %v4363 = vshrl.u32 %v4362, 23
    %v4364 = vsub.s32 %v4363, 127
    %v4365 = vand.u32 2147483647, %v1471
    %v4366 = vand.u32 %v4365, 8388607
    %v4367 = vor.u32 %v4366, 8388608
    %v4368 = vsub.s32 0, %v4367
    %v4369 = vadd.s32 %v4364, 1
    %vm4370 = vcmp.gt.s32.totalorder %v4369, 0
    %v4371 = vsel %vm4370, %v4369, 0
    %v4372 = vshrl.u32 %v4371, 5
    %v4373 = vand.u32 %v4371, 31
    %v4374 = vsub.s32 32, %v4373
    %v4375 = vshrl.u32 683565275, %v4374
    %v4376 = vshll.u32 683565275, %v4373
    %v4377 = vshrl.u32 2475754826, %v4374
    %v4378 = vor.u32 %v4376, %v4377
    %v4379 = vshll.u32 2475754826, %v4373
    %v4380 = vshrl.u32 2131351028, %v4374
    %v4381 = vor.u32 %v4379, %v4380
    %v4382 = vshll.u32 2131351028, %v4373
    %v4383 = vshrl.u32 2102212464, %v4374
    %v4384 = vor.u32 %v4382, %v4383
    %v4385 = vshll.u32 2102212464, %v4373
    %v4386 = vshrl.u32 920167782, %v4374
    %v4387 = vor.u32 %v4385, %v4386
    %v4388 = vshll.u32 920167782, %v4373
    %v4389 = vshrl.u32 1326507024, %v4374
    %v4390 = vor.u32 %v4388, %v4389
    %vm4391 = vcmp.lt.s32.totalorder %v4372, 1
    %vm4392 = vcmp.lt.s32.totalorder %v4372, 2
    %vm4393 = vcmp.lt.s32.totalorder %v4372, 3
    %vm4394 = vcmp.lt.s32.totalorder %v4372, 4
    %v4395 = vsel %vm4391, %v4375, %v4378
    %v4396 = vsel %vm4394, %v4384, 2102212464
    %v4397 = vsel %vm4393, %v4381, %v4396
    %v4398 = vsel %vm4392, %v4395, %v4397
    %v4399 = vsel %vm4391, %v4378, %v4381
    %v4400 = vsel %vm4394, %v4387, 920167782
    %v4401 = vsel %vm4393, %v4384, %v4400
    %v4402 = vsel %vm4392, %v4399, %v4401
    %v4403 = vsel %vm4391, %v4381, %v4384
    %v4404 = vsel %vm4394, %v4390, 1326507024
    %v4405 = vsel %vm4393, %v4387, %v4404
    %v4406 = vsel %vm4392, %v4403, %v4405
    %v4407 = vshll.u32 %v4367, 8
    %v4408 = vmul.u32.u64.compose %v4407, %v4406
    %v4409 = vextract.low.u32 %v4408
    %v4410 = vextract.high.u32 %v4408
    %v4411 = vmul.u32.u64.compose %v4407, %v4402
    %v4412 = vextract.low.u32 %v4411
    %v4413 = vextract.high.u32 %v4411
    %v4414 = vmul.u32 %v4407, %v4398
    %v4415 = vadd.s32 %v4410, %v4412
    %vm4416 = vc.u32 %v4410, %v4412
    %v4417 = vadd.s32 %v4413, 1
    %v4418 = vsel %vm4416, %v4417, %v4413
    %v4419 = vadd.s32 %v4414, %v4418
    %v4420 = vadd.s32 %v4419, 536870912
    %v4421 = vshrl.u32 %v4420, 30
    %v4422 = vshll.u32 %v4421, 30
    %v4423 = vsub.s32 %v4419, %v4422
    %vm4424 = vcmp.lt.s32.totalorder %v4423, 0
    %v4425 = vsub.s32 0, %v4423
    %v4426 = vsel %vm4424, %v4425, %v4423
    %v4427 = vclz %v4426
    %v4428 = vsub.s32 %v4427, 2
    %vm4429 = vcmp.gt.s32.totalorder 0, %v4428
    %v4430 = vsel %vm4429, 0, %v4428
    %v4431 = vsub.s32 32, %v4430
    %v4432 = vshll.u32 %v4423, %v4430
    %v4433 = vshrl.u32 %v4415, %v4431
    %v4434 = vor.u32 %v4432, %v4433
    %v4435 = vsub.s32 4294967266, %v4430
    %v4436 = vadd.s32 %v4435, 127
    %v4437 = vshll.u32 %v4436, 23
    %v4438 = vor.u32 4788187, %v4437
    %v4439 = vand.u32 2147483647, %v4438
    %v4441 = vcvt.s32.f32 %v4434
    %v4442 = vmul.f32 %v4441, %v4439
    %v4443 = vxor.u32 %v4442, 2147483648
    %v4444 = vsel %vm4361, %v4443, %v4442
    %v4445 = vsub.s32 4, %v4421
    %v4446 = vsel %vm4361, %v4445, %v4421
    %v4447 = vsel %vm4360, %v1471, %v4444
    %v4448 = vsel %vm4360, 0, %v4446
    %v4449 = vcosq.f32.pop %v4447
    %v4450 = vsinq.f32.pop %v4447
    %vm4451 = vweird.f32 %v1471
    %v4452 = vand.u32 %v4448, 3
    %vm4453 = vcmp.lt.s32.totalorder %v4452, 2
    %vm4454 = vcmp.eq.s32.totalorder %v4452, 0
    %v4455 = vxor.u32 %v4450, 2147483648
    %v4456 = vsel %vm4454, %v4449, %v4455
    %vm4457 = vcmp.eq.s32.totalorder %v4452, 2
    %v4458 = vxor.u32 %v4449, 2147483648
    %v4459 = vsel %vm4457, %v4458, %v4450
    %v4460 = vsel %vm4453, %v4456, %v4459
    %v4461 = vsel %vm4451, nan, %v4460
    %v4462 = vand.u32 2147483647, %v1472
    %vm4463 = vcmp.le.f32.partialorder %v4462, 0.7853982
    %vm4464 = vcmp.lt.s32.totalorder %v1472, 0
    %v4465 = vand.u32 %v1472, 2139095040
    %v4466 = vshrl.u32 %v4465, 23
    %v4467 = vsub.s32 %v4466, 127
    %v4468 = vand.u32 2147483647, %v1472
    %v4469 = vand.u32 %v4468, 8388607
    %v4470 = vor.u32 %v4469, 8388608
    %v4471 = vsub.s32 0, %v4470
    %v4472 = vadd.s32 %v4467, 1
    %vm4473 = vcmp.gt.s32.totalorder %v4472, 0
    %v4474 = vsel %vm4473, %v4472, 0
    %v4475 = vshrl.u32 %v4474, 5
    %v4476 = vand.u32 %v4474, 31
    %v4477 = vsub.s32 32, %v4476
    %v4478 = vshrl.u32 683565275, %v4477
    %v4479 = vshll.u32 683565275, %v4476
    %v4480 = vshrl.u32 2475754826, %v4477
    %v4481 = vor.u32 %v4479, %v4480
    %v4482 = vshll.u32 2475754826, %v4476
    %v4483 = vshrl.u32 2131351028, %v4477
    %v4484 = vor.u32 %v4482, %v4483
    %v4485 = vshll.u32 2131351028, %v4476
    %v4486 = vshrl.u32 2102212464, %v4477
    %v4487 = vor.u32 %v4485, %v4486
    %v4488 = vshll.u32 2102212464, %v4476
    %v4489 = vshrl.u32 920167782, %v4477
    %v4490 = vor.u32 %v4488, %v4489
    %v4491 = vshll.u32 920167782, %v4476
    %v4492 = vshrl.u32 1326507024, %v4477
    %v4493 = vor.u32 %v4491, %v4492
    %vm4494 = vcmp.lt.s32.totalorder %v4475, 1
    %vm4495 = vcmp.lt.s32.totalorder %v4475, 2
    %vm4496 = vcmp.lt.s32.totalorder %v4475, 3
    %vm4497 = vcmp.lt.s32.totalorder %v4475, 4
    %v4498 = vsel %vm4494, %v4478, %v4481
    %v4499 = vsel %vm4497, %v4487, 2102212464
    %v4500 = vsel %vm4496, %v4484, %v4499
    %v4501 = vsel %vm4495, %v4498, %v4500
    %v4502 = vsel %vm4494, %v4481, %v4484
    %v4503 = vsel %vm4497, %v4490, 920167782
    %v4504 = vsel %vm4496, %v4487, %v4503
    %v4505 = vsel %vm4495, %v4502, %v4504
    %v4506 = vsel %vm4494, %v4484, %v4487
    %v4507 = vsel %vm4497, %v4493, 1326507024
    %v4508 = vsel %vm4496, %v4490, %v4507
    %v4509 = vsel %vm4495, %v4506, %v4508
    %v4510 = vshll.u32 %v4470, 8
    %v4511 = vmul.u32.u64.compose %v4510, %v4509
    %v4512 = vextract.low.u32 %v4511
    %v4513 = vextract.high.u32 %v4511
    %v4514 = vmul.u32.u64.compose %v4510, %v4505
    %v4515 = vextract.low.u32 %v4514
    %v4516 = vextract.high.u32 %v4514
    %v4517 = vmul.u32 %v4510, %v4501
    %v4518 = vadd.s32 %v4513, %v4515
    %vm4519 = vc.u32 %v4513, %v4515
    %v4520 = vadd.s32 %v4516, 1
    %v4521 = vsel %vm4519, %v4520, %v4516
    %v4522 = vadd.s32 %v4517, %v4521
    %v4523 = vadd.s32 %v4522, 536870912
    %v4524 = vshrl.u32 %v4523, 30
    %v4525 = vshll.u32 %v4524, 30
    %v4526 = vsub.s32 %v4522, %v4525
    %vm4527 = vcmp.lt.s32.totalorder %v4526, 0
    %v4528 = vsub.s32 0, %v4526
    %v4529 = vsel %vm4527, %v4528, %v4526
    %v4530 = vclz %v4529
    %v4531 = vsub.s32 %v4530, 2
    %vm4532 = vcmp.gt.s32.totalorder 0, %v4531
    %v4533 = vsel %vm4532, 0, %v4531
    %v4534 = vsub.s32 32, %v4533
    %v4535 = vshll.u32 %v4526, %v4533
    %v4536 = vshrl.u32 %v4518, %v4534
    %v4537 = vor.u32 %v4535, %v4536
    %v4538 = vsub.s32 4294967266, %v4533
    %v4539 = vadd.s32 %v4538, 127
    %v4540 = vshll.u32 %v4539, 23
    %v4541 = vor.u32 4788187, %v4540
    %v4542 = vand.u32 2147483647, %v4541
    %v4544 = vcvt.s32.f32 %v4537
    %v4545 = vmul.f32 %v4544, %v4542
    %v4546 = vxor.u32 %v4545, 2147483648
    %v4547 = vsel %vm4464, %v4546, %v4545
    %v4548 = vsub.s32 4, %v4524
    %v4549 = vsel %vm4464, %v4548, %v4524
    %v4550 = vsel %vm4463, %v1472, %v4547
    %v4551 = vsel %vm4463, 0, %v4549
    %v4552 = vcosq.f32.pop %v4550
    %v4553 = vsinq.f32.pop %v4550
    %vm4554 = vweird.f32 %v1472
    %v4555 = vand.u32 %v4551, 3
    %vm4556 = vcmp.lt.s32.totalorder %v4555, 2
    %vm4557 = vcmp.eq.s32.totalorder %v4555, 0
    %v4558 = vxor.u32 %v4553, 2147483648
    %v4559 = vsel %vm4557, %v4552, %v4558
    %vm4560 = vcmp.eq.s32.totalorder %v4555, 2
    %v4561 = vxor.u32 %v4552, 2147483648
    %v4562 = vsel %vm4560, %v4561, %v4553
    %v4563 = vsel %vm4556, %v4559, %v4562
    %v4564 = vsel %vm4554, nan, %v4563
    %v4565 = vand.u32 2147483647, %v1473
    %vm4566 = vcmp.le.f32.partialorder %v4565, 0.7853982
    %vm4567 = vcmp.lt.s32.totalorder %v1473, 0
    %v4568 = vand.u32 %v1473, 2139095040
    %v4569 = vshrl.u32 %v4568, 23
    %v4570 = vsub.s32 %v4569, 127
    %v4571 = vand.u32 2147483647, %v1473
    %v4572 = vand.u32 %v4571, 8388607
    %v4573 = vor.u32 %v4572, 8388608
    %v4574 = vsub.s32 0, %v4573
    %v4575 = vadd.s32 %v4570, 1
    %vm4576 = vcmp.gt.s32.totalorder %v4575, 0
    %v4577 = vsel %vm4576, %v4575, 0
    %v4578 = vshrl.u32 %v4577, 5
    %v4579 = vand.u32 %v4577, 31
    %v4580 = vsub.s32 32, %v4579
    %v4581 = vshrl.u32 683565275, %v4580
    %v4582 = vshll.u32 683565275, %v4579
    %v4583 = vshrl.u32 2475754826, %v4580
    %v4584 = vor.u32 %v4582, %v4583
    %v4585 = vshll.u32 2475754826, %v4579
    %v4586 = vshrl.u32 2131351028, %v4580
    %v4587 = vor.u32 %v4585, %v4586
    %v4588 = vshll.u32 2131351028, %v4579
    %v4589 = vshrl.u32 2102212464, %v4580
    %v4590 = vor.u32 %v4588, %v4589
    %v4591 = vshll.u32 2102212464, %v4579
    %v4592 = vshrl.u32 920167782, %v4580
    %v4593 = vor.u32 %v4591, %v4592
    %v4594 = vshll.u32 920167782, %v4579
    %v4595 = vshrl.u32 1326507024, %v4580
    %v4596 = vor.u32 %v4594, %v4595
    %vm4597 = vcmp.lt.s32.totalorder %v4578, 1
    %vm4598 = vcmp.lt.s32.totalorder %v4578, 2
    %vm4599 = vcmp.lt.s32.totalorder %v4578, 3
    %vm4600 = vcmp.lt.s32.totalorder %v4578, 4
    %v4601 = vsel %vm4597, %v4581, %v4584
    %v4602 = vsel %vm4600, %v4590, 2102212464
    %v4603 = vsel %vm4599, %v4587, %v4602
    %v4604 = vsel %vm4598, %v4601, %v4603
    %v4605 = vsel %vm4597, %v4584, %v4587
    %v4606 = vsel %vm4600, %v4593, 920167782
    %v4607 = vsel %vm4599, %v4590, %v4606
    %v4608 = vsel %vm4598, %v4605, %v4607
    %v4609 = vsel %vm4597, %v4587, %v4590
    %v4610 = vsel %vm4600, %v4596, 1326507024
    %v4611 = vsel %vm4599, %v4593, %v4610
    %v4612 = vsel %vm4598, %v4609, %v4611
    %v4613 = vshll.u32 %v4573, 8
    %v4614 = vmul.u32.u64.compose %v4613, %v4612
    %v4615 = vextract.low.u32 %v4614
    %v4616 = vextract.high.u32 %v4614
    %v4617 = vmul.u32.u64.compose %v4613, %v4608
    %v4618 = vextract.low.u32 %v4617
    %v4619 = vextract.high.u32 %v4617
    %v4620 = vmul.u32 %v4613, %v4604
    %v4621 = vadd.s32 %v4616, %v4618
    %vm4622 = vc.u32 %v4616, %v4618
    %v4623 = vadd.s32 %v4619, 1
    %v4624 = vsel %vm4622, %v4623, %v4619
    %v4625 = vadd.s32 %v4620, %v4624
    %v4626 = vadd.s32 %v4625, 536870912
    %v4627 = vshrl.u32 %v4626, 30
    %v4628 = vshll.u32 %v4627, 30
    %v4629 = vsub.s32 %v4625, %v4628
    %vm4630 = vcmp.lt.s32.totalorder %v4629, 0
    %v4631 = vsub.s32 0, %v4629
    %v4632 = vsel %vm4630, %v4631, %v4629
    %v4633 = vclz %v4632
    %v4634 = vsub.s32 %v4633, 2
    %vm4635 = vcmp.gt.s32.totalorder 0, %v4634
    %v4636 = vsel %vm4635, 0, %v4634
    %v4637 = vsub.s32 32, %v4636
    %v4638 = vshll.u32 %v4629, %v4636
    %v4639 = vshrl.u32 %v4621, %v4637
    %v4640 = vor.u32 %v4638, %v4639
    %v4641 = vsub.s32 4294967266, %v4636
    %v4642 = vadd.s32 %v4641, 127
    %v4643 = vshll.u32 %v4642, 23
    %v4644 = vor.u32 4788187, %v4643
    %v4645 = vand.u32 2147483647, %v4644
    %v4647 = vcvt.s32.f32 %v4640
    %v4648 = vmul.f32 %v4647, %v4645
    %v4649 = vxor.u32 %v4648, 2147483648
    %v4650 = vsel %vm4567, %v4649, %v4648
    %v4651 = vsub.s32 4, %v4627
    %v4652 = vsel %vm4567, %v4651, %v4627
    %v4653 = vsel %vm4566, %v1473, %v4650
    %v4654 = vsel %vm4566, 0, %v4652
    %v4655 = vcosq.f32.pop %v4653
    %v4656 = vsinq.f32.pop %v4653
    %vm4657 = vweird.f32 %v1473
    %v4658 = vand.u32 %v4654, 3
    %vm4659 = vcmp.lt.s32.totalorder %v4658, 2
    %vm4660 = vcmp.eq.s32.totalorder %v4658, 0
    %v4661 = vxor.u32 %v4656, 2147483648
    %v4662 = vsel %vm4660, %v4655, %v4661
    %vm4663 = vcmp.eq.s32.totalorder %v4658, 2
    %v4664 = vxor.u32 %v4655, 2147483648
    %v4665 = vsel %vm4663, %v4664, %v4656
    %v4666 = vsel %vm4659, %v4662, %v4665
    %v4667 = vsel %vm4657, nan, %v4666
    %v4668 = vand.u32 2147483647, %v1474
    %vm4669 = vcmp.le.f32.partialorder %v4668, 0.7853982
    %vm4670 = vcmp.lt.s32.totalorder %v1474, 0
    %v4671 = vand.u32 %v1474, 2139095040
    %v4672 = vshrl.u32 %v4671, 23
    %v4673 = vsub.s32 %v4672, 127
    %v4674 = vand.u32 2147483647, %v1474
    %v4675 = vand.u32 %v4674, 8388607
    %v4676 = vor.u32 %v4675, 8388608
    %v4677 = vsub.s32 0, %v4676
    %v4678 = vadd.s32 %v4673, 1
    %vm4679 = vcmp.gt.s32.totalorder %v4678, 0
    %v4680 = vsel %vm4679, %v4678, 0
    %v4681 = vshrl.u32 %v4680, 5
    %v4682 = vand.u32 %v4680, 31
    %v4683 = vsub.s32 32, %v4682
    %v4684 = vshrl.u32 683565275, %v4683
    %v4685 = vshll.u32 683565275, %v4682
    %v4686 = vshrl.u32 2475754826, %v4683
    %v4687 = vor.u32 %v4685, %v4686
    %v4688 = vshll.u32 2475754826, %v4682
    %v4689 = vshrl.u32 2131351028, %v4683
    %v4690 = vor.u32 %v4688, %v4689
    %v4691 = vshll.u32 2131351028, %v4682
    %v4692 = vshrl.u32 2102212464, %v4683
    %v4693 = vor.u32 %v4691, %v4692
    %v4694 = vshll.u32 2102212464, %v4682
    %v4695 = vshrl.u32 920167782, %v4683
    %v4696 = vor.u32 %v4694, %v4695
    %v4697 = vshll.u32 920167782, %v4682
    %v4698 = vshrl.u32 1326507024, %v4683
    %v4699 = vor.u32 %v4697, %v4698
    %vm4700 = vcmp.lt.s32.totalorder %v4681, 1
    %vm4701 = vcmp.lt.s32.totalorder %v4681, 2
    %vm4702 = vcmp.lt.s32.totalorder %v4681, 3
    %vm4703 = vcmp.lt.s32.totalorder %v4681, 4
    %v4704 = vsel %vm4700, %v4684, %v4687
    %v4705 = vsel %vm4703, %v4693, 2102212464
    %v4706 = vsel %vm4702, %v4690, %v4705
    %v4707 = vsel %vm4701, %v4704, %v4706
    %v4708 = vsel %vm4700, %v4687, %v4690
    %v4709 = vsel %vm4703, %v4696, 920167782
    %v4710 = vsel %vm4702, %v4693, %v4709
    %v4711 = vsel %vm4701, %v4708, %v4710
    %v4712 = vsel %vm4700, %v4690, %v4693
    %v4713 = vsel %vm4703, %v4699, 1326507024
    %v4714 = vsel %vm4702, %v4696, %v4713
    %v4715 = vsel %vm4701, %v4712, %v4714
    %v4716 = vshll.u32 %v4676, 8
    %v4717 = vmul.u32.u64.compose %v4716, %v4715
    %v4718 = vextract.low.u32 %v4717
    %v4719 = vextract.high.u32 %v4717
    %v4720 = vmul.u32.u64.compose %v4716, %v4711
    %v4721 = vextract.low.u32 %v4720
    %v4722 = vextract.high.u32 %v4720
    %v4723 = vmul.u32 %v4716, %v4707
    %v4724 = vadd.s32 %v4719, %v4721
    %vm4725 = vc.u32 %v4719, %v4721
    %v4726 = vadd.s32 %v4722, 1
    %v4727 = vsel %vm4725, %v4726, %v4722
    %v4728 = vadd.s32 %v4723, %v4727
    %v4729 = vadd.s32 %v4728, 536870912
    %v4730 = vshrl.u32 %v4729, 30
    %v4731 = vshll.u32 %v4730, 30
    %v4732 = vsub.s32 %v4728, %v4731
    %vm4733 = vcmp.lt.s32.totalorder %v4732, 0
    %v4734 = vsub.s32 0, %v4732
    %v4735 = vsel %vm4733, %v4734, %v4732
    %v4736 = vclz %v4735
    %v4737 = vsub.s32 %v4736, 2
    %vm4738 = vcmp.gt.s32.totalorder 0, %v4737
    %v4739 = vsel %vm4738, 0, %v4737
    %v4740 = vsub.s32 32, %v4739
    %v4741 = vshll.u32 %v4732, %v4739
    %v4742 = vshrl.u32 %v4724, %v4740
    %v4743 = vor.u32 %v4741, %v4742
    %v4744 = vsub.s32 4294967266, %v4739
    %v4745 = vadd.s32 %v4744, 127
    %v4746 = vshll.u32 %v4745, 23
    %v4747 = vor.u32 4788187, %v4746
    %v4748 = vand.u32 2147483647, %v4747
    %v4750 = vcvt.s32.f32 %v4743
    %v4751 = vmul.f32 %v4750, %v4748
    %v4752 = vxor.u32 %v4751, 2147483648
    %v4753 = vsel %vm4670, %v4752, %v4751
    %v4754 = vsub.s32 4, %v4730
    %v4755 = vsel %vm4670, %v4754, %v4730
    %v4756 = vsel %vm4669, %v1474, %v4753
    %v4757 = vsel %vm4669, 0, %v4755
    %v4758 = vcosq.f32.pop %v4756
    %v4759 = vsinq.f32.pop %v4756
    %vm4760 = vweird.f32 %v1474
    %v4761 = vand.u32 %v4757, 3
    %vm4762 = vcmp.lt.s32.totalorder %v4761, 2
    %vm4763 = vcmp.eq.s32.totalorder %v4761, 0
    %v4764 = vxor.u32 %v4759, 2147483648
    %v4765 = vsel %vm4763, %v4758, %v4764
    %vm4766 = vcmp.eq.s32.totalorder %v4761, 2
    %v4767 = vxor.u32 %v4758, 2147483648
    %v4768 = vsel %vm4766, %v4767, %v4759
    %v4769 = vsel %vm4762, %v4765, %v4768
    %v4770 = vsel %vm4760, nan, %v4769
    %v4771 = vadd.f32 %v1577, 1.0
    %v4772 = vadd.f32 %v1680, 1.0
    %v4773 = vadd.f32 %v1783, 1.0
    %v4774 = vadd.f32 %v1886, 1.0
    %v4775 = vadd.f32 %v1989, 1.0
    %v4776 = vadd.f32 %v2092, 1.0
    %v4777 = vadd.f32 %v2195, 1.0
    %v4778 = vadd.f32 %v2298, 1.0
    %v4779 = vadd.f32 %v2401, 1.0
    %v4780 = vadd.f32 %v2504, 1.0
    %v4781 = vadd.f32 %v2607, 1.0
    %v4782 = vadd.f32 %v2710, 1.0
    %v4783 = vadd.f32 %v2813, 1.0
    %v4784 = vadd.f32 %v2916, 1.0
    %v4785 = vadd.f32 %v3019, 1.0
    %v4786 = vadd.f32 %v3122, 1.0
    %v4787 = vadd.f32 %v3225, 1.0
    %v4788 = vadd.f32 %v3328, 1.0
    %v4789 = vadd.f32 %v3431, 1.0
    %v4790 = vadd.f32 %v3534, 1.0
    %v4791 = vadd.f32 %v3637, 1.0
    %v4792 = vadd.f32 %v3740, 1.0
    %v4793 = vadd.f32 %v3843, 1.0
    %v4794 = vadd.f32 %v3946, 1.0
    %v4795 = vadd.f32 %v4049, 1.0
    %v4796 = vadd.f32 %v4152, 1.0
    %v4797 = vadd.f32 %v4255, 1.0
    %v4798 = vadd.f32 %v4358, 1.0
    %v4799 = vadd.f32 %v4461, 1.0
    %v4800 = vadd.f32 %v4564, 1.0
    %v4801 = vadd.f32 %v4667, 1.0
    %v4802 = vadd.f32 %v4770, 1.0
    %v4803 = vmul.f32 %v4771, 0.5
    %v4804 = vmul.f32 %v4772, 0.5
    %v4805 = vmul.f32 %v4773, 0.5
    %v4806 = vmul.f32 %v4774, 0.5
    %v4807 = vmul.f32 %v4775, 0.5
    %v4808 = vmul.f32 %v4776, 0.5
    %v4809 = vmul.f32 %v4777, 0.5
    %v4810 = vmul.f32 %v4778, 0.5
    %v4811 = vmul.f32 %v4779, 0.5
    %v4812 = vmul.f32 %v4780, 0.5
    %v4813 = vmul.f32 %v4781, 0.5
    %v4814 = vmul.f32 %v4782, 0.5
    %v4815 = vmul.f32 %v4783, 0.5
    %v4816 = vmul.f32 %v4784, 0.5
    %v4817 = vmul.f32 %v4785, 0.5
    %v4818 = vmul.f32 %v4786, 0.5
    %v4819 = vmul.f32 %v4787, 0.5
    %v4820 = vmul.f32 %v4788, 0.5
    %v4821 = vmul.f32 %v4789, 0.5
    %v4822 = vmul.f32 %v4790, 0.5
    %v4823 = vmul.f32 %v4791, 0.5
    %v4824 = vmul.f32 %v4792, 0.5
    %v4825 = vmul.f32 %v4793, 0.5
    %v4826 = vmul.f32 %v4794, 0.5
    %v4827 = vmul.f32 %v4795, 0.5
    %v4828 = vmul.f32 %v4796, 0.5
    %v4829 = vmul.f32 %v4797, 0.5
    %v4830 = vmul.f32 %v4798, 0.5
    %v4831 = vmul.f32 %v4799, 0.5
    %v4832 = vmul.f32 %v4800, 0.5
    %v4833 = vmul.f32 %v4801, 0.5
    %v4834 = vmul.f32 %v4802, 0.5
    %vm4835 = vcmp.le.f32.partialorder %v1411, 10.0
    %vm4836 = vcmp.le.f32.partialorder %v1412, 10.0
    %vm4837 = vcmp.le.f32.partialorder %v1413, 10.0
    %vm4838 = vcmp.le.f32.partialorder %v1414, 10.0
    %vm4839 = vcmp.le.f32.partialorder %v1415, 10.0
    %vm4840 = vcmp.le.f32.partialorder %v1416, 10.0
    %vm4841 = vcmp.le.f32.partialorder %v1417, 10.0
    %vm4842 = vcmp.le.f32.partialorder %v1418, 10.0
    %vm4843 = vcmp.le.f32.partialorder %v1419, 10.0
    %vm4844 = vcmp.le.f32.partialorder %v1420, 10.0
    %vm4845 = vcmp.le.f32.partialorder %v1421, 10.0
    %vm4846 = vcmp.le.f32.partialorder %v1422, 10.0
    %vm4847 = vcmp.le.f32.partialorder %v1423, 10.0
    %vm4848 = vcmp.le.f32.partialorder %v1424, 10.0
    %vm4849 = vcmp.le.f32.partialorder %v1425, 10.0
    %vm4850 = vcmp.le.f32.partialorder %v1426, 10.0
    %vm4851 = vcmp.le.f32.partialorder %v1427, 10.0
    %vm4852 = vcmp.le.f32.partialorder %v1428, 10.0
    %vm4853 = vcmp.le.f32.partialorder %v1429, 10.0
    %vm4854 = vcmp.le.f32.partialorder %v1430, 10.0
    %vm4855 = vcmp.le.f32.partialorder %v1431, 10.0
    %vm4856 = vcmp.le.f32.partialorder %v1432, 10.0
    %vm4857 = vcmp.le.f32.partialorder %v1433, 10.0
    %vm4858 = vcmp.le.f32.partialorder %v1434, 10.0
    %vm4859 = vcmp.le.f32.partialorder %v1435, 10.0
    %vm4860 = vcmp.le.f32.partialorder %v1436, 10.0
    %vm4861 = vcmp.le.f32.partialorder %v1437, 10.0
    %vm4862 = vcmp.le.f32.partialorder %v1438, 10.0
    %vm4863 = vcmp.le.f32.partialorder %v1439, 10.0
    %vm4864 = vcmp.le.f32.partialorder %v1440, 10.0
    %vm4865 = vcmp.le.f32.partialorder %v1441, 10.0
    %vm4866 = vcmp.le.f32.partialorder %v1442, 10.0
    %vm4867 = vcmp.ge.f32.partialorder %v1411, 0.0
    %vm4868 = vcmp.ge.f32.partialorder %v1412, 0.0
    %vm4869 = vcmp.ge.f32.partialorder %v1413, 0.0
    %vm4870 = vcmp.ge.f32.partialorder %v1414, 0.0
    %vm4871 = vcmp.ge.f32.partialorder %v1415, 0.0
    %vm4872 = vcmp.ge.f32.partialorder %v1416, 0.0
    %vm4873 = vcmp.ge.f32.partialorder %v1417, 0.0
    %vm4874 = vcmp.ge.f32.partialorder %v1418, 0.0
    %vm4875 = vcmp.ge.f32.partialorder %v1419, 0.0
    %vm4876 = vcmp.ge.f32.partialorder %v1420, 0.0
    %vm4877 = vcmp.ge.f32.partialorder %v1421, 0.0
    %vm4878 = vcmp.ge.f32.partialorder %v1422, 0.0
    %vm4879 = vcmp.ge.f32.partialorder %v1423, 0.0
    %vm4880 = vcmp.ge.f32.partialorder %v1424, 0.0
    %vm4881 = vcmp.ge.f32.partialorder %v1425, 0.0
    %vm4882 = vcmp.ge.f32.partialorder %v1426, 0.0
    %vm4883 = vcmp.ge.f32.partialorder %v1427, 0.0
    %vm4884 = vcmp.ge.f32.partialorder %v1428, 0.0
    %vm4885 = vcmp.ge.f32.partialorder %v1429, 0.0
    %vm4886 = vcmp.ge.f32.partialorder %v1430, 0.0
    %vm4887 = vcmp.ge.f32.partialorder %v1431, 0.0
    %vm4888 = vcmp.ge.f32.partialorder %v1432, 0.0
    %vm4889 = vcmp.ge.f32.partialorder %v1433, 0.0
    %vm4890 = vcmp.ge.f32.partialorder %v1434, 0.0
    %vm4891 = vcmp.ge.f32.partialorder %v1435, 0.0
    %vm4892 = vcmp.ge.f32.partialorder %v1436, 0.0
    %vm4893 = vcmp.ge.f32.partialorder %v1437, 0.0
    %vm4894 = vcmp.ge.f32.partialorder %v1438, 0.0
    %vm4895 = vcmp.ge.f32.partialorder %v1439, 0.0
    %vm4896 = vcmp.ge.f32.partialorder %v1440, 0.0
    %vm4897 = vcmp.ge.f32.partialorder %v1441, 0.0
    %vm4898 = vcmp.ge.f32.partialorder %v1442, 0.0
    %vm4899 = vmand %vm4835, %vm4867
    %vm4900 = vmand %vm4836, %vm4868
    %vm4901 = vmand %vm4837, %vm4869
    %vm4902 = vmand %vm4838, %vm4870
    %vm4903 = vmand %vm4839, %vm4871
    %vm4904 = vmand %vm4840, %vm4872
    %vm4905 = vmand %vm4841, %vm4873
    %vm4906 = vmand %vm4842, %vm4874
    %vm4907 = vmand %vm4843, %vm4875
    %vm4908 = vmand %vm4844, %vm4876
    %vm4909 = vmand %vm4845, %vm4877
    %vm4910 = vmand %vm4846, %vm4878
    %vm4911 = vmand %vm4847, %vm4879
    %vm4912 = vmand %vm4848, %vm4880
    %vm4913 = vmand %vm4849, %vm4881
    %vm4914 = vmand %vm4850, %vm4882
    %vm4915 = vmand %vm4851, %vm4883
    %vm4916 = vmand %vm4852, %vm4884
    %vm4917 = vmand %vm4853, %vm4885
    %vm4918 = vmand %vm4854, %vm4886
    %vm4919 = vmand %vm4855, %vm4887
    %vm4920 = vmand %vm4856, %vm4888
    %vm4921 = vmand %vm4857, %vm4889
    %vm4922 = vmand %vm4858, %vm4890
    %vm4923 = vmand %vm4859, %vm4891
    %vm4924 = vmand %vm4860, %vm4892
    %vm4925 = vmand %vm4861, %vm4893
    %vm4926 = vmand %vm4862, %vm4894
    %vm4927 = vmand %vm4863, %vm4895
    %vm4928 = vmand %vm4864, %vm4896
    %vm4929 = vmand %vm4865, %vm4897
    %vm4930 = vmand %vm4866, %vm4898
    %v4931 = vsel %vm4899, %v4803, 0.0
    %v4932 = vsel %vm4900, %v4804, 0.0
    %v4933 = vsel %vm4901, %v4805, 0.0
    %v4934 = vsel %vm4902, %v4806, 0.0
    %v4935 = vsel %vm4903, %v4807, 0.0
    %v4936 = vsel %vm4904, %v4808, 0.0
    %v4937 = vsel %vm4905, %v4809, 0.0
    %v4938 = vsel %vm4906, %v4810, 0.0
    %v4939 = vsel %vm4907, %v4811, 0.0
    %v4940 = vsel %vm4908, %v4812, 0.0
    %v4941 = vsel %vm4909, %v4813, 0.0
    %v4942 = vsel %vm4910, %v4814, 0.0
    %v4943 = vsel %vm4911, %v4815, 0.0
    %v4944 = vsel %vm4912, %v4816, 0.0
    %v4945 = vsel %vm4913, %v4817, 0.0
    %v4946 = vsel %vm4914, %v4818, 0.0
    %v4947 = vsel %vm4915, %v4819, 0.0
    %v4948 = vsel %vm4916, %v4820, 0.0
    %v4949 = vsel %vm4917, %v4821, 0.0
    %v4950 = vsel %vm4918, %v4822, 0.0
    %v4951 = vsel %vm4919, %v4823, 0.0
    %v4952 = vsel %vm4920, %v4824, 0.0
    %v4953 = vsel %vm4921, %v4825, 0.0
    %v4954 = vsel %vm4922, %v4826, 0.0
    %v4955 = vsel %vm4923, %v4827, 0.0
    %v4956 = vsel %vm4924, %v4828, 0.0
    %v4957 = vsel %vm4925, %v4829, 0.0
    %v4958 = vsel %vm4926, %v4830, 0.0
    %v4959 = vsel %vm4927, %v4831, 0.0
    %v4960 = vsel %vm4928, %v4832, 0.0
    %v4961 = vsel %vm4929, %v4833, 0.0
    %v4962 = vsel %vm4930, %v4834, 0.0
    %4964 = vset.pattern.permute.xlu0 0
    %4965 = vperm.xlu0 %4964, %v4931
    %v4966 = vpop.permute.xlu0 %4965
    %4969 = vset.pattern.permute.xlu0 0
    %4970 = vperm.xlu0 %4969, %v4932
    %v4971 = vpop.permute.xlu0 %4970
    %4974 = vset.pattern.permute.xlu0 0
    %4975 = vperm.xlu0 %4974, %v4933
    %v4976 = vpop.permute.xlu0 %4975
    %4979 = vset.pattern.permute.xlu0 0
    %4980 = vperm.xlu0 %4979, %v4934
    %v4981 = vpop.permute.xlu0 %4980
    %4984 = vset.pattern.permute.xlu0 0
    %4985 = vperm.xlu0 %4984, %v4935
    %v4986 = vpop.permute.xlu0 %4985
    %4989 = vset.pattern.permute.xlu0 0
    %4990 = vperm.xlu0 %4989, %v4936
    %v4991 = vpop.permute.xlu0 %4990
    %4994 = vset.pattern.permute.xlu0 0
    %4995 = vperm.xlu0 %4994, %v4937
    %v4996 = vpop.permute.xlu0 %4995
    %4999 = vset.pattern.permute.xlu0 0
    %5000 = vperm.xlu0 %4999, %v4938
    %v5001 = vpop.permute.xlu0 %5000
    %5004 = vset.pattern.permute.xlu0 0
    %5005 = vperm.xlu0 %5004, %v4939
    %v5006 = vpop.permute.xlu0 %5005
    %5009 = vset.pattern.permute.xlu0 0
    %5010 = vperm.xlu0 %5009, %v4940
    %v5011 = vpop.permute.xlu0 %5010
    %5014 = vset.pattern.permute.xlu0 0
    %5015 = vperm.xlu0 %5014, %v4941
    %v5016 = vpop.permute.xlu0 %5015
    %5019 = vset.pattern.permute.xlu0 0
    %5020 = vperm.xlu0 %5019, %v4942
    %v5021 = vpop.permute.xlu0 %5020
    %5024 = vset.pattern.permute.xlu0 0
    %5025 = vperm.xlu0 %5024, %v4943
    %v5026 = vpop.permute.xlu0 %5025
    %5029 = vset.pattern.permute.xlu0 0
    %5030 = vperm.xlu0 %5029, %v4944
    %v5031 = vpop.permute.xlu0 %5030
    %5034 = vset.pattern.permute.xlu0 0
    %5035 = vperm.xlu0 %5034, %v4945
    %v5036 = vpop.permute.xlu0 %5035
    %5039 = vset.pattern.permute.xlu0 0
    %5040 = vperm.xlu0 %5039, %v4946
    %v5041 = vpop.permute.xlu0 %5040
    %5044 = vset.pattern.permute.xlu0 0
    %5045 = vperm.xlu0 %5044, %v4947
    %v5046 = vpop.permute.xlu0 %5045
    %5049 = vset.pattern.permute.xlu0 0
    %5050 = vperm.xlu0 %5049, %v4948
    %v5051 = vpop.permute.xlu0 %5050
    %5054 = vset.pattern.permute.xlu0 0
    %5055 = vperm.xlu0 %5054, %v4949
    %v5056 = vpop.permute.xlu0 %5055
    %5059 = vset.pattern.permute.xlu0 0
    %5060 = vperm.xlu0 %5059, %v4950
    %v5061 = vpop.permute.xlu0 %5060
    %5064 = vset.pattern.permute.xlu0 0
    %5065 = vperm.xlu0 %5064, %v4951
    %v5066 = vpop.permute.xlu0 %5065
    %5069 = vset.pattern.permute.xlu0 0
    %5070 = vperm.xlu0 %5069, %v4952
    %v5071 = vpop.permute.xlu0 %5070
    %5074 = vset.pattern.permute.xlu0 0
    %5075 = vperm.xlu0 %5074, %v4953
    %v5076 = vpop.permute.xlu0 %5075
    %5079 = vset.pattern.permute.xlu0 0
    %5080 = vperm.xlu0 %5079, %v4954
    %v5081 = vpop.permute.xlu0 %5080
    %5084 = vset.pattern.permute.xlu0 0
    %5085 = vperm.xlu0 %5084, %v4955
    %v5086 = vpop.permute.xlu0 %5085
    %5089 = vset.pattern.permute.xlu0 0
    %5090 = vperm.xlu0 %5089, %v4956
    %v5091 = vpop.permute.xlu0 %5090
    %5094 = vset.pattern.permute.xlu0 0
    %5095 = vperm.xlu0 %5094, %v4957
    %v5096 = vpop.permute.xlu0 %5095
    %5099 = vset.pattern.permute.xlu0 0
    %5100 = vperm.xlu0 %5099, %v4958
    %v5101 = vpop.permute.xlu0 %5100
    %5104 = vset.pattern.permute.xlu0 0
    %5105 = vperm.xlu0 %5104, %v4959
    %v5106 = vpop.permute.xlu0 %5105
    %5109 = vset.pattern.permute.xlu0 0
    %5110 = vperm.xlu0 %5109, %v4960
    %v5111 = vpop.permute.xlu0 %5110
    %5114 = vset.pattern.permute.xlu0 0
    %5115 = vperm.xlu0 %5114, %v4961
    %v5116 = vpop.permute.xlu0 %5115
    %5119 = vset.pattern.permute.xlu0 0
    %5120 = vperm.xlu0 %5119, %v4962
    %v5121 = vpop.permute.xlu0 %5120
    %v5123 = vmul.f32 %v1253, %v4966
    %v5124 = vmul.f32 %v1258, %v4971
    %v5125 = vmul.f32 %v1263, %v4976
    %v5126 = vmul.f32 %v1268, %v4981
    %v5127 = vmul.f32 %v1273, %v4986
    %v5128 = vmul.f32 %v1278, %v4991
    %v5129 = vmul.f32 %v1283, %v4996
    %v5130 = vmul.f32 %v1288, %v5001
    %v5131 = vmul.f32 %v1293, %v5006
    %v5132 = vmul.f32 %v1298, %v5011
    %v5133 = vmul.f32 %v1303, %v5016
    %v5134 = vmul.f32 %v1308, %v5021
    %v5135 = vmul.f32 %v1313, %v5026
    %v5136 = vmul.f32 %v1318, %v5031
    %v5137 = vmul.f32 %v1323, %v5036
    %v5138 = vmul.f32 %v1328, %v5041
    %v5139 = vmul.f32 %v1333, %v5046
    %v5140 = vmul.f32 %v1338, %v5051
    %v5141 = vmul.f32 %v1343, %v5056
    %v5142 = vmul.f32 %v1348, %v5061
    %v5143 = vmul.f32 %v1353, %v5066
    %v5144 = vmul.f32 %v1358, %v5071
    %v5145 = vmul.f32 %v1363, %v5076
    %v5146 = vmul.f32 %v1368, %v5081
    %v5147 = vmul.f32 %v1373, %v5086
    %v5148 = vmul.f32 %v1378, %v5091
    %v5149 = vmul.f32 %v1383, %v5096
    %v5150 = vmul.f32 %v1388, %v5101
    %v5151 = vmul.f32 %v1393, %v5106
    %v5152 = vmul.f32 %v1398, %v5111
    %v5153 = vmul.f32 %v1403, %v5116
    %v5154 = vmul.f32 %v1408, %v5121
    %v5155 = vld [vmem:[#allocation7] sm:$0xf]
    %v5156 = vld [vmem:[#allocation7 + $0x4] sm:$0xf]
    %v5157 = vld [vmem:[#allocation7 + $0x8] sm:$0xf]
    %v5158 = vld [vmem:[#allocation7 + $0xc] sm:$0xf]
    %v5159 = vld [vmem:[#allocation7 + $0x10] sm:$0xf]
    %v5160 = vld [vmem:[#allocation7 + $0x14] sm:$0xf]
    %v5161 = vld [vmem:[#allocation7 + $0x18] sm:$0xf]
    %v5162 = vld [vmem:[#allocation7 + $0x1c] sm:$0xf]
    %v5163 = vld [vmem:[#allocation7 + $0x20] sm:$0xf]
    %v5164 = vld [vmem:[#allocation7 + $0x24] sm:$0xf]
    %v5165 = vld [vmem:[#allocation7 + $0x28] sm:$0xf]
    %v5166 = vld [vmem:[#allocation7 + $0x2c] sm:$0xf]
    %v5167 = vld [vmem:[#allocation7 + $0x30] sm:$0xf]
    %v5168 = vld [vmem:[#allocation7 + $0x34] sm:$0xf]
    %v5169 = vld [vmem:[#allocation7 + $0x38] sm:$0xf]
    %v5170 = vld [vmem:[#allocation7 + $0x3c] sm:$0xf]
    %v5171 = vld [vmem:[#allocation7 + $0x40] sm:$0xf]
    %v5172 = vld [vmem:[#allocation7 + $0x44] sm:$0xf]
    %v5173 = vld [vmem:[#allocation7 + $0x48] sm:$0xf]
    %v5174 = vld [vmem:[#allocation7 + $0x4c] sm:$0xf]
    %v5175 = vld [vmem:[#allocation7 + $0x50] sm:$0xf]
    %v5176 = vld [vmem:[#allocation7 + $0x54] sm:$0xf]
    %v5177 = vld [vmem:[#allocation7 + $0x58] sm:$0xf]
    %v5178 = vld [vmem:[#allocation7 + $0x5c] sm:$0xf]
    %v5179 = vld [vmem:[#allocation7 + $0x60] sm:$0xf]
    %v5180 = vld [vmem:[#allocation7 + $0x64] sm:$0xf]
    %v5181 = vld [vmem:[#allocation7 + $0x68] sm:$0xf]
    %v5182 = vld [vmem:[#allocation7 + $0x6c] sm:$0xf]
    %v5183 = vld [vmem:[#allocation7 + $0x70] sm:$0xf]
    %v5184 = vld [vmem:[#allocation7 + $0x74] sm:$0xf]
    %v5185 = vld [vmem:[#allocation7 + $0x78] sm:$0xf]
    %v5186 = vld [vmem:[#allocation7 + $0x7c] sm:$0xf]
    %v5187 = vld [vmem:[#allocation2] sm:$0xff]
    %v5188 = vld [vmem:[#allocation2 + $0x8] sm:$0xff]
    %v5189 = vld [vmem:[#allocation2 + $0x10] sm:$0xff]
    %v5190 = vld [vmem:[#allocation2 + $0x18] sm:$0xff]
    %v5191 = vld [vmem:[#allocation2 + $0x20] sm:$0xff]
    %v5192 = vld [vmem:[#allocation2 + $0x28] sm:$0xff]
    %v5193 = vld [vmem:[#allocation2 + $0x30] sm:$0xff]
    %v5194 = vld [vmem:[#allocation2 + $0x38] sm:$0xff]
    %v5227 = vunpack.c.l.b16 %v5155
    %v5228 = vunpack.c.l.b16 %v5156
    %v5229 = vunpack.c.l.b16 %v5157
    %v5230 = vunpack.c.l.b16 %v5158
    %v5231 = vunpack.c.l.b16 %v5159
    %v5232 = vunpack.c.l.b16 %v5160
    %v5233 = vunpack.c.l.b16 %v5161
    %v5234 = vunpack.c.l.b16 %v5162
    %v5235 = vunpack.c.l.b16 %v5163
    %v5236 = vunpack.c.l.b16 %v5164
    %v5237 = vunpack.c.l.b16 %v5165
    %v5238 = vunpack.c.l.b16 %v5166
    %v5239 = vunpack.c.l.b16 %v5167
    %v5240 = vunpack.c.l.b16 %v5168
    %v5241 = vunpack.c.l.b16 %v5169
    %v5242 = vunpack.c.l.b16 %v5170
    %v5243 = vunpack.c.l.b16 %v5171
    %v5244 = vunpack.c.l.b16 %v5172
    %v5245 = vunpack.c.l.b16 %v5173
    %v5246 = vunpack.c.l.b16 %v5174
    %v5247 = vunpack.c.l.b16 %v5175
    %v5248 = vunpack.c.l.b16 %v5176
    %v5249 = vunpack.c.l.b16 %v5177
    %v5250 = vunpack.c.l.b16 %v5178
    %v5251 = vunpack.c.l.b16 %v5179
    %v5252 = vunpack.c.l.b16 %v5180
    %v5253 = vunpack.c.l.b16 %v5181
    %v5254 = vunpack.c.l.b16 %v5182
    %v5255 = vunpack.c.l.b16 %v5183
    %v5256 = vunpack.c.l.b16 %v5184
    %v5257 = vunpack.c.l.b16 %v5185
    %v5258 = vunpack.c.l.b16 %v5186
    %v5259 = vpack.c.b16 %v5228, %v5227
    %v5260 = vpack.c.b16 %v5230, %v5229
    %v5261 = vpack.c.b16 %v5232, %v5231
    %v5262 = vpack.c.b16 %v5234, %v5233
    %v5263 = vpack.c.b16 %v5236, %v5235
    %v5264 = vpack.c.b16 %v5238, %v5237
    %v5265 = vpack.c.b16 %v5240, %v5239
    %v5266 = vpack.c.b16 %v5242, %v5241
    %v5267 = vpack.c.b16 %v5244, %v5243
    %v5268 = vpack.c.b16 %v5246, %v5245
    %v5269 = vpack.c.b16 %v5248, %v5247
    %v5270 = vpack.c.b16 %v5250, %v5249
    %v5271 = vpack.c.b16 %v5252, %v5251
    %v5272 = vpack.c.b16 %v5254, %v5253
    %v5273 = vpack.c.b16 %v5256, %v5255
    %v5274 = vpack.c.b16 %v5258, %v5257
    %5291 = vmatprep.subr.bf16.mxu0 0
    %5292 = vmatpush1.bf16.msra.mxu0 %v5187
    %5293 = vmatprep.subr.bf16.mxu0 0
    %5294 = vmatpush1.bf16.msra.mxu0 %v5188
    %5295 = vmatprep.subr.bf16.mxu0 0
    %5296 = vmatpush1.bf16.msra.mxu0 %v5189
    %5297 = vmatprep.subr.bf16.mxu0 0
    %5298 = vmatpush1.bf16.msra.mxu0 %v5190
    %5299 = vmatprep.subr.bf16.mxu0 0
    %5300 = vmatpush1.bf16.msra.mxu0 %v5191
    %5301 = vmatprep.subr.bf16.mxu0 0
    %5302 = vmatpush1.bf16.msra.mxu0 %v5192
    %5303 = vmatprep.subr.bf16.mxu0 0
    %5304 = vmatpush1.bf16.msra.mxu0 %v5193
    %5305 = vmatprep.subr.bf16.mxu0 0
    %5306 = vmatpush1.bf16.msra.mxu0 %v5194
    %5307 = vmatprep.subr.bf16.mxu0 0
    %5308 = vmatpush1.bf16.msra.mxu0 0
    %5309 = vmatprep.subr.bf16.mxu0 0
    %5310 = vmatpush1.bf16.msra.mxu0 0
    %5311 = vmatprep.subr.bf16.mxu0 0
    %5312 = vmatpush1.bf16.msra.mxu0 0
    %5313 = vmatprep.subr.bf16.mxu0 0
    %5314 = vmatpush1.bf16.msra.mxu0 0
    %5315 = vmatprep.subr.bf16.mxu0 0
    %5316 = vmatpush1.bf16.msra.mxu0 0
    %5317 = vmatprep.subr.bf16.mxu0 0
    %5318 = vmatpush1.bf16.msra.mxu0 0
    %5319 = vmatprep.subr.bf16.mxu0 0
    %5320 = vmatpush1.bf16.msra.mxu0 0
    %5321 = vmatprep.subr.bf16.mxu0 0
    %5322 = vmatpush1.bf16.msra.mxu0 0
    %5323 = vmatprep.mubr.bf16.mxu0 0
    %5324 = vmatmul.mubr.bf16.gmra.mrb[0].mxu0 %v5259
    %v5325 = vpop.f32.mrb[0].mxu0
    %v5326 = vadd.f32 0.0, %v5325
    %v5327 = vpop.f32.mrb[0].mxu0
    %v5328 = vpop.f32.mrb[0].mxu0
    %v5329 = vadd.f32 0.0, %v5328
    %v5330 = vpop.f32.mrb[0].mxu0
    %5331 = vmatprep.mubr.bf16.mxu0 0
    %5332 = vmatmul.mubr.bf16.gmra.mrb[0].mxu0 %v5260
    %v5333 = vpop.f32.mrb[0].mxu0
    %v5334 = vadd.f32 0.0, %v5333
    %v5335 = vpop.f32.mrb[0].mxu0
    %v5336 = vpop.f32.mrb[0].mxu0
    %v5337 = vadd.f32 0.0, %v5336
    %v5338 = vpop.f32.mrb[0].mxu0
    %5339 = vmatprep.mubr.bf16.mxu0 0
    %5340 = vmatmul.mubr.bf16.gmra.mrb[0].mxu0 %v5261
    %v5341 = vpop.f32.mrb[0].mxu0
    %v5342 = vadd.f32 0.0, %v5341
    %v5343 = vpop.f32.mrb[0].mxu0
    %v5344 = vpop.f32.mrb[0].mxu0
    %v5345 = vadd.f32 0.0, %v5344
    %v5346 = vpop.f32.mrb[0].mxu0
    %5347 = vmatprep.mubr.bf16.mxu0 0
    %5348 = vmatmul.mubr.bf16.gmra.mrb[0].mxu0 %v5262
    %v5349 = vpop.f32.mrb[0].mxu0
    %v5350 = vadd.f32 0.0, %v5349
    %v5351 = vpop.f32.mrb[0].mxu0
    %v5352 = vpop.f32.mrb[0].mxu0
    %v5353 = vadd.f32 0.0, %v5352
    %v5354 = vpop.f32.mrb[0].mxu0
    %5355 = vmatprep.mubr.bf16.mxu0 0
    %5356 = vmatmul.mubr.bf16.gmra.mrb[0].mxu0 %v5263
    %v5357 = vpop.f32.mrb[0].mxu0
    %v5358 = vadd.f32 0.0, %v5357
    %v5359 = vpop.f32.mrb[0].mxu0
    %v5360 = vpop.f32.mrb[0].mxu0
    %v5361 = vadd.f32 0.0, %v5360
    %v5362 = vpop.f32.mrb[0].mxu0
    %5363 = vmatprep.mubr.bf16.mxu0 0
    %5364 = vmatmul.mubr.bf16.gmra.mrb[0].mxu0 %v5264
    %v5365 = vpop.f32.mrb[0].mxu0
    %v5366 = vadd.f32 0.0, %v5365
    %v5367 = vpop.f32.mrb[0].mxu0
    %v5368 = vpop.f32.mrb[0].mxu0
    %v5369 = vadd.f32 0.0, %v5368
    %v5370 = vpop.f32.mrb[0].mxu0
    %5371 = vmatprep.mubr.bf16.mxu0 0
    %5372 = vmatmul.mubr.bf16.gmra.mrb[0].mxu0 %v5265
    %v5373 = vpop.f32.mrb[0].mxu0
    %v5374 = vadd.f32 0.0, %v5373
    %v5375 = vpop.f32.mrb[0].mxu0
    %v5376 = vpop.f32.mrb[0].mxu0
    %v5377 = vadd.f32 0.0, %v5376
    %v5378 = vpop.f32.mrb[0].mxu0
    %5379 = vmatprep.mubr.bf16.mxu0 0
    %5380 = vmatmul.mubr.bf16.gmra.mrb[0].mxu0 %v5266
    %v5381 = vpop.f32.mrb[0].mxu0
    %v5382 = vadd.f32 0.0, %v5381
    %v5383 = vpop.f32.mrb[0].mxu0
    %v5384 = vpop.f32.mrb[0].mxu0
    %v5385 = vadd.f32 0.0, %v5384
    %v5386 = vpop.f32.mrb[0].mxu0
    %5387 = vmatprep.mubr.bf16.mxu0 0
    %5388 = vmatmul.mubr.bf16.gmra.mrb[0].mxu0 %v5267
    %v5389 = vpop.f32.mrb[0].mxu0
    %v5390 = vadd.f32 0.0, %v5389
    %v5391 = vpop.f32.mrb[0].mxu0
    %v5392 = vpop.f32.mrb[0].mxu0
    %v5393 = vadd.f32 0.0, %v5392
    %v5394 = vpop.f32.mrb[0].mxu0
    %5395 = vmatprep.mubr.bf16.mxu0 0
    %5396 = vmatmul.mubr.bf16.gmra.mrb[0].mxu0 %v5268
    %v5397 = vpop.f32.mrb[0].mxu0
    %v5398 = vadd.f32 0.0, %v5397
    %v5399 = vpop.f32.mrb[0].mxu0
    %v5400 = vpop.f32.mrb[0].mxu0
    %v5401 = vadd.f32 0.0, %v5400
    %v5402 = vpop.f32.mrb[0].mxu0
    %5403 = vmatprep.mubr.bf16.mxu0 0
    %5404 = vmatmul.mubr.bf16.gmra.mrb[0].mxu0 %v5269
    %v5405 = vpop.f32.mrb[0].mxu0
    %v5406 = vadd.f32 0.0, %v5405
    %v5407 = vpop.f32.mrb[0].mxu0
    %v5408 = vpop.f32.mrb[0].mxu0
    %v5409 = vadd.f32 0.0, %v5408
    %v5410 = vpop.f32.mrb[0].mxu0
    %5411 = vmatprep.mubr.bf16.mxu0 0
    %5412 = vmatmul.mubr.bf16.gmra.mrb[0].mxu0 %v5270
    %v5413 = vpop.f32.mrb[0].mxu0
    %v5414 = vadd.f32 0.0, %v5413
    %v5415 = vpop.f32.mrb[0].mxu0
    %v5416 = vpop.f32.mrb[0].mxu0
    %v5417 = vadd.f32 0.0, %v5416
    %v5418 = vpop.f32.mrb[0].mxu0
    %5419 = vmatprep.mubr.bf16.mxu0 0
    %5420 = vmatmul.mubr.bf16.gmra.mrb[0].mxu0 %v5271
    %v5421 = vpop.f32.mrb[0].mxu0
    %v5422 = vadd.f32 0.0, %v5421
    %v5423 = vpop.f32.mrb[0].mxu0
    %v5424 = vpop.f32.mrb[0].mxu0
    %v5425 = vadd.f32 0.0, %v5424
    %v5426 = vpop.f32.mrb[0].mxu0
    %5427 = vmatprep.mubr.bf16.mxu0 0
    %5428 = vmatmul.mubr.bf16.gmra.mrb[0].mxu0 %v5272
    %v5429 = vpop.f32.mrb[0].mxu0
    %v5430 = vadd.f32 0.0, %v5429
    %v5431 = vpop.f32.mrb[0].mxu0
    %v5432 = vpop.f32.mrb[0].mxu0
    %v5433 = vadd.f32 0.0, %v5432
    %v5434 = vpop.f32.mrb[0].mxu0
    %5435 = vmatprep.mubr.bf16.mxu0 0
    %5436 = vmatmul.mubr.bf16.gmra.mrb[0].mxu0 %v5273
    %v5437 = vpop.f32.mrb[0].mxu0
    %v5438 = vadd.f32 0.0, %v5437
    %v5439 = vpop.f32.mrb[0].mxu0
    %v5440 = vpop.f32.mrb[0].mxu0
    %v5441 = vadd.f32 0.0, %v5440
    %v5442 = vpop.f32.mrb[0].mxu0
    %5443 = vmatprep.mubr.bf16.mxu0 0
    %5444 = vmatmul.mubr.bf16.gmra.mrb[0].mxu0 %v5274
    %v5445 = vpop.f32.mrb[0].mxu0
    %v5446 = vadd.f32 0.0, %v5445
    %v5447 = vpop.f32.mrb[0].mxu0
    %v5448 = vpop.f32.mrb[0].mxu0
    %v5449 = vadd.f32 0.0, %v5448
    %v5450 = vpop.f32.mrb[0].mxu0
    %5451 = vdwg.mxu0
    %v5452 = vmul.f32 %v5326, %v5123
    %v5453 = vmul.f32 %v5329, %v5124
    %v5454 = vmul.f32 %v5334, %v5125
    %v5455 = vmul.f32 %v5337, %v5126
    %v5456 = vmul.f32 %v5342, %v5127
    %v5457 = vmul.f32 %v5345, %v5128
    %v5458 = vmul.f32 %v5350, %v5129
    %v5459 = vmul.f32 %v5353, %v5130
    %v5460 = vmul.f32 %v5358, %v5131
    %v5461 = vmul.f32 %v5361, %v5132
    %v5462 = vmul.f32 %v5366, %v5133
    %v5463 = vmul.f32 %v5369, %v5134
    %v5464 = vmul.f32 %v5374, %v5135
    %v5465 = vmul.f32 %v5377, %v5136
    %v5466 = vmul.f32 %v5382, %v5137
    %v5467 = vmul.f32 %v5385, %v5138
    %v5468 = vmul.f32 %v5390, %v5139
    %v5469 = vmul.f32 %v5393, %v5140
    %v5470 = vmul.f32 %v5398, %v5141
    %v5471 = vmul.f32 %v5401, %v5142
    %v5472 = vmul.f32 %v5406, %v5143
    %v5473 = vmul.f32 %v5409, %v5144
    %v5474 = vmul.f32 %v5414, %v5145
    %v5475 = vmul.f32 %v5417, %v5146
    %v5476 = vmul.f32 %v5422, %v5147
    %v5477 = vmul.f32 %v5425, %v5148
    %v5478 = vmul.f32 %v5430, %v5149
    %v5479 = vmul.f32 %v5433, %v5150
    %v5480 = vmul.f32 %v5438, %v5151
    %v5481 = vmul.f32 %v5441, %v5152
    %v5482 = vmul.f32 %v5446, %v5153
    %v5483 = vmul.f32 %v5449, %v5154
    %v5484 = vpack.c.bf16 %v5453, %v5452
    %v5485 = vpack.c.bf16 %v5455, %v5454
    %v5486 = vpack.c.bf16 %v5457, %v5456
    %v5487 = vpack.c.bf16 %v5459, %v5458
    %v5488 = vpack.c.bf16 %v5461, %v5460
    %v5489 = vpack.c.bf16 %v5463, %v5462
    %v5490 = vpack.c.bf16 %v5465, %v5464
    %v5491 = vpack.c.bf16 %v5467, %v5466
    %v5492 = vpack.c.bf16 %v5469, %v5468
    %v5493 = vpack.c.bf16 %v5471, %v5470
    %v5494 = vpack.c.bf16 %v5473, %v5472
    %v5495 = vpack.c.bf16 %v5475, %v5474
    %v5496 = vpack.c.bf16 %v5477, %v5476
    %v5497 = vpack.c.bf16 %v5479, %v5478
    %v5498 = vpack.c.bf16 %v5481, %v5480
    %v5499 = vpack.c.bf16 %v5483, %v5482
    %v5500 = vld [vmem:[#allocation3] sm:$0xff]
    %v5501 = vld [vmem:[#allocation3 + $0x8] sm:$0xff]
    %v5502 = vld [vmem:[#allocation3 + $0x10] sm:$0xff]
    %v5503 = vld [vmem:[#allocation3 + $0x18] sm:$0xff]
    %v5504 = vld [vmem:[#allocation3 + $0x20] sm:$0xff]
    %v5505 = vld [vmem:[#allocation3 + $0x28] sm:$0xff]
    %v5506 = vld [vmem:[#allocation3 + $0x30] sm:$0xff]
    %v5507 = vld [vmem:[#allocation3 + $0x38] sm:$0xff]
    %v5508 = vld [vmem:[#allocation3 + $0x40] sm:$0xff]
    %v5509 = vld [vmem:[#allocation3 + $0x48] sm:$0xff]
    %v5510 = vld [vmem:[#allocation3 + $0x50] sm:$0xff]
    %v5511 = vld [vmem:[#allocation3 + $0x58] sm:$0xff]
    %v5512 = vld [vmem:[#allocation3 + $0x60] sm:$0xff]
    %v5513 = vld [vmem:[#allocation3 + $0x68] sm:$0xff]
    %v5514 = vld [vmem:[#allocation3 + $0x70] sm:$0xff]
    %v5515 = vld [vmem:[#allocation3 + $0x78] sm:$0xff]
    %v5516 = vld [vmem:[#allocation9] sm:$0xf]
    %v5517 = vld [vmem:[#allocation9 + $0x4] sm:$0xf]
    %v5518 = vld [vmem:[#allocation9 + $0x8] sm:$0xf]
    %v5519 = vld [vmem:[#allocation9 + $0xc] sm:$0xf]
    %v5520 = vld [vmem:[#allocation9 + $0x10] sm:$0xf]
    %v5521 = vld [vmem:[#allocation9 + $0x14] sm:$0xf]
    %v5522 = vld [vmem:[#allocation9 + $0x18] sm:$0xf]
    %v5523 = vld [vmem:[#allocation9 + $0x1c] sm:$0xf]
    %v5524 = vld [vmem:[#allocation9 + $0x20] sm:$0xf]
    %v5525 = vld [vmem:[#allocation9 + $0x24] sm:$0xf]
    %v5526 = vld [vmem:[#allocation9 + $0x28] sm:$0xf]
    %v5527 = vld [vmem:[#allocation9 + $0x2c] sm:$0xf]
    %v5528 = vld [vmem:[#allocation9 + $0x30] sm:$0xf]
    %v5529 = vld [vmem:[#allocation9 + $0x34] sm:$0xf]
    %v5530 = vld [vmem:[#allocation9 + $0x38] sm:$0xf]
    %v5531 = vld [vmem:[#allocation9 + $0x3c] sm:$0xf]
    %v5532 = vld [vmem:[#allocation9 + $0x40] sm:$0xf]
    %v5533 = vld [vmem:[#allocation9 + $0x44] sm:$0xf]
    %v5534 = vld [vmem:[#allocation9 + $0x48] sm:$0xf]
    %v5535 = vld [vmem:[#allocation9 + $0x4c] sm:$0xf]
    %v5536 = vld [vmem:[#allocation9 + $0x50] sm:$0xf]
    %v5537 = vld [vmem:[#allocation9 + $0x54] sm:$0xf]
    %v5538 = vld [vmem:[#allocation9 + $0x58] sm:$0xf]
    %v5539 = vld [vmem:[#allocation9 + $0x5c] sm:$0xf]
    %v5540 = vld [vmem:[#allocation9 + $0x60] sm:$0xf]
    %v5541 = vld [vmem:[#allocation9 + $0x64] sm:$0xf]
    %v5542 = vld [vmem:[#allocation9 + $0x68] sm:$0xf]
    %v5543 = vld [vmem:[#allocation9 + $0x6c] sm:$0xf]
    %v5544 = vld [vmem:[#allocation9 + $0x70] sm:$0xf]
    %v5545 = vld [vmem:[#allocation9 + $0x74] sm:$0xf]
    %v5546 = vld [vmem:[#allocation9 + $0x78] sm:$0xf]
    %v5547 = vld [vmem:[#allocation9 + $0x7c] sm:$0xf]
    %v5580 = vunpack.c.l.b16 %v5516
    %v5581 = vunpack.c.l.b16 %v5517
    %v5582 = vunpack.c.l.b16 %v5518
    %v5583 = vunpack.c.l.b16 %v5519
    %v5584 = vunpack.c.l.b16 %v5520
    %v5585 = vunpack.c.l.b16 %v5521
    %v5586 = vunpack.c.l.b16 %v5522
    %v5587 = vunpack.c.l.b16 %v5523
    %v5588 = vunpack.c.l.b16 %v5524
    %v5589 = vunpack.c.l.b16 %v5525
    %v5590 = vunpack.c.l.b16 %v5526
    %v5591 = vunpack.c.l.b16 %v5527
    %v5592 = vunpack.c.l.b16 %v5528
    %v5593 = vunpack.c.l.b16 %v5529
    %v5594 = vunpack.c.l.b16 %v5530
    %v5595 = vunpack.c.l.b16 %v5531
    %v5596 = vunpack.c.l.b16 %v5532
    %v5597 = vunpack.c.l.b16 %v5533
    %v5598 = vunpack.c.l.b16 %v5534
    %v5599 = vunpack.c.l.b16 %v5535
    %v5600 = vunpack.c.l.b16 %v5536
    %v5601 = vunpack.c.l.b16 %v5537
    %v5602 = vunpack.c.l.b16 %v5538
    %v5603 = vunpack.c.l.b16 %v5539
    %v5604 = vunpack.c.l.b16 %v5540
    %v5605 = vunpack.c.l.b16 %v5541
    %v5606 = vunpack.c.l.b16 %v5542
    %v5607 = vunpack.c.l.b16 %v5543
    %v5608 = vunpack.c.l.b16 %v5544
    %v5609 = vunpack.c.l.b16 %v5545
    %v5610 = vunpack.c.l.b16 %v5546
    %v5611 = vunpack.c.l.b16 %v5547
    %v5612 = vpack.c.b16 %v5581, %v5580
    %v5613 = vpack.c.b16 %v5583, %v5582
    %v5614 = vpack.c.b16 %v5585, %v5584
    %v5615 = vpack.c.b16 %v5587, %v5586
    %v5616 = vpack.c.b16 %v5589, %v5588
    %v5617 = vpack.c.b16 %v5591, %v5590
    %v5618 = vpack.c.b16 %v5593, %v5592
    %v5619 = vpack.c.b16 %v5595, %v5594
    %v5620 = vpack.c.b16 %v5597, %v5596
    %v5621 = vpack.c.b16 %v5599, %v5598
    %v5622 = vpack.c.b16 %v5601, %v5600
    %v5623 = vpack.c.b16 %v5603, %v5602
    %v5624 = vpack.c.b16 %v5605, %v5604
    %v5625 = vpack.c.b16 %v5607, %v5606
    %v5626 = vpack.c.b16 %v5609, %v5608
    %v5627 = vpack.c.b16 %v5611, %v5610
    %5644 = vxpose.xlu0.c.b16.start [1/8] %v5612, 128
    %5645 = vxpose.xlu0.c.b16.cont [2/8] %v5613, 128
    %5646 = vxpose.xlu0.c.b16.cont [3/8] %v5614, 128
    %5647 = vxpose.xlu0.c.b16.cont [4/8] %v5615, 128
    %5648 = vxpose.xlu0.c.b16.cont [5/8] %v5616, 128
    %5649 = vxpose.xlu0.c.b16.cont [6/8] %v5617, 128
    %5650 = vxpose.xlu0.c.b16.cont [7/8] %v5618, 128
    %5651 = vxpose.xlu0.c.b16.end [8/8] %v5619, 128
    %v5652 = vpop.trf.xlu0
    %v5653 = vpop.trf.xlu0
    %v5654 = vpop.trf.xlu0
    %v5655 = vpop.trf.xlu0
    %v5656 = vpop.trf.xlu0
    %v5657 = vpop.trf.xlu0
    %v5658 = vpop.trf.xlu0
    %v5659 = vpop.trf.xlu0
    %5660 = vxpose.xlu0.c.b16.start [1/8] %v5620, 128
    %5661 = vxpose.xlu0.c.b16.cont [2/8] %v5621, 128
    %5662 = vxpose.xlu0.c.b16.cont [3/8] %v5622, 128
    %5663 = vxpose.xlu0.c.b16.cont [4/8] %v5623, 128
    %5664 = vxpose.xlu0.c.b16.cont [5/8] %v5624, 128
    %5665 = vxpose.xlu0.c.b16.cont [6/8] %v5625, 128
    %5666 = vxpose.xlu0.c.b16.cont [7/8] %v5626, 128
    %5667 = vxpose.xlu0.c.b16.end [8/8] %v5627, 128
    %v5668 = vpop.trf.xlu0
    %v5669 = vpop.trf.xlu0
    %v5670 = vpop.trf.xlu0
    %v5671 = vpop.trf.xlu0
    %v5672 = vpop.trf.xlu0
    %v5673 = vpop.trf.xlu0
    %v5674 = vpop.trf.xlu0
    %v5675 = vpop.trf.xlu0
    %5676 = vmatprep.subr.bf16.mxu0 0
    %5677 = vmatpush1.bf16.msra.mxu0 %v5484
    %5678 = vmatprep.subr.bf16.mxu0 0
    %5679 = vmatpush1.bf16.msra.mxu0 %v5485
    %5680 = vmatprep.subr.bf16.mxu0 0
    %5681 = vmatpush1.bf16.msra.mxu0 %v5486
    %5682 = vmatprep.subr.bf16.mxu0 0
    %5683 = vmatpush1.bf16.msra.mxu0 %v5487
    %5684 = vmatprep.subr.bf16.mxu0 0
    %5685 = vmatpush1.bf16.msra.mxu0 %v5488
    %5686 = vmatprep.subr.bf16.mxu0 0
    %5687 = vmatpush1.bf16.msra.mxu0 %v5489
    %5688 = vmatprep.subr.bf16.mxu0 0
    %5689 = vmatpush1.bf16.msra.mxu0 %v5490
    %5690 = vmatprep.subr.bf16.mxu0 0
    %5691 = vmatpush1.bf16.msra.mxu0 %v5491
    %5692 = vmatprep.subr.bf16.mxu0 0
    %5693 = vmatpush1.bf16.msra.mxu0 %v5492
    %5694 = vmatprep.subr.bf16.mxu0 0
    %5695 = vmatpush1.bf16.msra.mxu0 %v5493
    %5696 = vmatprep.subr.bf16.mxu0 0
    %5697 = vmatpush1.bf16.msra.mxu0 %v5494
    %5698 = vmatprep.subr.bf16.mxu0 0
    %5699 = vmatpush1.bf16.msra.mxu0 %v5495
    %5700 = vmatprep.subr.bf16.mxu0 0
    %5701 = vmatpush1.bf16.msra.mxu0 %v5496
    %5702 = vmatprep.subr.bf16.mxu0 0
    %5703 = vmatpush1.bf16.msra.mxu0 %v5497
    %5704 = vmatprep.subr.bf16.mxu0 0
    %5705 = vmatpush1.bf16.msra.mxu0 %v5498
    %5706 = vmatprep.subr.bf16.mxu0 0
    %5707 = vmatpush1.bf16.msra.mxu0 %v5499
    %5708 = vmatprep.mubr.bf16.mxu0 %v5668
    %5709 = vmatmul.mubr.bf16.gmra.mrb[0].mxu0 %v5652
    %v5710 = vpop.f32.mrb[0].mxu0
    %v5711 = vadd.f32 0.0, %v5710
    %v5712 = vpop.f32.mrb[0].mxu0
    %v5713 = vpop.f32.mrb[0].mxu0
    %v5714 = vadd.f32 0.0, %v5713
    %v5715 = vpop.f32.mrb[0].mxu0
    %5716 = vmatprep.mubr.bf16.mxu0 %v5669
    %5717 = vmatmul.mubr.bf16.gmra.mrb[0].mxu0 %v5653
    %v5718 = vpop.f32.mrb[0].mxu0
    %v5719 = vadd.f32 0.0, %v5718
    %v5720 = vpop.f32.mrb[0].mxu0
    %v5721 = vpop.f32.mrb[0].mxu0
    %v5722 = vadd.f32 0.0, %v5721
    %v5723 = vpop.f32.mrb[0].mxu0
    %5724 = vmatprep.mubr.bf16.mxu0 %v5670
    %5725 = vmatmul.mubr.bf16.gmra.mrb[0].mxu0 %v5654
    %v5726 = vpop.f32.mrb[0].mxu0
    %v5727 = vadd.f32 0.0, %v5726
    %v5728 = vpop.f32.mrb[0].mxu0
    %v5729 = vpop.f32.mrb[0].mxu0
    %v5730 = vadd.f32 0.0, %v5729
    %v5731 = vpop.f32.mrb[0].mxu0
    %5732 = vmatprep.mubr.bf16.mxu0 %v5671
    %5733 = vmatmul.mubr.bf16.gmra.mrb[0].mxu0 %v5655
    %v5734 = vpop.f32.mrb[0].mxu0
    %v5735 = vadd.f32 0.0, %v5734
    %v5736 = vpop.f32.mrb[0].mxu0
    %v5737 = vpop.f32.mrb[0].mxu0
    %v5738 = vadd.f32 0.0, %v5737
    %v5739 = vpop.f32.mrb[0].mxu0
    %5740 = vmatprep.mubr.bf16.mxu0 %v5672
    %5741 = vmatmul.mubr.bf16.gmra.mrb[0].mxu0 %v5656
    %v5742 = vpop.f32.mrb[0].mxu0
    %v5743 = vadd.f32 0.0, %v5742
    %v5744 = vpop.f32.mrb[0].mxu0
    %v5745 = vpop.f32.mrb[0].mxu0
    %v5746 = vadd.f32 0.0, %v5745
    %v5747 = vpop.f32.mrb[0].mxu0
    %5748 = vmatprep.mubr.bf16.mxu0 %v5673
    %5749 = vmatmul.mubr.bf16.gmra.mrb[0].mxu0 %v5657
    %v5750 = vpop.f32.mrb[0].mxu0
    %v5751 = vadd.f32 0.0, %v5750
    %v5752 = vpop.f32.mrb[0].mxu0
    %v5753 = vpop.f32.mrb[0].mxu0
    %v5754 = vadd.f32 0.0, %v5753
    %v5755 = vpop.f32.mrb[0].mxu0
    %5756 = vmatprep.mubr.bf16.mxu0 %v5674
    %5757 = vmatmul.mubr.bf16.gmra.mrb[0].mxu0 %v5658
    %v5758 = vpop.f32.mrb[0].mxu0
    %v5759 = vadd.f32 0.0, %v5758
    %v5760 = vpop.f32.mrb[0].mxu0
    %v5761 = vpop.f32.mrb[0].mxu0
    %v5762 = vadd.f32 0.0, %v5761
    %v5763 = vpop.f32.mrb[0].mxu0
    %5764 = vmatprep.mubr.bf16.mxu0 %v5675
    %5765 = vmatmul.mubr.bf16.gmra.mrb[0].mxu0 %v5659
    %v5766 = vpop.f32.mrb[0].mxu0
    %v5767 = vadd.f32 0.0, %v5766
    %v5768 = vpop.f32.mrb[0].mxu0
    %v5769 = vpop.f32.mrb[0].mxu0
    %v5770 = vadd.f32 0.0, %v5769
    %v5771 = vpop.f32.mrb[0].mxu0
    %5772 = vdwg.mxu0
    %v5773 = vadd.f32 %v5500, %v5711
    %v5774 = vadd.f32 %v5501, %v5714
    %v5775 = vadd.f32 %v5502, %v5719
    %v5776 = vadd.f32 %v5503, %v5722
    %v5777 = vadd.f32 %v5504, %v5727
    %v5778 = vadd.f32 %v5505, %v5730
    %v5779 = vadd.f32 %v5506, %v5735
    %v5780 = vadd.f32 %v5507, %v5738
    %v5781 = vadd.f32 %v5508, %v5743
    %v5782 = vadd.f32 %v5509, %v5746
    %v5783 = vadd.f32 %v5510, %v5751
    %v5784 = vadd.f32 %v5511, %v5754
    %v5785 = vadd.f32 %v5512, %v5759
    %v5786 = vadd.f32 %v5513, %v5762
    %v5787 = vadd.f32 %v5514, %v5767
    %v5788 = vadd.f32 %v5515, %v5770
    %5789 = vst [vmem:[#allocation3] sm:$0xff] %v5773
    %5790 = vst [vmem:[#allocation3 + $0x8] sm:$0xff] %v5774
    %5791 = vst [vmem:[#allocation3 + $0x10] sm:$0xff] %v5775
    %5792 = vst [vmem:[#allocation3 + $0x18] sm:$0xff] %v5776
    %5793 = vst [vmem:[#allocation3 + $0x20] sm:$0xff] %v5777
    %5794 = vst [vmem:[#allocation3 + $0x28] sm:$0xff] %v5778
    %5795 = vst [vmem:[#allocation3 + $0x30] sm:$0xff] %v5779
    %5796 = vst [vmem:[#allocation3 + $0x38] sm:$0xff] %v5780
    %5797 = vst [vmem:[#allocation3 + $0x40] sm:$0xff] %v5781
    %5798 = vst [vmem:[#allocation3 + $0x48] sm:$0xff] %v5782
    %5799 = vst [vmem:[#allocation3 + $0x50] sm:$0xff] %v5783
    %5800 = vst [vmem:[#allocation3 + $0x58] sm:$0xff] %v5784
    %5801 = vst [vmem:[#allocation3 + $0x60] sm:$0xff] %v5785
    %5802 = vst [vmem:[#allocation3 + $0x68] sm:$0xff] %v5786
    %5803 = vst [vmem:[#allocation3 + $0x70] sm:$0xff] %v5787
    %5804 = vst [vmem:[#allocation3 + $0x78] sm:$0xff] %v5788
    // Predicated region
    $region94: #{tpu_custom_call.1} parent=1 // pred_check
      %p5805 = pneg %p158
    $region95: #{tpu_custom_call.1} parent=1 // pred_check_branch
      %5807 = sbr.rel (%p5805) target = $region97
    $region96: #{tpu_custom_call.1} parent=1 // pred_region
      %v5808 = vld [vmem:[#allocation3] sm:$0xff]
      %v5809 = vld [vmem:[#allocation3 + $0x8] sm:$0xff]
      %v5810 = vld [vmem:[#allocation3 + $0x10] sm:$0xff]
      %v5811 = vld [vmem:[#allocation3 + $0x18] sm:$0xff]
      %v5812 = vld [vmem:[#allocation3 + $0x20] sm:$0xff]
      %v5813 = vld [vmem:[#allocation3 + $0x28] sm:$0xff]
      %v5814 = vld [vmem:[#allocation3 + $0x30] sm:$0xff]
      %v5815 = vld [vmem:[#allocation3 + $0x38] sm:$0xff]
      %v5816 = vld [vmem:[#allocation3 + $0x40] sm:$0xff]
      %v5817 = vld [vmem:[#allocation3 + $0x48] sm:$0xff]
      %v5818 = vld [vmem:[#allocation3 + $0x50] sm:$0xff]
      %v5819 = vld [vmem:[#allocation3 + $0x58] sm:$0xff]
      %v5820 = vld [vmem:[#allocation3 + $0x60] sm:$0xff]
      %v5821 = vld [vmem:[#allocation3 + $0x68] sm:$0xff]
      %v5822 = vld [vmem:[#allocation3 + $0x70] sm:$0xff]
      %v5823 = vld [vmem:[#allocation3 + $0x78] sm:$0xff]
      %v5824 = vld [vmem:[#allocation15] sm:$0xff]
      %v5825 = vld [vmem:[#allocation15 + $0x8] sm:$0xff]
      %v5826 = vld [vmem:[#allocation15 + $0x10] sm:$0xff]
      %v5827 = vld [vmem:[#allocation15 + $0x18] sm:$0xff]
      %v5828 = vld [vmem:[#allocation15 + $0x20] sm:$0xff]
      %v5829 = vld [vmem:[#allocation15 + $0x28] sm:$0xff]
      %v5830 = vld [vmem:[#allocation15 + $0x30] sm:$0xff]
      %v5831 = vld [vmem:[#allocation15 + $0x38] sm:$0xff]
      %v5832 = vld [vmem:[#allocation15 + $0x40] sm:$0xff]
      %v5833 = vld [vmem:[#allocation15 + $0x48] sm:$0xff]
      %v5834 = vld [vmem:[#allocation15 + $0x50] sm:$0xff]
      %v5835 = vld [vmem:[#allocation15 + $0x58] sm:$0xff]
      %v5836 = vld [vmem:[#allocation15 + $0x60] sm:$0xff]
      %v5837 = vld [vmem:[#allocation15 + $0x68] sm:$0xff]
      %v5838 = vld [vmem:[#allocation15 + $0x70] sm:$0xff]
      %v5839 = vld [vmem:[#allocation15 + $0x78] sm:$0xff]
      %v5840 = vld [vmem:[%s11] sm:$0x1]
      %v5842 = vlaneseq
      %v5843 = vshrl.u32 %v5842, 7
      %v5844 = vsub.s32 0, %v5843
      %v5845 = vrot.slane %v5840, %v5844
      %5847 = vmatprep.subr.mxu0 0.0
      %5848 = vmatpush1.msra.mxu0 %v5824
      %5849 = vmatprep.subr.mxu0 0.0
      %5850 = vmatpush1.msra.mxu0 %v5825
      %5851 = vmatprep.subr.mxu0 0.0
      %5852 = vmatpush1.msra.mxu0 %v5826
      %5853 = vmatprep.subr.mxu0 0.0
      %5854 = vmatpush1.msra.mxu0 %v5827
      %5855 = vmatprep.subr.mxu0 0.0
      %5856 = vmatpush1.msra.mxu0 %v5828
      %5857 = vmatprep.subr.mxu0 0.0
      %5858 = vmatpush1.msra.mxu0 %v5829
      %5859 = vmatprep.subr.mxu0 0.0
      %5860 = vmatpush1.msra.mxu0 %v5830
      %5861 = vmatprep.subr.mxu0 0.0
      %5862 = vmatpush1.msra.mxu0 %v5831
      %5863 = vmatprep.subr.mxu0 0.0
      %5864 = vmatpush1.msra.mxu0 %v5832
      %5865 = vmatprep.subr.mxu0 0.0
      %5866 = vmatpush1.msra.mxu0 %v5833
      %5867 = vmatprep.subr.mxu0 0.0
      %5868 = vmatpush1.msra.mxu0 %v5834
      %5869 = vmatprep.subr.mxu0 0.0
      %5870 = vmatpush1.msra.mxu0 %v5835
      %5871 = vmatprep.subr.mxu0 0.0
      %5872 = vmatpush1.msra.mxu0 %v5836
      %5873 = vmatprep.subr.mxu0 0.0
      %5874 = vmatpush1.msra.mxu0 %v5837
      %5875 = vmatprep.subr.mxu0 0.0
      %5876 = vmatpush1.msra.mxu0 %v5838
      %5877 = vmatprep.subr.mxu0 0.0
      %5878 = vmatpush1.msra.mxu0 %v5839
      %5879 = vmatprep.subr.mxu0 0.0
      %5880 = vmatpush1.msra.mxu0 0.0
      %5881 = vmatprep.subr.mxu0 0.0
      %5882 = vmatpush1.msra.mxu0 0.0
      %5883 = vmatprep.subr.mxu0 0.0
      %5884 = vmatpush1.msra.mxu0 0.0
      %5885 = vmatprep.subr.mxu0 0.0
      %5886 = vmatpush1.msra.mxu0 0.0
      %5887 = vmatprep.subr.mxu0 0.0
      %5888 = vmatpush1.msra.mxu0 0.0
      %5889 = vmatprep.subr.mxu0 0.0
      %5890 = vmatpush1.msra.mxu0 0.0
      %5891 = vmatprep.subr.mxu0 0.0
      %5892 = vmatpush1.msra.mxu0 0.0
      %5893 = vmatprep.subr.mxu0 0.0
      %5894 = vmatpush1.msra.mxu0 0.0
      %5895 = vmatprep.subr.mxu0 0.0
      %5896 = vmatpush1.msra.mxu0 0.0
      %5897 = vmatprep.subr.mxu0 0.0
      %5898 = vmatpush1.msra.mxu0 0.0
      %5899 = vmatprep.subr.mxu0 0.0
      %5900 = vmatpush1.msra.mxu0 0.0
      %5901 = vmatprep.subr.mxu0 0.0
      %5902 = vmatpush1.msra.mxu0 0.0
      %5903 = vmatprep.subr.mxu0 0.0
      %5904 = vmatpush1.msra.mxu0 0.0
      %5905 = vmatprep.subr.mxu0 0.0
      %5906 = vmatpush1.msra.mxu0 0.0
      %5907 = vmatprep.subr.mxu0 0.0
      %5908 = vmatpush1.msra.mxu0 0.0
      %5909 = vmatprep.subr.mxu0 0.0
      %5910 = vmatpush1.msra.mxu0 0.0
      %5911 = vmatprep.mubr.f32.mxu0 0.0
      %5912 = vmatmul.mubr.f32.gmra.mrb[0].mxu0 %v5808
      %v5913 = vpop.f32.mrb[0].mxu0
      %v5914 = vadd.f32 %v5845, %v5913
      %v5915 = vpop.f32.mrb[0].mxu0
      %5916 = vmatprep.mubr.f32.mxu0 0.0
      %5917 = vmatmul.mubr.f32.gmra.mrb[0].mxu0 %v5809
      %v5918 = vpop.f32.mrb[0].mxu0
      %v5919 = vadd.f32 %v5845, %v5918
      %v5920 = vpop.f32.mrb[0].mxu0
      %5921 = vmatprep.mubr.f32.mxu0 0.0
      %5922 = vmatmul.mubr.f32.gmra.mrb[0].mxu0 %v5810
      %v5923 = vpop.f32.mrb[0].mxu0
      %v5924 = vadd.f32 %v5845, %v5923
      %v5925 = vpop.f32.mrb[0].mxu0
      %5926 = vmatprep.mubr.f32.mxu0 0.0
      %5927 = vmatmul.mubr.f32.gmra.mrb[0].mxu0 %v5811
      %v5928 = vpop.f32.mrb[0].mxu0
      %v5929 = vadd.f32 %v5845, %v5928
      %v5930 = vpop.f32.mrb[0].mxu0
      %5931 = vmatprep.mubr.f32.mxu0 0.0
      %5932 = vmatmul.mubr.f32.gmra.mrb[0].mxu0 %v5812
      %v5933 = vpop.f32.mrb[0].mxu0
      %v5934 = vadd.f32 %v5845, %v5933
      %v5935 = vpop.f32.mrb[0].mxu0
      %5936 = vmatprep.mubr.f32.mxu0 0.0
      %5937 = vmatmul.mubr.f32.gmra.mrb[0].mxu0 %v5813
      %v5938 = vpop.f32.mrb[0].mxu0
      %v5939 = vadd.f32 %v5845, %v5938
      %v5940 = vpop.f32.mrb[0].mxu0
      %5941 = vmatprep.mubr.f32.mxu0 0.0
      %5942 = vmatmul.mubr.f32.gmra.mrb[0].mxu0 %v5814
      %v5943 = vpop.f32.mrb[0].mxu0
      %v5944 = vadd.f32 %v5845, %v5943
      %v5945 = vpop.f32.mrb[0].mxu0
      %5946 = vmatprep.mubr.f32.mxu0 0.0
      %5947 = vmatmul.mubr.f32.gmra.mrb[0].mxu0 %v5815
      %v5948 = vpop.f32.mrb[0].mxu0
      %v5949 = vadd.f32 %v5845, %v5948
      %v5950 = vpop.f32.mrb[0].mxu0
      %5951 = vmatprep.mubr.f32.mxu0 0.0
      %5952 = vmatmul.mubr.f32.gmra.mrb[0].mxu0 %v5816
      %v5953 = vpop.f32.mrb[0].mxu0
      %v5954 = vadd.f32 %v5845, %v5953
      %v5955 = vpop.f32.mrb[0].mxu0
      %5956 = vmatprep.mubr.f32.mxu0 0.0
      %5957 = vmatmul.mubr.f32.gmra.mrb[0].mxu0 %v5817
      %v5958 = vpop.f32.mrb[0].mxu0
      %v5959 = vadd.f32 %v5845, %v5958
      %v5960 = vpop.f32.mrb[0].mxu0
      %5961 = vmatprep.mubr.f32.mxu0 0.0
      %5962 = vmatmul.mubr.f32.gmra.mrb[0].mxu0 %v5818
      %v5963 = vpop.f32.mrb[0].mxu0
      %v5964 = vadd.f32 %v5845, %v5963
      %v5965 = vpop.f32.mrb[0].mxu0
      %5966 = vmatprep.mubr.f32.mxu0 0.0
      %5967 = vmatmul.mubr.f32.gmra.mrb[0].mxu0 %v5819
      %v5968 = vpop.f32.mrb[0].mxu0
      %v5969 = vadd.f32 %v5845, %v5968
      %v5970 = vpop.f32.mrb[0].mxu0
      %5971 = vmatprep.mubr.f32.mxu0 0.0
      %5972 = vmatmul.mubr.f32.gmra.mrb[0].mxu0 %v5820
      %v5973 = vpop.f32.mrb[0].mxu0
      %v5974 = vadd.f32 %v5845, %v5973
      %v5975 = vpop.f32.mrb[0].mxu0
      %5976 = vmatprep.mubr.f32.mxu0 0.0
      %5977 = vmatmul.mubr.f32.gmra.mrb[0].mxu0 %v5821
      %v5978 = vpop.f32.mrb[0].mxu0
      %v5979 = vadd.f32 %v5845, %v5978
      %v5980 = vpop.f32.mrb[0].mxu0
      %5981 = vmatprep.mubr.f32.mxu0 0.0
      %5982 = vmatmul.mubr.f32.gmra.mrb[0].mxu0 %v5822
      %v5983 = vpop.f32.mrb[0].mxu0
      %v5984 = vadd.f32 %v5845, %v5983
      %v5985 = vpop.f32.mrb[0].mxu0
      %5986 = vmatprep.mubr.f32.mxu0 0.0
      %5987 = vmatmul.mubr.f32.gmra.mrb[0].mxu0 %v5823
      %v5988 = vpop.f32.mrb[0].mxu0
      %v5989 = vadd.f32 %v5845, %v5988
      %v5990 = vpop.f32.mrb[0].mxu0
      %5991 = vdwg.mxu0
      %v5992 = vmax.f32 %v5914, 0.0
      %v5993 = vmax.f32 %v5919, 0.0
      %v5994 = vmax.f32 %v5924, 0.0
      %v5995 = vmax.f32 %v5929, 0.0
      %v5996 = vmax.f32 %v5934, 0.0
      %v5997 = vmax.f32 %v5939, 0.0
      %v5998 = vmax.f32 %v5944, 0.0
      %v5999 = vmax.f32 %v5949, 0.0
      %v6000 = vmax.f32 %v5954, 0.0
      %v6001 = vmax.f32 %v5959, 0.0
      %v6002 = vmax.f32 %v5964, 0.0
      %v6003 = vmax.f32 %v5969, 0.0
      %v6004 = vmax.f32 %v5974, 0.0
      %v6005 = vmax.f32 %v5979, 0.0
      %v6006 = vmax.f32 %v5984, 0.0
      %v6007 = vmax.f32 %v5989, 0.0
      %v6008 = vand.u32 2147483647, %v5914
      %v6009 = vand.u32 2147483647, %v5919
      %v6010 = vand.u32 2147483647, %v5924
      %v6011 = vand.u32 2147483647, %v5929
      %v6012 = vand.u32 2147483647, %v5934
      %v6013 = vand.u32 2147483647, %v5939
      %v6014 = vand.u32 2147483647, %v5944
      %v6015 = vand.u32 2147483647, %v5949
      %v6016 = vand.u32 2147483647, %v5954
      %v6017 = vand.u32 2147483647, %v5959
      %v6018 = vand.u32 2147483647, %v5964
      %v6019 = vand.u32 2147483647, %v5969
      %v6020 = vand.u32 2147483647, %v5974
      %v6021 = vand.u32 2147483647, %v5979
      %v6022 = vand.u32 2147483647, %v5984
      %v6023 = vand.u32 2147483647, %v5989
      %v6024 = vsub.f32 0.0, %v6008
      %v6025 = vsub.f32 0.0, %v6009
      %v6026 = vsub.f32 0.0, %v6010
      %v6027 = vsub.f32 0.0, %v6011
      %v6028 = vsub.f32 0.0, %v6012
      %v6029 = vsub.f32 0.0, %v6013
      %v6030 = vsub.f32 0.0, %v6014
      %v6031 = vsub.f32 0.0, %v6015
      %v6032 = vsub.f32 0.0, %v6016
      %v6033 = vsub.f32 0.0, %v6017
      %v6034 = vsub.f32 0.0, %v6018
      %v6035 = vsub.f32 0.0, %v6019
      %v6036 = vsub.f32 0.0, %v6020
      %v6037 = vsub.f32 0.0, %v6021
      %v6038 = vsub.f32 0.0, %v6022
      %v6039 = vsub.f32 0.0, %v6023
      %v6040 = vmul.f32 %v6024, 1.442695
      %v6041 = vpow.pop %v6040
      %v6042 = vmul.f32 %v6025, 1.442695
      %v6043 = vpow.pop %v6042
      %v6044 = vmul.f32 %v6026, 1.442695
      %v6045 = vpow.pop %v6044
      %v6046 = vmul.f32 %v6027, 1.442695
      %v6047 = vpow.pop %v6046
      %v6048 = vmul.f32 %v6028, 1.442695
      %v6049 = vpow.pop %v6048
      %v6050 = vmul.f32 %v6029, 1.442695
      %v6051 = vpow.pop %v6050
      %v6052 = vmul.f32 %v6030, 1.442695
      %v6053 = vpow.pop %v6052
      %v6054 = vmul.f32 %v6031, 1.442695
      %v6055 = vpow.pop %v6054
      %v6056 = vmul.f32 %v6032, 1.442695
      %v6057 = vpow.pop %v6056
      %v6058 = vmul.f32 %v6033, 1.442695
      %v6059 = vpow.pop %v6058
      %v6060 = vmul.f32 %v6034, 1.442695
      %v6061 = vpow.pop %v6060
      %v6062 = vmul.f32 %v6035, 1.442695
      %v6063 = vpow.pop %v6062
      %v6064 = vmul.f32 %v6036, 1.442695
      %v6065 = vpow.pop %v6064
      %v6066 = vmul.f32 %v6037, 1.442695
      %v6067 = vpow.pop %v6066
      %v6068 = vmul.f32 %v6038, 1.442695
      %v6069 = vpow.pop %v6068
      %v6070 = vmul.f32 %v6039, 1.442695
      %v6071 = vpow.pop %v6070
      %v6072 = vadd.f32 %v6041, 1.0
      %v6073 = vlog2.pop %v6072
      %v6074 = vmul.f32 %v6073, 0.6931472
      %v6075 = vmul.f32 -0.5, %v6041
      %v6076 = vadd.f32 %v6075, 1.0
      %v6077 = vmul.f32 %v6076, %v6041
      %v6078 = vand.u32 2147483647, %v6041
      %vm6079 = vcmp.lt.f32.partialorder %v6078, 0.0004427343
      %v6080 = vsel %vm6079, %v6077, %v6074
      %v6081 = vadd.f32 %v6043, 1.0
      %v6082 = vlog2.pop %v6081
      %v6083 = vmul.f32 %v6082, 0.6931472
      %v6084 = vmul.f32 -0.5, %v6043
      %v6085 = vadd.f32 %v6084, 1.0
      %v6086 = vmul.f32 %v6085, %v6043
      %v6087 = vand.u32 2147483647, %v6043
      %vm6088 = vcmp.lt.f32.partialorder %v6087, 0.0004427343
      %v6089 = vsel %vm6088, %v6086, %v6083
      %v6090 = vadd.f32 %v6045, 1.0
      %v6091 = vlog2.pop %v6090
      %v6092 = vmul.f32 %v6091, 0.6931472
      %v6093 = vmul.f32 -0.5, %v6045
      %v6094 = vadd.f32 %v6093, 1.0
      %v6095 = vmul.f32 %v6094, %v6045
      %v6096 = vand.u32 2147483647, %v6045
      %vm6097 = vcmp.lt.f32.partialorder %v6096, 0.0004427343
      %v6098 = vsel %vm6097, %v6095, %v6092
      %v6099 = vadd.f32 %v6047, 1.0
      %v6100 = vlog2.pop %v6099
      %v6101 = vmul.f32 %v6100, 0.6931472
      %v6102 = vmul.f32 -0.5, %v6047
      %v6103 = vadd.f32 %v6102, 1.0
      %v6104 = vmul.f32 %v6103, %v6047
      %v6105 = vand.u32 2147483647, %v6047
      %vm6106 = vcmp.lt.f32.partialorder %v6105, 0.0004427343
      %v6107 = vsel %vm6106, %v6104, %v6101
      %v6108 = vadd.f32 %v6049, 1.0
      %v6109 = vlog2.pop %v6108
      %v6110 = vmul.f32 %v6109, 0.6931472
      %v6111 = vmul.f32 -0.5, %v6049
      %v6112 = vadd.f32 %v6111, 1.0
      %v6113 = vmul.f32 %v6112, %v6049
      %v6114 = vand.u32 2147483647, %v6049
      %vm6115 = vcmp.lt.f32.partialorder %v6114, 0.0004427343
      %v6116 = vsel %vm6115, %v6113, %v6110
      %v6117 = vadd.f32 %v6051, 1.0
      %v6118 = vlog2.pop %v6117
      %v6119 = vmul.f32 %v6118, 0.6931472
      %v6120 = vmul.f32 -0.5, %v6051
      %v6121 = vadd.f32 %v6120, 1.0
      %v6122 = vmul.f32 %v6121, %v6051
      %v6123 = vand.u32 2147483647, %v6051
      %vm6124 = vcmp.lt.f32.partialorder %v6123, 0.0004427343
      %v6125 = vsel %vm6124, %v6122, %v6119
      %v6126 = vadd.f32 %v6053, 1.0
      %v6127 = vlog2.pop %v6126
      %v6128 = vmul.f32 %v6127, 0.6931472
      %v6129 = vmul.f32 -0.5, %v6053
      %v6130 = vadd.f32 %v6129, 1.0
      %v6131 = vmul.f32 %v6130, %v6053
      %v6132 = vand.u32 2147483647, %v6053
      %vm6133 = vcmp.lt.f32.partialorder %v6132, 0.0004427343
      %v6134 = vsel %vm6133, %v6131, %v6128
      %v6135 = vadd.f32 %v6055, 1.0
      %v6136 = vlog2.pop %v6135
      %v6137 = vmul.f32 %v6136, 0.6931472
      %v6138 = vmul.f32 -0.5, %v6055
      %v6139 = vadd.f32 %v6138, 1.0
      %v6140 = vmul.f32 %v6139, %v6055
      %v6141 = vand.u32 2147483647, %v6055
      %vm6142 = vcmp.lt.f32.partialorder %v6141, 0.0004427343
      %v6143 = vsel %vm6142, %v6140, %v6137
      %v6144 = vadd.f32 %v6057, 1.0
      %v6145 = vlog2.pop %v6144
      %v6146 = vmul.f32 %v6145, 0.6931472
      %v6147 = vmul.f32 -0.5, %v6057
      %v6148 = vadd.f32 %v6147, 1.0
      %v6149 = vmul.f32 %v6148, %v6057
      %v6150 = vand.u32 2147483647, %v6057
      %vm6151 = vcmp.lt.f32.partialorder %v6150, 0.0004427343
      %v6152 = vsel %vm6151, %v6149, %v6146
      %v6153 = vadd.f32 %v6059, 1.0
      %v6154 = vlog2.pop %v6153
      %v6155 = vmul.f32 %v6154, 0.6931472
      %v6156 = vmul.f32 -0.5, %v6059
      %v6157 = vadd.f32 %v6156, 1.0
      %v6158 = vmul.f32 %v6157, %v6059
      %v6159 = vand.u32 2147483647, %v6059
      %vm6160 = vcmp.lt.f32.partialorder %v6159, 0.0004427343
      %v6161 = vsel %vm6160, %v6158, %v6155
      %v6162 = vadd.f32 %v6061, 1.0
      %v6163 = vlog2.pop %v6162
      %v6164 = vmul.f32 %v6163, 0.6931472
      %v6165 = vmul.f32 -0.5, %v6061
      %v6166 = vadd.f32 %v6165, 1.0
      %v6167 = vmul.f32 %v6166, %v6061
      %v6168 = vand.u32 2147483647, %v6061
      %vm6169 = vcmp.lt.f32.partialorder %v6168, 0.0004427343
      %v6170 = vsel %vm6169, %v6167, %v6164
      %v6171 = vadd.f32 %v6063, 1.0
      %v6172 = vlog2.pop %v6171
      %v6173 = vmul.f32 %v6172, 0.6931472
      %v6174 = vmul.f32 -0.5, %v6063
      %v6175 = vadd.f32 %v6174, 1.0
      %v6176 = vmul.f32 %v6175, %v6063
      %v6177 = vand.u32 2147483647, %v6063
      %vm6178 = vcmp.lt.f32.partialorder %v6177, 0.0004427343
      %v6179 = vsel %vm6178, %v6176, %v6173
      %v6180 = vadd.f32 %v6065, 1.0
      %v6181 = vlog2.pop %v6180
      %v6182 = vmul.f32 %v6181, 0.6931472
      %v6183 = vmul.f32 -0.5, %v6065
      %v6184 = vadd.f32 %v6183, 1.0
      %v6185 = vmul.f32 %v6184, %v6065
      %v6186 = vand.u32 2147483647, %v6065
      %vm6187 = vcmp.lt.f32.partialorder %v6186, 0.0004427343
      %v6188 = vsel %vm6187, %v6185, %v6182
      %v6189 = vadd.f32 %v6067, 1.0
      %v6190 = vlog2.pop %v6189
      %v6191 = vmul.f32 %v6190, 0.6931472
      %v6192 = vmul.f32 -0.5, %v6067
      %v6193 = vadd.f32 %v6192, 1.0
      %v6194 = vmul.f32 %v6193, %v6067
      %v6195 = vand.u32 2147483647, %v6067
      %vm6196 = vcmp.lt.f32.partialorder %v6195, 0.0004427343
      %v6197 = vsel %vm6196, %v6194, %v6191
      %v6198 = vadd.f32 %v6069, 1.0
      %v6199 = vlog2.pop %v6198
      %v6200 = vmul.f32 %v6199, 0.6931472
      %v6201 = vmul.f32 -0.5, %v6069
      %v6202 = vadd.f32 %v6201, 1.0
      %v6203 = vmul.f32 %v6202, %v6069
      %v6204 = vand.u32 2147483647, %v6069
      %vm6205 = vcmp.lt.f32.partialorder %v6204, 0.0004427343
      %v6206 = vsel %vm6205, %v6203, %v6200
      %v6207 = vadd.f32 %v6071, 1.0
      %v6208 = vlog2.pop %v6207
      %v6209 = vmul.f32 %v6208, 0.6931472
      %v6210 = vmul.f32 -0.5, %v6071
      %v6211 = vadd.f32 %v6210, 1.0
      %v6212 = vmul.f32 %v6211, %v6071
      %v6213 = vand.u32 2147483647, %v6071
      %vm6214 = vcmp.lt.f32.partialorder %v6213, 0.0004427343
      %v6215 = vsel %vm6214, %v6212, %v6209
      %v6216 = vadd.f32 %v5992, %v6080
      %v6217 = vadd.f32 %v5993, %v6089
      %v6218 = vadd.f32 %v5994, %v6098
      %v6219 = vadd.f32 %v5995, %v6107
      %v6220 = vadd.f32 %v5996, %v6116
      %v6221 = vadd.f32 %v5997, %v6125
      %v6222 = vadd.f32 %v5998, %v6134
      %v6223 = vadd.f32 %v5999, %v6143
      %v6224 = vadd.f32 %v6000, %v6152
      %v6225 = vadd.f32 %v6001, %v6161
      %v6226 = vadd.f32 %v6002, %v6170
      %v6227 = vadd.f32 %v6003, %v6179
      %v6228 = vadd.f32 %v6004, %v6188
      %v6229 = vadd.f32 %v6005, %v6197
      %v6230 = vadd.f32 %v6006, %v6206
      %v6231 = vadd.f32 %v6007, %v6215
      %v6232 = vsub.f32 %v6216, 0.6931472
      %v6233 = vsub.f32 %v6217, 0.6931472
      %v6234 = vsub.f32 %v6218, 0.6931472
      %v6235 = vsub.f32 %v6219, 0.6931472
      %v6236 = vsub.f32 %v6220, 0.6931472
      %v6237 = vsub.f32 %v6221, 0.6931472
      %v6238 = vsub.f32 %v6222, 0.6931472
      %v6239 = vsub.f32 %v6223, 0.6931472
      %v6240 = vsub.f32 %v6224, 0.6931472
      %v6241 = vsub.f32 %v6225, 0.6931472
      %v6242 = vsub.f32 %v6226, 0.6931472
      %v6243 = vsub.f32 %v6227, 0.6931472
      %v6244 = vsub.f32 %v6228, 0.6931472
      %v6245 = vsub.f32 %v6229, 0.6931472
      %v6246 = vsub.f32 %v6230, 0.6931472
      %v6247 = vsub.f32 %v6231, 0.6931472
      %v6248 = vld [vmem:[#allocation16] sm:$0xff]
      %v6249 = vld [vmem:[#allocation16 + $0x8] sm:$0xff]
      %v6250 = vld [vmem:[#allocation16 + $0x10] sm:$0xff]
      %v6251 = vld [vmem:[#allocation16 + $0x18] sm:$0xff]
      %v6252 = vld [vmem:[#allocation16 + $0x20] sm:$0xff]
      %v6253 = vld [vmem:[#allocation16 + $0x28] sm:$0xff]
      %v6254 = vld [vmem:[#allocation16 + $0x30] sm:$0xff]
      %v6255 = vld [vmem:[#allocation16 + $0x38] sm:$0xff]
      %v6256 = vld [vmem:[#allocation16 + $0x40] sm:$0xff]
      %v6257 = vld [vmem:[#allocation16 + $0x48] sm:$0xff]
      %v6258 = vld [vmem:[#allocation16 + $0x50] sm:$0xff]
      %v6259 = vld [vmem:[#allocation16 + $0x58] sm:$0xff]
      %v6260 = vld [vmem:[#allocation16 + $0x60] sm:$0xff]
      %v6261 = vld [vmem:[#allocation16 + $0x68] sm:$0xff]
      %v6262 = vld [vmem:[#allocation16 + $0x70] sm:$0xff]
      %v6263 = vld [vmem:[#allocation16 + $0x78] sm:$0xff]
      %v6264 = vld [vmem:[%s13] sm:$0x1]
      %v6266 = vlaneseq
      %v6267 = vshrl.u32 %v6266, 7
      %v6268 = vsub.s32 0, %v6267
      %v6269 = vrot.slane %v6264, %v6268
      %6271 = vmatprep.subr.mxu0 0.0
      %6272 = vmatpush1.msra.mxu0 %v6248
      %6273 = vmatprep.subr.mxu0 0.0
      %6274 = vmatpush1.msra.mxu0 %v6249
      %6275 = vmatprep.subr.mxu0 0.0
      %6276 = vmatpush1.msra.mxu0 %v6250
      %6277 = vmatprep.subr.mxu0 0.0
      %6278 = vmatpush1.msra.mxu0 %v6251
      %6279 = vmatprep.subr.mxu0 0.0
      %6280 = vmatpush1.msra.mxu0 %v6252
      %6281 = vmatprep.subr.mxu0 0.0
      %6282 = vmatpush1.msra.mxu0 %v6253
      %6283 = vmatprep.subr.mxu0 0.0
      %6284 = vmatpush1.msra.mxu0 %v6254
      %6285 = vmatprep.subr.mxu0 0.0
      %6286 = vmatpush1.msra.mxu0 %v6255
      %6287 = vmatprep.subr.mxu0 0.0
      %6288 = vmatpush1.msra.mxu0 %v6256
      %6289 = vmatprep.subr.mxu0 0.0
      %6290 = vmatpush1.msra.mxu0 %v6257
      %6291 = vmatprep.subr.mxu0 0.0
      %6292 = vmatpush1.msra.mxu0 %v6258
      %6293 = vmatprep.subr.mxu0 0.0
      %6294 = vmatpush1.msra.mxu0 %v6259
      %6295 = vmatprep.subr.mxu0 0.0
      %6296 = vmatpush1.msra.mxu0 %v6260
      %6297 = vmatprep.subr.mxu0 0.0
      %6298 = vmatpush1.msra.mxu0 %v6261
      %6299 = vmatprep.subr.mxu0 0.0
      %6300 = vmatpush1.msra.mxu0 %v6262
      %6301 = vmatprep.subr.mxu0 0.0
      %6302 = vmatpush1.msra.mxu0 %v6263
      %6303 = vmatprep.subr.mxu0 0.0
      %6304 = vmatpush1.msra.mxu0 0.0
      %6305 = vmatprep.subr.mxu0 0.0
      %6306 = vmatpush1.msra.mxu0 0.0
      %6307 = vmatprep.subr.mxu0 0.0
      %6308 = vmatpush1.msra.mxu0 0.0
      %6309 = vmatprep.subr.mxu0 0.0
      %6310 = vmatpush1.msra.mxu0 0.0
      %6311 = vmatprep.subr.mxu0 0.0
      %6312 = vmatpush1.msra.mxu0 0.0
      %6313 = vmatprep.subr.mxu0 0.0
      %6314 = vmatpush1.msra.mxu0 0.0
      %6315 = vmatprep.subr.mxu0 0.0
      %6316 = vmatpush1.msra.mxu0 0.0
      %6317 = vmatprep.subr.mxu0 0.0
      %6318 = vmatpush1.msra.mxu0 0.0
      %6319 = vmatprep.subr.mxu0 0.0
      %6320 = vmatpush1.msra.mxu0 0.0
      %6321 = vmatprep.subr.mxu0 0.0
      %6322 = vmatpush1.msra.mxu0 0.0
      %6323 = vmatprep.subr.mxu0 0.0
      %6324 = vmatpush1.msra.mxu0 0.0
      %6325 = vmatprep.subr.mxu0 0.0
      %6326 = vmatpush1.msra.mxu0 0.0
      %6327 = vmatprep.subr.mxu0 0.0
      %6328 = vmatpush1.msra.mxu0 0.0
      %6329 = vmatprep.subr.mxu0 0.0
      %6330 = vmatpush1.msra.mxu0 0.0
      %6331 = vmatprep.subr.mxu0 0.0
      %6332 = vmatpush1.msra.mxu0 0.0
      %6333 = vmatprep.subr.mxu0 0.0
      %6334 = vmatpush1.msra.mxu0 0.0
      %6335 = vmatprep.mubr.f32.mxu0 0.0
      %6336 = vmatmul.mubr.f32.gmra.mrb[0].mxu0 %v6232
      %v6337 = vpop.f32.mrb[0].mxu0
      %v6338 = vadd.f32 %v6269, %v6337
      %v6339 = vpop.f32.mrb[0].mxu0
      %6340 = vmatprep.mubr.f32.mxu0 0.0
      %6341 = vmatmul.mubr.f32.gmra.mrb[0].mxu0 %v6233
      %v6342 = vpop.f32.mrb[0].mxu0
      %v6343 = vadd.f32 %v6269, %v6342
      %v6344 = vpop.f32.mrb[0].mxu0
      %6345 = vmatprep.mubr.f32.mxu0 0.0
      %6346 = vmatmul.mubr.f32.gmra.mrb[0].mxu0 %v6234
      %v6347 = vpop.f32.mrb[0].mxu0
      %v6348 = vadd.f32 %v6269, %v6347
      %v6349 = vpop.f32.mrb[0].mxu0
      %6350 = vmatprep.mubr.f32.mxu0 0.0
      %6351 = vmatmul.mubr.f32.gmra.mrb[0].mxu0 %v6235
      %v6352 = vpop.f32.mrb[0].mxu0
      %v6353 = vadd.f32 %v6269, %v6352
      %v6354 = vpop.f32.mrb[0].mxu0
      %6355 = vmatprep.mubr.f32.mxu0 0.0
      %6356 = vmatmul.mubr.f32.gmra.mrb[0].mxu0 %v6236
      %v6357 = vpop.f32.mrb[0].mxu0
      %v6358 = vadd.f32 %v6269, %v6357
      %v6359 = vpop.f32.mrb[0].mxu0
      %6360 = vmatprep.mubr.f32.mxu0 0.0
      %6361 = vmatmul.mubr.f32.gmra.mrb[0].mxu0 %v6237
      %v6362 = vpop.f32.mrb[0].mxu0
      %v6363 = vadd.f32 %v6269, %v6362
      %v6364 = vpop.f32.mrb[0].mxu0
      %6365 = vmatprep.mubr.f32.mxu0 0.0
      %6366 = vmatmul.mubr.f32.gmra.mrb[0].mxu0 %v6238
      %v6367 = vpop.f32.mrb[0].mxu0
      %v6368 = vadd.f32 %v6269, %v6367
      %v6369 = vpop.f32.mrb[0].mxu0
      %6370 = vmatprep.mubr.f32.mxu0 0.0
      %6371 = vmatmul.mubr.f32.gmra.mrb[0].mxu0 %v6239
      %v6372 = vpop.f32.mrb[0].mxu0
      %v6373 = vadd.f32 %v6269, %v6372
      %v6374 = vpop.f32.mrb[0].mxu0
      %6375 = vmatprep.mubr.f32.mxu0 0.0
      %6376 = vmatmul.mubr.f32.gmra.mrb[0].mxu0 %v6240
      %v6377 = vpop.f32.mrb[0].mxu0
      %v6378 = vadd.f32 %v6269, %v6377
      %v6379 = vpop.f32.mrb[0].mxu0
      %6380 = vmatprep.mubr.f32.mxu0 0.0
      %6381 = vmatmul.mubr.f32.gmra.mrb[0].mxu0 %v6241
      %v6382 = vpop.f32.mrb[0].mxu0
      %v6383 = vadd.f32 %v6269, %v6382
      %v6384 = vpop.f32.mrb[0].mxu0
      %6385 = vmatprep.mubr.f32.mxu0 0.0
      %6386 = vmatmul.mubr.f32.gmra.mrb[0].mxu0 %v6242
      %v6387 = vpop.f32.mrb[0].mxu0
      %v6388 = vadd.f32 %v6269, %v6387
      %v6389 = vpop.f32.mrb[0].mxu0
      %6390 = vmatprep.mubr.f32.mxu0 0.0
      %6391 = vmatmul.mubr.f32.gmra.mrb[0].mxu0 %v6243
      %v6392 = vpop.f32.mrb[0].mxu0
      %v6393 = vadd.f32 %v6269, %v6392
      %v6394 = vpop.f32.mrb[0].mxu0
      %6395 = vmatprep.mubr.f32.mxu0 0.0
      %6396 = vmatmul.mubr.f32.gmra.mrb[0].mxu0 %v6244
      %v6397 = vpop.f32.mrb[0].mxu0
      %v6398 = vadd.f32 %v6269, %v6397
      %v6399 = vpop.f32.mrb[0].mxu0
      %6400 = vmatprep.mubr.f32.mxu0 0.0
      %6401 = vmatmul.mubr.f32.gmra.mrb[0].mxu0 %v6245
      %v6402 = vpop.f32.mrb[0].mxu0
      %v6403 = vadd.f32 %v6269, %v6402
      %v6404 = vpop.f32.mrb[0].mxu0
      %6405 = vmatprep.mubr.f32.mxu0 0.0
      %6406 = vmatmul.mubr.f32.gmra.mrb[0].mxu0 %v6246
      %v6407 = vpop.f32.mrb[0].mxu0
      %v6408 = vadd.f32 %v6269, %v6407
      %v6409 = vpop.f32.mrb[0].mxu0
      %6410 = vmatprep.mubr.f32.mxu0 0.0
      %6411 = vmatmul.mubr.f32.gmra.mrb[0].mxu0 %v6247
      %v6412 = vpop.f32.mrb[0].mxu0
      %v6413 = vadd.f32 %v6269, %v6412
      %v6414 = vpop.f32.mrb[0].mxu0
      %6415 = vdwg.mxu0
      %6416 = vst [vmem:[#allocation18] sm:$0xff] %v6338
      %6417 = vst [vmem:[#allocation18 + $0x8] sm:$0xff] %v6343
      %6418 = vst [vmem:[#allocation18 + $0x10] sm:$0xff] %v6348
      %6419 = vst [vmem:[#allocation18 + $0x18] sm:$0xff] %v6353
      %6420 = vst [vmem:[#allocation18 + $0x20] sm:$0xff] %v6358
      %6421 = vst [vmem:[#allocation18 + $0x28] sm:$0xff] %v6363
      %6422 = vst [vmem:[#allocation18 + $0x30] sm:$0xff] %v6368
      %6423 = vst [vmem:[#allocation18 + $0x38] sm:$0xff] %v6373
      %6424 = vst [vmem:[#allocation18 + $0x40] sm:$0xff] %v6378
      %6425 = vst [vmem:[#allocation18 + $0x48] sm:$0xff] %v6383
      %6426 = vst [vmem:[#allocation18 + $0x50] sm:$0xff] %v6388
      %6427 = vst [vmem:[#allocation18 + $0x58] sm:$0xff] %v6393
      %6428 = vst [vmem:[#allocation18 + $0x60] sm:$0xff] %v6398
      %6429 = vst [vmem:[#allocation18 + $0x68] sm:$0xff] %v6403
      %6430 = vst [vmem:[#allocation18 + $0x70] sm:$0xff] %v6408
      %6431 = vst [vmem:[#allocation18 + $0x78] sm:$0xff] %v6413
    $region97: #{tpu_custom_call.1} parent=1 // pred_fallthru
      _
    // Predicated region
    $region98: #{tpu_custom_call.1} parent=1 // pred_check
      _
    $region99: #{tpu_custom_call.1} parent=1 // pred_check_branch
      %6433 = sbr.rel (0) target = $region101
    $region100: #{tpu_custom_call.1} parent=1 // pred_region
      %s6435 = ssub.s32 2048, 2048
      %6436 = vsyncadd [#allocation6], %s6435
      %s6437 = sshll.u32 [#allocation18], 4
      %s6438 = int_to_ptr.vmem [resolvable:$true] %s6437
      %6443 = dma.vmem_to_hbm [thread:$0]  %s6438, 2048, %s14, [#allocation6], 128, 128, 8
    $region101: #{tpu_custom_call.1} parent=1 // pred_fallthru
      _
    // Predicated region
    $region102: #{tpu_custom_call.1} parent=1 // pred_check
      _
    $region103: #{tpu_custom_call.1} parent=1 // pred_check_branch
      %6445 = sbr.rel (0) target = $region105
    $region104: #{tpu_custom_call.1} parent=1 // pred_region
      %6446 = dma.done [#allocation6], 2048
    $region105: #{tpu_custom_call.1} parent=1 // pred_fallthru
      _
    %6447 = vsyncpa [#allocation5], 1
    %6448 = vsyncpa [#allocation8], 1
    %6449 = vsyncpa [#allocation11], 1
    %6450 = vsyncpa [#allocation14], 1
    %6451 = vsyncpa [#allocation17], 1
    %6452 = vsyncpa [#allocation6], 1

</llo_original>
